<compile_context>
chip_gen: v7x
topology: tpu7x:2x2x1
jax: 0.10.0
libtpu: 0.0.40
codegen_flags: <defaults>
</compile_context>

<pallas_src>
import functools

import jax
import jax.numpy as jnp
from jax import lax
from jax.experimental import pallas as pl
from jax.experimental.pallas import tpu as pltpu

KW = 4        # kernel size
PADW = 1      # padding
SLOPE = 0.2   # LeakyReLU negative slope
EPS = 1e-5    # BatchNorm eps
LANE = 128    # TPU lane width


# ----------------------------------------------------------------------------
# Tile selection helpers
# ----------------------------------------------------------------------------
def _ceil_to(x, m):
    return ((x + m - 1) // m) * m


def _pick_tm(m, cap=256):
    # M tiles may be ragged (Pallas masks the tail rows on store); 256 is a safe
    # default across v5e/v6e/v7x (v6e could go 512 with its 128 MiB VMEM).
    return cap if m >= cap else m


def _pick_tk(k, cap=1024):
    # K is the reduction axis: the tile must divide K exactly (no masking of
    # garbage contributions into the accumulator).
    for tk in (1024, 512, 256, 128):
        if tk <= cap and k % tk == 0:
            return tk
    return k


def _pick_tn(n_padded, cap=256):
    for tn in (256, 128):
        if tn <= cap and n_padded % tn == 0:
            return tn
    return n_padded


# ----------------------------------------------------------------------------
# Pallas kernels
# ----------------------------------------------------------------------------
def _gemm_bias_act_kernel(a_ref, b_ref, bias_ref, o_ref, acc_ref, *, apply_act,
                          slope):
    """One (M,N) tile of Y = A @ B + bias (+ optional LeakyReLU), K-tiled."""
    k = pl.program_id(2)

    @pl.when(k == 0)
    def _():
        acc_ref[...] = jnp.zeros_like(acc_ref)

    acc_ref[...] += jnp.dot(a_ref[...], b_ref[...],
                            preferred_element_type=jnp.float32)

    @pl.when(k == pl.num_programs(2) - 1)
    def _():
        out = acc_ref[...] + bias_ref[...]       # (1, TN) broadcasts over rows
        if apply_act:
            out = jnp.where(out >= 0, out, slope * out)
        o_ref[...] = out.astype(o_ref.dtype)


def _bn_stats_kernel(y_ref, sum_ref, ssq_ref, *, tm, m_total):
    """Pass 1: accumulate per-channel sum and sum-of-squares over M tiles."""
    i = pl.program_id(0)

    @pl.when(i == 0)
    def _():
        sum_ref[...] = jnp.zeros_like(sum_ref)
        ssq_ref[...] = jnp.zeros_like(ssq_ref)

    y = y_ref[...].astype(jnp.float32)
    # Mask rows past the end of the (possibly ragged) last tile.
    rows = lax.broadcasted_iota(jnp.int32, y.shape, 0)
    y = jnp.where(rows < (m_total - i * tm), y, 0.0)
    sum_ref[...] += jnp.sum(y, axis=0, keepdims=True)
    ssq_ref[...] += jnp.sum(y * y, axis=0, keepdims=True)


def _bn_apply_kernel(y_ref, scale_ref, shift_ref, o_ref, *, apply_act, slope):
    """Pass 2: out = y * scale + shift (+ optional LeakyReLU), tiled over M."""
    out = y_ref[...].astype(jnp.float32) * scale_ref[...] + shift_ref[...]
    if apply_act:
        out = jnp.where(out >= 0, out, slope * out)
    o_ref[...] = out.astype(o_ref.dtype)


# ----------------------------------------------------------------------------
# Pallas wrappers
# ----------------------------------------------------------------------------
def gemm_bias_act(a, b, bias, *, apply_act, out_dtype):
    """Y = a @ b + bias (+ LeakyReLU).

    a: (M, K) bf16, b: (K, Np) bf16 with Np a multiple of 128 (lane-dense),
    bias: (1, Np) f32.  K/N tiled; f32 VMEM accumulator.
    """
    M, K = a.shape
    _, Np = b.shape
    TM = _pick_tm(M)
    TK = _pick_tk(K)
    TN = _pick_tn(Np)
    grid = (pl.cdiv(M, TM), Np // TN, K // TK)

    return pl.pallas_call(
        functools.partial(_gemm_bias_act_kernel, apply_act=apply_act,
                          slope=SLOPE),
        out_shape=jax.ShapeDtypeStruct((M, Np), out_dtype),
        grid=grid,
        in_specs=[
            pl.BlockSpec((TM, TK), lambda i, j, k: (i, k)),
            pl.BlockSpec((TK, TN), lambda i, j, k: (k, j)),
            pl.BlockSpec((1, TN), lambda i, j, k: (0, j)),
        ],
        out_specs=pl.BlockSpec((TM, TN), lambda i, j, k: (i, j)),
        scratch_shapes=[pltpu.VMEM((TM, TN), jnp.float32)],
        compiler_params=pltpu.CompilerParams(
            dimension_semantics=("parallel", "parallel", "arbitrary")),
    )(a, b, bias)


def bn_leaky(y, gamma, beta, *, apply_act, out_dtype):
    """Training-mode BatchNorm (+ LeakyReLU) over (M, C), tiled two-pass."""
    M, C = y.shape
    TM = 512 if M >= 512 else M
    grid = (pl.cdiv(M, TM),)

    s, ssq = pl.pallas_call(
        functools.partial(_bn_stats_kernel, tm=TM, m_total=M),
        out_shape=(jax.ShapeDtypeStruct((1, C), jnp.float32),
                   jax.ShapeDtypeStruct((1, C), jnp.float32)),
        grid=grid,
        in_specs=[pl.BlockSpec((TM, C), lambda i: (i, 0))],
        out_specs=(pl.BlockSpec((1, C), lambda i: (0, 0)),
                   pl.BlockSpec((1, C), lambda i: (0, 0))),
        compiler_params=pltpu.CompilerParams(
            dimension_semantics=("arbitrary",)),
    )(y)

    # Tiny (1, C) math in plain JAX between the two passes.
    mean = s / M
    var = jnp.maximum(ssq / M - mean * mean, 0.0)        # biased var (PyTorch)
    inv = lax.rsqrt(var + EPS)
    scale = gamma.reshape(1, C) * inv
    shift = beta.reshape(1, C) - mean * scale

    return pl.pallas_call(
        functools.partial(_bn_apply_kernel, apply_act=apply_act, slope=SLOPE),
        out_shape=jax.ShapeDtypeStruct((M, C), out_dtype),
        grid=grid,
        in_specs=[
            pl.BlockSpec((TM, C), lambda i: (i, 0)),
            pl.BlockSpec((1, C), lambda i: (0, 0)),
            pl.BlockSpec((1, C), lambda i: (0, 0)),
        ],
        out_specs=pl.BlockSpec((TM, C), lambda i: (i, 0)),
        compiler_params=pltpu.CompilerParams(
            dimension_semantics=("parallel",)),
    )(y, scale, shift)


# ----------------------------------------------------------------------------
# im2col glue (plain JAX: pad + strided slicing + reshape, no compute)
# ----------------------------------------------------------------------------
def im2col_3d(x_ndhwc, k, stride, pad):
    x = jnp.pad(x_ndhwc, ((0, 0), (pad, pad), (pad, pad), (pad, pad), (0, 0)))
    N, Dp, Hp, Wp, C = x.shape
    Do = (Dp - k) // stride + 1
    Ho = (Hp - k) // stride + 1
    Wo = (Wp - k) // stride + 1
    cols = []
    for kd in range(k):
        for kh in range(k):
            for kw in range(k):
                sl = x[:, kd:kd + stride * Do:stride,
                          kh:kh + stride * Ho:stride,
                          kw:kw + stride * Wo:stride, :]
                cols.append(sl)
    patches = jnp.stack(cols, axis=4)                     # (N,Do,Ho,Wo,k^3,C)
    a = patches.reshape(N * Do * Ho * Wo, k * k * k * C)  # K ordered (kd,kh,kw,C)
    return a, (N, Do, Ho, Wo)


# ----------------------------------------------------------------------------
# Module config / parameters (mirrors NLayerDiscriminator3D.__init__)
# ----------------------------------------------------------------------------
def build_configs(input_nc=3, ndf=64, n_layers=3):
    cfgs = [dict(cin=input_nc, cout=ndf, stride=2, bias=True, bn=False, act=True)]
    nf_mult = 1
    for n in range(1, n_layers):
        nf_prev, nf_mult = nf_mult, min(2 ** n, 8)
        cfgs.append(dict(cin=ndf * nf_prev, cout=ndf * nf_mult,
                         stride=2, bias=False, bn=True, act=True))
    nf_prev, nf_mult = nf_mult, min(2 ** n_layers, 8)
    cfgs.append(dict(cin=ndf * nf_prev, cout=ndf * nf_mult,
                     stride=1, bias=False, bn=True, act=True))
    cfgs.append(dict(cin=ndf * nf_mult, cout=1,
                     stride=1, bias=True, bn=False, act=False))
    return cfgs


def init_params(cfgs, key):
    params = []
    for cfg in cfgs:
        key, k1, k2, k3, k4 = jax.random.split(key, 5)
        w = 0.05 * jax.random.normal(k1, (cfg["cout"], cfg["cin"], KW, KW, KW),
                                     jnp.float32)
        if cfg["bias"]:
            b = 0.05 * jax.random.normal(k2, (cfg["cout"],), jnp.float32)
        else:
            b = jnp.zeros((cfg["cout"],), jnp.float32)
        if cfg["bn"]:
            gamma = 1.0 + 0.1 * jax.random.normal(k3, (cfg["cout"],), jnp.float32)
            beta = 0.1 * jax.random.normal(k4, (cfg["cout"],), jnp.float32)
        else:
            gamma = beta = None
        params.append(dict(w=w, b=b, gamma=gamma, beta=beta))
    return params


# ----------------------------------------------------------------------------
# Forward passes
# ----------------------------------------------------------------------------
def forward_pallas(x_ncdhw, params, cfgs):
    # NCDHW -> NDHWC; activations flow in bf16 (GEMM operands are bf16, all
    # accumulation / BN statistics in f32).
    x = jnp.transpose(x_ncdhw, (0, 2, 3, 4, 1)).astype(jnp.bfloat16)
    n_total = len(cfgs)
    for li, (cfg, p) in enumerate(zip(cfgs, params)):
        cin, cout = cfg["cin"], cfg["cout"]
        a, (N, Do, Ho, Wo) = im2col_3d(x, KW, cfg["stride"], PADW)

        # Lane-dense output: pad Cout up to a multiple of 128, slice later.
        cout_p = _ceil_to(cout, LANE)
        # (Cout,Cin,kd,kh,kw) -> (kd,kh,kw,Cin,Cout) -> (K, Cout) to match im2col
        wmat = jnp.transpose(p["w"], (2, 3, 4, 1, 0)).reshape(
            KW * KW * KW * cin, cout)
        wmat = jnp.pad(wmat, ((0, 0), (0, cout_p - cout))).astype(jnp.bfloat16)
        bias = jnp.pad(p["b"], (0, cout_p - cout)).reshape(1, cout_p)
        bias = bias.astype(jnp.float32)

        is_last = li == n_total - 1
        out_dtype = jnp.float32 if is_last else jnp.bfloat16

        y = gemm_bias_act(a, wmat, bias,
                          apply_act=(cfg["act"] and not cfg["bn"]),
                          out_dtype=out_dtype)
        if cfg["bn"]:
            gamma = jnp.pad(p["gamma"], (0, cout_p - cout), constant_values=1.0)
            beta = jnp.pad(p["beta"], (0, cout_p - cout))
            y = bn_leaky(y, gamma, beta, apply_act=cfg["act"],
                         out_dtype=out_dtype)

        x = y[:, :cout].reshape(N, Do, Ho, Wo, cout)
    return jnp.transpose(x, (0, 4, 1, 2, 3)).astype(jnp.float32)   # -> NCDHW


def forward_reference(x, cfgs, params):
    """Pure-JAX f32 reference (lax conv) for correctness checking."""
    for cfg, p in zip(cfgs, params):
        x = lax.conv_general_dilated(
            x, p["w"], (cfg["stride"],) * 3, [(PADW, PADW)] * 3,
            dimension_numbers=("NCDHW", "OIDHW", "NCDHW"))
        x = x + p["b"].reshape(1, -1, 1, 1, 1)
        if cfg["bn"]:
            mean = jnp.mean(x, axis=(0, 2, 3, 4), keepdims=True)
            var = jnp.var(x, axis=(0, 2, 3, 4), keepdims=True)
            x = ((x - mean) / jnp.sqrt(var + EPS)
                 * p["gamma"].reshape(1, -1, 1, 1, 1)
                 + p["beta"].reshape(1, -1, 1, 1, 1))
        if cfg["act"]:
            x = jnp.where(x >= 0, x, SLOPE * x)
    return x


# ----------------------------------------------------------------------------
if __name__ == "__main__":
    # Spatial must survive 3 stride-2 convs + two stride-1 k=4 p=1 convs:
    # 32 -> 16 -> 8 -> 4 -> 3 -> 2.
    key = jax.random.PRNGKey(0)
    k_x, k_p = jax.random.split(key)
    N, C_in, D, H, W = 2, 3, 32, 32, 32
    ndf, n_layers = 8, 3

    x = jax.random.normal(k_x, (N, C_in, D, H, W), jnp.float32)
    cfgs = build_configs(input_nc=C_in, ndf=ndf, n_layers=n_layers)
    params = init_params(cfgs, k_p)

    fwd = jax.jit(functools.partial(forward_pallas, cfgs=cfgs))
    out = jax.block_until_ready(fwd(x, params))

    ref = jax.block_until_ready(forward_reference(x, cfgs, params))
    assert out.shape == ref.shape, (out.shape, ref.shape)
    # Kernel runs bf16 operands / bf16 inter-layer activations (f32 accumulation
    # and BN stats) vs. a pure-f32 reference across 5 chained layers, hence the
    # relaxed tolerance.
    assert jnp.allclose(out, ref, rtol=5e-2, atol=5e-2), (
        float(jnp.max(jnp.abs(out - ref))))

    print("KERNEL_OK")
</pallas_src>

<mosaic_0001>
module attributes {stable_mosaic.version = 11 : i64} {
  func.func @_gemm_bias_act_kernel(%arg0: i32, %arg1: i32, %arg2: i32, %arg3: memref<256x192xbf16, #tpu.memory_space<vmem>>, %arg4: memref<192x128xbf16, #tpu.memory_space<vmem>>, %arg5: memref<1x128xf32, #tpu.memory_space<vmem>>, %arg6: memref<256x128xbf16, #tpu.memory_space<vmem>>, %arg7: memref<256x128xf32, #tpu.memory_space<vmem>>) attributes {dimension_semantics = [#tpu.dimension_semantics<parallel>, #tpu.dimension_semantics<parallel>, #tpu.dimension_semantics<arbitrary>], iteration_bounds = array<i64: 32, 1, 1>, scalar_prefetch = 0 : i64, scratch_operands = 1 : i64, tpu.core_type = #tpu.core_type<tc>, window_params = [{transform_indices = @transform_0, window_bounds = array<i64: 256, 192>}, {transform_indices = @transform_1, window_bounds = array<i64: 192, 128>}, {transform_indices = @transform_2, window_bounds = array<i64: 1, 128>}, {transform_indices = @transform_3, window_bounds = array<i64: 256, 128>}]} {
    %c0_i32 = arith.constant 0 : i32
    %0 = arith.cmpi eq, %arg2, %c0_i32 : i32
    %1 = arith.extui %0 : i1 to i32
    %c0_i32_0 = arith.constant 0 : i32
    %2 = arith.cmpi ne, %1, %c0_i32_0 : i32
    scf.if %2 {
      %cst_10 = arith.constant 0.000000e+00 : f32
      %12 = vector.broadcast %cst_10 : f32 to vector<256x128xf32>
      %c0_11 = arith.constant 0 : index
      %c0_12 = arith.constant 0 : index
      %13 = vector.load %arg7[%c0_11, %c0_12] : memref<256x128xf32, #tpu.memory_space<vmem>>, vector<256x128xf32>
      tpu.vector_store %arg7[%c0_11, %c0_12], %12 {strides = array<i32>} : memref<256x128xf32, #tpu.memory_space<vmem>>, vector<256x128xf32>,
    } else {
    }
    %c0 = arith.constant 0 : index
    %c0_1 = arith.constant 0 : index
    %3 = vector.load %arg7[%c0, %c0_1] : memref<256x128xf32, #tpu.memory_space<vmem>>, vector<256x128xf32>
    %c0_2 = arith.constant 0 : index
    %c0_3 = arith.constant 0 : index
    %4 = vector.load %arg3[%c0_2, %c0_3] : memref<256x192xbf16, #tpu.memory_space<vmem>>, vector<256x192xbf16>
    %c0_4 = arith.constant 0 : index
    %c0_5 = arith.constant 0 : index
    %5 = vector.load %arg4[%c0_4, %c0_5] : memref<192x128xbf16, #tpu.memory_space<vmem>>, vector<192x128xbf16>
    %cst = arith.constant dense<0.000000e+00> : vector<256x128xf32>
    %6 = tpu.matmul %4, %5, %cst {dimension_numbers = #tpu.dot_dimension_numbers<[1], [0], [0], [1], [0, 0, 1, 1], [], []>} : vector<256x192xbf16>, vector<192x128xbf16>, vector<256x128xf32> -> vector<256x128xf32>
    %7 = arith.addf %3, %6 : vector<256x128xf32>
    %c0_6 = arith.constant 0 : index
    %c0_7 = arith.constant 0 : index
    %8 = vector.load %arg7[%c0_6, %c0_7] : memref<256x128xf32, #tpu.memory_space<vmem>>, vector<256x128xf32>
    tpu.vector_store %arg7[%c0_6, %c0_7], %7 {strides = array<i32>} : memref<256x128xf32, #tpu.memory_space<vmem>>, vector<256x128xf32>,
    %c0_i32_8 = arith.constant 0 : i32
    %9 = arith.cmpi eq, %arg2, %c0_i32_8 : i32
    %10 = arith.extui %9 : i1 to i32
    %c0_i32_9 = arith.constant 0 : i32
    %11 = arith.cmpi ne, %10, %c0_i32_9 : i32
    scf.if %11 {
      %c0_10 = arith.constant 0 : index
      %c0_11 = arith.constant 0 : index
      %12 = vector.load %arg7[%c0_10, %c0_11] : memref<256x128xf32, #tpu.memory_space<vmem>>, vector<256x128xf32>
      %c0_12 = arith.constant 0 : index
      %c0_13 = arith.constant 0 : index
      %13 = vector.load %arg5[%c0_12, %c0_13] : memref<1x128xf32, #tpu.memory_space<vmem>>, vector<1x128xf32>
      %14 = vector.broadcast %13 : vector<1x128xf32> to vector<256x128xf32>
      %15 = arith.addf %12, %14 : vector<256x128xf32>
      %cst_14 = arith.constant 0.000000e+00 : f32
      %16 = vector.broadcast %cst_14 : f32 to vector<256x128xf32>
      %17 = arith.cmpf oge, %15, %16 : vector<256x128xf32>
      %cst_15 = arith.constant 2.000000e-01 : f32
      %18 = vector.broadcast %cst_15 : f32 to vector<256x128xf32>
      %19 = arith.mulf %18, %15 : vector<256x128xf32>
      %20 = arith.select %17, %15, %19 : vector<256x128xi1>, vector<256x128xf32>
      %21 = arith.truncf %20 : vector<256x128xf32> to vector<256x128xbf16>
      %c0_16 = arith.constant 0 : index
      %c0_17 = arith.constant 0 : index
      %22 = vector.load %arg6[%c0_16, %c0_17] : memref<256x128xbf16, #tpu.memory_space<vmem>>, vector<256x128xbf16>
      tpu.vector_store %arg6[%c0_16, %c0_17], %21 {strides = array<i32>} : memref<256x128xbf16, #tpu.memory_space<vmem>>, vector<256x128xbf16>,
    } else {
    }
    return
  }
  func.func @transform_0(%arg0: i32, %arg1: i32, %arg2: i32) -> (i32, i32) {
    %c0_i32 = arith.constant 0 : i32
    return %arg0, %arg2 : i32, i32
  }
  func.func @transform_1(%arg0: i32, %arg1: i32, %arg2: i32) -> (i32, i32) {
    %c0_i32 = arith.constant 0 : i32
    return %arg2, %arg1 : i32, i32
  }
  func.func @transform_2(%arg0: i32, %arg1: i32, %arg2: i32) -> (i32, i32) {
    %c0_i32 = arith.constant 0 : i32
    %c0_i32_0 = arith.constant 0 : i32
    return %c0_i32, %arg1 : i32, i32
  }
  func.func @transform_3(%arg0: i32, %arg1: i32, %arg2: i32) -> (i32, i32) {
    %c0_i32 = arith.constant 0 : i32
    return %arg0, %arg1 : i32, i32
  }
}

module attributes {stable_mosaic.version = 11 : i64} {
  func.func @_gemm_bias_act_kernel(%arg0: i32, %arg1: i32, %arg2: i32, %arg3: memref<256x512xbf16, #tpu.memory_space<vmem>>, %arg4: memref<512x128xbf16, #tpu.memory_space<vmem>>, %arg5: memref<1x128xf32, #tpu.memory_space<vmem>>, %arg6: memref<256x128xbf16, #tpu.memory_space<vmem>>, %arg7: memref<256x128xf32, #tpu.memory_space<vmem>>) attributes {dimension_semantics = [#tpu.dimension_semantics<parallel>, #tpu.dimension_semantics<parallel>, #tpu.dimension_semantics<arbitrary>], iteration_bounds = array<i64: 4, 1, 1>, scalar_prefetch = 0 : i64, scratch_operands = 1 : i64, tpu.core_type = #tpu.core_type<tc>, window_params = [{transform_indices = @transform_0, window_bounds = array<i64: 256, 512>}, {transform_indices = @transform_1, window_bounds = array<i64: 512, 128>}, {transform_indices = @transform_2, window_bounds = array<i64: 1, 128>}, {transform_indices = @transform_3, window_bounds = array<i64: 256, 128>}]} {
    %c0_i32 = arith.constant 0 : i32
    %0 = arith.cmpi eq, %arg2, %c0_i32 : i32
    %1 = arith.extui %0 : i1 to i32
    %c0_i32_0 = arith.constant 0 : i32
    %2 = arith.cmpi ne, %1, %c0_i32_0 : i32
    scf.if %2 {
      %cst_10 = arith.constant 0.000000e+00 : f32
      %12 = vector.broadcast %cst_10 : f32 to vector<256x128xf32>
      %c0_11 = arith.constant 0 : index
      %c0_12 = arith.constant 0 : index
      %13 = vector.load %arg7[%c0_11, %c0_12] : memref<256x128xf32, #tpu.memory_space<vmem>>, vector<256x128xf32>
      tpu.vector_store %arg7[%c0_11, %c0_12], %12 {strides = array<i32>} : memref<256x128xf32, #tpu.memory_space<vmem>>, vector<256x128xf32>,
    } else {
    }
    %c0 = arith.constant 0 : index
    %c0_1 = arith.constant 0 : index
    %3 = vector.load %arg7[%c0, %c0_1] : memref<256x128xf32, #tpu.memory_space<vmem>>, vector<256x128xf32>
    %c0_2 = arith.constant 0 : index
    %c0_3 = arith.constant 0 : index
    %4 = vector.load %arg3[%c0_2, %c0_3] : memref<256x512xbf16, #tpu.memory_space<vmem>>, vector<256x512xbf16>
    %c0_4 = arith.constant 0 : index
    %c0_5 = arith.constant 0 : index
    %5 = vector.load %arg4[%c0_4, %c0_5] : memref<512x128xbf16, #tpu.memory_space<vmem>>, vector<512x128xbf16>
    %cst = arith.constant dense<0.000000e+00> : vector<256x128xf32>
    %6 = tpu.matmul %4, %5, %cst {dimension_numbers = #tpu.dot_dimension_numbers<[1], [0], [0], [1], [0, 0, 1, 1], [], []>} : vector<256x512xbf16>, vector<512x128xbf16>, vector<256x128xf32> -> vector<256x128xf32>
    %7 = arith.addf %3, %6 : vector<256x128xf32>
    %c0_6 = arith.constant 0 : index
    %c0_7 = arith.constant 0 : index
    %8 = vector.load %arg7[%c0_6, %c0_7] : memref<256x128xf32, #tpu.memory_space<vmem>>, vector<256x128xf32>
    tpu.vector_store %arg7[%c0_6, %c0_7], %7 {strides = array<i32>} : memref<256x128xf32, #tpu.memory_space<vmem>>, vector<256x128xf32>,
    %c0_i32_8 = arith.constant 0 : i32
    %9 = arith.cmpi eq, %arg2, %c0_i32_8 : i32
    %10 = arith.extui %9 : i1 to i32
    %c0_i32_9 = arith.constant 0 : i32
    %11 = arith.cmpi ne, %10, %c0_i32_9 : i32
    scf.if %11 {
      %c0_10 = arith.constant 0 : index
      %c0_11 = arith.constant 0 : index
      %12 = vector.load %arg7[%c0_10, %c0_11] : memref<256x128xf32, #tpu.memory_space<vmem>>, vector<256x128xf32>
      %c0_12 = arith.constant 0 : index
      %c0_13 = arith.constant 0 : index
      %13 = vector.load %arg5[%c0_12, %c0_13] : memref<1x128xf32, #tpu.memory_space<vmem>>, vector<1x128xf32>
      %14 = vector.broadcast %13 : vector<1x128xf32> to vector<256x128xf32>
      %15 = arith.addf %12, %14 : vector<256x128xf32>
      %16 = arith.truncf %15 : vector<256x128xf32> to vector<256x128xbf16>
      %c0_14 = arith.constant 0 : index
      %c0_15 = arith.constant 0 : index
      %17 = vector.load %arg6[%c0_14, %c0_15] : memref<256x128xbf16, #tpu.memory_space<vmem>>, vector<256x128xbf16>
      tpu.vector_store %arg6[%c0_14, %c0_15], %16 {strides = array<i32>} : memref<256x128xbf16, #tpu.memory_space<vmem>>, vector<256x128xbf16>,
    } else {
    }
    return
  }
  func.func @transform_0(%arg0: i32, %arg1: i32, %arg2: i32) -> (i32, i32) {
    %c0_i32 = arith.constant 0 : i32
    return %arg0, %arg2 : i32, i32
  }
  func.func @transform_1(%arg0: i32, %arg1: i32, %arg2: i32) -> (i32, i32) {
    %c0_i32 = arith.constant 0 : i32
    return %arg2, %arg1 : i32, i32
  }
  func.func @transform_2(%arg0: i32, %arg1: i32, %arg2: i32) -> (i32, i32) {
    %c0_i32 = arith.constant 0 : i32
    %c0_i32_0 = arith.constant 0 : i32
    return %c0_i32, %arg1 : i32, i32
  }
  func.func @transform_3(%arg0: i32, %arg1: i32, %arg2: i32) -> (i32, i32) {
    %c0_i32 = arith.constant 0 : i32
    return %arg0, %arg1 : i32, i32
  }
}

module attributes {stable_mosaic.version = 11 : i64} {
  func.func @_bn_stats_kernel(%arg0: i32, %arg1: memref<512x128xbf16, #tpu.memory_space<vmem>>, %arg2: memref<1x128xf32, #tpu.memory_space<vmem>>, %arg3: memref<1x128xf32, #tpu.memory_space<vmem>>) attributes {dimension_semantics = [#tpu.dimension_semantics<arbitrary>], iteration_bounds = array<i64: 2>, scalar_prefetch = 0 : i64, scratch_operands = 0 : i64, tpu.core_type = #tpu.core_type<tc>, window_params = [{transform_indices = @transform_0, window_bounds = array<i64: 512, 128>}, {pipeline_mode = #tpu.pipeline_mode<synchronous>, transform_indices = @transform_1, window_bounds = array<i64: 1, 128>}, {pipeline_mode = #tpu.pipeline_mode<synchronous>, transform_indices = @transform_2, window_bounds = array<i64: 1, 128>}]} {
    %c0_i32 = arith.constant 0 : i32
    %0 = arith.cmpi eq, %arg0, %c0_i32 : i32
    %1 = arith.extui %0 : i1 to i32
    %c0_i32_0 = arith.constant 0 : i32
    %2 = arith.cmpi ne, %1, %c0_i32_0 : i32
    scf.if %2 {
      %cst_12 = arith.constant 0.000000e+00 : f32
      %23 = vector.broadcast %cst_12 : f32 to vector<1x128xf32>
      %c0_13 = arith.constant 0 : index
      %c0_14 = arith.constant 0 : index
      %24 = vector.load %arg2[%c0_13, %c0_14] : memref<1x128xf32, #tpu.memory_space<vmem>>, vector<1x128xf32>
      tpu.vector_store %arg2[%c0_13, %c0_14], %23 {strides = array<i32>} : memref<1x128xf32, #tpu.memory_space<vmem>>, vector<1x128xf32>,
      %cst_15 = arith.constant 0.000000e+00 : f32
      %25 = vector.broadcast %cst_15 : f32 to vector<1x128xf32>
      %c0_16 = arith.constant 0 : index
      %c0_17 = arith.constant 0 : index
      %26 = vector.load %arg3[%c0_16, %c0_17] : memref<1x128xf32, #tpu.memory_space<vmem>>, vector<1x128xf32>
      tpu.vector_store %arg3[%c0_16, %c0_17], %25 {strides = array<i32>} : memref<1x128xf32, #tpu.memory_space<vmem>>, vector<1x128xf32>,
    } else {
    }
    %c0 = arith.constant 0 : index
    %c0_1 = arith.constant 0 : index
    %3 = vector.load %arg1[%c0, %c0_1] : memref<512x128xbf16, #tpu.memory_space<vmem>>, vector<512x128xbf16>
    %4 = arith.extf %3 : vector<512x128xbf16> to vector<512x128xf32>
    %5 = tpu.iota {dimensions = array<i32: 0>} : vector<512x128xi32>
    %c512_i32 = arith.constant 512 : i32
    %6 = arith.muli %arg0, %c512_i32 : i32
    %c1024_i32 = arith.constant 1024 : i32
    %7 = arith.subi %c1024_i32, %6 : i32
    %8 = vector.broadcast %7 : i32 to vector<512x128xi32>
    %9 = arith.cmpi slt, %5, %8 : vector<512x128xi32>
    %cst = arith.constant 0.000000e+00 : f32
    %10 = vector.broadcast %cst : f32 to vector<512x128xf32>
    %11 = arith.select %9, %4, %10 : vector<512x128xi1>, vector<512x128xf32>
    %c0_2 = arith.constant 0 : index
    %c0_3 = arith.constant 0 : index
    %12 = vector.load %arg2[%c0_2, %c0_3] : memref<1x128xf32, #tpu.memory_space<vmem>>, vector<1x128xf32>
    %cst_4 = arith.constant dense<0.000000e+00> : vector<128xf32>
    %13 = vector.multi_reduction <add>, %11, %cst_4 [0] : vector<512x128xf32> to vector<128xf32>
    %14 = vector.shape_cast %13 : vector<128xf32> to vector<1x128xf32>
    %15 = arith.addf %12, %14 : vector<1x128xf32>
    %c0_5 = arith.constant 0 : index
    %c0_6 = arith.constant 0 : index
    %16 = vector.load %arg2[%c0_5, %c0_6] : memref<1x128xf32, #tpu.memory_space<vmem>>, vector<1x128xf32>
    tpu.vector_store %arg2[%c0_5, %c0_6], %15 {strides = array<i32>} : memref<1x128xf32, #tpu.memory_space<vmem>>, vector<1x128xf32>,
    %c0_7 = arith.constant 0 : index
    %c0_8 = arith.constant 0 : index
    %17 = vector.load %arg3[%c0_7, %c0_8] : memref<1x128xf32, #tpu.memory_space<vmem>>, vector<1x128xf32>
    %18 = arith.mulf %11, %11 : vector<512x128xf32>
    %cst_9 = arith.constant dense<0.000000e+00> : vector<128xf32>
    %19 = vector.multi_reduction <add>, %18, %cst_9 [0] : vector<512x128xf32> to vector<128xf32>
    %20 = vector.shape_cast %19 : vector<128xf32> to vector<1x128xf32>
    %21 = arith.addf %17, %20 : vector<1x128xf32>
    %c0_10 = arith.constant 0 : index
    %c0_11 = arith.constant 0 : index
    %22 = vector.load %arg3[%c0_10, %c0_11] : memref<1x128xf32, #tpu.memory_space<vmem>>, vector<1x128xf32>
    tpu.vector_store %arg3[%c0_10, %c0_11], %21 {strides = array<i32>} : memref<1x128xf32, #tpu.memory_space<vmem>>, vector<1x128xf32>,
    return
  }
  func.func @transform_0(%arg0: i32) -> (i32, i32) {
    %c0_i32 = arith.constant 0 : i32
    %c0_i32_0 = arith.constant 0 : i32
    return %arg0, %c0_i32 : i32, i32
  }
  func.func @transform_1(%arg0: i32) -> (i32, i32) {
    %c0_i32 = arith.constant 0 : i32
    %c0_i32_0 = arith.constant 0 : i32
    %c0_i32_1 = arith.constant 0 : i32
    return %c0_i32, %c0_i32_0 : i32, i32
  }
  func.func @transform_2(%arg0: i32) -> (i32, i32) {
    %c0_i32 = arith.constant 0 : i32
    %c0_i32_0 = arith.constant 0 : i32
    %c0_i32_1 = arith.constant 0 : i32
    return %c0_i32, %c0_i32_0 : i32, i32
  }
}

module attributes {stable_mosaic.version = 11 : i64} {
  func.func @_bn_apply_kernel(%arg0: i32, %arg1: memref<512x128xbf16, #tpu.memory_space<vmem>>, %arg2: memref<1x128xf32, #tpu.memory_space<vmem>>, %arg3: memref<1x128xf32, #tpu.memory_space<vmem>>, %arg4: memref<512x128xbf16, #tpu.memory_space<vmem>>) attributes {dimension_semantics = [#tpu.dimension_semantics<parallel>], iteration_bounds = array<i64: 2>, scalar_prefetch = 0 : i64, scratch_operands = 0 : i64, tpu.core_type = #tpu.core_type<tc>, window_params = [{transform_indices = @transform_0, window_bounds = array<i64: 512, 128>}, {pipeline_mode = #tpu.pipeline_mode<synchronous>, transform_indices = @transform_1, window_bounds = array<i64: 1, 128>}, {pipeline_mode = #tpu.pipeline_mode<synchronous>, transform_indices = @transform_2, window_bounds = array<i64: 1, 128>}, {transform_indices = @transform_3, window_bounds = array<i64: 512, 128>}]} {
    %c0 = arith.constant 0 : index
    %c0_0 = arith.constant 0 : index
    %0 = vector.load %arg1[%c0, %c0_0] : memref<512x128xbf16, #tpu.memory_space<vmem>>, vector<512x128xbf16>
    %1 = arith.extf %0 : vector<512x128xbf16> to vector<512x128xf32>
    %c0_1 = arith.constant 0 : index
    %c0_2 = arith.constant 0 : index
    %2 = vector.load %arg2[%c0_1, %c0_2] : memref<1x128xf32, #tpu.memory_space<vmem>>, vector<1x128xf32>
    %3 = vector.broadcast %2 : vector<1x128xf32> to vector<512x128xf32>
    %4 = arith.mulf %1, %3 : vector<512x128xf32>
    %c0_3 = arith.constant 0 : index
    %c0_4 = arith.constant 0 : index
    %5 = vector.load %arg3[%c0_3, %c0_4] : memref<1x128xf32, #tpu.memory_space<vmem>>, vector<1x128xf32>
    %6 = vector.broadcast %5 : vector<1x128xf32> to vector<512x128xf32>
    %7 = arith.addf %4, %6 : vector<512x128xf32>
    %cst = arith.constant 0.000000e+00 : f32
    %8 = vector.broadcast %cst : f32 to vector<512x128xf32>
    %9 = arith.cmpf oge, %7, %8 : vector<512x128xf32>
    %cst_5 = arith.constant 2.000000e-01 : f32
    %10 = vector.broadcast %cst_5 : f32 to vector<512x128xf32>
    %11 = arith.mulf %10, %7 : vector<512x128xf32>
    %12 = arith.select %9, %7, %11 : vector<512x128xi1>, vector<512x128xf32>
    %13 = arith.truncf %12 : vector<512x128xf32> to vector<512x128xbf16>
    %c0_6 = arith.constant 0 : index
    %c0_7 = arith.constant 0 : index
    %14 = vector.load %arg4[%c0_6, %c0_7] : memref<512x128xbf16, #tpu.memory_space<vmem>>, vector<512x128xbf16>
    tpu.vector_store %arg4[%c0_6, %c0_7], %13 {strides = array<i32>} : memref<512x128xbf16, #tpu.memory_space<vmem>>, vector<512x128xbf16>,
    return
  }
  func.func @transform_0(%arg0: i32) -> (i32, i32) {
    %c0_i32 = arith.constant 0 : i32
    %c0_i32_0 = arith.constant 0 : i32
    return %arg0, %c0_i32 : i32, i32
  }
  func.func @transform_1(%arg0: i32) -> (i32, i32) {
    %c0_i32 = arith.constant 0 : i32
    %c0_i32_0 = arith.constant 0 : i32
    %c0_i32_1 = arith.constant 0 : i32
    return %c0_i32, %c0_i32_0 : i32, i32
  }
  func.func @transform_2(%arg0: i32) -> (i32, i32) {
    %c0_i32 = arith.constant 0 : i32
    %c0_i32_0 = arith.constant 0 : i32
    %c0_i32_1 = arith.constant 0 : i32
    return %c0_i32, %c0_i32_0 : i32, i32
  }
  func.func @transform_3(%arg0: i32) -> (i32, i32) {
    %c0_i32 = arith.constant 0 : i32
    %c0_i32_0 = arith.constant 0 : i32
    return %arg0, %c0_i32 : i32, i32
  }
}

module attributes {stable_mosaic.version = 11 : i64} {
  func.func @_gemm_bias_act_kernel(%arg0: i32, %arg1: i32, %arg2: i32, %arg3: memref<128x1024xbf16, #tpu.memory_space<vmem>>, %arg4: memref<1024x128xbf16, #tpu.memory_space<vmem>>, %arg5: memref<1x128xf32, #tpu.memory_space<vmem>>, %arg6: memref<128x128xbf16, #tpu.memory_space<vmem>>, %arg7: memref<128x128xf32, #tpu.memory_space<vmem>>) attributes {dimension_semantics = [#tpu.dimension_semantics<parallel>, #tpu.dimension_semantics<parallel>, #tpu.dimension_semantics<arbitrary>], iteration_bounds = array<i64: 1, 1, 1>, scalar_prefetch = 0 : i64, scratch_operands = 1 : i64, tpu.core_type = #tpu.core_type<tc>, window_params = [{transform_indices = @transform_0, window_bounds = array<i64: 128, 1024>}, {transform_indices = @transform_1, window_bounds = array<i64: 1024, 128>}, {transform_indices = @transform_2, window_bounds = array<i64: 1, 128>}, {transform_indices = @transform_3, window_bounds = array<i64: 128, 128>}]} {
    %c0_i32 = arith.constant 0 : i32
    %0 = arith.cmpi eq, %arg2, %c0_i32 : i32
    %1 = arith.extui %0 : i1 to i32
    %c0_i32_0 = arith.constant 0 : i32
    %2 = arith.cmpi ne, %1, %c0_i32_0 : i32
    scf.if %2 {
      %cst_10 = arith.constant 0.000000e+00 : f32
      %12 = vector.broadcast %cst_10 : f32 to vector<128x128xf32>
      %c0_11 = arith.constant 0 : index
      %c0_12 = arith.constant 0 : index
      %13 = vector.load %arg7[%c0_11, %c0_12] : memref<128x128xf32, #tpu.memory_space<vmem>>, vector<128x128xf32>
      tpu.vector_store %arg7[%c0_11, %c0_12], %12 {strides = array<i32>} : memref<128x128xf32, #tpu.memory_space<vmem>>, vector<128x128xf32>,
    } else {
    }
    %c0 = arith.constant 0 : index
    %c0_1 = arith.constant 0 : index
    %3 = vector.load %arg7[%c0, %c0_1] : memref<128x128xf32, #tpu.memory_space<vmem>>, vector<128x128xf32>
    %c0_2 = arith.constant 0 : index
    %c0_3 = arith.constant 0 : index
    %4 = vector.load %arg3[%c0_2, %c0_3] : memref<128x1024xbf16, #tpu.memory_space<vmem>>, vector<128x1024xbf16>
    %c0_4 = arith.constant 0 : index
    %c0_5 = arith.constant 0 : index
    %5 = vector.load %arg4[%c0_4, %c0_5] : memref<1024x128xbf16, #tpu.memory_space<vmem>>, vector<1024x128xbf16>
    %cst = arith.constant dense<0.000000e+00> : vector<128x128xf32>
    %6 = tpu.matmul %4, %5, %cst {dimension_numbers = #tpu.dot_dimension_numbers<[1], [0], [0], [1], [0, 0, 1, 1], [], []>} : vector<128x1024xbf16>, vector<1024x128xbf16>, vector<128x128xf32> -> vector<128x128xf32>
    %7 = arith.addf %3, %6 : vector<128x128xf32>
    %c0_6 = arith.constant 0 : index
    %c0_7 = arith.constant 0 : index
    %8 = vector.load %arg7[%c0_6, %c0_7] : memref<128x128xf32, #tpu.memory_space<vmem>>, vector<128x128xf32>
    tpu.vector_store %arg7[%c0_6, %c0_7], %7 {strides = array<i32>} : memref<128x128xf32, #tpu.memory_space<vmem>>, vector<128x128xf32>,
    %c0_i32_8 = arith.constant 0 : i32
    %9 = arith.cmpi eq, %arg2, %c0_i32_8 : i32
    %10 = arith.extui %9 : i1 to i32
    %c0_i32_9 = arith.constant 0 : i32
    %11 = arith.cmpi ne, %10, %c0_i32_9 : i32
    scf.if %11 {
      %c0_10 = arith.constant 0 : index
      %c0_11 = arith.constant 0 : index
      %12 = vector.load %arg7[%c0_10, %c0_11] : memref<128x128xf32, #tpu.memory_space<vmem>>, vector<128x128xf32>
      %c0_12 = arith.constant 0 : index
      %c0_13 = arith.constant 0 : index
      %13 = vector.load %arg5[%c0_12, %c0_13] : memref<1x128xf32, #tpu.memory_space<vmem>>, vector<1x128xf32>
      %14 = vector.broadcast %13 : vector<1x128xf32> to vector<128x128xf32>
      %15 = arith.addf %12, %14 : vector<128x128xf32>
      %16 = arith.truncf %15 : vector<128x128xf32> to vector<128x128xbf16>
      %c0_14 = arith.constant 0 : index
      %c0_15 = arith.constant 0 : index
      %17 = vector.load %arg6[%c0_14, %c0_15] : memref<128x128xbf16, #tpu.memory_space<vmem>>, vector<128x128xbf16>
      tpu.vector_store %arg6[%c0_14, %c0_15], %16 {strides = array<i32>} : memref<128x128xbf16, #tpu.memory_space<vmem>>, vector<128x128xbf16>,
    } else {
    }
    return
  }
  func.func @transform_0(%arg0: i32, %arg1: i32, %arg2: i32) -> (i32, i32) {
    %c0_i32 = arith.constant 0 : i32
    return %arg0, %arg2 : i32, i32
  }
  func.func @transform_1(%arg0: i32, %arg1: i32, %arg2: i32) -> (i32, i32) {
    %c0_i32 = arith.constant 0 : i32
    return %arg2, %arg1 : i32, i32
  }
  func.func @transform_2(%arg0: i32, %arg1: i32, %arg2: i32) -> (i32, i32) {
    %c0_i32 = arith.constant 0 : i32
    %c0_i32_0 = arith.constant 0 : i32
    return %c0_i32, %arg1 : i32, i32
  }
  func.func @transform_3(%arg0: i32, %arg1: i32, %arg2: i32) -> (i32, i32) {
    %c0_i32 = arith.constant 0 : i32
    return %arg0, %arg1 : i32, i32
  }
}

module attributes {stable_mosaic.version = 11 : i64} {
  func.func @_bn_stats_kernel(%arg0: i32, %arg1: memref<128x128xbf16, #tpu.memory_space<vmem>>, %arg2: memref<1x128xf32, #tpu.memory_space<vmem>>, %arg3: memref<1x128xf32, #tpu.memory_space<vmem>>) attributes {dimension_semantics = [#tpu.dimension_semantics<arbitrary>], iteration_bounds = array<i64: 1>, scalar_prefetch = 0 : i64, scratch_operands = 0 : i64, tpu.core_type = #tpu.core_type<tc>, window_params = [{transform_indices = @transform_0, window_bounds = array<i64: 128, 128>}, {pipeline_mode = #tpu.pipeline_mode<synchronous>, transform_indices = @transform_1, window_bounds = array<i64: 1, 128>}, {pipeline_mode = #tpu.pipeline_mode<synchronous>, transform_indices = @transform_2, window_bounds = array<i64: 1, 128>}]} {
    %c0_i32 = arith.constant 0 : i32
    %0 = arith.cmpi eq, %arg0, %c0_i32 : i32
    %1 = arith.extui %0 : i1 to i32
    %c0_i32_0 = arith.constant 0 : i32
    %2 = arith.cmpi ne, %1, %c0_i32_0 : i32
    scf.if %2 {
      %cst_13 = arith.constant 0.000000e+00 : f32
      %23 = vector.broadcast %cst_13 : f32 to vector<1x128xf32>
      %c0_14 = arith.constant 0 : index
      %c0_15 = arith.constant 0 : index
      %24 = vector.load %arg2[%c0_14, %c0_15] : memref<1x128xf32, #tpu.memory_space<vmem>>, vector<1x128xf32>
      tpu.vector_store %arg2[%c0_14, %c0_15], %23 {strides = array<i32>} : memref<1x128xf32, #tpu.memory_space<vmem>>, vector<1x128xf32>,
      %cst_16 = arith.constant 0.000000e+00 : f32
      %25 = vector.broadcast %cst_16 : f32 to vector<1x128xf32>
      %c0_17 = arith.constant 0 : index
      %c0_18 = arith.constant 0 : index
      %26 = vector.load %arg3[%c0_17, %c0_18] : memref<1x128xf32, #tpu.memory_space<vmem>>, vector<1x128xf32>
      tpu.vector_store %arg3[%c0_17, %c0_18], %25 {strides = array<i32>} : memref<1x128xf32, #tpu.memory_space<vmem>>, vector<1x128xf32>,
    } else {
    }
    %c0 = arith.constant 0 : index
    %c0_1 = arith.constant 0 : index
    %3 = vector.load %arg1[%c0, %c0_1] : memref<128x128xbf16, #tpu.memory_space<vmem>>, vector<128x128xbf16>
    %4 = arith.extf %3 : vector<128x128xbf16> to vector<128x128xf32>
    %5 = tpu.iota {dimensions = array<i32: 0>} : vector<128x128xi32>
    %c128_i32 = arith.constant 128 : i32
    %6 = arith.muli %arg0, %c128_i32 : i32
    %c128_i32_2 = arith.constant 128 : i32
    %7 = arith.subi %c128_i32_2, %6 : i32
    %8 = vector.broadcast %7 : i32 to vector<128x128xi32>
    %9 = arith.cmpi slt, %5, %8 : vector<128x128xi32>
    %cst = arith.constant 0.000000e+00 : f32
    %10 = vector.broadcast %cst : f32 to vector<128x128xf32>
    %11 = arith.select %9, %4, %10 : vector<128x128xi1>, vector<128x128xf32>
    %c0_3 = arith.constant 0 : index
    %c0_4 = arith.constant 0 : index
    %12 = vector.load %arg2[%c0_3, %c0_4] : memref<1x128xf32, #tpu.memory_space<vmem>>, vector<1x128xf32>
    %cst_5 = arith.constant dense<0.000000e+00> : vector<128xf32>
    %13 = vector.multi_reduction <add>, %11, %cst_5 [0] : vector<128x128xf32> to vector<128xf32>
    %14 = vector.shape_cast %13 : vector<128xf32> to vector<1x128xf32>
    %15 = arith.addf %12, %14 : vector<1x128xf32>
    %c0_6 = arith.constant 0 : index
    %c0_7 = arith.constant 0 : index
    %16 = vector.load %arg2[%c0_6, %c0_7] : memref<1x128xf32, #tpu.memory_space<vmem>>, vector<1x128xf32>
    tpu.vector_store %arg2[%c0_6, %c0_7], %15 {strides = array<i32>} : memref<1x128xf32, #tpu.memory_space<vmem>>, vector<1x128xf32>,
    %c0_8 = arith.constant 0 : index
    %c0_9 = arith.constant 0 : index
    %17 = vector.load %arg3[%c0_8, %c0_9] : memref<1x128xf32, #tpu.memory_space<vmem>>, vector<1x128xf32>
    %18 = arith.mulf %11, %11 : vector<128x128xf32>
    %cst_10 = arith.constant dense<0.000000e+00> : vector<128xf32>
    %19 = vector.multi_reduction <add>, %18, %cst_10 [0] : vector<128x128xf32> to vector<128xf32>
    %20 = vector.shape_cast %19 : vector<128xf32> to vector<1x128xf32>
    %21 = arith.addf %17, %20 : vector<1x128xf32>
    %c0_11 = arith.constant 0 : index
    %c0_12 = arith.constant 0 : index
    %22 = vector.load %arg3[%c0_11, %c0_12] : memref<1x128xf32, #tpu.memory_space<vmem>>, vector<1x128xf32>
    tpu.vector_store %arg3[%c0_11, %c0_12], %21 {strides = array<i32>} : memref<1x128xf32, #tpu.memory_space<vmem>>, vector<1x128xf32>,
    return
  }
  func.func @transform_0(%arg0: i32) -> (i32, i32) {
    %c0_i32 = arith.constant 0 : i32
    %c0_i32_0 = arith.constant 0 : i32
    return %arg0, %c0_i32 : i32, i32
  }
  func.func @transform_1(%arg0: i32) -> (i32, i32) {
    %c0_i32 = arith.constant 0 : i32
    %c0_i32_0 = arith.constant 0 : i32
    %c0_i32_1 = arith.constant 0 : i32
    return %c0_i32, %c0_i32_0 : i32, i32
  }
  func.func @transform_2(%arg0: i32) -> (i32, i32) {
    %c0_i32 = arith.constant 0 : i32
    %c0_i32_0 = arith.constant 0 : i32
    %c0_i32_1 = arith.constant 0 : i32
    return %c0_i32, %c0_i32_0 : i32, i32
  }
}

module attributes {stable_mosaic.version = 11 : i64} {
  func.func @_bn_apply_kernel(%arg0: i32, %arg1: memref<128x128xbf16, #tpu.memory_space<vmem>>, %arg2: memref<1x128xf32, #tpu.memory_space<vmem>>, %arg3: memref<1x128xf32, #tpu.memory_space<vmem>>, %arg4: memref<128x128xbf16, #tpu.memory_space<vmem>>) attributes {dimension_semantics = [#tpu.dimension_semantics<parallel>], iteration_bounds = array<i64: 1>, scalar_prefetch = 0 : i64, scratch_operands = 0 : i64, tpu.core_type = #tpu.core_type<tc>, window_params = [{transform_indices = @transform_0, window_bounds = array<i64: 128, 128>}, {pipeline_mode = #tpu.pipeline_mode<synchronous>, transform_indices = @transform_1, window_bounds = array<i64: 1, 128>}, {pipeline_mode = #tpu.pipeline_mode<synchronous>, transform_indices = @transform_2, window_bounds = array<i64: 1, 128>}, {transform_indices = @transform_3, window_bounds = array<i64: 128, 128>}]} {
    %c0 = arith.constant 0 : index
    %c0_0 = arith.constant 0 : index
    %0 = vector.load %arg1[%c0, %c0_0] : memref<128x128xbf16, #tpu.memory_space<vmem>>, vector<128x128xbf16>
    %1 = arith.extf %0 : vector<128x128xbf16> to vector<128x128xf32>
    %c0_1 = arith.constant 0 : index
    %c0_2 = arith.constant 0 : index
    %2 = vector.load %arg2[%c0_1, %c0_2] : memref<1x128xf32, #tpu.memory_space<vmem>>, vector<1x128xf32>
    %3 = vector.broadcast %2 : vector<1x128xf32> to vector<128x128xf32>
    %4 = arith.mulf %1, %3 : vector<128x128xf32>
    %c0_3 = arith.constant 0 : index
    %c0_4 = arith.constant 0 : index
    %5 = vector.load %arg3[%c0_3, %c0_4] : memref<1x128xf32, #tpu.memory_space<vmem>>, vector<1x128xf32>
    %6 = vector.broadcast %5 : vector<1x128xf32> to vector<128x128xf32>
    %7 = arith.addf %4, %6 : vector<128x128xf32>
    %cst = arith.constant 0.000000e+00 : f32
    %8 = vector.broadcast %cst : f32 to vector<128x128xf32>
    %9 = arith.cmpf oge, %7, %8 : vector<128x128xf32>
    %cst_5 = arith.constant 2.000000e-01 : f32
    %10 = vector.broadcast %cst_5 : f32 to vector<128x128xf32>
    %11 = arith.mulf %10, %7 : vector<128x128xf32>
    %12 = arith.select %9, %7, %11 : vector<128x128xi1>, vector<128x128xf32>
    %13 = arith.truncf %12 : vector<128x128xf32> to vector<128x128xbf16>
    %c0_6 = arith.constant 0 : index
    %c0_7 = arith.constant 0 : index
    %14 = vector.load %arg4[%c0_6, %c0_7] : memref<128x128xbf16, #tpu.memory_space<vmem>>, vector<128x128xbf16>
    tpu.vector_store %arg4[%c0_6, %c0_7], %13 {strides = array<i32>} : memref<128x128xbf16, #tpu.memory_space<vmem>>, vector<128x128xbf16>,
    return
  }
  func.func @transform_0(%arg0: i32) -> (i32, i32) {
    %c0_i32 = arith.constant 0 : i32
    %c0_i32_0 = arith.constant 0 : i32
    return %arg0, %c0_i32 : i32, i32
  }
  func.func @transform_1(%arg0: i32) -> (i32, i32) {
    %c0_i32 = arith.constant 0 : i32
    %c0_i32_0 = arith.constant 0 : i32
    %c0_i32_1 = arith.constant 0 : i32
    return %c0_i32, %c0_i32_0 : i32, i32
  }
  func.func @transform_2(%arg0: i32) -> (i32, i32) {
    %c0_i32 = arith.constant 0 : i32
    %c0_i32_0 = arith.constant 0 : i32
    %c0_i32_1 = arith.constant 0 : i32
    return %c0_i32, %c0_i32_0 : i32, i32
  }
  func.func @transform_3(%arg0: i32) -> (i32, i32) {
    %c0_i32 = arith.constant 0 : i32
    %c0_i32_0 = arith.constant 0 : i32
    return %arg0, %c0_i32 : i32, i32
  }
}

module attributes {stable_mosaic.version = 11 : i64} {
  func.func @_gemm_bias_act_kernel(%arg0: i32, %arg1: i32, %arg2: i32, %arg3: memref<54x1024xbf16, #tpu.memory_space<vmem>>, %arg4: memref<1024x128xbf16, #tpu.memory_space<vmem>>, %arg5: memref<1x128xf32, #tpu.memory_space<vmem>>, %arg6: memref<54x128xbf16, #tpu.memory_space<vmem>>, %arg7: memref<54x128xf32, #tpu.memory_space<vmem>>) attributes {dimension_semantics = [#tpu.dimension_semantics<parallel>, #tpu.dimension_semantics<parallel>, #tpu.dimension_semantics<arbitrary>], iteration_bounds = array<i64: 1, 1, 2>, scalar_prefetch = 0 : i64, scratch_operands = 1 : i64, tpu.core_type = #tpu.core_type<tc>, window_params = [{transform_indices = @transform_0, window_bounds = array<i64: 54, 1024>}, {transform_indices = @transform_1, window_bounds = array<i64: 1024, 128>}, {transform_indices = @transform_2, window_bounds = array<i64: 1, 128>}, {transform_indices = @transform_3, window_bounds = array<i64: 54, 128>}]} {
    %c0_i32 = arith.constant 0 : i32
    %0 = arith.cmpi eq, %arg2, %c0_i32 : i32
    %1 = arith.extui %0 : i1 to i32
    %c0_i32_0 = arith.constant 0 : i32
    %2 = arith.cmpi ne, %1, %c0_i32_0 : i32
    scf.if %2 {
      %cst_9 = arith.constant 0.000000e+00 : f32
      %12 = vector.broadcast %cst_9 : f32 to vector<54x128xf32>
      %c0_10 = arith.constant 0 : index
      %c0_11 = arith.constant 0 : index
      %13 = vector.load %arg7[%c0_10, %c0_11] : memref<54x128xf32, #tpu.memory_space<vmem>>, vector<54x128xf32>
      tpu.vector_store %arg7[%c0_10, %c0_11], %12 {strides = array<i32>} : memref<54x128xf32, #tpu.memory_space<vmem>>, vector<54x128xf32>,
    } else {
    }
    %c0 = arith.constant 0 : index
    %c0_1 = arith.constant 0 : index
    %3 = vector.load %arg7[%c0, %c0_1] : memref<54x128xf32, #tpu.memory_space<vmem>>, vector<54x128xf32>
    %c0_2 = arith.constant 0 : index
    %c0_3 = arith.constant 0 : index
    %4 = vector.load %arg3[%c0_2, %c0_3] : memref<54x1024xbf16, #tpu.memory_space<vmem>>, vector<54x1024xbf16>
    %c0_4 = arith.constant 0 : index
    %c0_5 = arith.constant 0 : index
    %5 = vector.load %arg4[%c0_4, %c0_5] : memref<1024x128xbf16, #tpu.memory_space<vmem>>, vector<1024x128xbf16>
    %cst = arith.constant dense<0.000000e+00> : vector<54x128xf32>
    %6 = tpu.matmul %4, %5, %cst {dimension_numbers = #tpu.dot_dimension_numbers<[1], [0], [0], [1], [0, 0, 1, 1], [], []>} : vector<54x1024xbf16>, vector<1024x128xbf16>, vector<54x128xf32> -> vector<54x128xf32>
    %7 = arith.addf %3, %6 : vector<54x128xf32>
    %c0_6 = arith.constant 0 : index
    %c0_7 = arith.constant 0 : index
    %8 = vector.load %arg7[%c0_6, %c0_7] : memref<54x128xf32, #tpu.memory_space<vmem>>, vector<54x128xf32>
    tpu.vector_store %arg7[%c0_6, %c0_7], %7 {strides = array<i32>} : memref<54x128xf32, #tpu.memory_space<vmem>>, vector<54x128xf32>,
    %c1_i32 = arith.constant 1 : i32
    %9 = arith.cmpi eq, %arg2, %c1_i32 : i32
    %10 = arith.extui %9 : i1 to i32
    %c0_i32_8 = arith.constant 0 : i32
    %11 = arith.cmpi ne, %10, %c0_i32_8 : i32
    scf.if %11 {
      %c0_9 = arith.constant 0 : index
      %c0_10 = arith.constant 0 : index
      %12 = vector.load %arg7[%c0_9, %c0_10] : memref<54x128xf32, #tpu.memory_space<vmem>>, vector<54x128xf32>
      %c0_11 = arith.constant 0 : index
      %c0_12 = arith.constant 0 : index
      %13 = vector.load %arg5[%c0_11, %c0_12] : memref<1x128xf32, #tpu.memory_space<vmem>>, vector<1x128xf32>
      %14 = vector.broadcast %13 : vector<1x128xf32> to vector<54x128xf32>
      %15 = arith.addf %12, %14 : vector<54x128xf32>
      %16 = arith.truncf %15 : vector<54x128xf32> to vector<54x128xbf16>
      %c0_13 = arith.constant 0 : index
      %c0_14 = arith.constant 0 : index
      %17 = vector.load %arg6[%c0_13, %c0_14] : memref<54x128xbf16, #tpu.memory_space<vmem>>, vector<54x128xbf16>
      tpu.vector_store %arg6[%c0_13, %c0_14], %16 {strides = array<i32>} : memref<54x128xbf16, #tpu.memory_space<vmem>>, vector<54x128xbf16>,
    } else {
    }
    return
  }
  func.func @transform_0(%arg0: i32, %arg1: i32, %arg2: i32) -> (i32, i32) {
    %c0_i32 = arith.constant 0 : i32
    return %arg0, %arg2 : i32, i32
  }
  func.func @transform_1(%arg0: i32, %arg1: i32, %arg2: i32) -> (i32, i32) {
    %c0_i32 = arith.constant 0 : i32
    return %arg2, %arg1 : i32, i32
  }
  func.func @transform_2(%arg0: i32, %arg1: i32, %arg2: i32) -> (i32, i32) {
    %c0_i32 = arith.constant 0 : i32
    %c0_i32_0 = arith.constant 0 : i32
    return %c0_i32, %arg1 : i32, i32
  }
  func.func @transform_3(%arg0: i32, %arg1: i32, %arg2: i32) -> (i32, i32) {
    %c0_i32 = arith.constant 0 : i32
    return %arg0, %arg1 : i32, i32
  }
}

module attributes {stable_mosaic.version = 11 : i64} {
  func.func @_bn_stats_kernel(%arg0: i32, %arg1: memref<54x128xbf16, #tpu.memory_space<vmem>>, %arg2: memref<1x128xf32, #tpu.memory_space<vmem>>, %arg3: memref<1x128xf32, #tpu.memory_space<vmem>>) attributes {dimension_semantics = [#tpu.dimension_semantics<arbitrary>], iteration_bounds = array<i64: 1>, scalar_prefetch = 0 : i64, scratch_operands = 0 : i64, tpu.core_type = #tpu.core_type<tc>, window_params = [{transform_indices = @transform_0, window_bounds = array<i64: 54, 128>}, {pipeline_mode = #tpu.pipeline_mode<synchronous>, transform_indices = @transform_1, window_bounds = array<i64: 1, 128>}, {pipeline_mode = #tpu.pipeline_mode<synchronous>, transform_indices = @transform_2, window_bounds = array<i64: 1, 128>}]} {
    %c0_i32 = arith.constant 0 : i32
    %0 = arith.cmpi eq, %arg0, %c0_i32 : i32
    %1 = arith.extui %0 : i1 to i32
    %c0_i32_0 = arith.constant 0 : i32
    %2 = arith.cmpi ne, %1, %c0_i32_0 : i32
    scf.if %2 {
      %cst_13 = arith.constant 0.000000e+00 : f32
      %23 = vector.broadcast %cst_13 : f32 to vector<1x128xf32>
      %c0_14 = arith.constant 0 : index
      %c0_15 = arith.constant 0 : index
      %24 = vector.load %arg2[%c0_14, %c0_15] : memref<1x128xf32, #tpu.memory_space<vmem>>, vector<1x128xf32>
      tpu.vector_store %arg2[%c0_14, %c0_15], %23 {strides = array<i32>} : memref<1x128xf32, #tpu.memory_space<vmem>>, vector<1x128xf32>,
      %cst_16 = arith.constant 0.000000e+00 : f32
      %25 = vector.broadcast %cst_16 : f32 to vector<1x128xf32>
      %c0_17 = arith.constant 0 : index
      %c0_18 = arith.constant 0 : index
      %26 = vector.load %arg3[%c0_17, %c0_18] : memref<1x128xf32, #tpu.memory_space<vmem>>, vector<1x128xf32>
      tpu.vector_store %arg3[%c0_17, %c0_18], %25 {strides = array<i32>} : memref<1x128xf32, #tpu.memory_space<vmem>>, vector<1x128xf32>,
    } else {
    }
    %c0 = arith.constant 0 : index
    %c0_1 = arith.constant 0 : index
    %3 = vector.load %arg1[%c0, %c0_1] : memref<54x128xbf16, #tpu.memory_space<vmem>>, vector<54x128xbf16>
    %4 = arith.extf %3 : vector<54x128xbf16> to vector<54x128xf32>
    %5 = tpu.iota {dimensions = array<i32: 0>} : vector<54x128xi32>
    %c54_i32 = arith.constant 54 : i32
    %6 = arith.muli %arg0, %c54_i32 : i32
    %c54_i32_2 = arith.constant 54 : i32
    %7 = arith.subi %c54_i32_2, %6 : i32
    %8 = vector.broadcast %7 : i32 to vector<54x128xi32>
    %9 = arith.cmpi slt, %5, %8 : vector<54x128xi32>
    %cst = arith.constant 0.000000e+00 : f32
    %10 = vector.broadcast %cst : f32 to vector<54x128xf32>
    %11 = arith.select %9, %4, %10 : vector<54x128xi1>, vector<54x128xf32>
    %c0_3 = arith.constant 0 : index
    %c0_4 = arith.constant 0 : index
    %12 = vector.load %arg2[%c0_3, %c0_4] : memref<1x128xf32, #tpu.memory_space<vmem>>, vector<1x128xf32>
    %cst_5 = arith.constant dense<0.000000e+00> : vector<128xf32>
    %13 = vector.multi_reduction <add>, %11, %cst_5 [0] : vector<54x128xf32> to vector<128xf32>
    %14 = vector.shape_cast %13 : vector<128xf32> to vector<1x128xf32>
    %15 = arith.addf %12, %14 : vector<1x128xf32>
    %c0_6 = arith.constant 0 : index
    %c0_7 = arith.constant 0 : index
    %16 = vector.load %arg2[%c0_6, %c0_7] : memref<1x128xf32, #tpu.memory_space<vmem>>, vector<1x128xf32>
    tpu.vector_store %arg2[%c0_6, %c0_7], %15 {strides = array<i32>} : memref<1x128xf32, #tpu.memory_space<vmem>>, vector<1x128xf32>,
    %c0_8 = arith.constant 0 : index
    %c0_9 = arith.constant 0 : index
    %17 = vector.load %arg3[%c0_8, %c0_9] : memref<1x128xf32, #tpu.memory_space<vmem>>, vector<1x128xf32>
    %18 = arith.mulf %11, %11 : vector<54x128xf32>
    %cst_10 = arith.constant dense<0.000000e+00> : vector<128xf32>
    %19 = vector.multi_reduction <add>, %18, %cst_10 [0] : vector<54x128xf32> to vector<128xf32>
    %20 = vector.shape_cast %19 : vector<128xf32> to vector<1x128xf32>
    %21 = arith.addf %17, %20 : vector<1x128xf32>
    %c0_11 = arith.constant 0 : index
    %c0_12 = arith.constant 0 : index
    %22 = vector.load %arg3[%c0_11, %c0_12] : memref<1x128xf32, #tpu.memory_space<vmem>>, vector<1x128xf32>
    tpu.vector_store %arg3[%c0_11, %c0_12], %21 {strides = array<i32>} : memref<1x128xf32, #tpu.memory_space<vmem>>, vector<1x128xf32>,
    return
  }
  func.func @transform_0(%arg0: i32) -> (i32, i32) {
    %c0_i32 = arith.constant 0 : i32
    %c0_i32_0 = arith.constant 0 : i32
    return %arg0, %c0_i32 : i32, i32
  }
  func.func @transform_1(%arg0: i32) -> (i32, i32) {
    %c0_i32 = arith.constant 0 : i32
    %c0_i32_0 = arith.constant 0 : i32
    %c0_i32_1 = arith.constant 0 : i32
    return %c0_i32, %c0_i32_0 : i32, i32
  }
  func.func @transform_2(%arg0: i32) -> (i32, i32) {
    %c0_i32 = arith.constant 0 : i32
    %c0_i32_0 = arith.constant 0 : i32
    %c0_i32_1 = arith.constant 0 : i32
    return %c0_i32, %c0_i32_0 : i32, i32
  }
}

module attributes {stable_mosaic.version = 11 : i64} {
  func.func @_bn_apply_kernel(%arg0: i32, %arg1: memref<54x128xbf16, #tpu.memory_space<vmem>>, %arg2: memref<1x128xf32, #tpu.memory_space<vmem>>, %arg3: memref<1x128xf32, #tpu.memory_space<vmem>>, %arg4: memref<54x128xbf16, #tpu.memory_space<vmem>>) attributes {dimension_semantics = [#tpu.dimension_semantics<parallel>], iteration_bounds = array<i64: 1>, scalar_prefetch = 0 : i64, scratch_operands = 0 : i64, tpu.core_type = #tpu.core_type<tc>, window_params = [{transform_indices = @transform_0, window_bounds = array<i64: 54, 128>}, {pipeline_mode = #tpu.pipeline_mode<synchronous>, transform_indices = @transform_1, window_bounds = array<i64: 1, 128>}, {pipeline_mode = #tpu.pipeline_mode<synchronous>, transform_indices = @transform_2, window_bounds = array<i64: 1, 128>}, {transform_indices = @transform_3, window_bounds = array<i64: 54, 128>}]} {
    %c0 = arith.constant 0 : index
    %c0_0 = arith.constant 0 : index
    %0 = vector.load %arg1[%c0, %c0_0] : memref<54x128xbf16, #tpu.memory_space<vmem>>, vector<54x128xbf16>
    %1 = arith.extf %0 : vector<54x128xbf16> to vector<54x128xf32>
    %c0_1 = arith.constant 0 : index
    %c0_2 = arith.constant 0 : index
    %2 = vector.load %arg2[%c0_1, %c0_2] : memref<1x128xf32, #tpu.memory_space<vmem>>, vector<1x128xf32>
    %3 = vector.broadcast %2 : vector<1x128xf32> to vector<54x128xf32>
    %4 = arith.mulf %1, %3 : vector<54x128xf32>
    %c0_3 = arith.constant 0 : index
    %c0_4 = arith.constant 0 : index
    %5 = vector.load %arg3[%c0_3, %c0_4] : memref<1x128xf32, #tpu.memory_space<vmem>>, vector<1x128xf32>
    %6 = vector.broadcast %5 : vector<1x128xf32> to vector<54x128xf32>
    %7 = arith.addf %4, %6 : vector<54x128xf32>
    %cst = arith.constant 0.000000e+00 : f32
    %8 = vector.broadcast %cst : f32 to vector<54x128xf32>
    %9 = arith.cmpf oge, %7, %8 : vector<54x128xf32>
    %cst_5 = arith.constant 2.000000e-01 : f32
    %10 = vector.broadcast %cst_5 : f32 to vector<54x128xf32>
    %11 = arith.mulf %10, %7 : vector<54x128xf32>
    %12 = arith.select %9, %7, %11 : vector<54x128xi1>, vector<54x128xf32>
    %13 = arith.truncf %12 : vector<54x128xf32> to vector<54x128xbf16>
    %c0_6 = arith.constant 0 : index
    %c0_7 = arith.constant 0 : index
    %14 = vector.load %arg4[%c0_6, %c0_7] : memref<54x128xbf16, #tpu.memory_space<vmem>>, vector<54x128xbf16>
    tpu.vector_store %arg4[%c0_6, %c0_7], %13 {strides = array<i32>} : memref<54x128xbf16, #tpu.memory_space<vmem>>, vector<54x128xbf16>,
    return
  }
  func.func @transform_0(%arg0: i32) -> (i32, i32) {
    %c0_i32 = arith.constant 0 : i32
    %c0_i32_0 = arith.constant 0 : i32
    return %arg0, %c0_i32 : i32, i32
  }
  func.func @transform_1(%arg0: i32) -> (i32, i32) {
    %c0_i32 = arith.constant 0 : i32
    %c0_i32_0 = arith.constant 0 : i32
    %c0_i32_1 = arith.constant 0 : i32
    return %c0_i32, %c0_i32_0 : i32, i32
  }
  func.func @transform_2(%arg0: i32) -> (i32, i32) {
    %c0_i32 = arith.constant 0 : i32
    %c0_i32_0 = arith.constant 0 : i32
    %c0_i32_1 = arith.constant 0 : i32
    return %c0_i32, %c0_i32_0 : i32, i32
  }
  func.func @transform_3(%arg0: i32) -> (i32, i32) {
    %c0_i32 = arith.constant 0 : i32
    %c0_i32_0 = arith.constant 0 : i32
    return %arg0, %c0_i32 : i32, i32
  }
}

module attributes {stable_mosaic.version = 11 : i64} {
  func.func @_gemm_bias_act_kernel(%arg0: i32, %arg1: i32, %arg2: i32, %arg3: memref<16x1024xbf16, #tpu.memory_space<vmem>>, %arg4: memref<1024x128xbf16, #tpu.memory_space<vmem>>, %arg5: memref<1x128xf32, #tpu.memory_space<vmem>>, %arg6: memref<16x128xf32, #tpu.memory_space<vmem>>, %arg7: memref<16x128xf32, #tpu.memory_space<vmem>>) attributes {dimension_semantics = [#tpu.dimension_semantics<parallel>, #tpu.dimension_semantics<parallel>, #tpu.dimension_semantics<arbitrary>], iteration_bounds = array<i64: 1, 1, 4>, scalar_prefetch = 0 : i64, scratch_operands = 1 : i64, tpu.core_type = #tpu.core_type<tc>, window_params = [{transform_indices = @transform_0, window_bounds = array<i64: 16, 1024>}, {transform_indices = @transform_1, window_bounds = array<i64: 1024, 128>}, {transform_indices = @transform_2, window_bounds = array<i64: 1, 128>}, {transform_indices = @transform_3, window_bounds = array<i64: 16, 128>}]} {
    %c0_i32 = arith.constant 0 : i32
    %0 = arith.cmpi eq, %arg2, %c0_i32 : i32
    %1 = arith.extui %0 : i1 to i32
    %c0_i32_0 = arith.constant 0 : i32
    %2 = arith.cmpi ne, %1, %c0_i32_0 : i32
    scf.if %2 {
      %cst_9 = arith.constant 0.000000e+00 : f32
      %12 = vector.broadcast %cst_9 : f32 to vector<16x128xf32>
      %c0_10 = arith.constant 0 : index
      %c0_11 = arith.constant 0 : index
      %13 = vector.load %arg7[%c0_10, %c0_11] : memref<16x128xf32, #tpu.memory_space<vmem>>, vector<16x128xf32>
      tpu.vector_store %arg7[%c0_10, %c0_11], %12 {strides = array<i32>} : memref<16x128xf32, #tpu.memory_space<vmem>>, vector<16x128xf32>,
    } else {
    }
    %c0 = arith.constant 0 : index
    %c0_1 = arith.constant 0 : index
    %3 = vector.load %arg7[%c0, %c0_1] : memref<16x128xf32, #tpu.memory_space<vmem>>, vector<16x128xf32>
    %c0_2 = arith.constant 0 : index
    %c0_3 = arith.constant 0 : index
    %4 = vector.load %arg3[%c0_2, %c0_3] : memref<16x1024xbf16, #tpu.memory_space<vmem>>, vector<16x1024xbf16>
    %c0_4 = arith.constant 0 : index
    %c0_5 = arith.constant 0 : index
    %5 = vector.load %arg4[%c0_4, %c0_5] : memref<1024x128xbf16, #tpu.memory_space<vmem>>, vector<1024x128xbf16>
    %cst = arith.constant dense<0.000000e+00> : vector<16x128xf32>
    %6 = tpu.matmul %4, %5, %cst {dimension_numbers = #tpu.dot_dimension_numbers<[1], [0], [0], [1], [0, 0, 1, 1], [], []>} : vector<16x1024xbf16>, vector<1024x128xbf16>, vector<16x128xf32> -> vector<16x128xf32>
    %7 = arith.addf %3, %6 : vector<16x128xf32>
    %c0_6 = arith.constant 0 : index
    %c0_7 = arith.constant 0 : index
    %8 = vector.load %arg7[%c0_6, %c0_7] : memref<16x128xf32, #tpu.memory_space<vmem>>, vector<16x128xf32>
    tpu.vector_store %arg7[%c0_6, %c0_7], %7 {strides = array<i32>} : memref<16x128xf32, #tpu.memory_space<vmem>>, vector<16x128xf32>,
    %c3_i32 = arith.constant 3 : i32
    %9 = arith.cmpi eq, %arg2, %c3_i32 : i32
    %10 = arith.extui %9 : i1 to i32
    %c0_i32_8 = arith.constant 0 : i32
    %11 = arith.cmpi ne, %10, %c0_i32_8 : i32
    scf.if %11 {
      %c0_9 = arith.constant 0 : index
      %c0_10 = arith.constant 0 : index
      %12 = vector.load %arg7[%c0_9, %c0_10] : memref<16x128xf32, #tpu.memory_space<vmem>>, vector<16x128xf32>
      %c0_11 = arith.constant 0 : index
      %c0_12 = arith.constant 0 : index
      %13 = vector.load %arg5[%c0_11, %c0_12] : memref<1x128xf32, #tpu.memory_space<vmem>>, vector<1x128xf32>
      %14 = vector.broadcast %13 : vector<1x128xf32> to vector<16x128xf32>
      %15 = arith.addf %12, %14 : vector<16x128xf32>
      %c0_13 = arith.constant 0 : index
      %c0_14 = arith.constant 0 : index
      %16 = vector.load %arg6[%c0_13, %c0_14] : memref<16x128xf32, #tpu.memory_space<vmem>>, vector<16x128xf32>
      tpu.vector_store %arg6[%c0_13, %c0_14], %15 {strides = array<i32>} : memref<16x128xf32, #tpu.memory_space<vmem>>, vector<16x128xf32>,
    } else {
    }
    return
  }
  func.func @transform_0(%arg0: i32, %arg1: i32, %arg2: i32) -> (i32, i32) {
    %c0_i32 = arith.constant 0 : i32
    return %arg0, %arg2 : i32, i32
  }
  func.func @transform_1(%arg0: i32, %arg1: i32, %arg2: i32) -> (i32, i32) {
    %c0_i32 = arith.constant 0 : i32
    return %arg2, %arg1 : i32, i32
  }
  func.func @transform_2(%arg0: i32, %arg1: i32, %arg2: i32) -> (i32, i32) {
    %c0_i32 = arith.constant 0 : i32
    %c0_i32_0 = arith.constant 0 : i32
    return %c0_i32, %arg1 : i32, i32
  }
  func.func @transform_3(%arg0: i32, %arg1: i32, %arg2: i32) -> (i32, i32) {
    %c0_i32 = arith.constant 0 : i32
    return %arg0, %arg1 : i32, i32
  }
}

</mosaic_0001>

<llo_original>
// kernel: forward_pallas.11
$region0: #{forward_pallas.11}
  #allocation0 [shape = 'u32[]', space=smem, size = 0x4, offset = 0x4, fixed_abs, tag = 'smem constant byte address 0x4 - core index']
  #allocation1 [shape = 'u32[144,128]{1,0:T(1,128)}', space=vmem, size = 0x12000, scoped, tag = 'internal scratch']
  #allocation2 [shape = 'f32[256,128]{1,0:T(8,128)}', space=vmem, size = 0x20000, scoped, tag = 'scratch operand']
  %s0 = inlined_call_operand.vmem [shape: bf16[8192,192], index: 0, kind: input, shape index: {}]
  %s1 = inlined_call_operand.vmem [shape: bf16[192,128], index: 1, kind: input, shape index: {}]
  %s2 = inlined_call_operand.vmem [shape: f32[1,128], index: 2, kind: input, shape index: {}]
  %s3 = inlined_call_operand.vmem [shape: bf16[8192,128], index: 3, kind: output, shape index: {}]
  %s4 = sld [smem:[#allocation0]]
  $region53: #{forward_pallas.11} parent=0
    _
  %s6 = ssub.s32 1, %s4
  %s7 = scalar_select 0, %s6, %s4
  loop: start=0, step=1, limit=34
  $region2: #{forward_pallas.11} parent=0 // loop_pre_header
    _
  $region3: #{forward_pallas.11} parent=0 // loop_header
    %s9 = sphi 0, %s13
    %p10 = scmp.ge.s32.totalorder %s9, 34
    %s16 = sphi 0, %s35
    %s17 = sphi 0, %s31
    %s18 = sphi 0, %s27
    %s19 = sphi 0, %s16
    %s20 = sphi 0, %s17
    %s21 = sphi 0, %s18
    %s22 = sphi 0, %s19
    %s23 = sphi 0, %s20
    %s24 = sphi 0, %s21
    %s40 = sphi 0, %s42
    %s43 = sphi 0, %s40
    %s44 = sphi 0, %s43
    %s60 = sphi 0, %s44
    %s68 = sphi 0, %s70
    %s71 = sphi 0, %s68
    %s72 = sphi 0, %s71
    %s88 = sphi 0, %s72
    %s94 = sphi 0, %s96
    %s97 = sphi 0, %s94
    %s98 = sphi 0, %s97
    %s114 = sphi 0, %s98
    %s122 = sphi 0, %s124
    %s125 = sphi 0, %s122
    %s126 = sphi 0, %s125
    %s142 = sphi 0, %s126
  $region4: #{forward_pallas.11} parent=0 // loop_header_branch
    %12 = sbr.rel (%p10) target = $region8
  $region5: #{forward_pallas.11} parent=0 // loop_body
    %s14 = ssub.s32 %s9, 1
    %s15 = ssub.s32 %s9, 2
    %s25 = sadd.s32 1, %s18
    %p26 = scmp.ge.s32.totalorder %s25, 1
    %s27 = scalar_select %p26, 0, %s25
    %s28 = sadd.s32 1, %s17
    %s29 = scalar_select %p26, %s28, %s17
    %p30 = scmp.ge.s32.totalorder %s29, 1
    %s31 = scalar_select %p30, 0, %s29
    %s32 = sadd.s32 1, %s16
    %s33 = scalar_select %p30, %s32, %s16
    %p34 = scmp.ge.s32.totalorder %s33, 32
    %s35 = scalar_select %p34, 0, %s33
    %s36 = ssub.s32 %s16, %s35
    %s37 = ssub.s32 %s18, %s27
    %s38 = sor.u32 %s36, %s37
    %p39 = scmp.eq.s32.totalorder %s38, 0
    %s41 = sadd.s32 %s40, 1
    %s42 = scalar_select %p39, %s40, %s41
    %p45 = pneg %p39
    %p46 = scmp.eq.s32.totalorder %s9, 31
    %p47 = por %p45, %p46
    %p48 = scmp.ne.s32.totalorder %s40, %s43
    %p49 = scmp.eq.s32.totalorder %s9, 0
    %p50 = por %p48, %p49
    %p51 = scmp.ne.s32.totalorder %s40, %s43
    %p52 = scmp.eq.s32.totalorder %s14, 31
    %p53 = por %p51, %p52
    %p54 = scmp.ne.s32.totalorder %s43, %s44
    %p55 = scmp.eq.s32.totalorder %s14, 0
    %p56 = por %p54, %p55
    %p57 = scmp.ne.s32.totalorder %s43, %s44
    %p58 = scmp.eq.s32.totalorder %s15, 31
    %p59 = por %p57, %p58
    %p61 = scmp.ne.s32.totalorder %s44, %s60
    %p62 = scmp.eq.s32.totalorder %s15, 0
    %p63 = por %p61, %p62
    %s64 = ssub.s32 %s18, %s27
    %s65 = ssub.s32 %s17, %s31
    %s66 = sor.u32 %s64, %s65
    %p67 = scmp.eq.s32.totalorder %s66, 0
    %s69 = sadd.s32 %s68, 1
    %s70 = scalar_select %p67, %s68, %s69
    %p73 = pneg %p67
    %p74 = scmp.eq.s32.totalorder %s9, 31
    %p75 = por %p73, %p74
    %p76 = scmp.ne.s32.totalorder %s68, %s71
    %p77 = scmp.eq.s32.totalorder %s9, 0
    %p78 = por %p76, %p77
    %p79 = scmp.ne.s32.totalorder %s68, %s71
    %p80 = scmp.eq.s32.totalorder %s14, 31
    %p81 = por %p79, %p80
    %p82 = scmp.ne.s32.totalorder %s71, %s72
    %p83 = scmp.eq.s32.totalorder %s14, 0
    %p84 = por %p82, %p83
    %p85 = scmp.ne.s32.totalorder %s71, %s72
    %p86 = scmp.eq.s32.totalorder %s15, 31
    %p87 = por %p85, %p86
    %p89 = scmp.ne.s32.totalorder %s72, %s88
    %p90 = scmp.eq.s32.totalorder %s15, 0
    %p91 = por %p89, %p90
    %s92 = ssub.s32 %s17, %s31
    %p93 = scmp.eq.s32.totalorder %s92, 0
    %s95 = sadd.s32 %s94, 1
    %s96 = scalar_select %p93, %s94, %s95
    %p99 = pneg %p93
    %p100 = scmp.eq.s32.totalorder %s9, 31
    %p101 = por %p99, %p100
    %p102 = scmp.ne.s32.totalorder %s94, %s97
    %p103 = scmp.eq.s32.totalorder %s9, 0
    %p104 = por %p102, %p103
    %p105 = scmp.ne.s32.totalorder %s94, %s97
    %p106 = scmp.eq.s32.totalorder %s14, 31
    %p107 = por %p105, %p106
    %p108 = scmp.ne.s32.totalorder %s97, %s98
    %p109 = scmp.eq.s32.totalorder %s14, 0
    %p110 = por %p108, %p109
    %p111 = scmp.ne.s32.totalorder %s97, %s98
    %p112 = scmp.eq.s32.totalorder %s15, 31
    %p113 = por %p111, %p112
    %p115 = scmp.ne.s32.totalorder %s98, %s114
    %p116 = scmp.eq.s32.totalorder %s15, 0
    %p117 = por %p115, %p116
    %s118 = ssub.s32 %s16, %s35
    %s119 = ssub.s32 %s17, %s31
    %s120 = sor.u32 %s118, %s119
    %p121 = scmp.eq.s32.totalorder %s120, 0
    %s123 = sadd.s32 %s122, 1
    %s124 = scalar_select %p121, %s122, %s123
    %p127 = pneg %p121
    %p128 = scmp.eq.s32.totalorder %s9, 31
    %p129 = por %p127, %p128
    %p130 = scmp.ne.s32.totalorder %s122, %s125
    %p131 = scmp.eq.s32.totalorder %s9, 0
    %p132 = por %p130, %p131
    %p133 = scmp.ne.s32.totalorder %s122, %s125
    %p134 = scmp.eq.s32.totalorder %s14, 31
    %p135 = por %p133, %p134
    %p136 = scmp.ne.s32.totalorder %s125, %s126
    %p137 = scmp.eq.s32.totalorder %s14, 0
    %p138 = por %p136, %p137
    %p139 = scmp.ne.s32.totalorder %s125, %s126
    %p140 = scmp.eq.s32.totalorder %s15, 31
    %p141 = por %p139, %p140
    %p143 = scmp.ne.s32.totalorder %s126, %s142
    %p144 = scmp.eq.s32.totalorder %s15, 0
    %p145 = por %p143, %p144
    %p146 = scmp.le.s32.totalorder 1, %s9
    %p147 = scmp.lt.s32.totalorder %s9, 33
    %p148 = pnand %p146, %p147
    %p149 = pneg %p148
    // Predicated region
    $region9: #{forward_pallas.11} parent=5 // pred_check
      _
    $region10: #{forward_pallas.11} parent=5 // pred_check_branch
      %151 = sbr.rel (%p148) target = $region12
    $region11: #{forward_pallas.11} parent=5 // pred_region
      %s152 = ssub.s32 %s9, 1
      // Predicated region
      $region13: #{forward_pallas.11} parent=11 // pred_check
        %p153 = pneg %p84
      $region14: #{forward_pallas.11} parent=11 // pred_check_branch
        %155 = sbr.rel (%p153) target = $region16
      $region15: #{forward_pallas.11} parent=11 // pred_region
        %s156 = smul.u32 24, %s21
        %p157 = scmp.lt.s32.totalorder %s156, 23
        %s158 = scalar_select %p157, %s156, 23
        %p159 = scmp.lt.s32.totalorder %s20, 0
        %s160 = scalar_select %p159, %s20, 0
        %s161 = sadd.s32 %s160, %s158
        %s162 = smul.addr %s161, 4
        %s163 = scalar_lea.vmem %s1, %s162
        %s164 = smul.u32 24, %s21
      $region16: #{forward_pallas.11} parent=11 // pred_fallthru
        _
      // Predicated region
      $region17: #{forward_pallas.11} parent=11 // pred_check
        %p165 = pneg %p110
      $region18: #{forward_pallas.11} parent=11 // pred_check_branch
        %167 = sbr.rel (%p165) target = $region20
      $region19: #{forward_pallas.11} parent=11 // pred_region
        %p168 = scmp.lt.s32.totalorder %s20, 0
        %s169 = scalar_select %p168, %s20, 0
        %s170 = scalar_lea.vmem %s2, %s169
      $region20: #{forward_pallas.11} parent=11 // pred_fallthru
        _
    $region12: #{forward_pallas.11} parent=5 // pred_fallthru
      _
    %p171 = scmp.lt.s32.totalorder %s9, 32
    // Predicated region
    $region21: #{forward_pallas.11} parent=5 // pred_check
      %p172 = pneg %p171
    $region22: #{forward_pallas.11} parent=5 // pred_check_branch
      %174 = sbr.rel (%p172) target = $region24
    $region23: #{forward_pallas.11} parent=5 // pred_region
      // Predicated region
      $region25: #{forward_pallas.11} parent=23 // pred_check
        %p175 = pneg %p50
      $region26: #{forward_pallas.11} parent=23 // pred_check_branch
        %177 = sbr.rel (%p175) target = $region28
      $region27: #{forward_pallas.11} parent=23 // pred_region
        %s178 = smul.u32 32, %s16
        %s179 = smul.u32 2, %s18
        %p180 = scmp.lt.s32.totalorder %s178, 1023
        %s181 = scalar_select %p180, %s178, 1023
        %p182 = scmp.lt.s32.totalorder %s179, 1
        %s183 = scalar_select %p182, %s179, 1
        %s184 = smul.addr %s181, 2
        %s185 = sadd.s32 %s183, %s184
        %s186 = smul.addr %s185, 4
        %s187 = scalar_lea.vmem %s0, %s186
        %s188 = smul.u32 32, %s16
        %s189 = smul.u32 2, %s18
      $region28: #{forward_pallas.11} parent=23 // pred_fallthru
        _
    $region24: #{forward_pallas.11} parent=5 // pred_fallthru
      _
    %p190 = scmp.le.s32.totalorder 1, %s9
    %p191 = scmp.lt.s32.totalorder %s9, 33
    %p192 = pnand %p190, %p191
    %p193 = pneg %p192
    // Predicated region
    $region29: #{forward_pallas.11} parent=5 // pred_check
      _
    $region30: #{forward_pallas.11} parent=5 // pred_check_branch
      %195 = sbr.rel (%p192) target = $region32
    $region31: #{forward_pallas.11} parent=5 // pred_region
      %s196 = ssub.s32 %s9, 1
      %s197 = smul.u32 32, %s19
      %s198 = smul.u32 2, %s21
      %p199 = scmp.lt.s32.totalorder %s197, 1023
      %s200 = scalar_select %p199, %s197, 1023
      %p201 = scmp.lt.s32.totalorder %s198, 1
      %s202 = scalar_select %p201, %s198, 1
      %s203 = smul.addr %s200, 2
      %s204 = sadd.s32 %s202, %s203
      %s205 = smul.addr %s204, 4
      %s206 = scalar_lea.vmem %s0, %s205
      %p207 = pneg %p56
      %p208 = pneg %p53
      %s209 = smul.u32 24, %s21
      %p210 = scmp.lt.s32.totalorder %s209, 23
      %s211 = scalar_select %p210, %s209, 23
      %p212 = scmp.lt.s32.totalorder %s20, 0
      %s213 = scalar_select %p212, %s20, 0
      %s214 = sadd.s32 %s213, %s211
      %s215 = smul.addr %s214, 4
      %s216 = scalar_lea.vmem %s1, %s215
      %p217 = pneg %p84
      %p218 = pneg %p81
      %p219 = scmp.lt.s32.totalorder %s20, 0
      %s220 = scalar_select %p219, %s20, 0
      %s221 = scalar_lea.vmem %s2, %s220
      %p222 = pneg %p110
      %p223 = pneg %p107
      %p224 = pneg %p138
      %p225 = pneg %p135
      %s226 = smul.u32 32, %s19
      %p227 = scmp.lt.s32.totalorder %s226, 1023
      %s228 = scalar_select %p227, %s226, 1023
      %p229 = scmp.lt.s32.totalorder %s20, 0
      %s230 = scalar_select %p229, %s20, 0
      %s231 = sadd.s32 %s230, %s228
      %s232 = smul.addr %s231, 4
      %s233 = scalar_lea.vmem %s3, %s232
      %s234 = smul.u32 32, %s19
      %s235 = smul.u32 2, %s21
      %p236 = scmp.lt.s32.totalorder %s234, 1023
      %s237 = scalar_select %p236, %s234, 1023
      %p238 = scmp.lt.s32.totalorder %s235, 1
      %s239 = scalar_select %p238, %s235, 1
      %s240 = smul.addr %s237, 2
      %s241 = sadd.s32 %s239, %s240
      %s242 = smul.addr %s241, 4
      %s243 = scalar_lea.vmem %s0, %s242
      %s244 = smul.u32 32, %s19
      %s245 = smul.u32 2, %s21
      %s246 = smul.u32 24, %s21
      %p247 = scmp.lt.s32.totalorder %s246, 23
      %s248 = scalar_select %p247, %s246, 23
      %p249 = scmp.lt.s32.totalorder %s20, 0
      %s250 = scalar_select %p249, %s20, 0
      %s251 = sadd.s32 %s250, %s248
      %s252 = smul.addr %s251, 4
      %s253 = scalar_lea.vmem %s1, %s252
      %s254 = smul.u32 24, %s21
      %p255 = scmp.lt.s32.totalorder %s20, 0
      %s256 = scalar_select %p255, %s20, 0
      %s257 = scalar_lea.vmem %s2, %s256
      %s258 = smul.u32 32, %s19
      %p259 = scmp.lt.s32.totalorder %s258, 1023
      %s260 = scalar_select %p259, %s258, 1023
      %p261 = scmp.lt.s32.totalorder %s20, 0
      %s262 = scalar_select %p261, %s20, 0
      %s263 = sadd.s32 %s262, %s260
      %s264 = smul.addr %s263, 4
      %s265 = scalar_lea.vmem %s3, %s264
      %s266 = smul.u32 32, %s19
      %p268 = scmp.eq.s32.totalorder %s21, 0
      // Predicated region
      $region33: #{forward_pallas.11} parent=31 // pred_check
        %p269 = pneg %p268
      $region34: #{forward_pallas.11} parent=31 // pred_check_branch
        %271 = sbr.rel (%p269) target = $region36
      $region35: #{forward_pallas.11} parent=31 // pred_region
        %272 = vst [vmem:[#allocation2] sm:$0xff] 0.0
        %273 = vst [vmem:[#allocation2 + $0x8] sm:$0xff] 0.0
        %274 = vst [vmem:[#allocation2 + $0x10] sm:$0xff] 0.0
        %275 = vst [vmem:[#allocation2 + $0x18] sm:$0xff] 0.0
        %276 = vst [vmem:[#allocation2 + $0x20] sm:$0xff] 0.0
        %277 = vst [vmem:[#allocation2 + $0x28] sm:$0xff] 0.0
        %278 = vst [vmem:[#allocation2 + $0x30] sm:$0xff] 0.0
        %279 = vst [vmem:[#allocation2 + $0x38] sm:$0xff] 0.0
        %280 = vst [vmem:[#allocation2 + $0x40] sm:$0xff] 0.0
        %281 = vst [vmem:[#allocation2 + $0x48] sm:$0xff] 0.0
        %282 = vst [vmem:[#allocation2 + $0x50] sm:$0xff] 0.0
        %283 = vst [vmem:[#allocation2 + $0x58] sm:$0xff] 0.0
        %284 = vst [vmem:[#allocation2 + $0x60] sm:$0xff] 0.0
        %285 = vst [vmem:[#allocation2 + $0x68] sm:$0xff] 0.0
        %286 = vst [vmem:[#allocation2 + $0x70] sm:$0xff] 0.0
        %287 = vst [vmem:[#allocation2 + $0x78] sm:$0xff] 0.0
        %288 = vst [vmem:[#allocation2 + $0x80] sm:$0xff] 0.0
        %289 = vst [vmem:[#allocation2 + $0x88] sm:$0xff] 0.0
        %290 = vst [vmem:[#allocation2 + $0x90] sm:$0xff] 0.0
        %291 = vst [vmem:[#allocation2 + $0x98] sm:$0xff] 0.0
        %292 = vst [vmem:[#allocation2 + $0xa0] sm:$0xff] 0.0
        %293 = vst [vmem:[#allocation2 + $0xa8] sm:$0xff] 0.0
        %294 = vst [vmem:[#allocation2 + $0xb0] sm:$0xff] 0.0
        %295 = vst [vmem:[#allocation2 + $0xb8] sm:$0xff] 0.0
        %296 = vst [vmem:[#allocation2 + $0xc0] sm:$0xff] 0.0
        %297 = vst [vmem:[#allocation2 + $0xc8] sm:$0xff] 0.0
        %298 = vst [vmem:[#allocation2 + $0xd0] sm:$0xff] 0.0
        %299 = vst [vmem:[#allocation2 + $0xd8] sm:$0xff] 0.0
        %300 = vst [vmem:[#allocation2 + $0xe0] sm:$0xff] 0.0
        %301 = vst [vmem:[#allocation2 + $0xe8] sm:$0xff] 0.0
        %302 = vst [vmem:[#allocation2 + $0xf0] sm:$0xff] 0.0
        %303 = vst [vmem:[#allocation2 + $0xf8] sm:$0xff] 0.0
      $region36: #{forward_pallas.11} parent=31 // pred_fallthru
        _
      %v304 = vld [vmem:[#allocation2] sm:$0xff]
      %v305 = vld [vmem:[#allocation2 + $0x8] sm:$0xff]
      %v306 = vld [vmem:[#allocation2 + $0x10] sm:$0xff]
      %v307 = vld [vmem:[#allocation2 + $0x18] sm:$0xff]
      %v308 = vld [vmem:[#allocation2 + $0x20] sm:$0xff]
      %v309 = vld [vmem:[#allocation2 + $0x28] sm:$0xff]
      %v310 = vld [vmem:[#allocation2 + $0x30] sm:$0xff]
      %v311 = vld [vmem:[#allocation2 + $0x38] sm:$0xff]
      %v312 = vld [vmem:[#allocation2 + $0x40] sm:$0xff]
      %v313 = vld [vmem:[#allocation2 + $0x48] sm:$0xff]
      %v314 = vld [vmem:[#allocation2 + $0x50] sm:$0xff]
      %v315 = vld [vmem:[#allocation2 + $0x58] sm:$0xff]
      %v316 = vld [vmem:[#allocation2 + $0x60] sm:$0xff]
      %v317 = vld [vmem:[#allocation2 + $0x68] sm:$0xff]
      %v318 = vld [vmem:[#allocation2 + $0x70] sm:$0xff]
      %v319 = vld [vmem:[#allocation2 + $0x78] sm:$0xff]
      %v320 = vld [vmem:[#allocation2 + $0x80] sm:$0xff]
      %v321 = vld [vmem:[#allocation2 + $0x88] sm:$0xff]
      %v322 = vld [vmem:[#allocation2 + $0x90] sm:$0xff]
      %v323 = vld [vmem:[#allocation2 + $0x98] sm:$0xff]
      %v324 = vld [vmem:[#allocation2 + $0xa0] sm:$0xff]
      %v325 = vld [vmem:[#allocation2 + $0xa8] sm:$0xff]
      %v326 = vld [vmem:[#allocation2 + $0xb0] sm:$0xff]
      %v327 = vld [vmem:[#allocation2 + $0xb8] sm:$0xff]
      %v328 = vld [vmem:[#allocation2 + $0xc0] sm:$0xff]
      %v329 = vld [vmem:[#allocation2 + $0xc8] sm:$0xff]
      %v330 = vld [vmem:[#allocation2 + $0xd0] sm:$0xff]
      %v331 = vld [vmem:[#allocation2 + $0xd8] sm:$0xff]
      %v332 = vld [vmem:[#allocation2 + $0xe0] sm:$0xff]
      %v333 = vld [vmem:[#allocation2 + $0xe8] sm:$0xff]
      %v334 = vld [vmem:[#allocation2 + $0xf0] sm:$0xff]
      %v335 = vld [vmem:[#allocation2 + $0xf8] sm:$0xff]
      %v336 = vld [vmem:[%s243] sm:$0xff]
      %v337 = vld [vmem:[%s243 + $0x8] sm:$0xff]
      %v338 = vld [vmem:[%s243 + $0x10] sm:$0xff]
      %v339 = vld [vmem:[%s243 + $0x18] sm:$0xff]
      %v340 = vld [vmem:[%s243 + $0x20] sm:$0xff]
      %v341 = vld [vmem:[%s243 + $0x28] sm:$0xff]
      %v342 = vld [vmem:[%s243 + $0x30] sm:$0xff]
      %v343 = vld [vmem:[%s243 + $0x38] sm:$0xff]
      %v344 = vld [vmem:[%s243 + $0x40] sm:$0xff]
      %v345 = vld [vmem:[%s243 + $0x48] sm:$0xff]
      %v346 = vld [vmem:[%s243 + $0x50] sm:$0xff]
      %v347 = vld [vmem:[%s243 + $0x58] sm:$0xff]
      %v348 = vld [vmem:[%s243 + $0x60] sm:$0xff]
      %v349 = vld [vmem:[%s243 + $0x68] sm:$0xff]
      %v350 = vld [vmem:[%s243 + $0x70] sm:$0xff]
      %v351 = vld [vmem:[%s243 + $0x78] sm:$0xff]
      %v352 = vld [vmem:[%s243 + $0x80] sm:$0xff]
      %v353 = vld [vmem:[%s243 + $0x88] sm:$0xff]
      %v354 = vld [vmem:[%s243 + $0x90] sm:$0xff]
      %v355 = vld [vmem:[%s243 + $0x98] sm:$0xff]
      %v356 = vld [vmem:[%s243 + $0xa0] sm:$0xff]
      %v357 = vld [vmem:[%s243 + $0xa8] sm:$0xff]
      %v358 = vld [vmem:[%s243 + $0xb0] sm:$0xff]
      %v359 = vld [vmem:[%s243 + $0xb8] sm:$0xff]
      %v360 = vld [vmem:[%s243 + $0xc0] sm:$0xff]
      %v361 = vld [vmem:[%s243 + $0xc8] sm:$0xff]
      %v362 = vld [vmem:[%s243 + $0xd0] sm:$0xff]
      %v363 = vld [vmem:[%s243 + $0xd8] sm:$0xff]
      %v364 = vld [vmem:[%s243 + $0xe0] sm:$0xff]
      %v365 = vld [vmem:[%s243 + $0xe8] sm:$0xff]
      %v366 = vld [vmem:[%s243 + $0xf0] sm:$0xff]
      %v367 = vld [vmem:[%s243 + $0xf8] sm:$0xff]
      %v368 = vld [vmem:[%s253] sm:$0xf]
      %v369 = vld [vmem:[%s253 + $0x4] sm:$0xf]
      %v370 = vld [vmem:[%s253 + $0x8] sm:$0xf]
      %v371 = vld [vmem:[%s253 + $0xc] sm:$0xf]
      %v372 = vld [vmem:[%s253 + $0x10] sm:$0xf]
      %v373 = vld [vmem:[%s253 + $0x14] sm:$0xf]
      %v374 = vld [vmem:[%s253 + $0x18] sm:$0xf]
      %v375 = vld [vmem:[%s253 + $0x1c] sm:$0xf]
      %v376 = vld [vmem:[%s253 + $0x20] sm:$0xf]
      %v377 = vld [vmem:[%s253 + $0x24] sm:$0xf]
      %v378 = vld [vmem:[%s253 + $0x28] sm:$0xf]
      %v379 = vld [vmem:[%s253 + $0x2c] sm:$0xf]
      %v380 = vld [vmem:[%s253 + $0x30] sm:$0xf]
      %v381 = vld [vmem:[%s253 + $0x34] sm:$0xf]
      %v382 = vld [vmem:[%s253 + $0x38] sm:$0xf]
      %v383 = vld [vmem:[%s253 + $0x3c] sm:$0xf]
      %v384 = vld [vmem:[%s253 + $0x40] sm:$0xf]
      %v385 = vld [vmem:[%s253 + $0x44] sm:$0xf]
      %v386 = vld [vmem:[%s253 + $0x48] sm:$0xf]
      %v387 = vld [vmem:[%s253 + $0x4c] sm:$0xf]
      %v388 = vld [vmem:[%s253 + $0x50] sm:$0xf]
      %v389 = vld [vmem:[%s253 + $0x54] sm:$0xf]
      %v390 = vld [vmem:[%s253 + $0x58] sm:$0xf]
      %v391 = vld [vmem:[%s253 + $0x5c] sm:$0xf]
      %v424 = vunpack.c.l.b16 %v336
      %v425 = vunpack.c.h.b16 %v336
      %v426 = vunpack.c.l.b16 %v337
      %v427 = vunpack.c.h.b16 %v337
      %v428 = vunpack.c.l.b16 %v338
      %v429 = vunpack.c.h.b16 %v338
      %v430 = vunpack.c.l.b16 %v339
      %v431 = vunpack.c.h.b16 %v339
      %v432 = vunpack.c.l.b16 %v340
      %v433 = vunpack.c.h.b16 %v340
      %v434 = vunpack.c.l.b16 %v341
      %v435 = vunpack.c.h.b16 %v341
      %v436 = vunpack.c.l.b16 %v342
      %v437 = vunpack.c.h.b16 %v342
      %v438 = vunpack.c.l.b16 %v343
      %v439 = vunpack.c.h.b16 %v343
      %v440 = vunpack.c.l.b16 %v344
      %v441 = vunpack.c.h.b16 %v344
      %v442 = vunpack.c.l.b16 %v345
      %v443 = vunpack.c.h.b16 %v345
      %v444 = vunpack.c.l.b16 %v346
      %v445 = vunpack.c.h.b16 %v346
      %v446 = vunpack.c.l.b16 %v347
      %v447 = vunpack.c.h.b16 %v347
      %v448 = vunpack.c.l.b16 %v348
      %v449 = vunpack.c.h.b16 %v348
      %v450 = vunpack.c.l.b16 %v349
      %v451 = vunpack.c.h.b16 %v349
      %v452 = vunpack.c.l.b16 %v350
      %v453 = vunpack.c.h.b16 %v350
      %v454 = vunpack.c.l.b16 %v351
      %v455 = vunpack.c.h.b16 %v351
      %v456 = vunpack.c.l.b16 %v352
      %v457 = vunpack.c.h.b16 %v352
      %v458 = vunpack.c.l.b16 %v353
      %v459 = vunpack.c.h.b16 %v353
      %v460 = vunpack.c.l.b16 %v354
      %v461 = vunpack.c.h.b16 %v354
      %v462 = vunpack.c.l.b16 %v355
      %v463 = vunpack.c.h.b16 %v355
      %v464 = vunpack.c.l.b16 %v356
      %v465 = vunpack.c.h.b16 %v356
      %v466 = vunpack.c.l.b16 %v357
      %v467 = vunpack.c.h.b16 %v357
      %v468 = vunpack.c.l.b16 %v358
      %v469 = vunpack.c.h.b16 %v358
      %v470 = vunpack.c.l.b16 %v359
      %v471 = vunpack.c.h.b16 %v359
      %v472 = vunpack.c.l.b16 %v360
      %v473 = vunpack.c.h.b16 %v360
      %v474 = vunpack.c.l.b16 %v361
      %v475 = vunpack.c.h.b16 %v361
      %v476 = vunpack.c.l.b16 %v362
      %v477 = vunpack.c.h.b16 %v362
      %v478 = vunpack.c.l.b16 %v363
      %v479 = vunpack.c.h.b16 %v363
      %v480 = vunpack.c.l.b16 %v364
      %v481 = vunpack.c.h.b16 %v364
      %v482 = vunpack.c.l.b16 %v365
      %v483 = vunpack.c.h.b16 %v365
      %v484 = vunpack.c.l.b16 %v366
      %v485 = vunpack.c.h.b16 %v366
      %v486 = vunpack.c.l.b16 %v367
      %v487 = vunpack.c.h.b16 %v367
      %v488 = vpack.c.b16 %v426, %v424
      %v489 = vpack.c.b16 %v427, %v425
      %v490 = vpack.c.b16 %v430, %v428
      %v491 = vpack.c.b16 %v431, %v429
      %v492 = vpack.c.b16 %v434, %v432
      %v493 = vpack.c.b16 %v435, %v433
      %v494 = vpack.c.b16 %v438, %v436
      %v495 = vpack.c.b16 %v439, %v437
      %v496 = vpack.c.b16 %v442, %v440
      %v497 = vpack.c.b16 %v443, %v441
      %v498 = vpack.c.b16 %v446, %v444
      %v499 = vpack.c.b16 %v447, %v445
      %v500 = vpack.c.b16 %v450, %v448
      %v501 = vpack.c.b16 %v451, %v449
      %v502 = vpack.c.b16 %v454, %v452
      %v503 = vpack.c.b16 %v455, %v453
      %v504 = vpack.c.b16 %v458, %v456
      %v505 = vpack.c.b16 %v459, %v457
      %v506 = vpack.c.b16 %v462, %v460
      %v507 = vpack.c.b16 %v463, %v461
      %v508 = vpack.c.b16 %v466, %v464
      %v509 = vpack.c.b16 %v467, %v465
      %v510 = vpack.c.b16 %v470, %v468
      %v511 = vpack.c.b16 %v471, %v469
      %v512 = vpack.c.b16 %v474, %v472
      %v513 = vpack.c.b16 %v475, %v473
      %v514 = vpack.c.b16 %v478, %v476
      %v515 = vpack.c.b16 %v479, %v477
      %v516 = vpack.c.b16 %v482, %v480
      %v517 = vpack.c.b16 %v483, %v481
      %v518 = vpack.c.b16 %v486, %v484
      %v519 = vpack.c.b16 %v487, %v485
      %v560 = vunpack.c.l.b16 %v368
      %v561 = vunpack.c.l.b16 %v369
      %v562 = vunpack.c.l.b16 %v370
      %v563 = vunpack.c.l.b16 %v371
      %v564 = vunpack.c.l.b16 %v372
      %v565 = vunpack.c.l.b16 %v373
      %v566 = vunpack.c.l.b16 %v374
      %v567 = vunpack.c.l.b16 %v375
      %v568 = vunpack.c.l.b16 %v376
      %v569 = vunpack.c.l.b16 %v377
      %v570 = vunpack.c.l.b16 %v378
      %v571 = vunpack.c.l.b16 %v379
      %v572 = vunpack.c.l.b16 %v380
      %v573 = vunpack.c.l.b16 %v381
      %v574 = vunpack.c.l.b16 %v382
      %v575 = vunpack.c.l.b16 %v383
      %v576 = vunpack.c.l.b16 %v384
      %v577 = vunpack.c.l.b16 %v385
      %v578 = vunpack.c.l.b16 %v386
      %v579 = vunpack.c.l.b16 %v387
      %v580 = vunpack.c.l.b16 %v388
      %v581 = vunpack.c.l.b16 %v389
      %v582 = vunpack.c.l.b16 %v390
      %v583 = vunpack.c.l.b16 %v391
      %v584 = vpack.c.b16 %v561, %v560
      %v585 = vpack.c.b16 %v563, %v562
      %v586 = vpack.c.b16 %v565, %v564
      %v587 = vpack.c.b16 %v567, %v566
      %v588 = vpack.c.b16 %v569, %v568
      %v589 = vpack.c.b16 %v571, %v570
      %v590 = vpack.c.b16 %v573, %v572
      %v591 = vpack.c.b16 %v575, %v574
      %v592 = vpack.c.b16 %v577, %v576
      %v593 = vpack.c.b16 %v579, %v578
      %v594 = vpack.c.b16 %v581, %v580
      %v595 = vpack.c.b16 %v583, %v582
      %vm608 = vcmask 523264
      %v610 = vsel %vm608, %v489, 0
      %v613 = vsel %vm608, %v491, 0
      %v616 = vsel %vm608, %v493, 0
      %v619 = vsel %vm608, %v495, 0
      %v622 = vsel %vm608, %v497, 0
      %v625 = vsel %vm608, %v499, 0
      %v628 = vsel %vm608, %v501, 0
      %v631 = vsel %vm608, %v503, 0
      %v634 = vsel %vm608, %v505, 0
      %v637 = vsel %vm608, %v507, 0
      %v640 = vsel %vm608, %v509, 0
      %v643 = vsel %vm608, %v511, 0
      %v646 = vsel %vm608, %v513, 0
      %v649 = vsel %vm608, %v515, 0
      %v652 = vsel %vm608, %v517, 0
      %v655 = vsel %vm608, %v519, 0
      %657 = vmatprep.subr.bf16.mxu0 0
      %658 = vmatpush1.bf16.msra.mxu0 %v584
      %659 = vmatprep.subr.bf16.mxu0 0
      %660 = vmatpush1.bf16.msra.mxu0 %v585
      %661 = vmatprep.subr.bf16.mxu0 0
      %662 = vmatpush1.bf16.msra.mxu0 %v586
      %663 = vmatprep.subr.bf16.mxu0 0
      %664 = vmatpush1.bf16.msra.mxu0 %v587
      %665 = vmatprep.subr.bf16.mxu0 0
      %666 = vmatpush1.bf16.msra.mxu0 %v588
      %667 = vmatprep.subr.bf16.mxu0 0
      %668 = vmatpush1.bf16.msra.mxu0 %v589
      %669 = vmatprep.subr.bf16.mxu0 0
      %670 = vmatpush1.bf16.msra.mxu0 %v590
      %671 = vmatprep.subr.bf16.mxu0 0
      %672 = vmatpush1.bf16.msra.mxu0 %v591
      %673 = vmatprep.subr.bf16.mxu0 0
      %674 = vmatpush1.bf16.msra.mxu0 %v592
      %675 = vmatprep.subr.bf16.mxu0 0
      %676 = vmatpush1.bf16.msra.mxu0 %v593
      %677 = vmatprep.subr.bf16.mxu0 0
      %678 = vmatpush1.bf16.msra.mxu0 %v594
      %679 = vmatprep.subr.bf16.mxu0 0
      %680 = vmatpush1.bf16.msra.mxu0 %v595
      %681 = vmatprep.subr.bf16.mxu0 0
      %682 = vmatpush1.bf16.msra.mxu0 0
      %683 = vmatprep.subr.bf16.mxu0 0
      %684 = vmatpush1.bf16.msra.mxu0 0
      %685 = vmatprep.subr.bf16.mxu0 0
      %686 = vmatpush1.bf16.msra.mxu0 0
      %687 = vmatprep.subr.bf16.mxu0 0
      %688 = vmatpush1.bf16.msra.mxu0 0
      %689 = vmatprep.mubr.bf16.mxu0 %v610
      %690 = vmatmul.mubr.bf16.gmra.mrb[0].mxu0 %v488
      %v691 = vpop.f32.mrb[0].mxu0
      %v692 = vadd.f32 0.0, %v691
      %v693 = vpop.f32.mrb[0].mxu0
      %v694 = vpop.f32.mrb[0].mxu0
      %v695 = vadd.f32 0.0, %v694
      %v696 = vpop.f32.mrb[0].mxu0
      %697 = vmatprep.mubr.bf16.mxu0 %v613
      %698 = vmatmul.mubr.bf16.gmra.mrb[0].mxu0 %v490
      %v699 = vpop.f32.mrb[0].mxu0
      %v700 = vadd.f32 0.0, %v699
      %v701 = vpop.f32.mrb[0].mxu0
      %v702 = vpop.f32.mrb[0].mxu0
      %v703 = vadd.f32 0.0, %v702
      %v704 = vpop.f32.mrb[0].mxu0
      %705 = vmatprep.mubr.bf16.mxu0 %v616
      %706 = vmatmul.mubr.bf16.gmra.mrb[0].mxu0 %v492
      %v707 = vpop.f32.mrb[0].mxu0
      %v708 = vadd.f32 0.0, %v707
      %v709 = vpop.f32.mrb[0].mxu0
      %v710 = vpop.f32.mrb[0].mxu0
      %v711 = vadd.f32 0.0, %v710
      %v712 = vpop.f32.mrb[0].mxu0
      %713 = vmatprep.mubr.bf16.mxu0 %v619
      %714 = vmatmul.mubr.bf16.gmra.mrb[0].mxu0 %v494
      %v715 = vpop.f32.mrb[0].mxu0
      %v716 = vadd.f32 0.0, %v715
      %v717 = vpop.f32.mrb[0].mxu0
      %v718 = vpop.f32.mrb[0].mxu0
      %v719 = vadd.f32 0.0, %v718
      %v720 = vpop.f32.mrb[0].mxu0
      %721 = vmatprep.mubr.bf16.mxu0 %v622
      %722 = vmatmul.mubr.bf16.gmra.mrb[0].mxu0 %v496
      %v723 = vpop.f32.mrb[0].mxu0
      %v724 = vadd.f32 0.0, %v723
      %v725 = vpop.f32.mrb[0].mxu0
      %v726 = vpop.f32.mrb[0].mxu0
      %v727 = vadd.f32 0.0, %v726
      %v728 = vpop.f32.mrb[0].mxu0
      %729 = vmatprep.mubr.bf16.mxu0 %v625
      %730 = vmatmul.mubr.bf16.gmra.mrb[0].mxu0 %v498
      %v731 = vpop.f32.mrb[0].mxu0
      %v732 = vadd.f32 0.0, %v731
      %v733 = vpop.f32.mrb[0].mxu0
      %v734 = vpop.f32.mrb[0].mxu0
      %v735 = vadd.f32 0.0, %v734
      %v736 = vpop.f32.mrb[0].mxu0
      %737 = vmatprep.mubr.bf16.mxu0 %v628
      %738 = vmatmul.mubr.bf16.gmra.mrb[0].mxu0 %v500
      %v739 = vpop.f32.mrb[0].mxu0
      %v740 = vadd.f32 0.0, %v739
      %v741 = vpop.f32.mrb[0].mxu0
      %v742 = vpop.f32.mrb[0].mxu0
      %v743 = vadd.f32 0.0, %v742
      %v744 = vpop.f32.mrb[0].mxu0
      %745 = vmatprep.mubr.bf16.mxu0 %v631
      %746 = vmatmul.mubr.bf16.gmra.mrb[0].mxu0 %v502
      %v747 = vpop.f32.mrb[0].mxu0
      %v748 = vadd.f32 0.0, %v747
      %v749 = vpop.f32.mrb[0].mxu0
      %v750 = vpop.f32.mrb[0].mxu0
      %v751 = vadd.f32 0.0, %v750
      %v752 = vpop.f32.mrb[0].mxu0
      %753 = vmatprep.mubr.bf16.mxu0 %v634
      %754 = vmatmul.mubr.bf16.gmra.mrb[0].mxu0 %v504
      %v755 = vpop.f32.mrb[0].mxu0
      %v756 = vadd.f32 0.0, %v755
      %v757 = vpop.f32.mrb[0].mxu0
      %v758 = vpop.f32.mrb[0].mxu0
      %v759 = vadd.f32 0.0, %v758
      %v760 = vpop.f32.mrb[0].mxu0
      %761 = vmatprep.mubr.bf16.mxu0 %v637
      %762 = vmatmul.mubr.bf16.gmra.mrb[0].mxu0 %v506
      %v763 = vpop.f32.mrb[0].mxu0
      %v764 = vadd.f32 0.0, %v763
      %v765 = vpop.f32.mrb[0].mxu0
      %v766 = vpop.f32.mrb[0].mxu0
      %v767 = vadd.f32 0.0, %v766
      %v768 = vpop.f32.mrb[0].mxu0
      %769 = vmatprep.mubr.bf16.mxu0 %v640
      %770 = vmatmul.mubr.bf16.gmra.mrb[0].mxu0 %v508
      %v771 = vpop.f32.mrb[0].mxu0
      %v772 = vadd.f32 0.0, %v771
      %v773 = vpop.f32.mrb[0].mxu0
      %v774 = vpop.f32.mrb[0].mxu0
      %v775 = vadd.f32 0.0, %v774
      %v776 = vpop.f32.mrb[0].mxu0
      %777 = vmatprep.mubr.bf16.mxu0 %v643
      %778 = vmatmul.mubr.bf16.gmra.mrb[0].mxu0 %v510
      %v779 = vpop.f32.mrb[0].mxu0
      %v780 = vadd.f32 0.0, %v779
      %v781 = vpop.f32.mrb[0].mxu0
      %v782 = vpop.f32.mrb[0].mxu0
      %v783 = vadd.f32 0.0, %v782
      %v784 = vpop.f32.mrb[0].mxu0
      %785 = vmatprep.mubr.bf16.mxu0 %v646
      %786 = vmatmul.mubr.bf16.gmra.mrb[0].mxu0 %v512
      %v787 = vpop.f32.mrb[0].mxu0
      %v788 = vadd.f32 0.0, %v787
      %v789 = vpop.f32.mrb[0].mxu0
      %v790 = vpop.f32.mrb[0].mxu0
      %v791 = vadd.f32 0.0, %v790
      %v792 = vpop.f32.mrb[0].mxu0
      %793 = vmatprep.mubr.bf16.mxu0 %v649
      %794 = vmatmul.mubr.bf16.gmra.mrb[0].mxu0 %v514
      %v795 = vpop.f32.mrb[0].mxu0
      %v796 = vadd.f32 0.0, %v795
      %v797 = vpop.f32.mrb[0].mxu0
      %v798 = vpop.f32.mrb[0].mxu0
      %v799 = vadd.f32 0.0, %v798
      %v800 = vpop.f32.mrb[0].mxu0
      %801 = vmatprep.mubr.bf16.mxu0 %v652
      %802 = vmatmul.mubr.bf16.gmra.mrb[0].mxu0 %v516
      %v803 = vpop.f32.mrb[0].mxu0
      %v804 = vadd.f32 0.0, %v803
      %v805 = vpop.f32.mrb[0].mxu0
      %v806 = vpop.f32.mrb[0].mxu0
      %v807 = vadd.f32 0.0, %v806
      %v808 = vpop.f32.mrb[0].mxu0
      %809 = vmatprep.mubr.bf16.mxu0 %v655
      %810 = vmatmul.mubr.bf16.gmra.mrb[0].mxu0 %v518
      %v811 = vpop.f32.mrb[0].mxu0
      %v812 = vadd.f32 0.0, %v811
      %v813 = vpop.f32.mrb[0].mxu0
      %v814 = vpop.f32.mrb[0].mxu0
      %v815 = vadd.f32 0.0, %v814
      %v816 = vpop.f32.mrb[0].mxu0
      %817 = vdwg.mxu0
      %v818 = vadd.f32 %v304, %v692
      %v819 = vadd.f32 %v305, %v695
      %v820 = vadd.f32 %v306, %v700
      %v821 = vadd.f32 %v307, %v703
      %v822 = vadd.f32 %v308, %v708
      %v823 = vadd.f32 %v309, %v711
      %v824 = vadd.f32 %v310, %v716
      %v825 = vadd.f32 %v311, %v719
      %v826 = vadd.f32 %v312, %v724
      %v827 = vadd.f32 %v313, %v727
      %v828 = vadd.f32 %v314, %v732
      %v829 = vadd.f32 %v315, %v735
      %v830 = vadd.f32 %v316, %v740
      %v831 = vadd.f32 %v317, %v743
      %v832 = vadd.f32 %v318, %v748
      %v833 = vadd.f32 %v319, %v751
      %v834 = vadd.f32 %v320, %v756
      %v835 = vadd.f32 %v321, %v759
      %v836 = vadd.f32 %v322, %v764
      %v837 = vadd.f32 %v323, %v767
      %v838 = vadd.f32 %v324, %v772
      %v839 = vadd.f32 %v325, %v775
      %v840 = vadd.f32 %v326, %v780
      %v841 = vadd.f32 %v327, %v783
      %v842 = vadd.f32 %v328, %v788
      %v843 = vadd.f32 %v329, %v791
      %v844 = vadd.f32 %v330, %v796
      %v845 = vadd.f32 %v331, %v799
      %v846 = vadd.f32 %v332, %v804
      %v847 = vadd.f32 %v333, %v807
      %v848 = vadd.f32 %v334, %v812
      %v849 = vadd.f32 %v335, %v815
      %850 = vst [vmem:[#allocation2] sm:$0xff] %v818
      %851 = vst [vmem:[#allocation2 + $0x8] sm:$0xff] %v819
      %852 = vst [vmem:[#allocation2 + $0x10] sm:$0xff] %v820
      %853 = vst [vmem:[#allocation2 + $0x18] sm:$0xff] %v821
      %854 = vst [vmem:[#allocation2 + $0x20] sm:$0xff] %v822
      %855 = vst [vmem:[#allocation2 + $0x28] sm:$0xff] %v823
      %856 = vst [vmem:[#allocation2 + $0x30] sm:$0xff] %v824
      %857 = vst [vmem:[#allocation2 + $0x38] sm:$0xff] %v825
      %858 = vst [vmem:[#allocation2 + $0x40] sm:$0xff] %v826
      %859 = vst [vmem:[#allocation2 + $0x48] sm:$0xff] %v827
      %860 = vst [vmem:[#allocation2 + $0x50] sm:$0xff] %v828
      %861 = vst [vmem:[#allocation2 + $0x58] sm:$0xff] %v829
      %862 = vst [vmem:[#allocation2 + $0x60] sm:$0xff] %v830
      %863 = vst [vmem:[#allocation2 + $0x68] sm:$0xff] %v831
      %864 = vst [vmem:[#allocation2 + $0x70] sm:$0xff] %v832
      %865 = vst [vmem:[#allocation2 + $0x78] sm:$0xff] %v833
      %866 = vst [vmem:[#allocation2 + $0x80] sm:$0xff] %v834
      %867 = vst [vmem:[#allocation2 + $0x88] sm:$0xff] %v835
      %868 = vst [vmem:[#allocation2 + $0x90] sm:$0xff] %v836
      %869 = vst [vmem:[#allocation2 + $0x98] sm:$0xff] %v837
      %870 = vst [vmem:[#allocation2 + $0xa0] sm:$0xff] %v838
      %871 = vst [vmem:[#allocation2 + $0xa8] sm:$0xff] %v839
      %872 = vst [vmem:[#allocation2 + $0xb0] sm:$0xff] %v840
      %873 = vst [vmem:[#allocation2 + $0xb8] sm:$0xff] %v841
      %874 = vst [vmem:[#allocation2 + $0xc0] sm:$0xff] %v842
      %875 = vst [vmem:[#allocation2 + $0xc8] sm:$0xff] %v843
      %876 = vst [vmem:[#allocation2 + $0xd0] sm:$0xff] %v844
      %877 = vst [vmem:[#allocation2 + $0xd8] sm:$0xff] %v845
      %878 = vst [vmem:[#allocation2 + $0xe0] sm:$0xff] %v846
      %879 = vst [vmem:[#allocation2 + $0xe8] sm:$0xff] %v847
      %880 = vst [vmem:[#allocation2 + $0xf0] sm:$0xff] %v848
      %881 = vst [vmem:[#allocation2 + $0xf8] sm:$0xff] %v849
      // Predicated region
      $region37: #{forward_pallas.11} parent=31 // pred_check
        %p882 = pneg %p268
      $region38: #{forward_pallas.11} parent=31 // pred_check_branch
        %884 = sbr.rel (%p882) target = $region40
      $region39: #{forward_pallas.11} parent=31 // pred_region
        %v885 = vld [vmem:[#allocation2] sm:$0xff]
        %v886 = vld [vmem:[#allocation2 + $0x8] sm:$0xff]
        %v887 = vld [vmem:[#allocation2 + $0x10] sm:$0xff]
        %v888 = vld [vmem:[#allocation2 + $0x18] sm:$0xff]
        %v889 = vld [vmem:[#allocation2 + $0x20] sm:$0xff]
        %v890 = vld [vmem:[#allocation2 + $0x28] sm:$0xff]
        %v891 = vld [vmem:[#allocation2 + $0x30] sm:$0xff]
        %v892 = vld [vmem:[#allocation2 + $0x38] sm:$0xff]
        %v893 = vld [vmem:[#allocation2 + $0x40] sm:$0xff]
        %v894 = vld [vmem:[#allocation2 + $0x48] sm:$0xff]
        %v895 = vld [vmem:[#allocation2 + $0x50] sm:$0xff]
        %v896 = vld [vmem:[#allocation2 + $0x58] sm:$0xff]
        %v897 = vld [vmem:[#allocation2 + $0x60] sm:$0xff]
        %v898 = vld [vmem:[#allocation2 + $0x68] sm:$0xff]
        %v899 = vld [vmem:[#allocation2 + $0x70] sm:$0xff]
        %v900 = vld [vmem:[#allocation2 + $0x78] sm:$0xff]
        %v901 = vld [vmem:[#allocation2 + $0x80] sm:$0xff]
        %v902 = vld [vmem:[#allocation2 + $0x88] sm:$0xff]
        %v903 = vld [vmem:[#allocation2 + $0x90] sm:$0xff]
        %v904 = vld [vmem:[#allocation2 + $0x98] sm:$0xff]
        %v905 = vld [vmem:[#allocation2 + $0xa0] sm:$0xff]
        %v906 = vld [vmem:[#allocation2 + $0xa8] sm:$0xff]
        %v907 = vld [vmem:[#allocation2 + $0xb0] sm:$0xff]
        %v908 = vld [vmem:[#allocation2 + $0xb8] sm:$0xff]
        %v909 = vld [vmem:[#allocation2 + $0xc0] sm:$0xff]
        %v910 = vld [vmem:[#allocation2 + $0xc8] sm:$0xff]
        %v911 = vld [vmem:[#allocation2 + $0xd0] sm:$0xff]
        %v912 = vld [vmem:[#allocation2 + $0xd8] sm:$0xff]
        %v913 = vld [vmem:[#allocation2 + $0xe0] sm:$0xff]
        %v914 = vld [vmem:[#allocation2 + $0xe8] sm:$0xff]
        %v915 = vld [vmem:[#allocation2 + $0xf0] sm:$0xff]
        %v916 = vld [vmem:[#allocation2 + $0xf8] sm:$0xff]
        %v917 = vld [vmem:[%s257] sm:$0x1]
        %v919 = vlaneseq
        %v920 = vshrl.u32 %v919, 7
        %v921 = vsub.s32 0, %v920
        %v922 = vrot.slane %v917, %v921
        %v924 = vadd.f32 %v885, %v922
        %v925 = vadd.f32 %v886, %v922
        %v926 = vadd.f32 %v887, %v922
        %v927 = vadd.f32 %v888, %v922
        %v928 = vadd.f32 %v889, %v922
        %v929 = vadd.f32 %v890, %v922
        %v930 = vadd.f32 %v891, %v922
        %v931 = vadd.f32 %v892, %v922
        %v932 = vadd.f32 %v893, %v922
        %v933 = vadd.f32 %v894, %v922
        %v934 = vadd.f32 %v895, %v922
        %v935 = vadd.f32 %v896, %v922
        %v936 = vadd.f32 %v897, %v922
        %v937 = vadd.f32 %v898, %v922
        %v938 = vadd.f32 %v899, %v922
        %v939 = vadd.f32 %v900, %v922
        %v940 = vadd.f32 %v901, %v922
        %v941 = vadd.f32 %v902, %v922
        %v942 = vadd.f32 %v903, %v922
        %v943 = vadd.f32 %v904, %v922
        %v944 = vadd.f32 %v905, %v922
        %v945 = vadd.f32 %v906, %v922
        %v946 = vadd.f32 %v907, %v922
        %v947 = vadd.f32 %v908, %v922
        %v948 = vadd.f32 %v909, %v922
        %v949 = vadd.f32 %v910, %v922
        %v950 = vadd.f32 %v911, %v922
        %v951 = vadd.f32 %v912, %v922
        %v952 = vadd.f32 %v913, %v922
        %v953 = vadd.f32 %v914, %v922
        %v954 = vadd.f32 %v915, %v922
        %v955 = vadd.f32 %v916, %v922
        %vm956 = vcmp.ge.f32.partialorder %v924, 0.0
        %vm957 = vcmp.ge.f32.partialorder %v925, 0.0
        %vm958 = vcmp.ge.f32.partialorder %v926, 0.0
        %vm959 = vcmp.ge.f32.partialorder %v927, 0.0
        %vm960 = vcmp.ge.f32.partialorder %v928, 0.0
        %vm961 = vcmp.ge.f32.partialorder %v929, 0.0
        %vm962 = vcmp.ge.f32.partialorder %v930, 0.0
        %vm963 = vcmp.ge.f32.partialorder %v931, 0.0
        %vm964 = vcmp.ge.f32.partialorder %v932, 0.0
        %vm965 = vcmp.ge.f32.partialorder %v933, 0.0
        %vm966 = vcmp.ge.f32.partialorder %v934, 0.0
        %vm967 = vcmp.ge.f32.partialorder %v935, 0.0
        %vm968 = vcmp.ge.f32.partialorder %v936, 0.0
        %vm969 = vcmp.ge.f32.partialorder %v937, 0.0
        %vm970 = vcmp.ge.f32.partialorder %v938, 0.0
        %vm971 = vcmp.ge.f32.partialorder %v939, 0.0
        %vm972 = vcmp.ge.f32.partialorder %v940, 0.0
        %vm973 = vcmp.ge.f32.partialorder %v941, 0.0
        %vm974 = vcmp.ge.f32.partialorder %v942, 0.0
        %vm975 = vcmp.ge.f32.partialorder %v943, 0.0
        %vm976 = vcmp.ge.f32.partialorder %v944, 0.0
        %vm977 = vcmp.ge.f32.partialorder %v945, 0.0
        %vm978 = vcmp.ge.f32.partialorder %v946, 0.0
        %vm979 = vcmp.ge.f32.partialorder %v947, 0.0
        %vm980 = vcmp.ge.f32.partialorder %v948, 0.0
        %vm981 = vcmp.ge.f32.partialorder %v949, 0.0
        %vm982 = vcmp.ge.f32.partialorder %v950, 0.0
        %vm983 = vcmp.ge.f32.partialorder %v951, 0.0
        %vm984 = vcmp.ge.f32.partialorder %v952, 0.0
        %vm985 = vcmp.ge.f32.partialorder %v953, 0.0
        %vm986 = vcmp.ge.f32.partialorder %v954, 0.0
        %vm987 = vcmp.ge.f32.partialorder %v955, 0.0
        %v988 = vmul.f32 %v924, 0.2
        %v989 = vmul.f32 %v925, 0.2
        %v990 = vmul.f32 %v926, 0.2
        %v991 = vmul.f32 %v927, 0.2
        %v992 = vmul.f32 %v928, 0.2
        %v993 = vmul.f32 %v929, 0.2
        %v994 = vmul.f32 %v930, 0.2
        %v995 = vmul.f32 %v931, 0.2
        %v996 = vmul.f32 %v932, 0.2
        %v997 = vmul.f32 %v933, 0.2
        %v998 = vmul.f32 %v934, 0.2
        %v999 = vmul.f32 %v935, 0.2
        %v1000 = vmul.f32 %v936, 0.2
        %v1001 = vmul.f32 %v937, 0.2
        %v1002 = vmul.f32 %v938, 0.2
        %v1003 = vmul.f32 %v939, 0.2
        %v1004 = vmul.f32 %v940, 0.2
        %v1005 = vmul.f32 %v941, 0.2
        %v1006 = vmul.f32 %v942, 0.2
        %v1007 = vmul.f32 %v943, 0.2
        %v1008 = vmul.f32 %v944, 0.2
        %v1009 = vmul.f32 %v945, 0.2
        %v1010 = vmul.f32 %v946, 0.2
        %v1011 = vmul.f32 %v947, 0.2
        %v1012 = vmul.f32 %v948, 0.2
        %v1013 = vmul.f32 %v949, 0.2
        %v1014 = vmul.f32 %v950, 0.2
        %v1015 = vmul.f32 %v951, 0.2
        %v1016 = vmul.f32 %v952, 0.2
        %v1017 = vmul.f32 %v953, 0.2
        %v1018 = vmul.f32 %v954, 0.2
        %v1019 = vmul.f32 %v955, 0.2
        %v1020 = vsel %vm956, %v924, %v988
        %v1021 = vsel %vm957, %v925, %v989
        %v1022 = vsel %vm958, %v926, %v990
        %v1023 = vsel %vm959, %v927, %v991
        %v1024 = vsel %vm960, %v928, %v992
        %v1025 = vsel %vm961, %v929, %v993
        %v1026 = vsel %vm962, %v930, %v994
        %v1027 = vsel %vm963, %v931, %v995
        %v1028 = vsel %vm964, %v932, %v996
        %v1029 = vsel %vm965, %v933, %v997
        %v1030 = vsel %vm966, %v934, %v998
        %v1031 = vsel %vm967, %v935, %v999
        %v1032 = vsel %vm968, %v936, %v1000
        %v1033 = vsel %vm969, %v937, %v1001
        %v1034 = vsel %vm970, %v938, %v1002
        %v1035 = vsel %vm971, %v939, %v1003
        %v1036 = vsel %vm972, %v940, %v1004
        %v1037 = vsel %vm973, %v941, %v1005
        %v1038 = vsel %vm974, %v942, %v1006
        %v1039 = vsel %vm975, %v943, %v1007
        %v1040 = vsel %vm976, %v944, %v1008
        %v1041 = vsel %vm977, %v945, %v1009
        %v1042 = vsel %vm978, %v946, %v1010
        %v1043 = vsel %vm979, %v947, %v1011
        %v1044 = vsel %vm980, %v948, %v1012
        %v1045 = vsel %vm981, %v949, %v1013
        %v1046 = vsel %vm982, %v950, %v1014
        %v1047 = vsel %vm983, %v951, %v1015
        %v1048 = vsel %vm984, %v952, %v1016
        %v1049 = vsel %vm985, %v953, %v1017
        %v1050 = vsel %vm986, %v954, %v1018
        %v1051 = vsel %vm987, %v955, %v1019
        %v1052 = vpack.c.bf16 %v1021, %v1020
        %v1053 = vpack.c.bf16 %v1023, %v1022
        %v1054 = vpack.c.bf16 %v1025, %v1024
        %v1055 = vpack.c.bf16 %v1027, %v1026
        %v1056 = vpack.c.bf16 %v1029, %v1028
        %v1057 = vpack.c.bf16 %v1031, %v1030
        %v1058 = vpack.c.bf16 %v1033, %v1032
        %v1059 = vpack.c.bf16 %v1035, %v1034
        %v1060 = vpack.c.bf16 %v1037, %v1036
        %v1061 = vpack.c.bf16 %v1039, %v1038
        %v1062 = vpack.c.bf16 %v1041, %v1040
        %v1063 = vpack.c.bf16 %v1043, %v1042
        %v1064 = vpack.c.bf16 %v1045, %v1044
        %v1065 = vpack.c.bf16 %v1047, %v1046
        %v1066 = vpack.c.bf16 %v1049, %v1048
        %v1067 = vpack.c.bf16 %v1051, %v1050
        %v1084 = vunpack.c.l.b16 %v1052
        %v1085 = vunpack.c.h.b16 %v1052
        %v1086 = vunpack.c.l.b16 %v1053
        %v1087 = vunpack.c.h.b16 %v1053
        %v1088 = vunpack.c.l.b16 %v1054
        %v1089 = vunpack.c.h.b16 %v1054
        %v1090 = vunpack.c.l.b16 %v1055
        %v1091 = vunpack.c.h.b16 %v1055
        %v1092 = vunpack.c.l.b16 %v1056
        %v1093 = vunpack.c.h.b16 %v1056
        %v1094 = vunpack.c.l.b16 %v1057
        %v1095 = vunpack.c.h.b16 %v1057
        %v1096 = vunpack.c.l.b16 %v1058
        %v1097 = vunpack.c.h.b16 %v1058
        %v1098 = vunpack.c.l.b16 %v1059
        %v1099 = vunpack.c.h.b16 %v1059
        %v1100 = vunpack.c.l.b16 %v1060
        %v1101 = vunpack.c.h.b16 %v1060
        %v1102 = vunpack.c.l.b16 %v1061
        %v1103 = vunpack.c.h.b16 %v1061
        %v1104 = vunpack.c.l.b16 %v1062
        %v1105 = vunpack.c.h.b16 %v1062
        %v1106 = vunpack.c.l.b16 %v1063
        %v1107 = vunpack.c.h.b16 %v1063
        %v1108 = vunpack.c.l.b16 %v1064
        %v1109 = vunpack.c.h.b16 %v1064
        %v1110 = vunpack.c.l.b16 %v1065
        %v1111 = vunpack.c.h.b16 %v1065
        %v1112 = vunpack.c.l.b16 %v1066
        %v1113 = vunpack.c.h.b16 %v1066
        %v1114 = vunpack.c.l.b16 %v1067
        %v1115 = vunpack.c.h.b16 %v1067
        %v1116 = vpack.c.b16 %v1084, %v1084
        %v1117 = vpack.c.b16 %v1085, %v1085
        %v1118 = vpack.c.b16 %v1086, %v1086
        %v1119 = vpack.c.b16 %v1087, %v1087
        %v1120 = vpack.c.b16 %v1088, %v1088
        %v1121 = vpack.c.b16 %v1089, %v1089
        %v1122 = vpack.c.b16 %v1090, %v1090
        %v1123 = vpack.c.b16 %v1091, %v1091
        %v1124 = vpack.c.b16 %v1092, %v1092
        %v1125 = vpack.c.b16 %v1093, %v1093
        %v1126 = vpack.c.b16 %v1094, %v1094
        %v1127 = vpack.c.b16 %v1095, %v1095
        %v1128 = vpack.c.b16 %v1096, %v1096
        %v1129 = vpack.c.b16 %v1097, %v1097
        %v1130 = vpack.c.b16 %v1098, %v1098
        %v1131 = vpack.c.b16 %v1099, %v1099
        %v1132 = vpack.c.b16 %v1100, %v1100
        %v1133 = vpack.c.b16 %v1101, %v1101
        %v1134 = vpack.c.b16 %v1102, %v1102
        %v1135 = vpack.c.b16 %v1103, %v1103
        %v1136 = vpack.c.b16 %v1104, %v1104
        %v1137 = vpack.c.b16 %v1105, %v1105
        %v1138 = vpack.c.b16 %v1106, %v1106
        %v1139 = vpack.c.b16 %v1107, %v1107
        %v1140 = vpack.c.b16 %v1108, %v1108
        %v1141 = vpack.c.b16 %v1109, %v1109
        %v1142 = vpack.c.b16 %v1110, %v1110
        %v1143 = vpack.c.b16 %v1111, %v1111
        %v1144 = vpack.c.b16 %v1112, %v1112
        %v1145 = vpack.c.b16 %v1113, %v1113
        %v1146 = vpack.c.b16 %v1114, %v1114
        %v1147 = vpack.c.b16 %v1115, %v1115
        %1180 = vst [vmem:[%s265] sm:$0xf] %v1116
        %1181 = vst [vmem:[%s265 + $0x4] sm:$0xf] %v1117
        %1182 = vst [vmem:[%s265 + $0x8] sm:$0xf] %v1118
        %1183 = vst [vmem:[%s265 + $0xc] sm:$0xf] %v1119
        %1184 = vst [vmem:[%s265 + $0x10] sm:$0xf] %v1120
        %1185 = vst [vmem:[%s265 + $0x14] sm:$0xf] %v1121
        %1186 = vst [vmem:[%s265 + $0x18] sm:$0xf] %v1122
        %1187 = vst [vmem:[%s265 + $0x1c] sm:$0xf] %v1123
        %1188 = vst [vmem:[%s265 + $0x20] sm:$0xf] %v1124
        %1189 = vst [vmem:[%s265 + $0x24] sm:$0xf] %v1125
        %1190 = vst [vmem:[%s265 + $0x28] sm:$0xf] %v1126
        %1191 = vst [vmem:[%s265 + $0x2c] sm:$0xf] %v1127
        %1192 = vst [vmem:[%s265 + $0x30] sm:$0xf] %v1128
        %1193 = vst [vmem:[%s265 + $0x34] sm:$0xf] %v1129
        %1194 = vst [vmem:[%s265 + $0x38] sm:$0xf] %v1130
        %1195 = vst [vmem:[%s265 + $0x3c] sm:$0xf] %v1131
        %1196 = vst [vmem:[%s265 + $0x40] sm:$0xf] %v1132
        %1197 = vst [vmem:[%s265 + $0x44] sm:$0xf] %v1133
        %1198 = vst [vmem:[%s265 + $0x48] sm:$0xf] %v1134
        %1199 = vst [vmem:[%s265 + $0x4c] sm:$0xf] %v1135
        %1200 = vst [vmem:[%s265 + $0x50] sm:$0xf] %v1136
        %1201 = vst [vmem:[%s265 + $0x54] sm:$0xf] %v1137
        %1202 = vst [vmem:[%s265 + $0x58] sm:$0xf] %v1138
        %1203 = vst [vmem:[%s265 + $0x5c] sm:$0xf] %v1139
        %1204 = vst [vmem:[%s265 + $0x60] sm:$0xf] %v1140
        %1205 = vst [vmem:[%s265 + $0x64] sm:$0xf] %v1141
        %1206 = vst [vmem:[%s265 + $0x68] sm:$0xf] %v1142
        %1207 = vst [vmem:[%s265 + $0x6c] sm:$0xf] %v1143
        %1208 = vst [vmem:[%s265 + $0x70] sm:$0xf] %v1144
        %1209 = vst [vmem:[%s265 + $0x74] sm:$0xf] %v1145
        %1210 = vst [vmem:[%s265 + $0x78] sm:$0xf] %v1146
        %1211 = vst [vmem:[%s265 + $0x7c] sm:$0xf] %v1147
      $region40: #{forward_pallas.11} parent=31 // pred_fallthru
        _
      %s1212 = smul.u32 32, %s19
      %p1213 = scmp.lt.s32.totalorder %s1212, 1023
      %s1214 = scalar_select %p1213, %s1212, 1023
      %p1215 = scmp.lt.s32.totalorder %s20, 0
      %s1216 = scalar_select %p1215, %s20, 0
      %s1217 = sadd.s32 %s1216, %s1214
      %s1218 = smul.addr %s1217, 4
      %s1219 = scalar_lea.vmem %s3, %s1218
      // Predicated region
      $region41: #{forward_pallas.11} parent=31 // pred_check
        %p1220 = pneg %p135
      $region42: #{forward_pallas.11} parent=31 // pred_check_branch
        %1222 = sbr.rel (%p1220) target = $region44
      $region43: #{forward_pallas.11} parent=31 // pred_region
        %s1223 = smul.u32 32, %s19
      $region44: #{forward_pallas.11} parent=31 // pred_fallthru
        _
    $region32: #{forward_pallas.11} parent=5 // pred_fallthru
      _
    %p1224 = scmp.le.s32.totalorder 2, %s9
    // Predicated region
    $region45: #{forward_pallas.11} parent=5 // pred_check
      %p1225 = pneg %p1224
    $region46: #{forward_pallas.11} parent=5 // pred_check_branch
      %1227 = sbr.rel (%p1225) target = $region48
    $region47: #{forward_pallas.11} parent=5 // pred_region
      %s1228 = ssub.s32 %s9, 2
      // Predicated region
      $region49: #{forward_pallas.11} parent=47 // pred_check
        %p1229 = pneg %p141
      $region50: #{forward_pallas.11} parent=47 // pred_check_branch
        %1231 = sbr.rel (%p1229) target = $region52
      $region51: #{forward_pallas.11} parent=47 // pred_region
        %s1232 = smul.u32 32, %s22
        %p1233 = scmp.lt.s32.totalorder %s1232, 1023
        %s1234 = scalar_select %p1233, %s1232, 1023
        %p1235 = scmp.lt.s32.totalorder %s23, 0
        %s1236 = scalar_select %p1235, %s23, 0
        %s1237 = sadd.s32 %s1236, %s1234
        %s1238 = smul.addr %s1237, 4
        %s1239 = scalar_lea.vmem %s3, %s1238
      $region52: #{forward_pallas.11} parent=47 // pred_fallthru
        _
    $region48: #{forward_pallas.11} parent=5 // pred_fallthru
      _
  $region6: #{forward_pallas.11} parent=0 // loop_footer
    %s13 = sadd.s32 1, %s9
  $region7: #{forward_pallas.11} parent=0 // loop_footer_branch
    %8 = sbr.rel target = $region3
  $region8: #{forward_pallas.11} parent=0 // loop_exit
    _

// kernel: forward_pallas.12
$region0: #{forward_pallas.12}
  #allocation0 [shape = 'u32[]', space=smem, size = 0x4, offset = 0x4, fixed_abs, tag = 'smem constant byte address 0x4 - core index']
  #allocation1 [shape = 'u32[144,128]{1,0:T(1,128)}', space=vmem, size = 0x12000, scoped, tag = 'internal scratch']
  #allocation2 [shape = 'f32[256,128]{1,0:T(8,128)}', space=vmem, size = 0x20000, scoped, tag = 'scratch operand']
  %s0 = inlined_call_operand.vmem [shape: bf16[1024,512], index: 0, kind: input, shape index: {}]
  %s1 = inlined_call_operand.vmem [shape: bf16[512,128], index: 1, kind: input, shape index: {}]
  %s2 = inlined_call_operand.vmem [shape: f32[1,128], index: 2, kind: input, shape index: {}]
  %s3 = inlined_call_operand.vmem [shape: bf16[1024,128], index: 3, kind: output, shape index: {}]
  %s4 = sld [smem:[#allocation0]]
  $region53: #{forward_pallas.12} parent=0
    _
  %s6 = ssub.s32 1, %s4
  %s7 = scalar_select 0, %s6, %s4
  loop: start=0, step=1, limit=6
  $region2: #{forward_pallas.12} parent=0 // loop_pre_header
    _
  $region3: #{forward_pallas.12} parent=0 // loop_header
    %s9 = sphi 0, %s13
    %p10 = scmp.ge.s32.totalorder %s9, 6
    %s16 = sphi 0, %s35
    %s17 = sphi 0, %s31
    %s18 = sphi 0, %s27
    %s19 = sphi 0, %s16
    %s20 = sphi 0, %s17
    %s21 = sphi 0, %s18
    %s22 = sphi 0, %s19
    %s23 = sphi 0, %s20
    %s24 = sphi 0, %s21
    %s40 = sphi 0, %s42
    %s43 = sphi 0, %s40
    %s44 = sphi 0, %s43
    %s60 = sphi 0, %s44
    %s68 = sphi 0, %s70
    %s71 = sphi 0, %s68
    %s72 = sphi 0, %s71
    %s88 = sphi 0, %s72
    %s94 = sphi 0, %s96
    %s97 = sphi 0, %s94
    %s98 = sphi 0, %s97
    %s114 = sphi 0, %s98
    %s122 = sphi 0, %s124
    %s125 = sphi 0, %s122
    %s126 = sphi 0, %s125
    %s142 = sphi 0, %s126
  $region4: #{forward_pallas.12} parent=0 // loop_header_branch
    %12 = sbr.rel (%p10) target = $region8
  $region5: #{forward_pallas.12} parent=0 // loop_body
    %s14 = ssub.s32 %s9, 1
    %s15 = ssub.s32 %s9, 2
    %s25 = sadd.s32 1, %s18
    %p26 = scmp.ge.s32.totalorder %s25, 1
    %s27 = scalar_select %p26, 0, %s25
    %s28 = sadd.s32 1, %s17
    %s29 = scalar_select %p26, %s28, %s17
    %p30 = scmp.ge.s32.totalorder %s29, 1
    %s31 = scalar_select %p30, 0, %s29
    %s32 = sadd.s32 1, %s16
    %s33 = scalar_select %p30, %s32, %s16
    %p34 = scmp.ge.s32.totalorder %s33, 4
    %s35 = scalar_select %p34, 0, %s33
    %s36 = ssub.s32 %s16, %s35
    %s37 = ssub.s32 %s18, %s27
    %s38 = sor.u32 %s36, %s37
    %p39 = scmp.eq.s32.totalorder %s38, 0
    %s41 = sadd.s32 %s40, 1
    %s42 = scalar_select %p39, %s40, %s41
    %p45 = pneg %p39
    %p46 = scmp.eq.s32.totalorder %s9, 3
    %p47 = por %p45, %p46
    %p48 = scmp.ne.s32.totalorder %s40, %s43
    %p49 = scmp.eq.s32.totalorder %s9, 0
    %p50 = por %p48, %p49
    %p51 = scmp.ne.s32.totalorder %s40, %s43
    %p52 = scmp.eq.s32.totalorder %s14, 3
    %p53 = por %p51, %p52
    %p54 = scmp.ne.s32.totalorder %s43, %s44
    %p55 = scmp.eq.s32.totalorder %s14, 0
    %p56 = por %p54, %p55
    %p57 = scmp.ne.s32.totalorder %s43, %s44
    %p58 = scmp.eq.s32.totalorder %s15, 3
    %p59 = por %p57, %p58
    %p61 = scmp.ne.s32.totalorder %s44, %s60
    %p62 = scmp.eq.s32.totalorder %s15, 0
    %p63 = por %p61, %p62
    %s64 = ssub.s32 %s18, %s27
    %s65 = ssub.s32 %s17, %s31
    %s66 = sor.u32 %s64, %s65
    %p67 = scmp.eq.s32.totalorder %s66, 0
    %s69 = sadd.s32 %s68, 1
    %s70 = scalar_select %p67, %s68, %s69
    %p73 = pneg %p67
    %p74 = scmp.eq.s32.totalorder %s9, 3
    %p75 = por %p73, %p74
    %p76 = scmp.ne.s32.totalorder %s68, %s71
    %p77 = scmp.eq.s32.totalorder %s9, 0
    %p78 = por %p76, %p77
    %p79 = scmp.ne.s32.totalorder %s68, %s71
    %p80 = scmp.eq.s32.totalorder %s14, 3
    %p81 = por %p79, %p80
    %p82 = scmp.ne.s32.totalorder %s71, %s72
    %p83 = scmp.eq.s32.totalorder %s14, 0
    %p84 = por %p82, %p83
    %p85 = scmp.ne.s32.totalorder %s71, %s72
    %p86 = scmp.eq.s32.totalorder %s15, 3
    %p87 = por %p85, %p86
    %p89 = scmp.ne.s32.totalorder %s72, %s88
    %p90 = scmp.eq.s32.totalorder %s15, 0
    %p91 = por %p89, %p90
    %s92 = ssub.s32 %s17, %s31
    %p93 = scmp.eq.s32.totalorder %s92, 0
    %s95 = sadd.s32 %s94, 1
    %s96 = scalar_select %p93, %s94, %s95
    %p99 = pneg %p93
    %p100 = scmp.eq.s32.totalorder %s9, 3
    %p101 = por %p99, %p100
    %p102 = scmp.ne.s32.totalorder %s94, %s97
    %p103 = scmp.eq.s32.totalorder %s9, 0
    %p104 = por %p102, %p103
    %p105 = scmp.ne.s32.totalorder %s94, %s97
    %p106 = scmp.eq.s32.totalorder %s14, 3
    %p107 = por %p105, %p106
    %p108 = scmp.ne.s32.totalorder %s97, %s98
    %p109 = scmp.eq.s32.totalorder %s14, 0
    %p110 = por %p108, %p109
    %p111 = scmp.ne.s32.totalorder %s97, %s98
    %p112 = scmp.eq.s32.totalorder %s15, 3
    %p113 = por %p111, %p112
    %p115 = scmp.ne.s32.totalorder %s98, %s114
    %p116 = scmp.eq.s32.totalorder %s15, 0
    %p117 = por %p115, %p116
    %s118 = ssub.s32 %s16, %s35
    %s119 = ssub.s32 %s17, %s31
    %s120 = sor.u32 %s118, %s119
    %p121 = scmp.eq.s32.totalorder %s120, 0
    %s123 = sadd.s32 %s122, 1
    %s124 = scalar_select %p121, %s122, %s123
    %p127 = pneg %p121
    %p128 = scmp.eq.s32.totalorder %s9, 3
    %p129 = por %p127, %p128
    %p130 = scmp.ne.s32.totalorder %s122, %s125
    %p131 = scmp.eq.s32.totalorder %s9, 0
    %p132 = por %p130, %p131
    %p133 = scmp.ne.s32.totalorder %s122, %s125
    %p134 = scmp.eq.s32.totalorder %s14, 3
    %p135 = por %p133, %p134
    %p136 = scmp.ne.s32.totalorder %s125, %s126
    %p137 = scmp.eq.s32.totalorder %s14, 0
    %p138 = por %p136, %p137
    %p139 = scmp.ne.s32.totalorder %s125, %s126
    %p140 = scmp.eq.s32.totalorder %s15, 3
    %p141 = por %p139, %p140
    %p143 = scmp.ne.s32.totalorder %s126, %s142
    %p144 = scmp.eq.s32.totalorder %s15, 0
    %p145 = por %p143, %p144
    %p146 = scmp.le.s32.totalorder 1, %s9
    %p147 = scmp.lt.s32.totalorder %s9, 5
    %p148 = pnand %p146, %p147
    %p149 = pneg %p148
    // Predicated region
    $region9: #{forward_pallas.12} parent=5 // pred_check
      _
    $region10: #{forward_pallas.12} parent=5 // pred_check_branch
      %151 = sbr.rel (%p148) target = $region12
    $region11: #{forward_pallas.12} parent=5 // pred_region
      %s152 = ssub.s32 %s9, 1
      // Predicated region
      $region13: #{forward_pallas.12} parent=11 // pred_check
        %p153 = pneg %p84
      $region14: #{forward_pallas.12} parent=11 // pred_check_branch
        %155 = sbr.rel (%p153) target = $region16
      $region15: #{forward_pallas.12} parent=11 // pred_region
        %s156 = smul.u32 64, %s21
        %p157 = scmp.lt.s32.totalorder %s156, 63
        %s158 = scalar_select %p157, %s156, 63
        %p159 = scmp.lt.s32.totalorder %s20, 0
        %s160 = scalar_select %p159, %s20, 0
        %s161 = sadd.s32 %s160, %s158
        %s162 = smul.addr %s161, 4
        %s163 = scalar_lea.vmem %s1, %s162
        %s164 = smul.u32 64, %s21
      $region16: #{forward_pallas.12} parent=11 // pred_fallthru
        _
      // Predicated region
      $region17: #{forward_pallas.12} parent=11 // pred_check
        %p165 = pneg %p110
      $region18: #{forward_pallas.12} parent=11 // pred_check_branch
        %167 = sbr.rel (%p165) target = $region20
      $region19: #{forward_pallas.12} parent=11 // pred_region
        %p168 = scmp.lt.s32.totalorder %s20, 0
        %s169 = scalar_select %p168, %s20, 0
        %s170 = scalar_lea.vmem %s2, %s169
      $region20: #{forward_pallas.12} parent=11 // pred_fallthru
        _
    $region12: #{forward_pallas.12} parent=5 // pred_fallthru
      _
    %p171 = scmp.lt.s32.totalorder %s9, 4
    // Predicated region
    $region21: #{forward_pallas.12} parent=5 // pred_check
      %p172 = pneg %p171
    $region22: #{forward_pallas.12} parent=5 // pred_check_branch
      %174 = sbr.rel (%p172) target = $region24
    $region23: #{forward_pallas.12} parent=5 // pred_region
      // Predicated region
      $region25: #{forward_pallas.12} parent=23 // pred_check
        %p175 = pneg %p50
      $region26: #{forward_pallas.12} parent=23 // pred_check_branch
        %177 = sbr.rel (%p175) target = $region28
      $region27: #{forward_pallas.12} parent=23 // pred_region
        %s178 = smul.u32 32, %s16
        %s179 = smul.u32 4, %s18
        %p180 = scmp.lt.s32.totalorder %s178, 127
        %s181 = scalar_select %p180, %s178, 127
        %p182 = scmp.lt.s32.totalorder %s179, 3
        %s183 = scalar_select %p182, %s179, 3
        %s184 = smul.addr %s181, 4
        %s185 = sadd.s32 %s183, %s184
        %s186 = smul.addr %s185, 4
        %s187 = scalar_lea.vmem %s0, %s186
        %s188 = smul.u32 32, %s16
        %s189 = smul.u32 4, %s18
      $region28: #{forward_pallas.12} parent=23 // pred_fallthru
        _
    $region24: #{forward_pallas.12} parent=5 // pred_fallthru
      _
    %p190 = scmp.le.s32.totalorder 1, %s9
    %p191 = scmp.lt.s32.totalorder %s9, 5
    %p192 = pnand %p190, %p191
    %p193 = pneg %p192
    // Predicated region
    $region29: #{forward_pallas.12} parent=5 // pred_check
      _
    $region30: #{forward_pallas.12} parent=5 // pred_check_branch
      %195 = sbr.rel (%p192) target = $region32
    $region31: #{forward_pallas.12} parent=5 // pred_region
      %s196 = ssub.s32 %s9, 1
      %s197 = smul.u32 32, %s19
      %s198 = smul.u32 4, %s21
      %p199 = scmp.lt.s32.totalorder %s197, 127
      %s200 = scalar_select %p199, %s197, 127
      %p201 = scmp.lt.s32.totalorder %s198, 3
      %s202 = scalar_select %p201, %s198, 3
      %s203 = smul.addr %s200, 4
      %s204 = sadd.s32 %s202, %s203
      %s205 = smul.addr %s204, 4
      %s206 = scalar_lea.vmem %s0, %s205
      %p207 = pneg %p56
      %p208 = pneg %p53
      %s209 = smul.u32 64, %s21
      %p210 = scmp.lt.s32.totalorder %s209, 63
      %s211 = scalar_select %p210, %s209, 63
      %p212 = scmp.lt.s32.totalorder %s20, 0
      %s213 = scalar_select %p212, %s20, 0
      %s214 = sadd.s32 %s213, %s211
      %s215 = smul.addr %s214, 4
      %s216 = scalar_lea.vmem %s1, %s215
      %p217 = pneg %p84
      %p218 = pneg %p81
      %p219 = scmp.lt.s32.totalorder %s20, 0
      %s220 = scalar_select %p219, %s20, 0
      %s221 = scalar_lea.vmem %s2, %s220
      %p222 = pneg %p110
      %p223 = pneg %p107
      %p224 = pneg %p138
      %p225 = pneg %p135
      %s226 = smul.u32 32, %s19
      %p227 = scmp.lt.s32.totalorder %s226, 127
      %s228 = scalar_select %p227, %s226, 127
      %p229 = scmp.lt.s32.totalorder %s20, 0
      %s230 = scalar_select %p229, %s20, 0
      %s231 = sadd.s32 %s230, %s228
      %s232 = smul.addr %s231, 4
      %s233 = scalar_lea.vmem %s3, %s232
      %s234 = smul.u32 32, %s19
      %s235 = smul.u32 4, %s21
      %p236 = scmp.lt.s32.totalorder %s234, 127
      %s237 = scalar_select %p236, %s234, 127
      %p238 = scmp.lt.s32.totalorder %s235, 3
      %s239 = scalar_select %p238, %s235, 3
      %s240 = smul.addr %s237, 4
      %s241 = sadd.s32 %s239, %s240
      %s242 = smul.addr %s241, 4
      %s243 = scalar_lea.vmem %s0, %s242
      %s244 = smul.u32 32, %s19
      %s245 = smul.u32 4, %s21
      %s246 = smul.u32 64, %s21
      %p247 = scmp.lt.s32.totalorder %s246, 63
      %s248 = scalar_select %p247, %s246, 63
      %p249 = scmp.lt.s32.totalorder %s20, 0
      %s250 = scalar_select %p249, %s20, 0
      %s251 = sadd.s32 %s250, %s248
      %s252 = smul.addr %s251, 4
      %s253 = scalar_lea.vmem %s1, %s252
      %s254 = smul.u32 64, %s21
      %p255 = scmp.lt.s32.totalorder %s20, 0
      %s256 = scalar_select %p255, %s20, 0
      %s257 = scalar_lea.vmem %s2, %s256
      %s258 = smul.u32 32, %s19
      %p259 = scmp.lt.s32.totalorder %s258, 127
      %s260 = scalar_select %p259, %s258, 127
      %p261 = scmp.lt.s32.totalorder %s20, 0
      %s262 = scalar_select %p261, %s20, 0
      %s263 = sadd.s32 %s262, %s260
      %s264 = smul.addr %s263, 4
      %s265 = scalar_lea.vmem %s3, %s264
      %s266 = smul.u32 32, %s19
      %p268 = scmp.eq.s32.totalorder %s21, 0
      // Predicated region
      $region33: #{forward_pallas.12} parent=31 // pred_check
        %p269 = pneg %p268
      $region34: #{forward_pallas.12} parent=31 // pred_check_branch
        %271 = sbr.rel (%p269) target = $region36
      $region35: #{forward_pallas.12} parent=31 // pred_region
        %272 = vst [vmem:[#allocation2] sm:$0xff] 0.0
        %273 = vst [vmem:[#allocation2 + $0x8] sm:$0xff] 0.0
        %274 = vst [vmem:[#allocation2 + $0x10] sm:$0xff] 0.0
        %275 = vst [vmem:[#allocation2 + $0x18] sm:$0xff] 0.0
        %276 = vst [vmem:[#allocation2 + $0x20] sm:$0xff] 0.0
        %277 = vst [vmem:[#allocation2 + $0x28] sm:$0xff] 0.0
        %278 = vst [vmem:[#allocation2 + $0x30] sm:$0xff] 0.0
        %279 = vst [vmem:[#allocation2 + $0x38] sm:$0xff] 0.0
        %280 = vst [vmem:[#allocation2 + $0x40] sm:$0xff] 0.0
        %281 = vst [vmem:[#allocation2 + $0x48] sm:$0xff] 0.0
        %282 = vst [vmem:[#allocation2 + $0x50] sm:$0xff] 0.0
        %283 = vst [vmem:[#allocation2 + $0x58] sm:$0xff] 0.0
        %284 = vst [vmem:[#allocation2 + $0x60] sm:$0xff] 0.0
        %285 = vst [vmem:[#allocation2 + $0x68] sm:$0xff] 0.0
        %286 = vst [vmem:[#allocation2 + $0x70] sm:$0xff] 0.0
        %287 = vst [vmem:[#allocation2 + $0x78] sm:$0xff] 0.0
        %288 = vst [vmem:[#allocation2 + $0x80] sm:$0xff] 0.0
        %289 = vst [vmem:[#allocation2 + $0x88] sm:$0xff] 0.0
        %290 = vst [vmem:[#allocation2 + $0x90] sm:$0xff] 0.0
        %291 = vst [vmem:[#allocation2 + $0x98] sm:$0xff] 0.0
        %292 = vst [vmem:[#allocation2 + $0xa0] sm:$0xff] 0.0
        %293 = vst [vmem:[#allocation2 + $0xa8] sm:$0xff] 0.0
        %294 = vst [vmem:[#allocation2 + $0xb0] sm:$0xff] 0.0
        %295 = vst [vmem:[#allocation2 + $0xb8] sm:$0xff] 0.0
        %296 = vst [vmem:[#allocation2 + $0xc0] sm:$0xff] 0.0
        %297 = vst [vmem:[#allocation2 + $0xc8] sm:$0xff] 0.0
        %298 = vst [vmem:[#allocation2 + $0xd0] sm:$0xff] 0.0
        %299 = vst [vmem:[#allocation2 + $0xd8] sm:$0xff] 0.0
        %300 = vst [vmem:[#allocation2 + $0xe0] sm:$0xff] 0.0
        %301 = vst [vmem:[#allocation2 + $0xe8] sm:$0xff] 0.0
        %302 = vst [vmem:[#allocation2 + $0xf0] sm:$0xff] 0.0
        %303 = vst [vmem:[#allocation2 + $0xf8] sm:$0xff] 0.0
      $region36: #{forward_pallas.12} parent=31 // pred_fallthru
        _
      %v304 = vld [vmem:[#allocation2] sm:$0xff]
      %v305 = vld [vmem:[#allocation2 + $0x8] sm:$0xff]
      %v306 = vld [vmem:[#allocation2 + $0x10] sm:$0xff]
      %v307 = vld [vmem:[#allocation2 + $0x18] sm:$0xff]
      %v308 = vld [vmem:[#allocation2 + $0x20] sm:$0xff]
      %v309 = vld [vmem:[#allocation2 + $0x28] sm:$0xff]
      %v310 = vld [vmem:[#allocation2 + $0x30] sm:$0xff]
      %v311 = vld [vmem:[#allocation2 + $0x38] sm:$0xff]
      %v312 = vld [vmem:[#allocation2 + $0x40] sm:$0xff]
      %v313 = vld [vmem:[#allocation2 + $0x48] sm:$0xff]
      %v314 = vld [vmem:[#allocation2 + $0x50] sm:$0xff]
      %v315 = vld [vmem:[#allocation2 + $0x58] sm:$0xff]
      %v316 = vld [vmem:[#allocation2 + $0x60] sm:$0xff]
      %v317 = vld [vmem:[#allocation2 + $0x68] sm:$0xff]
      %v318 = vld [vmem:[#allocation2 + $0x70] sm:$0xff]
      %v319 = vld [vmem:[#allocation2 + $0x78] sm:$0xff]
      %v320 = vld [vmem:[#allocation2 + $0x80] sm:$0xff]
      %v321 = vld [vmem:[#allocation2 + $0x88] sm:$0xff]
      %v322 = vld [vmem:[#allocation2 + $0x90] sm:$0xff]
      %v323 = vld [vmem:[#allocation2 + $0x98] sm:$0xff]
      %v324 = vld [vmem:[#allocation2 + $0xa0] sm:$0xff]
      %v325 = vld [vmem:[#allocation2 + $0xa8] sm:$0xff]
      %v326 = vld [vmem:[#allocation2 + $0xb0] sm:$0xff]
      %v327 = vld [vmem:[#allocation2 + $0xb8] sm:$0xff]
      %v328 = vld [vmem:[#allocation2 + $0xc0] sm:$0xff]
      %v329 = vld [vmem:[#allocation2 + $0xc8] sm:$0xff]
      %v330 = vld [vmem:[#allocation2 + $0xd0] sm:$0xff]
      %v331 = vld [vmem:[#allocation2 + $0xd8] sm:$0xff]
      %v332 = vld [vmem:[#allocation2 + $0xe0] sm:$0xff]
      %v333 = vld [vmem:[#allocation2 + $0xe8] sm:$0xff]
      %v334 = vld [vmem:[#allocation2 + $0xf0] sm:$0xff]
      %v335 = vld [vmem:[#allocation2 + $0xf8] sm:$0xff]
      %v336 = vld [vmem:[%s243] sm:$0xff]
      %v337 = vld [vmem:[%s243 + $0x8] sm:$0xff]
      %v338 = vld [vmem:[%s243 + $0x10] sm:$0xff]
      %v339 = vld [vmem:[%s243 + $0x18] sm:$0xff]
      %v340 = vld [vmem:[%s243 + $0x20] sm:$0xff]
      %v341 = vld [vmem:[%s243 + $0x28] sm:$0xff]
      %v342 = vld [vmem:[%s243 + $0x30] sm:$0xff]
      %v343 = vld [vmem:[%s243 + $0x38] sm:$0xff]
      %v344 = vld [vmem:[%s243 + $0x40] sm:$0xff]
      %v345 = vld [vmem:[%s243 + $0x48] sm:$0xff]
      %v346 = vld [vmem:[%s243 + $0x50] sm:$0xff]
      %v347 = vld [vmem:[%s243 + $0x58] sm:$0xff]
      %v348 = vld [vmem:[%s243 + $0x60] sm:$0xff]
      %v349 = vld [vmem:[%s243 + $0x68] sm:$0xff]
      %v350 = vld [vmem:[%s243 + $0x70] sm:$0xff]
      %v351 = vld [vmem:[%s243 + $0x78] sm:$0xff]
      %v352 = vld [vmem:[%s243 + $0x80] sm:$0xff]
      %v353 = vld [vmem:[%s243 + $0x88] sm:$0xff]
      %v354 = vld [vmem:[%s243 + $0x90] sm:$0xff]
      %v355 = vld [vmem:[%s243 + $0x98] sm:$0xff]
      %v356 = vld [vmem:[%s243 + $0xa0] sm:$0xff]
      %v357 = vld [vmem:[%s243 + $0xa8] sm:$0xff]
      %v358 = vld [vmem:[%s243 + $0xb0] sm:$0xff]
      %v359 = vld [vmem:[%s243 + $0xb8] sm:$0xff]
      %v360 = vld [vmem:[%s243 + $0xc0] sm:$0xff]
      %v361 = vld [vmem:[%s243 + $0xc8] sm:$0xff]
      %v362 = vld [vmem:[%s243 + $0xd0] sm:$0xff]
      %v363 = vld [vmem:[%s243 + $0xd8] sm:$0xff]
      %v364 = vld [vmem:[%s243 + $0xe0] sm:$0xff]
      %v365 = vld [vmem:[%s243 + $0xe8] sm:$0xff]
      %v366 = vld [vmem:[%s243 + $0xf0] sm:$0xff]
      %v367 = vld [vmem:[%s243 + $0xf8] sm:$0xff]
      %v368 = vld [vmem:[%s243 + $0x100] sm:$0xff]
      %v369 = vld [vmem:[%s243 + $0x108] sm:$0xff]
      %v370 = vld [vmem:[%s243 + $0x110] sm:$0xff]
      %v371 = vld [vmem:[%s243 + $0x118] sm:$0xff]
      %v372 = vld [vmem:[%s243 + $0x120] sm:$0xff]
      %v373 = vld [vmem:[%s243 + $0x128] sm:$0xff]
      %v374 = vld [vmem:[%s243 + $0x130] sm:$0xff]
      %v375 = vld [vmem:[%s243 + $0x138] sm:$0xff]
      %v376 = vld [vmem:[%s243 + $0x140] sm:$0xff]
      %v377 = vld [vmem:[%s243 + $0x148] sm:$0xff]
      %v378 = vld [vmem:[%s243 + $0x150] sm:$0xff]
      %v379 = vld [vmem:[%s243 + $0x158] sm:$0xff]
      %v380 = vld [vmem:[%s243 + $0x160] sm:$0xff]
      %v381 = vld [vmem:[%s243 + $0x168] sm:$0xff]
      %v382 = vld [vmem:[%s243 + $0x170] sm:$0xff]
      %v383 = vld [vmem:[%s243 + $0x178] sm:$0xff]
      %v384 = vld [vmem:[%s243 + $0x180] sm:$0xff]
      %v385 = vld [vmem:[%s243 + $0x188] sm:$0xff]
      %v386 = vld [vmem:[%s243 + $0x190] sm:$0xff]
      %v387 = vld [vmem:[%s243 + $0x198] sm:$0xff]
      %v388 = vld [vmem:[%s243 + $0x1a0] sm:$0xff]
      %v389 = vld [vmem:[%s243 + $0x1a8] sm:$0xff]
      %v390 = vld [vmem:[%s243 + $0x1b0] sm:$0xff]
      %v391 = vld [vmem:[%s243 + $0x1b8] sm:$0xff]
      %v392 = vld [vmem:[%s243 + $0x1c0] sm:$0xff]
      %v393 = vld [vmem:[%s243 + $0x1c8] sm:$0xff]
      %v394 = vld [vmem:[%s243 + $0x1d0] sm:$0xff]
      %v395 = vld [vmem:[%s243 + $0x1d8] sm:$0xff]
      %v396 = vld [vmem:[%s243 + $0x1e0] sm:$0xff]
      %v397 = vld [vmem:[%s243 + $0x1e8] sm:$0xff]
      %v398 = vld [vmem:[%s243 + $0x1f0] sm:$0xff]
      %v399 = vld [vmem:[%s243 + $0x1f8] sm:$0xff]
      %v400 = vld [vmem:[%s253] sm:$0xf]
      %v401 = vld [vmem:[%s253 + $0x4] sm:$0xf]
      %v402 = vld [vmem:[%s253 + $0x8] sm:$0xf]
      %v403 = vld [vmem:[%s253 + $0xc] sm:$0xf]
      %v404 = vld [vmem:[%s253 + $0x10] sm:$0xf]
      %v405 = vld [vmem:[%s253 + $0x14] sm:$0xf]
      %v406 = vld [vmem:[%s253 + $0x18] sm:$0xf]
      %v407 = vld [vmem:[%s253 + $0x1c] sm:$0xf]
      %v408 = vld [vmem:[%s253 + $0x20] sm:$0xf]
      %v409 = vld [vmem:[%s253 + $0x24] sm:$0xf]
      %v410 = vld [vmem:[%s253 + $0x28] sm:$0xf]
      %v411 = vld [vmem:[%s253 + $0x2c] sm:$0xf]
      %v412 = vld [vmem:[%s253 + $0x30] sm:$0xf]
      %v413 = vld [vmem:[%s253 + $0x34] sm:$0xf]
      %v414 = vld [vmem:[%s253 + $0x38] sm:$0xf]
      %v415 = vld [vmem:[%s253 + $0x3c] sm:$0xf]
      %v416 = vld [vmem:[%s253 + $0x40] sm:$0xf]
      %v417 = vld [vmem:[%s253 + $0x44] sm:$0xf]
      %v418 = vld [vmem:[%s253 + $0x48] sm:$0xf]
      %v419 = vld [vmem:[%s253 + $0x4c] sm:$0xf]
      %v420 = vld [vmem:[%s253 + $0x50] sm:$0xf]
      %v421 = vld [vmem:[%s253 + $0x54] sm:$0xf]
      %v422 = vld [vmem:[%s253 + $0x58] sm:$0xf]
      %v423 = vld [vmem:[%s253 + $0x5c] sm:$0xf]
      %v424 = vld [vmem:[%s253 + $0x60] sm:$0xf]
      %v425 = vld [vmem:[%s253 + $0x64] sm:$0xf]
      %v426 = vld [vmem:[%s253 + $0x68] sm:$0xf]
      %v427 = vld [vmem:[%s253 + $0x6c] sm:$0xf]
      %v428 = vld [vmem:[%s253 + $0x70] sm:$0xf]
      %v429 = vld [vmem:[%s253 + $0x74] sm:$0xf]
      %v430 = vld [vmem:[%s253 + $0x78] sm:$0xf]
      %v431 = vld [vmem:[%s253 + $0x7c] sm:$0xf]
      %v432 = vld [vmem:[%s253 + $0x80] sm:$0xf]
      %v433 = vld [vmem:[%s253 + $0x84] sm:$0xf]
      %v434 = vld [vmem:[%s253 + $0x88] sm:$0xf]
      %v435 = vld [vmem:[%s253 + $0x8c] sm:$0xf]
      %v436 = vld [vmem:[%s253 + $0x90] sm:$0xf]
      %v437 = vld [vmem:[%s253 + $0x94] sm:$0xf]
      %v438 = vld [vmem:[%s253 + $0x98] sm:$0xf]
      %v439 = vld [vmem:[%s253 + $0x9c] sm:$0xf]
      %v440 = vld [vmem:[%s253 + $0xa0] sm:$0xf]
      %v441 = vld [vmem:[%s253 + $0xa4] sm:$0xf]
      %v442 = vld [vmem:[%s253 + $0xa8] sm:$0xf]
      %v443 = vld [vmem:[%s253 + $0xac] sm:$0xf]
      %v444 = vld [vmem:[%s253 + $0xb0] sm:$0xf]
      %v445 = vld [vmem:[%s253 + $0xb4] sm:$0xf]
      %v446 = vld [vmem:[%s253 + $0xb8] sm:$0xf]
      %v447 = vld [vmem:[%s253 + $0xbc] sm:$0xf]
      %v448 = vld [vmem:[%s253 + $0xc0] sm:$0xf]
      %v449 = vld [vmem:[%s253 + $0xc4] sm:$0xf]
      %v450 = vld [vmem:[%s253 + $0xc8] sm:$0xf]
      %v451 = vld [vmem:[%s253 + $0xcc] sm:$0xf]
      %v452 = vld [vmem:[%s253 + $0xd0] sm:$0xf]
      %v453 = vld [vmem:[%s253 + $0xd4] sm:$0xf]
      %v454 = vld [vmem:[%s253 + $0xd8] sm:$0xf]
      %v455 = vld [vmem:[%s253 + $0xdc] sm:$0xf]
      %v456 = vld [vmem:[%s253 + $0xe0] sm:$0xf]
      %v457 = vld [vmem:[%s253 + $0xe4] sm:$0xf]
      %v458 = vld [vmem:[%s253 + $0xe8] sm:$0xf]
      %v459 = vld [vmem:[%s253 + $0xec] sm:$0xf]
      %v460 = vld [vmem:[%s253 + $0xf0] sm:$0xf]
      %v461 = vld [vmem:[%s253 + $0xf4] sm:$0xf]
      %v462 = vld [vmem:[%s253 + $0xf8] sm:$0xf]
      %v463 = vld [vmem:[%s253 + $0xfc] sm:$0xf]
      %v528 = vunpack.c.l.b16 %v336
      %v529 = vunpack.c.h.b16 %v336
      %v530 = vunpack.c.l.b16 %v337
      %v531 = vunpack.c.h.b16 %v337
      %v532 = vunpack.c.l.b16 %v338
      %v533 = vunpack.c.h.b16 %v338
      %v534 = vunpack.c.l.b16 %v339
      %v535 = vunpack.c.h.b16 %v339
      %v536 = vunpack.c.l.b16 %v340
      %v537 = vunpack.c.h.b16 %v340
      %v538 = vunpack.c.l.b16 %v341
      %v539 = vunpack.c.h.b16 %v341
      %v540 = vunpack.c.l.b16 %v342
      %v541 = vunpack.c.h.b16 %v342
      %v542 = vunpack.c.l.b16 %v343
      %v543 = vunpack.c.h.b16 %v343
      %v544 = vunpack.c.l.b16 %v344
      %v545 = vunpack.c.h.b16 %v344
      %v546 = vunpack.c.l.b16 %v345
      %v547 = vunpack.c.h.b16 %v345
      %v548 = vunpack.c.l.b16 %v346
      %v549 = vunpack.c.h.b16 %v346
      %v550 = vunpack.c.l.b16 %v347
      %v551 = vunpack.c.h.b16 %v347
      %v552 = vunpack.c.l.b16 %v348
      %v553 = vunpack.c.h.b16 %v348
      %v554 = vunpack.c.l.b16 %v349
      %v555 = vunpack.c.h.b16 %v349
      %v556 = vunpack.c.l.b16 %v350
      %v557 = vunpack.c.h.b16 %v350
      %v558 = vunpack.c.l.b16 %v351
      %v559 = vunpack.c.h.b16 %v351
      %v560 = vunpack.c.l.b16 %v352
      %v561 = vunpack.c.h.b16 %v352
      %v562 = vunpack.c.l.b16 %v353
      %v563 = vunpack.c.h.b16 %v353
      %v564 = vunpack.c.l.b16 %v354
      %v565 = vunpack.c.h.b16 %v354
      %v566 = vunpack.c.l.b16 %v355
      %v567 = vunpack.c.h.b16 %v355
      %v568 = vunpack.c.l.b16 %v356
      %v569 = vunpack.c.h.b16 %v356
      %v570 = vunpack.c.l.b16 %v357
      %v571 = vunpack.c.h.b16 %v357
      %v572 = vunpack.c.l.b16 %v358
      %v573 = vunpack.c.h.b16 %v358
      %v574 = vunpack.c.l.b16 %v359
      %v575 = vunpack.c.h.b16 %v359
      %v576 = vunpack.c.l.b16 %v360
      %v577 = vunpack.c.h.b16 %v360
      %v578 = vunpack.c.l.b16 %v361
      %v579 = vunpack.c.h.b16 %v361
      %v580 = vunpack.c.l.b16 %v362
      %v581 = vunpack.c.h.b16 %v362
      %v582 = vunpack.c.l.b16 %v363
      %v583 = vunpack.c.h.b16 %v363
      %v584 = vunpack.c.l.b16 %v364
      %v585 = vunpack.c.h.b16 %v364
      %v586 = vunpack.c.l.b16 %v365
      %v587 = vunpack.c.h.b16 %v365
      %v588 = vunpack.c.l.b16 %v366
      %v589 = vunpack.c.h.b16 %v366
      %v590 = vunpack.c.l.b16 %v367
      %v591 = vunpack.c.h.b16 %v367
      %v592 = vunpack.c.l.b16 %v368
      %v593 = vunpack.c.h.b16 %v368
      %v594 = vunpack.c.l.b16 %v369
      %v595 = vunpack.c.h.b16 %v369
      %v596 = vunpack.c.l.b16 %v370
      %v597 = vunpack.c.h.b16 %v370
      %v598 = vunpack.c.l.b16 %v371
      %v599 = vunpack.c.h.b16 %v371
      %v600 = vunpack.c.l.b16 %v372
      %v601 = vunpack.c.h.b16 %v372
      %v602 = vunpack.c.l.b16 %v373
      %v603 = vunpack.c.h.b16 %v373
      %v604 = vunpack.c.l.b16 %v374
      %v605 = vunpack.c.h.b16 %v374
      %v606 = vunpack.c.l.b16 %v375
      %v607 = vunpack.c.h.b16 %v375
      %v608 = vunpack.c.l.b16 %v376
      %v609 = vunpack.c.h.b16 %v376
      %v610 = vunpack.c.l.b16 %v377
      %v611 = vunpack.c.h.b16 %v377
      %v612 = vunpack.c.l.b16 %v378
      %v613 = vunpack.c.h.b16 %v378
      %v614 = vunpack.c.l.b16 %v379
      %v615 = vunpack.c.h.b16 %v379
      %v616 = vunpack.c.l.b16 %v380
      %v617 = vunpack.c.h.b16 %v380
      %v618 = vunpack.c.l.b16 %v381
      %v619 = vunpack.c.h.b16 %v381
      %v620 = vunpack.c.l.b16 %v382
      %v621 = vunpack.c.h.b16 %v382
      %v622 = vunpack.c.l.b16 %v383
      %v623 = vunpack.c.h.b16 %v383
      %v624 = vunpack.c.l.b16 %v384
      %v625 = vunpack.c.h.b16 %v384
      %v626 = vunpack.c.l.b16 %v385
      %v627 = vunpack.c.h.b16 %v385
      %v628 = vunpack.c.l.b16 %v386
      %v629 = vunpack.c.h.b16 %v386
      %v630 = vunpack.c.l.b16 %v387
      %v631 = vunpack.c.h.b16 %v387
      %v632 = vunpack.c.l.b16 %v388
      %v633 = vunpack.c.h.b16 %v388
      %v634 = vunpack.c.l.b16 %v389
      %v635 = vunpack.c.h.b16 %v389
      %v636 = vunpack.c.l.b16 %v390
      %v637 = vunpack.c.h.b16 %v390
      %v638 = vunpack.c.l.b16 %v391
      %v639 = vunpack.c.h.b16 %v391
      %v640 = vunpack.c.l.b16 %v392
      %v641 = vunpack.c.h.b16 %v392
      %v642 = vunpack.c.l.b16 %v393
      %v643 = vunpack.c.h.b16 %v393
      %v644 = vunpack.c.l.b16 %v394
      %v645 = vunpack.c.h.b16 %v394
      %v646 = vunpack.c.l.b16 %v395
      %v647 = vunpack.c.h.b16 %v395
      %v648 = vunpack.c.l.b16 %v396
      %v649 = vunpack.c.h.b16 %v396
      %v650 = vunpack.c.l.b16 %v397
      %v651 = vunpack.c.h.b16 %v397
      %v652 = vunpack.c.l.b16 %v398
      %v653 = vunpack.c.h.b16 %v398
      %v654 = vunpack.c.l.b16 %v399
      %v655 = vunpack.c.h.b16 %v399
      %v656 = vpack.c.b16 %v532, %v528
      %v657 = vpack.c.b16 %v533, %v529
      %v658 = vpack.c.b16 %v534, %v530
      %v659 = vpack.c.b16 %v535, %v531
      %v660 = vpack.c.b16 %v540, %v536
      %v661 = vpack.c.b16 %v541, %v537
      %v662 = vpack.c.b16 %v542, %v538
      %v663 = vpack.c.b16 %v543, %v539
      %v664 = vpack.c.b16 %v548, %v544
      %v665 = vpack.c.b16 %v549, %v545
      %v666 = vpack.c.b16 %v550, %v546
      %v667 = vpack.c.b16 %v551, %v547
      %v668 = vpack.c.b16 %v556, %v552
      %v669 = vpack.c.b16 %v557, %v553
      %v670 = vpack.c.b16 %v558, %v554
      %v671 = vpack.c.b16 %v559, %v555
      %v672 = vpack.c.b16 %v564, %v560
      %v673 = vpack.c.b16 %v565, %v561
      %v674 = vpack.c.b16 %v566, %v562
      %v675 = vpack.c.b16 %v567, %v563
      %v676 = vpack.c.b16 %v572, %v568
      %v677 = vpack.c.b16 %v573, %v569
      %v678 = vpack.c.b16 %v574, %v570
      %v679 = vpack.c.b16 %v575, %v571
      %v680 = vpack.c.b16 %v580, %v576
      %v681 = vpack.c.b16 %v581, %v577
      %v682 = vpack.c.b16 %v582, %v578
      %v683 = vpack.c.b16 %v583, %v579
      %v684 = vpack.c.b16 %v588, %v584
      %v685 = vpack.c.b16 %v589, %v585
      %v686 = vpack.c.b16 %v590, %v586
      %v687 = vpack.c.b16 %v591, %v587
      %v688 = vpack.c.b16 %v596, %v592
      %v689 = vpack.c.b16 %v597, %v593
      %v690 = vpack.c.b16 %v598, %v594
      %v691 = vpack.c.b16 %v599, %v595
      %v692 = vpack.c.b16 %v604, %v600
      %v693 = vpack.c.b16 %v605, %v601
      %v694 = vpack.c.b16 %v606, %v602
      %v695 = vpack.c.b16 %v607, %v603
      %v696 = vpack.c.b16 %v612, %v608
      %v697 = vpack.c.b16 %v613, %v609
      %v698 = vpack.c.b16 %v614, %v610
      %v699 = vpack.c.b16 %v615, %v611
      %v700 = vpack.c.b16 %v620, %v616
      %v701 = vpack.c.b16 %v621, %v617
      %v702 = vpack.c.b16 %v622, %v618
      %v703 = vpack.c.b16 %v623, %v619
      %v704 = vpack.c.b16 %v628, %v624
      %v705 = vpack.c.b16 %v629, %v625
      %v706 = vpack.c.b16 %v630, %v626
      %v707 = vpack.c.b16 %v631, %v627
      %v708 = vpack.c.b16 %v636, %v632
      %v709 = vpack.c.b16 %v637, %v633
      %v710 = vpack.c.b16 %v638, %v634
      %v711 = vpack.c.b16 %v639, %v635
      %v712 = vpack.c.b16 %v644, %v640
      %v713 = vpack.c.b16 %v645, %v641
      %v714 = vpack.c.b16 %v646, %v642
      %v715 = vpack.c.b16 %v647, %v643
      %v716 = vpack.c.b16 %v652, %v648
      %v717 = vpack.c.b16 %v653, %v649
      %v718 = vpack.c.b16 %v654, %v650
      %v719 = vpack.c.b16 %v655, %v651
      %v848 = vunpack.c.l.b16 %v400
      %v849 = vunpack.c.l.b16 %v401
      %v850 = vunpack.c.l.b16 %v402
      %v851 = vunpack.c.l.b16 %v403
      %v852 = vunpack.c.l.b16 %v404
      %v853 = vunpack.c.l.b16 %v405
      %v854 = vunpack.c.l.b16 %v406
      %v855 = vunpack.c.l.b16 %v407
      %v856 = vunpack.c.l.b16 %v408
      %v857 = vunpack.c.l.b16 %v409
      %v858 = vunpack.c.l.b16 %v410
      %v859 = vunpack.c.l.b16 %v411
      %v860 = vunpack.c.l.b16 %v412
      %v861 = vunpack.c.l.b16 %v413
      %v862 = vunpack.c.l.b16 %v414
      %v863 = vunpack.c.l.b16 %v415
      %v864 = vunpack.c.l.b16 %v416
      %v865 = vunpack.c.l.b16 %v417
      %v866 = vunpack.c.l.b16 %v418
      %v867 = vunpack.c.l.b16 %v419
      %v868 = vunpack.c.l.b16 %v420
      %v869 = vunpack.c.l.b16 %v421
      %v870 = vunpack.c.l.b16 %v422
      %v871 = vunpack.c.l.b16 %v423
      %v872 = vunpack.c.l.b16 %v424
      %v873 = vunpack.c.l.b16 %v425
      %v874 = vunpack.c.l.b16 %v426
      %v875 = vunpack.c.l.b16 %v427
      %v876 = vunpack.c.l.b16 %v428
      %v877 = vunpack.c.l.b16 %v429
      %v878 = vunpack.c.l.b16 %v430
      %v879 = vunpack.c.l.b16 %v431
      %v880 = vunpack.c.l.b16 %v432
      %v881 = vunpack.c.l.b16 %v433
      %v882 = vunpack.c.l.b16 %v434
      %v883 = vunpack.c.l.b16 %v435
      %v884 = vunpack.c.l.b16 %v436
      %v885 = vunpack.c.l.b16 %v437
      %v886 = vunpack.c.l.b16 %v438
      %v887 = vunpack.c.l.b16 %v439
      %v888 = vunpack.c.l.b16 %v440
      %v889 = vunpack.c.l.b16 %v441
      %v890 = vunpack.c.l.b16 %v442
      %v891 = vunpack.c.l.b16 %v443
      %v892 = vunpack.c.l.b16 %v444
      %v893 = vunpack.c.l.b16 %v445
      %v894 = vunpack.c.l.b16 %v446
      %v895 = vunpack.c.l.b16 %v447
      %v896 = vunpack.c.l.b16 %v448
      %v897 = vunpack.c.l.b16 %v449
      %v898 = vunpack.c.l.b16 %v450
      %v899 = vunpack.c.l.b16 %v451
      %v900 = vunpack.c.l.b16 %v452
      %v901 = vunpack.c.l.b16 %v453
      %v902 = vunpack.c.l.b16 %v454
      %v903 = vunpack.c.l.b16 %v455
      %v904 = vunpack.c.l.b16 %v456
      %v905 = vunpack.c.l.b16 %v457
      %v906 = vunpack.c.l.b16 %v458
      %v907 = vunpack.c.l.b16 %v459
      %v908 = vunpack.c.l.b16 %v460
      %v909 = vunpack.c.l.b16 %v461
      %v910 = vunpack.c.l.b16 %v462
      %v911 = vunpack.c.l.b16 %v463
      %v912 = vpack.c.b16 %v849, %v848
      %v913 = vpack.c.b16 %v851, %v850
      %v914 = vpack.c.b16 %v853, %v852
      %v915 = vpack.c.b16 %v855, %v854
      %v916 = vpack.c.b16 %v857, %v856
      %v917 = vpack.c.b16 %v859, %v858
      %v918 = vpack.c.b16 %v861, %v860
      %v919 = vpack.c.b16 %v863, %v862
      %v920 = vpack.c.b16 %v865, %v864
      %v921 = vpack.c.b16 %v867, %v866
      %v922 = vpack.c.b16 %v869, %v868
      %v923 = vpack.c.b16 %v871, %v870
      %v924 = vpack.c.b16 %v873, %v872
      %v925 = vpack.c.b16 %v875, %v874
      %v926 = vpack.c.b16 %v877, %v876
      %v927 = vpack.c.b16 %v879, %v878
      %v928 = vpack.c.b16 %v881, %v880
      %v929 = vpack.c.b16 %v883, %v882
      %v930 = vpack.c.b16 %v885, %v884
      %v931 = vpack.c.b16 %v887, %v886
      %v932 = vpack.c.b16 %v889, %v888
      %v933 = vpack.c.b16 %v891, %v890
      %v934 = vpack.c.b16 %v893, %v892
      %v935 = vpack.c.b16 %v895, %v894
      %v936 = vpack.c.b16 %v897, %v896
      %v937 = vpack.c.b16 %v899, %v898
      %v938 = vpack.c.b16 %v901, %v900
      %v939 = vpack.c.b16 %v903, %v902
      %v940 = vpack.c.b16 %v905, %v904
      %v941 = vpack.c.b16 %v907, %v906
      %v942 = vpack.c.b16 %v909, %v908
      %v943 = vpack.c.b16 %v911, %v910
      %976 = vmatprep.subr.bf16.mxu0 0
      %977 = vmatpush1.bf16.msra.mxu0 %v912
      %978 = vmatprep.subr.bf16.mxu0 0
      %979 = vmatpush1.bf16.msra.mxu0 %v913
      %980 = vmatprep.subr.bf16.mxu0 0
      %981 = vmatpush1.bf16.msra.mxu0 %v914
      %982 = vmatprep.subr.bf16.mxu0 0
      %983 = vmatpush1.bf16.msra.mxu0 %v915
      %984 = vmatprep.subr.bf16.mxu0 0
      %985 = vmatpush1.bf16.msra.mxu0 %v916
      %986 = vmatprep.subr.bf16.mxu0 0
      %987 = vmatpush1.bf16.msra.mxu0 %v917
      %988 = vmatprep.subr.bf16.mxu0 0
      %989 = vmatpush1.bf16.msra.mxu0 %v918
      %990 = vmatprep.subr.bf16.mxu0 0
      %991 = vmatpush1.bf16.msra.mxu0 %v919
      %992 = vmatprep.subr.bf16.mxu0 0
      %993 = vmatpush1.bf16.msra.mxu0 %v920
      %994 = vmatprep.subr.bf16.mxu0 0
      %995 = vmatpush1.bf16.msra.mxu0 %v921
      %996 = vmatprep.subr.bf16.mxu0 0
      %997 = vmatpush1.bf16.msra.mxu0 %v922
      %998 = vmatprep.subr.bf16.mxu0 0
      %999 = vmatpush1.bf16.msra.mxu0 %v923
      %1000 = vmatprep.subr.bf16.mxu0 0
      %1001 = vmatpush1.bf16.msra.mxu0 %v924
      %1002 = vmatprep.subr.bf16.mxu0 0
      %1003 = vmatpush1.bf16.msra.mxu0 %v925
      %1004 = vmatprep.subr.bf16.mxu0 0
      %1005 = vmatpush1.bf16.msra.mxu0 %v926
      %1006 = vmatprep.subr.bf16.mxu0 0
      %1007 = vmatpush1.bf16.msra.mxu0 %v927
      %1008 = vmatprep.mubr.bf16.mxu0 %v657
      %1009 = vmatmul.mubr.bf16.gmra.mrb[0].mxu0 %v656
      %v1010 = vpop.f32.mrb[0].mxu0
      %v1011 = vadd.f32 0.0, %v1010
      %v1012 = vpop.f32.mrb[0].mxu0
      %v1013 = vpop.f32.mrb[0].mxu0
      %v1014 = vadd.f32 0.0, %v1013
      %v1015 = vpop.f32.mrb[0].mxu0
      %1016 = vmatprep.mubr.bf16.mxu0 %v661
      %1017 = vmatmul.mubr.bf16.gmra.mrb[0].mxu0 %v660
      %v1018 = vpop.f32.mrb[0].mxu0
      %v1019 = vadd.f32 0.0, %v1018
      %v1020 = vpop.f32.mrb[0].mxu0
      %v1021 = vpop.f32.mrb[0].mxu0
      %v1022 = vadd.f32 0.0, %v1021
      %v1023 = vpop.f32.mrb[0].mxu0
      %1024 = vmatprep.mubr.bf16.mxu0 %v665
      %1025 = vmatmul.mubr.bf16.gmra.mrb[0].mxu0 %v664
      %v1026 = vpop.f32.mrb[0].mxu0
      %v1027 = vadd.f32 0.0, %v1026
      %v1028 = vpop.f32.mrb[0].mxu0
      %v1029 = vpop.f32.mrb[0].mxu0
      %v1030 = vadd.f32 0.0, %v1029
      %v1031 = vpop.f32.mrb[0].mxu0
      %1032 = vmatprep.mubr.bf16.mxu0 %v669
      %1033 = vmatmul.mubr.bf16.gmra.mrb[0].mxu0 %v668
      %v1034 = vpop.f32.mrb[0].mxu0
      %v1035 = vadd.f32 0.0, %v1034
      %v1036 = vpop.f32.mrb[0].mxu0
      %v1037 = vpop.f32.mrb[0].mxu0
      %v1038 = vadd.f32 0.0, %v1037
      %v1039 = vpop.f32.mrb[0].mxu0
      %1040 = vmatprep.mubr.bf16.mxu0 %v673
      %1041 = vmatmul.mubr.bf16.gmra.mrb[0].mxu0 %v672
      %v1042 = vpop.f32.mrb[0].mxu0
      %v1043 = vadd.f32 0.0, %v1042
      %v1044 = vpop.f32.mrb[0].mxu0
      %v1045 = vpop.f32.mrb[0].mxu0
      %v1046 = vadd.f32 0.0, %v1045
      %v1047 = vpop.f32.mrb[0].mxu0
      %1048 = vmatprep.mubr.bf16.mxu0 %v677
      %1049 = vmatmul.mubr.bf16.gmra.mrb[0].mxu0 %v676
      %v1050 = vpop.f32.mrb[0].mxu0
      %v1051 = vadd.f32 0.0, %v1050
      %v1052 = vpop.f32.mrb[0].mxu0
      %v1053 = vpop.f32.mrb[0].mxu0
      %v1054 = vadd.f32 0.0, %v1053
      %v1055 = vpop.f32.mrb[0].mxu0
      %1056 = vmatprep.mubr.bf16.mxu0 %v681
      %1057 = vmatmul.mubr.bf16.gmra.mrb[0].mxu0 %v680
      %v1058 = vpop.f32.mrb[0].mxu0
      %v1059 = vadd.f32 0.0, %v1058
      %v1060 = vpop.f32.mrb[0].mxu0
      %v1061 = vpop.f32.mrb[0].mxu0
      %v1062 = vadd.f32 0.0, %v1061
      %v1063 = vpop.f32.mrb[0].mxu0
      %1064 = vmatprep.mubr.bf16.mxu0 %v685
      %1065 = vmatmul.mubr.bf16.gmra.mrb[0].mxu0 %v684
      %v1066 = vpop.f32.mrb[0].mxu0
      %v1067 = vadd.f32 0.0, %v1066
      %v1068 = vpop.f32.mrb[0].mxu0
      %v1069 = vpop.f32.mrb[0].mxu0
      %v1070 = vadd.f32 0.0, %v1069
      %v1071 = vpop.f32.mrb[0].mxu0
      %1072 = vmatprep.mubr.bf16.mxu0 %v689
      %1073 = vmatmul.mubr.bf16.gmra.mrb[0].mxu0 %v688
      %v1074 = vpop.f32.mrb[0].mxu0
      %v1075 = vadd.f32 0.0, %v1074
      %v1076 = vpop.f32.mrb[0].mxu0
      %v1077 = vpop.f32.mrb[0].mxu0
      %v1078 = vadd.f32 0.0, %v1077
      %v1079 = vpop.f32.mrb[0].mxu0
      %1080 = vmatprep.mubr.bf16.mxu0 %v693
      %1081 = vmatmul.mubr.bf16.gmra.mrb[0].mxu0 %v692
      %v1082 = vpop.f32.mrb[0].mxu0
      %v1083 = vadd.f32 0.0, %v1082
      %v1084 = vpop.f32.mrb[0].mxu0
      %v1085 = vpop.f32.mrb[0].mxu0
      %v1086 = vadd.f32 0.0, %v1085
      %v1087 = vpop.f32.mrb[0].mxu0
      %1088 = vmatprep.mubr.bf16.mxu0 %v697
      %1089 = vmatmul.mubr.bf16.gmra.mrb[0].mxu0 %v696
      %v1090 = vpop.f32.mrb[0].mxu0
      %v1091 = vadd.f32 0.0, %v1090
      %v1092 = vpop.f32.mrb[0].mxu0
      %v1093 = vpop.f32.mrb[0].mxu0
      %v1094 = vadd.f32 0.0, %v1093
      %v1095 = vpop.f32.mrb[0].mxu0
      %1096 = vmatprep.mubr.bf16.mxu0 %v701
      %1097 = vmatmul.mubr.bf16.gmra.mrb[0].mxu0 %v700
      %v1098 = vpop.f32.mrb[0].mxu0
      %v1099 = vadd.f32 0.0, %v1098
      %v1100 = vpop.f32.mrb[0].mxu0
      %v1101 = vpop.f32.mrb[0].mxu0
      %v1102 = vadd.f32 0.0, %v1101
      %v1103 = vpop.f32.mrb[0].mxu0
      %1104 = vmatprep.mubr.bf16.mxu0 %v705
      %1105 = vmatmul.mubr.bf16.gmra.mrb[0].mxu0 %v704
      %v1106 = vpop.f32.mrb[0].mxu0
      %v1107 = vadd.f32 0.0, %v1106
      %v1108 = vpop.f32.mrb[0].mxu0
      %v1109 = vpop.f32.mrb[0].mxu0
      %v1110 = vadd.f32 0.0, %v1109
      %v1111 = vpop.f32.mrb[0].mxu0
      %1112 = vmatprep.mubr.bf16.mxu0 %v709
      %1113 = vmatmul.mubr.bf16.gmra.mrb[0].mxu0 %v708
      %v1114 = vpop.f32.mrb[0].mxu0
      %v1115 = vadd.f32 0.0, %v1114
      %v1116 = vpop.f32.mrb[0].mxu0
      %v1117 = vpop.f32.mrb[0].mxu0
      %v1118 = vadd.f32 0.0, %v1117
      %v1119 = vpop.f32.mrb[0].mxu0
      %1120 = vmatprep.mubr.bf16.mxu0 %v713
      %1121 = vmatmul.mubr.bf16.gmra.mrb[0].mxu0 %v712
      %v1122 = vpop.f32.mrb[0].mxu0
      %v1123 = vadd.f32 0.0, %v1122
      %v1124 = vpop.f32.mrb[0].mxu0
      %v1125 = vpop.f32.mrb[0].mxu0
      %v1126 = vadd.f32 0.0, %v1125
      %v1127 = vpop.f32.mrb[0].mxu0
      %1128 = vmatprep.mubr.bf16.mxu0 %v717
      %1129 = vmatmul.mubr.bf16.gmra.mrb[0].mxu0 %v716
      %v1130 = vpop.f32.mrb[0].mxu0
      %v1131 = vadd.f32 0.0, %v1130
      %v1132 = vpop.f32.mrb[0].mxu0
      %v1133 = vpop.f32.mrb[0].mxu0
      %v1134 = vadd.f32 0.0, %v1133
      %v1135 = vpop.f32.mrb[0].mxu0
      %1136 = vdwg.mxu0
      %1137 = vmatprep.subr.bf16.mxu0 0
      %1138 = vmatpush1.bf16.msra.mxu0 %v928
      %1139 = vmatprep.subr.bf16.mxu0 0
      %1140 = vmatpush1.bf16.msra.mxu0 %v929
      %1141 = vmatprep.subr.bf16.mxu0 0
      %1142 = vmatpush1.bf16.msra.mxu0 %v930
      %1143 = vmatprep.subr.bf16.mxu0 0
      %1144 = vmatpush1.bf16.msra.mxu0 %v931
      %1145 = vmatprep.subr.bf16.mxu0 0
      %1146 = vmatpush1.bf16.msra.mxu0 %v932
      %1147 = vmatprep.subr.bf16.mxu0 0
      %1148 = vmatpush1.bf16.msra.mxu0 %v933
      %1149 = vmatprep.subr.bf16.mxu0 0
      %1150 = vmatpush1.bf16.msra.mxu0 %v934
      %1151 = vmatprep.subr.bf16.mxu0 0
      %1152 = vmatpush1.bf16.msra.mxu0 %v935
      %1153 = vmatprep.subr.bf16.mxu0 0
      %1154 = vmatpush1.bf16.msra.mxu0 %v936
      %1155 = vmatprep.subr.bf16.mxu0 0
      %1156 = vmatpush1.bf16.msra.mxu0 %v937
      %1157 = vmatprep.subr.bf16.mxu0 0
      %1158 = vmatpush1.bf16.msra.mxu0 %v938
      %1159 = vmatprep.subr.bf16.mxu0 0
      %1160 = vmatpush1.bf16.msra.mxu0 %v939
      %1161 = vmatprep.subr.bf16.mxu0 0
      %1162 = vmatpush1.bf16.msra.mxu0 %v940
      %1163 = vmatprep.subr.bf16.mxu0 0
      %1164 = vmatpush1.bf16.msra.mxu0 %v941
      %1165 = vmatprep.subr.bf16.mxu0 0
      %1166 = vmatpush1.bf16.msra.mxu0 %v942
      %1167 = vmatprep.subr.bf16.mxu0 0
      %1168 = vmatpush1.bf16.msra.mxu0 %v943
      %1169 = vmatprep.mubr.bf16.mxu0 %v659
      %1170 = vmatmul.mubr.bf16.gmra.mrb[0].mxu0 %v658
      %v1171 = vpop.f32.mrb[0].mxu0
      %v1172 = vadd.f32 %v1011, %v1171
      %v1173 = vpop.f32.mrb[0].mxu0
      %v1174 = vpop.f32.mrb[0].mxu0
      %v1175 = vadd.f32 %v1014, %v1174
      %v1176 = vpop.f32.mrb[0].mxu0
      %1177 = vmatprep.mubr.bf16.mxu0 %v663
      %1178 = vmatmul.mubr.bf16.gmra.mrb[0].mxu0 %v662
      %v1179 = vpop.f32.mrb[0].mxu0
      %v1180 = vadd.f32 %v1019, %v1179
      %v1181 = vpop.f32.mrb[0].mxu0
      %v1182 = vpop.f32.mrb[0].mxu0
      %v1183 = vadd.f32 %v1022, %v1182
      %v1184 = vpop.f32.mrb[0].mxu0
      %1185 = vmatprep.mubr.bf16.mxu0 %v667
      %1186 = vmatmul.mubr.bf16.gmra.mrb[0].mxu0 %v666
      %v1187 = vpop.f32.mrb[0].mxu0
      %v1188 = vadd.f32 %v1027, %v1187
      %v1189 = vpop.f32.mrb[0].mxu0
      %v1190 = vpop.f32.mrb[0].mxu0
      %v1191 = vadd.f32 %v1030, %v1190
      %v1192 = vpop.f32.mrb[0].mxu0
      %1193 = vmatprep.mubr.bf16.mxu0 %v671
      %1194 = vmatmul.mubr.bf16.gmra.mrb[0].mxu0 %v670
      %v1195 = vpop.f32.mrb[0].mxu0
      %v1196 = vadd.f32 %v1035, %v1195
      %v1197 = vpop.f32.mrb[0].mxu0
      %v1198 = vpop.f32.mrb[0].mxu0
      %v1199 = vadd.f32 %v1038, %v1198
      %v1200 = vpop.f32.mrb[0].mxu0
      %1201 = vmatprep.mubr.bf16.mxu0 %v675
      %1202 = vmatmul.mubr.bf16.gmra.mrb[0].mxu0 %v674
      %v1203 = vpop.f32.mrb[0].mxu0
      %v1204 = vadd.f32 %v1043, %v1203
      %v1205 = vpop.f32.mrb[0].mxu0
      %v1206 = vpop.f32.mrb[0].mxu0
      %v1207 = vadd.f32 %v1046, %v1206
      %v1208 = vpop.f32.mrb[0].mxu0
      %1209 = vmatprep.mubr.bf16.mxu0 %v679
      %1210 = vmatmul.mubr.bf16.gmra.mrb[0].mxu0 %v678
      %v1211 = vpop.f32.mrb[0].mxu0
      %v1212 = vadd.f32 %v1051, %v1211
      %v1213 = vpop.f32.mrb[0].mxu0
      %v1214 = vpop.f32.mrb[0].mxu0
      %v1215 = vadd.f32 %v1054, %v1214
      %v1216 = vpop.f32.mrb[0].mxu0
      %1217 = vmatprep.mubr.bf16.mxu0 %v683
      %1218 = vmatmul.mubr.bf16.gmra.mrb[0].mxu0 %v682
      %v1219 = vpop.f32.mrb[0].mxu0
      %v1220 = vadd.f32 %v1059, %v1219
      %v1221 = vpop.f32.mrb[0].mxu0
      %v1222 = vpop.f32.mrb[0].mxu0
      %v1223 = vadd.f32 %v1062, %v1222
      %v1224 = vpop.f32.mrb[0].mxu0
      %1225 = vmatprep.mubr.bf16.mxu0 %v687
      %1226 = vmatmul.mubr.bf16.gmra.mrb[0].mxu0 %v686
      %v1227 = vpop.f32.mrb[0].mxu0
      %v1228 = vadd.f32 %v1067, %v1227
      %v1229 = vpop.f32.mrb[0].mxu0
      %v1230 = vpop.f32.mrb[0].mxu0
      %v1231 = vadd.f32 %v1070, %v1230
      %v1232 = vpop.f32.mrb[0].mxu0
      %1233 = vmatprep.mubr.bf16.mxu0 %v691
      %1234 = vmatmul.mubr.bf16.gmra.mrb[0].mxu0 %v690
      %v1235 = vpop.f32.mrb[0].mxu0
      %v1236 = vadd.f32 %v1075, %v1235
      %v1237 = vpop.f32.mrb[0].mxu0
      %v1238 = vpop.f32.mrb[0].mxu0
      %v1239 = vadd.f32 %v1078, %v1238
      %v1240 = vpop.f32.mrb[0].mxu0
      %1241 = vmatprep.mubr.bf16.mxu0 %v695
      %1242 = vmatmul.mubr.bf16.gmra.mrb[0].mxu0 %v694
      %v1243 = vpop.f32.mrb[0].mxu0
      %v1244 = vadd.f32 %v1083, %v1243
      %v1245 = vpop.f32.mrb[0].mxu0
      %v1246 = vpop.f32.mrb[0].mxu0
      %v1247 = vadd.f32 %v1086, %v1246
      %v1248 = vpop.f32.mrb[0].mxu0
      %1249 = vmatprep.mubr.bf16.mxu0 %v699
      %1250 = vmatmul.mubr.bf16.gmra.mrb[0].mxu0 %v698
      %v1251 = vpop.f32.mrb[0].mxu0
      %v1252 = vadd.f32 %v1091, %v1251
      %v1253 = vpop.f32.mrb[0].mxu0
      %v1254 = vpop.f32.mrb[0].mxu0
      %v1255 = vadd.f32 %v1094, %v1254
      %v1256 = vpop.f32.mrb[0].mxu0
      %1257 = vmatprep.mubr.bf16.mxu0 %v703
      %1258 = vmatmul.mubr.bf16.gmra.mrb[0].mxu0 %v702
      %v1259 = vpop.f32.mrb[0].mxu0
      %v1260 = vadd.f32 %v1099, %v1259
      %v1261 = vpop.f32.mrb[0].mxu0
      %v1262 = vpop.f32.mrb[0].mxu0
      %v1263 = vadd.f32 %v1102, %v1262
      %v1264 = vpop.f32.mrb[0].mxu0
      %1265 = vmatprep.mubr.bf16.mxu0 %v707
      %1266 = vmatmul.mubr.bf16.gmra.mrb[0].mxu0 %v706
      %v1267 = vpop.f32.mrb[0].mxu0
      %v1268 = vadd.f32 %v1107, %v1267
      %v1269 = vpop.f32.mrb[0].mxu0
      %v1270 = vpop.f32.mrb[0].mxu0
      %v1271 = vadd.f32 %v1110, %v1270
      %v1272 = vpop.f32.mrb[0].mxu0
      %1273 = vmatprep.mubr.bf16.mxu0 %v711
      %1274 = vmatmul.mubr.bf16.gmra.mrb[0].mxu0 %v710
      %v1275 = vpop.f32.mrb[0].mxu0
      %v1276 = vadd.f32 %v1115, %v1275
      %v1277 = vpop.f32.mrb[0].mxu0
      %v1278 = vpop.f32.mrb[0].mxu0
      %v1279 = vadd.f32 %v1118, %v1278
      %v1280 = vpop.f32.mrb[0].mxu0
      %1281 = vmatprep.mubr.bf16.mxu0 %v715
      %1282 = vmatmul.mubr.bf16.gmra.mrb[0].mxu0 %v714
      %v1283 = vpop.f32.mrb[0].mxu0
      %v1284 = vadd.f32 %v1123, %v1283
      %v1285 = vpop.f32.mrb[0].mxu0
      %v1286 = vpop.f32.mrb[0].mxu0
      %v1287 = vadd.f32 %v1126, %v1286
      %v1288 = vpop.f32.mrb[0].mxu0
      %1289 = vmatprep.mubr.bf16.mxu0 %v719
      %1290 = vmatmul.mubr.bf16.gmra.mrb[0].mxu0 %v718
      %v1291 = vpop.f32.mrb[0].mxu0
      %v1292 = vadd.f32 %v1131, %v1291
      %v1293 = vpop.f32.mrb[0].mxu0
      %v1294 = vpop.f32.mrb[0].mxu0
      %v1295 = vadd.f32 %v1134, %v1294
      %v1296 = vpop.f32.mrb[0].mxu0
      %1297 = vdwg.mxu0
      %v1298 = vadd.f32 %v304, %v1172
      %v1299 = vadd.f32 %v305, %v1175
      %v1300 = vadd.f32 %v306, %v1180
      %v1301 = vadd.f32 %v307, %v1183
      %v1302 = vadd.f32 %v308, %v1188
      %v1303 = vadd.f32 %v309, %v1191
      %v1304 = vadd.f32 %v310, %v1196
      %v1305 = vadd.f32 %v311, %v1199
      %v1306 = vadd.f32 %v312, %v1204
      %v1307 = vadd.f32 %v313, %v1207
      %v1308 = vadd.f32 %v314, %v1212
      %v1309 = vadd.f32 %v315, %v1215
      %v1310 = vadd.f32 %v316, %v1220
      %v1311 = vadd.f32 %v317, %v1223
      %v1312 = vadd.f32 %v318, %v1228
      %v1313 = vadd.f32 %v319, %v1231
      %v1314 = vadd.f32 %v320, %v1236
      %v1315 = vadd.f32 %v321, %v1239
      %v1316 = vadd.f32 %v322, %v1244
      %v1317 = vadd.f32 %v323, %v1247
      %v1318 = vadd.f32 %v324, %v1252
      %v1319 = vadd.f32 %v325, %v1255
      %v1320 = vadd.f32 %v326, %v1260
      %v1321 = vadd.f32 %v327, %v1263
      %v1322 = vadd.f32 %v328, %v1268
      %v1323 = vadd.f32 %v329, %v1271
      %v1324 = vadd.f32 %v330, %v1276
      %v1325 = vadd.f32 %v331, %v1279
      %v1326 = vadd.f32 %v332, %v1284
      %v1327 = vadd.f32 %v333, %v1287
      %v1328 = vadd.f32 %v334, %v1292
      %v1329 = vadd.f32 %v335, %v1295
      %1330 = vst [vmem:[#allocation2] sm:$0xff] %v1298
      %1331 = vst [vmem:[#allocation2 + $0x8] sm:$0xff] %v1299
      %1332 = vst [vmem:[#allocation2 + $0x10] sm:$0xff] %v1300
      %1333 = vst [vmem:[#allocation2 + $0x18] sm:$0xff] %v1301
      %1334 = vst [vmem:[#allocation2 + $0x20] sm:$0xff] %v1302
      %1335 = vst [vmem:[#allocation2 + $0x28] sm:$0xff] %v1303
      %1336 = vst [vmem:[#allocation2 + $0x30] sm:$0xff] %v1304
      %1337 = vst [vmem:[#allocation2 + $0x38] sm:$0xff] %v1305
      %1338 = vst [vmem:[#allocation2 + $0x40] sm:$0xff] %v1306
      %1339 = vst [vmem:[#allocation2 + $0x48] sm:$0xff] %v1307
      %1340 = vst [vmem:[#allocation2 + $0x50] sm:$0xff] %v1308
      %1341 = vst [vmem:[#allocation2 + $0x58] sm:$0xff] %v1309
      %1342 = vst [vmem:[#allocation2 + $0x60] sm:$0xff] %v1310
      %1343 = vst [vmem:[#allocation2 + $0x68] sm:$0xff] %v1311
      %1344 = vst [vmem:[#allocation2 + $0x70] sm:$0xff] %v1312
      %1345 = vst [vmem:[#allocation2 + $0x78] sm:$0xff] %v1313
      %1346 = vst [vmem:[#allocation2 + $0x80] sm:$0xff] %v1314
      %1347 = vst [vmem:[#allocation2 + $0x88] sm:$0xff] %v1315
      %1348 = vst [vmem:[#allocation2 + $0x90] sm:$0xff] %v1316
      %1349 = vst [vmem:[#allocation2 + $0x98] sm:$0xff] %v1317
      %1350 = vst [vmem:[#allocation2 + $0xa0] sm:$0xff] %v1318
      %1351 = vst [vmem:[#allocation2 + $0xa8] sm:$0xff] %v1319
      %1352 = vst [vmem:[#allocation2 + $0xb0] sm:$0xff] %v1320
      %1353 = vst [vmem:[#allocation2 + $0xb8] sm:$0xff] %v1321
      %1354 = vst [vmem:[#allocation2 + $0xc0] sm:$0xff] %v1322
      %1355 = vst [vmem:[#allocation2 + $0xc8] sm:$0xff] %v1323
      %1356 = vst [vmem:[#allocation2 + $0xd0] sm:$0xff] %v1324
      %1357 = vst [vmem:[#allocation2 + $0xd8] sm:$0xff] %v1325
      %1358 = vst [vmem:[#allocation2 + $0xe0] sm:$0xff] %v1326
      %1359 = vst [vmem:[#allocation2 + $0xe8] sm:$0xff] %v1327
      %1360 = vst [vmem:[#allocation2 + $0xf0] sm:$0xff] %v1328
      %1361 = vst [vmem:[#allocation2 + $0xf8] sm:$0xff] %v1329
      // Predicated region
      $region37: #{forward_pallas.12} parent=31 // pred_check
        %p1362 = pneg %p268
      $region38: #{forward_pallas.12} parent=31 // pred_check_branch
        %1364 = sbr.rel (%p1362) target = $region40
      $region39: #{forward_pallas.12} parent=31 // pred_region
        %v1365 = vld [vmem:[#allocation2] sm:$0xff]
        %v1366 = vld [vmem:[#allocation2 + $0x8] sm:$0xff]
        %v1367 = vld [vmem:[#allocation2 + $0x10] sm:$0xff]
        %v1368 = vld [vmem:[#allocation2 + $0x18] sm:$0xff]
        %v1369 = vld [vmem:[#allocation2 + $0x20] sm:$0xff]
        %v1370 = vld [vmem:[#allocation2 + $0x28] sm:$0xff]
        %v1371 = vld [vmem:[#allocation2 + $0x30] sm:$0xff]
        %v1372 = vld [vmem:[#allocation2 + $0x38] sm:$0xff]
        %v1373 = vld [vmem:[#allocation2 + $0x40] sm:$0xff]
        %v1374 = vld [vmem:[#allocation2 + $0x48] sm:$0xff]
        %v1375 = vld [vmem:[#allocation2 + $0x50] sm:$0xff]
        %v1376 = vld [vmem:[#allocation2 + $0x58] sm:$0xff]
        %v1377 = vld [vmem:[#allocation2 + $0x60] sm:$0xff]
        %v1378 = vld [vmem:[#allocation2 + $0x68] sm:$0xff]
        %v1379 = vld [vmem:[#allocation2 + $0x70] sm:$0xff]
        %v1380 = vld [vmem:[#allocation2 + $0x78] sm:$0xff]
        %v1381 = vld [vmem:[#allocation2 + $0x80] sm:$0xff]
        %v1382 = vld [vmem:[#allocation2 + $0x88] sm:$0xff]
        %v1383 = vld [vmem:[#allocation2 + $0x90] sm:$0xff]
        %v1384 = vld [vmem:[#allocation2 + $0x98] sm:$0xff]
        %v1385 = vld [vmem:[#allocation2 + $0xa0] sm:$0xff]
        %v1386 = vld [vmem:[#allocation2 + $0xa8] sm:$0xff]
        %v1387 = vld [vmem:[#allocation2 + $0xb0] sm:$0xff]
        %v1388 = vld [vmem:[#allocation2 + $0xb8] sm:$0xff]
        %v1389 = vld [vmem:[#allocation2 + $0xc0] sm:$0xff]
        %v1390 = vld [vmem:[#allocation2 + $0xc8] sm:$0xff]
        %v1391 = vld [vmem:[#allocation2 + $0xd0] sm:$0xff]
        %v1392 = vld [vmem:[#allocation2 + $0xd8] sm:$0xff]
        %v1393 = vld [vmem:[#allocation2 + $0xe0] sm:$0xff]
        %v1394 = vld [vmem:[#allocation2 + $0xe8] sm:$0xff]
        %v1395 = vld [vmem:[#allocation2 + $0xf0] sm:$0xff]
        %v1396 = vld [vmem:[#allocation2 + $0xf8] sm:$0xff]
        %v1397 = vld [vmem:[%s257] sm:$0x1]
        %v1399 = vlaneseq
        %v1400 = vshrl.u32 %v1399, 7
        %v1401 = vsub.s32 0, %v1400
        %v1402 = vrot.slane %v1397, %v1401
        %v1404 = vadd.f32 %v1365, %v1402
        %v1405 = vadd.f32 %v1366, %v1402
        %v1406 = vadd.f32 %v1367, %v1402
        %v1407 = vadd.f32 %v1368, %v1402
        %v1408 = vadd.f32 %v1369, %v1402
        %v1409 = vadd.f32 %v1370, %v1402
        %v1410 = vadd.f32 %v1371, %v1402
        %v1411 = vadd.f32 %v1372, %v1402
        %v1412 = vadd.f32 %v1373, %v1402
        %v1413 = vadd.f32 %v1374, %v1402
        %v1414 = vadd.f32 %v1375, %v1402
        %v1415 = vadd.f32 %v1376, %v1402
        %v1416 = vadd.f32 %v1377, %v1402
        %v1417 = vadd.f32 %v1378, %v1402
        %v1418 = vadd.f32 %v1379, %v1402
        %v1419 = vadd.f32 %v1380, %v1402
        %v1420 = vadd.f32 %v1381, %v1402
        %v1421 = vadd.f32 %v1382, %v1402
        %v1422 = vadd.f32 %v1383, %v1402
        %v1423 = vadd.f32 %v1384, %v1402
        %v1424 = vadd.f32 %v1385, %v1402
        %v1425 = vadd.f32 %v1386, %v1402
        %v1426 = vadd.f32 %v1387, %v1402
        %v1427 = vadd.f32 %v1388, %v1402
        %v1428 = vadd.f32 %v1389, %v1402
        %v1429 = vadd.f32 %v1390, %v1402
        %v1430 = vadd.f32 %v1391, %v1402
        %v1431 = vadd.f32 %v1392, %v1402
        %v1432 = vadd.f32 %v1393, %v1402
        %v1433 = vadd.f32 %v1394, %v1402
        %v1434 = vadd.f32 %v1395, %v1402
        %v1435 = vadd.f32 %v1396, %v1402
        %v1436 = vpack.c.bf16 %v1405, %v1404
        %v1437 = vpack.c.bf16 %v1407, %v1406
        %v1438 = vpack.c.bf16 %v1409, %v1408
        %v1439 = vpack.c.bf16 %v1411, %v1410
        %v1440 = vpack.c.bf16 %v1413, %v1412
        %v1441 = vpack.c.bf16 %v1415, %v1414
        %v1442 = vpack.c.bf16 %v1417, %v1416
        %v1443 = vpack.c.bf16 %v1419, %v1418
        %v1444 = vpack.c.bf16 %v1421, %v1420
        %v1445 = vpack.c.bf16 %v1423, %v1422
        %v1446 = vpack.c.bf16 %v1425, %v1424
        %v1447 = vpack.c.bf16 %v1427, %v1426
        %v1448 = vpack.c.bf16 %v1429, %v1428
        %v1449 = vpack.c.bf16 %v1431, %v1430
        %v1450 = vpack.c.bf16 %v1433, %v1432
        %v1451 = vpack.c.bf16 %v1435, %v1434
        %v1468 = vunpack.c.l.b16 %v1436
        %v1469 = vunpack.c.h.b16 %v1436
        %v1470 = vunpack.c.l.b16 %v1437
        %v1471 = vunpack.c.h.b16 %v1437
        %v1472 = vunpack.c.l.b16 %v1438
        %v1473 = vunpack.c.h.b16 %v1438
        %v1474 = vunpack.c.l.b16 %v1439
        %v1475 = vunpack.c.h.b16 %v1439
        %v1476 = vunpack.c.l.b16 %v1440
        %v1477 = vunpack.c.h.b16 %v1440
        %v1478 = vunpack.c.l.b16 %v1441
        %v1479 = vunpack.c.h.b16 %v1441
        %v1480 = vunpack.c.l.b16 %v1442
        %v1481 = vunpack.c.h.b16 %v1442
        %v1482 = vunpack.c.l.b16 %v1443
        %v1483 = vunpack.c.h.b16 %v1443
        %v1484 = vunpack.c.l.b16 %v1444
        %v1485 = vunpack.c.h.b16 %v1444
        %v1486 = vunpack.c.l.b16 %v1445
        %v1487 = vunpack.c.h.b16 %v1445
        %v1488 = vunpack.c.l.b16 %v1446
        %v1489 = vunpack.c.h.b16 %v1446
        %v1490 = vunpack.c.l.b16 %v1447
        %v1491 = vunpack.c.h.b16 %v1447
        %v1492 = vunpack.c.l.b16 %v1448
        %v1493 = vunpack.c.h.b16 %v1448
        %v1494 = vunpack.c.l.b16 %v1449
        %v1495 = vunpack.c.h.b16 %v1449
        %v1496 = vunpack.c.l.b16 %v1450
        %v1497 = vunpack.c.h.b16 %v1450
        %v1498 = vunpack.c.l.b16 %v1451
        %v1499 = vunpack.c.h.b16 %v1451
        %v1500 = vpack.c.b16 %v1468, %v1468
        %v1501 = vpack.c.b16 %v1469, %v1469
        %v1502 = vpack.c.b16 %v1470, %v1470
        %v1503 = vpack.c.b16 %v1471, %v1471
        %v1504 = vpack.c.b16 %v1472, %v1472
        %v1505 = vpack.c.b16 %v1473, %v1473
        %v1506 = vpack.c.b16 %v1474, %v1474
        %v1507 = vpack.c.b16 %v1475, %v1475
        %v1508 = vpack.c.b16 %v1476, %v1476
        %v1509 = vpack.c.b16 %v1477, %v1477
        %v1510 = vpack.c.b16 %v1478, %v1478
        %v1511 = vpack.c.b16 %v1479, %v1479
        %v1512 = vpack.c.b16 %v1480, %v1480
        %v1513 = vpack.c.b16 %v1481, %v1481
        %v1514 = vpack.c.b16 %v1482, %v1482
        %v1515 = vpack.c.b16 %v1483, %v1483
        %v1516 = vpack.c.b16 %v1484, %v1484
        %v1517 = vpack.c.b16 %v1485, %v1485
        %v1518 = vpack.c.b16 %v1486, %v1486
        %v1519 = vpack.c.b16 %v1487, %v1487
        %v1520 = vpack.c.b16 %v1488, %v1488
        %v1521 = vpack.c.b16 %v1489, %v1489
        %v1522 = vpack.c.b16 %v1490, %v1490
        %v1523 = vpack.c.b16 %v1491, %v1491
        %v1524 = vpack.c.b16 %v1492, %v1492
        %v1525 = vpack.c.b16 %v1493, %v1493
        %v1526 = vpack.c.b16 %v1494, %v1494
        %v1527 = vpack.c.b16 %v1495, %v1495
        %v1528 = vpack.c.b16 %v1496, %v1496
        %v1529 = vpack.c.b16 %v1497, %v1497
        %v1530 = vpack.c.b16 %v1498, %v1498
        %v1531 = vpack.c.b16 %v1499, %v1499
        %1564 = vst [vmem:[%s265] sm:$0xf] %v1500
        %1565 = vst [vmem:[%s265 + $0x4] sm:$0xf] %v1501
        %1566 = vst [vmem:[%s265 + $0x8] sm:$0xf] %v1502
        %1567 = vst [vmem:[%s265 + $0xc] sm:$0xf] %v1503
        %1568 = vst [vmem:[%s265 + $0x10] sm:$0xf] %v1504
        %1569 = vst [vmem:[%s265 + $0x14] sm:$0xf] %v1505
        %1570 = vst [vmem:[%s265 + $0x18] sm:$0xf] %v1506
        %1571 = vst [vmem:[%s265 + $0x1c] sm:$0xf] %v1507
        %1572 = vst [vmem:[%s265 + $0x20] sm:$0xf] %v1508
        %1573 = vst [vmem:[%s265 + $0x24] sm:$0xf] %v1509
        %1574 = vst [vmem:[%s265 + $0x28] sm:$0xf] %v1510
        %1575 = vst [vmem:[%s265 + $0x2c] sm:$0xf] %v1511
        %1576 = vst [vmem:[%s265 + $0x30] sm:$0xf] %v1512
        %1577 = vst [vmem:[%s265 + $0x34] sm:$0xf] %v1513
        %1578 = vst [vmem:[%s265 + $0x38] sm:$0xf] %v1514
        %1579 = vst [vmem:[%s265 + $0x3c] sm:$0xf] %v1515
        %1580 = vst [vmem:[%s265 + $0x40] sm:$0xf] %v1516
        %1581 = vst [vmem:[%s265 + $0x44] sm:$0xf] %v1517
        %1582 = vst [vmem:[%s265 + $0x48] sm:$0xf] %v1518
        %1583 = vst [vmem:[%s265 + $0x4c] sm:$0xf] %v1519
        %1584 = vst [vmem:[%s265 + $0x50] sm:$0xf] %v1520
        %1585 = vst [vmem:[%s265 + $0x54] sm:$0xf] %v1521
        %1586 = vst [vmem:[%s265 + $0x58] sm:$0xf] %v1522
        %1587 = vst [vmem:[%s265 + $0x5c] sm:$0xf] %v1523
        %1588 = vst [vmem:[%s265 + $0x60] sm:$0xf] %v1524
        %1589 = vst [vmem:[%s265 + $0x64] sm:$0xf] %v1525
        %1590 = vst [vmem:[%s265 + $0x68] sm:$0xf] %v1526
        %1591 = vst [vmem:[%s265 + $0x6c] sm:$0xf] %v1527
        %1592 = vst [vmem:[%s265 + $0x70] sm:$0xf] %v1528
        %1593 = vst [vmem:[%s265 + $0x74] sm:$0xf] %v1529
        %1594 = vst [vmem:[%s265 + $0x78] sm:$0xf] %v1530
        %1595 = vst [vmem:[%s265 + $0x7c] sm:$0xf] %v1531
      $region40: #{forward_pallas.12} parent=31 // pred_fallthru
        _
      %s1596 = smul.u32 32, %s19
      %p1597 = scmp.lt.s32.totalorder %s1596, 127
      %s1598 = scalar_select %p1597, %s1596, 127
      %p1599 = scmp.lt.s32.totalorder %s20, 0
      %s1600 = scalar_select %p1599, %s20, 0
      %s1601 = sadd.s32 %s1600, %s1598
      %s1602 = smul.addr %s1601, 4
      %s1603 = scalar_lea.vmem %s3, %s1602
      // Predicated region
      $region41: #{forward_pallas.12} parent=31 // pred_check
        %p1604 = pneg %p135
      $region42: #{forward_pallas.12} parent=31 // pred_check_branch
        %1606 = sbr.rel (%p1604) target = $region44
      $region43: #{forward_pallas.12} parent=31 // pred_region
        %s1607 = smul.u32 32, %s19
      $region44: #{forward_pallas.12} parent=31 // pred_fallthru
        _
    $region32: #{forward_pallas.12} parent=5 // pred_fallthru
      _
    %p1608 = scmp.le.s32.totalorder 2, %s9
    // Predicated region
    $region45: #{forward_pallas.12} parent=5 // pred_check
      %p1609 = pneg %p1608
    $region46: #{forward_pallas.12} parent=5 // pred_check_branch
      %1611 = sbr.rel (%p1609) target = $region48
    $region47: #{forward_pallas.12} parent=5 // pred_region
      %s1612 = ssub.s32 %s9, 2
      // Predicated region
      $region49: #{forward_pallas.12} parent=47 // pred_check
        %p1613 = pneg %p141
      $region50: #{forward_pallas.12} parent=47 // pred_check_branch
        %1615 = sbr.rel (%p1613) target = $region52
      $region51: #{forward_pallas.12} parent=47 // pred_region
        %s1616 = smul.u32 32, %s22
        %p1617 = scmp.lt.s32.totalorder %s1616, 127
        %s1618 = scalar_select %p1617, %s1616, 127
        %p1619 = scmp.lt.s32.totalorder %s23, 0
        %s1620 = scalar_select %p1619, %s23, 0
        %s1621 = sadd.s32 %s1620, %s1618
        %s1622 = smul.addr %s1621, 4
        %s1623 = scalar_lea.vmem %s3, %s1622
      $region52: #{forward_pallas.12} parent=47 // pred_fallthru
        _
    $region48: #{forward_pallas.12} parent=5 // pred_fallthru
      _
  $region6: #{forward_pallas.12} parent=0 // loop_footer
    %s13 = sadd.s32 1, %s9
  $region7: #{forward_pallas.12} parent=0 // loop_footer_branch
    %8 = sbr.rel target = $region3
  $region8: #{forward_pallas.12} parent=0 // loop_exit
    _

// kernel: forward_pallas.13
$region0: #{forward_pallas.13}
  #allocation0 [shape = 'u32[]', space=smem, size = 0x4, offset = 0x4, fixed_abs, tag = 'smem constant byte address 0x4 - core index']
  #allocation1 [shape = 'u32[144,128]{1,0:T(1,128)}', space=vmem, size = 0x12000, scoped, tag = 'internal scratch']
  %s0 = inlined_call_operand.vmem [shape: bf16[1024,128], index: 0, kind: input, shape index: {}]
  %s1 = inlined_call_operand.vmem [shape: f32[1,128], index: 1, kind: output, shape index: {0}]
  %s2 = inlined_call_operand.vmem [shape: f32[1,128], index: 2, kind: output, shape index: {1}]
  %3 = xla_tuple %s1, %s2
  %s4 = sld [smem:[#allocation0]]
  $region49: #{forward_pallas.13} parent=0
    _
  %s6 = ssub.s32 1, %s4
  %s7 = scalar_select 0, %s6, %s4
  loop: start=0, step=1, limit=4
  $region2: #{forward_pallas.13} parent=0 // loop_pre_header
    _
  $region3: #{forward_pallas.13} parent=0 // loop_header
    %s9 = sphi 0, %s13
    %p10 = scmp.ge.s32.totalorder %s9, 4
    %s19 = sphi 0, %s21
    %s22 = sphi 0, %s19
    %s23 = sphi 0, %s22
    %s39 = sphi 0, %s23
    %s43 = sphi 0, %s43
    %s45 = sphi 0, %s43
    %s46 = sphi 0, %s45
    %s60 = sphi 0, %s46
    %s64 = sphi 0, %s64
    %s66 = sphi 0, %s64
    %s67 = sphi 0, %s66
    %s81 = sphi 0, %s67
  $region4: #{forward_pallas.13} parent=0 // loop_header_branch
    %12 = sbr.rel (%p10) target = $region8
  $region5: #{forward_pallas.13} parent=0 // loop_body
    %s14 = ssub.s32 %s9, 1
    %s15 = ssub.s32 %s9, 2
    %s16 = sadd.s32 %s9, 1
    %s17 = ssub.s32 %s9, %s16
    %p18 = scmp.eq.s32.totalorder %s17, 0
    %s20 = sadd.s32 %s19, 1
    %s21 = scalar_select %p18, %s19, %s20
    %p24 = pneg %p18
    %p25 = scmp.eq.s32.totalorder %s9, 1
    %p26 = por %p24, %p25
    %p27 = scmp.ne.s32.totalorder %s19, %s22
    %p28 = scmp.eq.s32.totalorder %s9, 0
    %p29 = por %p27, %p28
    %p30 = scmp.ne.s32.totalorder %s19, %s22
    %p31 = scmp.eq.s32.totalorder %s14, 1
    %p32 = por %p30, %p31
    %p33 = scmp.ne.s32.totalorder %s22, %s23
    %p34 = scmp.eq.s32.totalorder %s14, 0
    %p35 = por %p33, %p34
    %p36 = scmp.ne.s32.totalorder %s22, %s23
    %p37 = scmp.eq.s32.totalorder %s15, 1
    %p38 = por %p36, %p37
    %p40 = scmp.ne.s32.totalorder %s23, %s39
    %p41 = scmp.eq.s32.totalorder %s15, 0
    %p42 = por %p40, %p41
    %s44 = sadd.s32 %s43, 1
    %p47 = scmp.eq.s32.totalorder %s9, 1
    %p48 = scmp.ne.s32.totalorder %s43, %s45
    %p49 = scmp.eq.s32.totalorder %s9, 0
    %p50 = por %p48, %p49
    %p51 = scmp.ne.s32.totalorder %s43, %s45
    %p52 = scmp.eq.s32.totalorder %s14, 1
    %p53 = por %p51, %p52
    %p54 = scmp.ne.s32.totalorder %s45, %s46
    %p55 = scmp.eq.s32.totalorder %s14, 0
    %p56 = por %p54, %p55
    %p57 = scmp.ne.s32.totalorder %s45, %s46
    %p58 = scmp.eq.s32.totalorder %s15, 1
    %p59 = por %p57, %p58
    %p61 = scmp.ne.s32.totalorder %s46, %s60
    %p62 = scmp.eq.s32.totalorder %s15, 0
    %p63 = por %p61, %p62
    %s65 = sadd.s32 %s64, 1
    %p68 = scmp.eq.s32.totalorder %s9, 1
    %p69 = scmp.ne.s32.totalorder %s64, %s66
    %p70 = scmp.eq.s32.totalorder %s9, 0
    %p71 = por %p69, %p70
    %p72 = scmp.ne.s32.totalorder %s64, %s66
    %p73 = scmp.eq.s32.totalorder %s14, 1
    %p74 = por %p72, %p73
    %p75 = scmp.ne.s32.totalorder %s66, %s67
    %p76 = scmp.eq.s32.totalorder %s14, 0
    %p77 = por %p75, %p76
    %p78 = scmp.ne.s32.totalorder %s66, %s67
    %p79 = scmp.eq.s32.totalorder %s15, 1
    %p80 = por %p78, %p79
    %p82 = scmp.ne.s32.totalorder %s67, %s81
    %p83 = scmp.eq.s32.totalorder %s15, 0
    %p84 = por %p82, %p83
    %p85 = scmp.le.s32.totalorder 1, %s9
    %p86 = scmp.lt.s32.totalorder %s9, 3
    %p87 = pnand %p85, %p86
    %p88 = pneg %p87
    // Predicated region
    $region9: #{forward_pallas.13} parent=5 // pred_check
      _
    $region10: #{forward_pallas.13} parent=5 // pred_check_branch
      %90 = sbr.rel (%p87) target = $region12
    $region11: #{forward_pallas.13} parent=5 // pred_region
      %s91 = ssub.s32 %s9, 1
    $region12: #{forward_pallas.13} parent=5 // pred_fallthru
      _
    %p92 = scmp.lt.s32.totalorder %s9, 2
    // Predicated region
    $region13: #{forward_pallas.13} parent=5 // pred_check
      %p93 = pneg %p92
    $region14: #{forward_pallas.13} parent=5 // pred_check_branch
      %95 = sbr.rel (%p93) target = $region16
    $region15: #{forward_pallas.13} parent=5 // pred_region
      // Predicated region
      $region17: #{forward_pallas.13} parent=15 // pred_check
        %p96 = pneg %p29
      $region18: #{forward_pallas.13} parent=15 // pred_check_branch
        %98 = sbr.rel (%p96) target = $region20
      $region19: #{forward_pallas.13} parent=15 // pred_region
        %s99 = smul.u32 64, %s9
        %p100 = scmp.lt.s32.totalorder %s99, 127
        %s101 = scalar_select %p100, %s99, 127
        %s102 = smul.addr %s101, 4
        %s103 = scalar_lea.vmem %s0, %s102
        %s104 = smul.u32 64, %s9
      $region20: #{forward_pallas.13} parent=15 // pred_fallthru
        _
    $region16: #{forward_pallas.13} parent=5 // pred_fallthru
      _
    %p105 = scmp.le.s32.totalorder 1, %s9
    %p106 = scmp.lt.s32.totalorder %s9, 3
    %p107 = pnand %p105, %p106
    %p108 = pneg %p107
    // Predicated region
    $region21: #{forward_pallas.13} parent=5 // pred_check
      _
    $region22: #{forward_pallas.13} parent=5 // pred_check_branch
      %110 = sbr.rel (%p107) target = $region24
    $region23: #{forward_pallas.13} parent=5 // pred_region
      %s111 = ssub.s32 %s9, 1
      %s112 = smul.u32 64, %s14
      %p113 = scmp.lt.s32.totalorder %s112, 127
      %s114 = scalar_select %p113, %s112, 127
      %s115 = smul.addr %s114, 4
      %s116 = scalar_lea.vmem %s0, %s115
      %p117 = pneg %p35
      %p118 = pneg %p32
      %p119 = pneg %p56
      %p120 = pneg %p53
      %p121 = pneg %p77
      %p122 = pneg %p74
      %s123 = smul.u32 64, %s14
      %p124 = scmp.lt.s32.totalorder %s123, 127
      %s125 = scalar_select %p124, %s123, 127
      %s126 = smul.addr %s125, 4
      %s127 = scalar_lea.vmem %s0, %s126
      %s128 = smul.u32 64, %s14
      %p129 = scmp.eq.s32.totalorder %s14, 0
      // Predicated region
      $region25: #{forward_pallas.13} parent=23 // pred_check
        %p130 = pneg %p129
      $region26: #{forward_pallas.13} parent=23 // pred_check_branch
        %132 = sbr.rel (%p130) target = $region28
      $region27: #{forward_pallas.13} parent=23 // pred_region
        %133 = vst [vmem:[%s1] sm:$0x1] 0.0
        %134 = vst [vmem:[%s2] sm:$0x1] 0.0
      $region28: #{forward_pallas.13} parent=23 // pred_fallthru
        _
      %v135 = vld [vmem:[%s127] sm:$0xf]
      %v136 = vld [vmem:[%s127 + $0x4] sm:$0xf]
      %v137 = vld [vmem:[%s127 + $0x8] sm:$0xf]
      %v138 = vld [vmem:[%s127 + $0xc] sm:$0xf]
      %v139 = vld [vmem:[%s127 + $0x10] sm:$0xf]
      %v140 = vld [vmem:[%s127 + $0x14] sm:$0xf]
      %v141 = vld [vmem:[%s127 + $0x18] sm:$0xf]
      %v142 = vld [vmem:[%s127 + $0x1c] sm:$0xf]
      %v143 = vld [vmem:[%s127 + $0x20] sm:$0xf]
      %v144 = vld [vmem:[%s127 + $0x24] sm:$0xf]
      %v145 = vld [vmem:[%s127 + $0x28] sm:$0xf]
      %v146 = vld [vmem:[%s127 + $0x2c] sm:$0xf]
      %v147 = vld [vmem:[%s127 + $0x30] sm:$0xf]
      %v148 = vld [vmem:[%s127 + $0x34] sm:$0xf]
      %v149 = vld [vmem:[%s127 + $0x38] sm:$0xf]
      %v150 = vld [vmem:[%s127 + $0x3c] sm:$0xf]
      %v151 = vld [vmem:[%s127 + $0x40] sm:$0xf]
      %v152 = vld [vmem:[%s127 + $0x44] sm:$0xf]
      %v153 = vld [vmem:[%s127 + $0x48] sm:$0xf]
      %v154 = vld [vmem:[%s127 + $0x4c] sm:$0xf]
      %v155 = vld [vmem:[%s127 + $0x50] sm:$0xf]
      %v156 = vld [vmem:[%s127 + $0x54] sm:$0xf]
      %v157 = vld [vmem:[%s127 + $0x58] sm:$0xf]
      %v158 = vld [vmem:[%s127 + $0x5c] sm:$0xf]
      %v159 = vld [vmem:[%s127 + $0x60] sm:$0xf]
      %v160 = vld [vmem:[%s127 + $0x64] sm:$0xf]
      %v161 = vld [vmem:[%s127 + $0x68] sm:$0xf]
      %v162 = vld [vmem:[%s127 + $0x6c] sm:$0xf]
      %v163 = vld [vmem:[%s127 + $0x70] sm:$0xf]
      %v164 = vld [vmem:[%s127 + $0x74] sm:$0xf]
      %v165 = vld [vmem:[%s127 + $0x78] sm:$0xf]
      %v166 = vld [vmem:[%s127 + $0x7c] sm:$0xf]
      %v167 = vld [vmem:[%s127 + $0x80] sm:$0xf]
      %v168 = vld [vmem:[%s127 + $0x84] sm:$0xf]
      %v169 = vld [vmem:[%s127 + $0x88] sm:$0xf]
      %v170 = vld [vmem:[%s127 + $0x8c] sm:$0xf]
      %v171 = vld [vmem:[%s127 + $0x90] sm:$0xf]
      %v172 = vld [vmem:[%s127 + $0x94] sm:$0xf]
      %v173 = vld [vmem:[%s127 + $0x98] sm:$0xf]
      %v174 = vld [vmem:[%s127 + $0x9c] sm:$0xf]
      %v175 = vld [vmem:[%s127 + $0xa0] sm:$0xf]
      %v176 = vld [vmem:[%s127 + $0xa4] sm:$0xf]
      %v177 = vld [vmem:[%s127 + $0xa8] sm:$0xf]
      %v178 = vld [vmem:[%s127 + $0xac] sm:$0xf]
      %v179 = vld [vmem:[%s127 + $0xb0] sm:$0xf]
      %v180 = vld [vmem:[%s127 + $0xb4] sm:$0xf]
      %v181 = vld [vmem:[%s127 + $0xb8] sm:$0xf]
      %v182 = vld [vmem:[%s127 + $0xbc] sm:$0xf]
      %v183 = vld [vmem:[%s127 + $0xc0] sm:$0xf]
      %v184 = vld [vmem:[%s127 + $0xc4] sm:$0xf]
      %v185 = vld [vmem:[%s127 + $0xc8] sm:$0xf]
      %v186 = vld [vmem:[%s127 + $0xcc] sm:$0xf]
      %v187 = vld [vmem:[%s127 + $0xd0] sm:$0xf]
      %v188 = vld [vmem:[%s127 + $0xd4] sm:$0xf]
      %v189 = vld [vmem:[%s127 + $0xd8] sm:$0xf]
      %v190 = vld [vmem:[%s127 + $0xdc] sm:$0xf]
      %v191 = vld [vmem:[%s127 + $0xe0] sm:$0xf]
      %v192 = vld [vmem:[%s127 + $0xe4] sm:$0xf]
      %v193 = vld [vmem:[%s127 + $0xe8] sm:$0xf]
      %v194 = vld [vmem:[%s127 + $0xec] sm:$0xf]
      %v195 = vld [vmem:[%s127 + $0xf0] sm:$0xf]
      %v196 = vld [vmem:[%s127 + $0xf4] sm:$0xf]
      %v197 = vld [vmem:[%s127 + $0xf8] sm:$0xf]
      %v198 = vld [vmem:[%s127 + $0xfc] sm:$0xf]
      %v199 = vunpack.c.l.bf16 %v135
      %v200 = vunpack.c.l.bf16 %v136
      %v201 = vunpack.c.l.bf16 %v137
      %v202 = vunpack.c.l.bf16 %v138
      %v203 = vunpack.c.l.bf16 %v139
      %v204 = vunpack.c.l.bf16 %v140
      %v205 = vunpack.c.l.bf16 %v141
      %v206 = vunpack.c.l.bf16 %v142
      %v207 = vunpack.c.l.bf16 %v143
      %v208 = vunpack.c.l.bf16 %v144
      %v209 = vunpack.c.l.bf16 %v145
      %v210 = vunpack.c.l.bf16 %v146
      %v211 = vunpack.c.l.bf16 %v147
      %v212 = vunpack.c.l.bf16 %v148
      %v213 = vunpack.c.l.bf16 %v149
      %v214 = vunpack.c.l.bf16 %v150
      %v215 = vunpack.c.l.bf16 %v151
      %v216 = vunpack.c.l.bf16 %v152
      %v217 = vunpack.c.l.bf16 %v153
      %v218 = vunpack.c.l.bf16 %v154
      %v219 = vunpack.c.l.bf16 %v155
      %v220 = vunpack.c.l.bf16 %v156
      %v221 = vunpack.c.l.bf16 %v157
      %v222 = vunpack.c.l.bf16 %v158
      %v223 = vunpack.c.l.bf16 %v159
      %v224 = vunpack.c.l.bf16 %v160
      %v225 = vunpack.c.l.bf16 %v161
      %v226 = vunpack.c.l.bf16 %v162
      %v227 = vunpack.c.l.bf16 %v163
      %v228 = vunpack.c.l.bf16 %v164
      %v229 = vunpack.c.l.bf16 %v165
      %v230 = vunpack.c.l.bf16 %v166
      %v231 = vunpack.c.l.bf16 %v167
      %v232 = vunpack.c.l.bf16 %v168
      %v233 = vunpack.c.l.bf16 %v169
      %v234 = vunpack.c.l.bf16 %v170
      %v235 = vunpack.c.l.bf16 %v171
      %v236 = vunpack.c.l.bf16 %v172
      %v237 = vunpack.c.l.bf16 %v173
      %v238 = vunpack.c.l.bf16 %v174
      %v239 = vunpack.c.l.bf16 %v175
      %v240 = vunpack.c.l.bf16 %v176
      %v241 = vunpack.c.l.bf16 %v177
      %v242 = vunpack.c.l.bf16 %v178
      %v243 = vunpack.c.l.bf16 %v179
      %v244 = vunpack.c.l.bf16 %v180
      %v245 = vunpack.c.l.bf16 %v181
      %v246 = vunpack.c.l.bf16 %v182
      %v247 = vunpack.c.l.bf16 %v183
      %v248 = vunpack.c.l.bf16 %v184
      %v249 = vunpack.c.l.bf16 %v185
      %v250 = vunpack.c.l.bf16 %v186
      %v251 = vunpack.c.l.bf16 %v187
      %v252 = vunpack.c.l.bf16 %v188
      %v253 = vunpack.c.l.bf16 %v189
      %v254 = vunpack.c.l.bf16 %v190
      %v255 = vunpack.c.l.bf16 %v191
      %v256 = vunpack.c.l.bf16 %v192
      %v257 = vunpack.c.l.bf16 %v193
      %v258 = vunpack.c.l.bf16 %v194
      %v259 = vunpack.c.l.bf16 %v195
      %v260 = vunpack.c.l.bf16 %v196
      %v261 = vunpack.c.l.bf16 %v197
      %v262 = vunpack.c.l.bf16 %v198
      %v263 = vlaneseq
      %v264 = vshrl.u32 %v263, 7
      %v265 = vadd.s32 %v264, 8
      %v266 = vadd.s32 %v264, 16
      %v267 = vadd.s32 %v264, 24
      %v268 = vadd.s32 %v264, 32
      %v269 = vadd.s32 %v264, 40
      %v270 = vadd.s32 %v264, 48
      %v271 = vadd.s32 %v264, 56
      %v272 = vadd.s32 %v264, 64
      %v273 = vadd.s32 %v264, 72
      %v274 = vadd.s32 %v264, 80
      %v275 = vadd.s32 %v264, 88
      %v276 = vadd.s32 %v264, 96
      %v277 = vadd.s32 %v264, 104
      %v278 = vadd.s32 %v264, 112
      %v279 = vadd.s32 %v264, 120
      %v280 = vadd.s32 %v264, 128
      %v281 = vadd.s32 %v264, 136
      %v282 = vadd.s32 %v264, 144
      %v283 = vadd.s32 %v264, 152
      %v284 = vadd.s32 %v264, 160
      %v285 = vadd.s32 %v264, 168
      %v286 = vadd.s32 %v264, 176
      %v287 = vadd.s32 %v264, 184
      %v288 = vadd.s32 %v264, 192
      %v289 = vadd.s32 %v264, 200
      %v290 = vadd.s32 %v264, 208
      %v291 = vadd.s32 %v264, 216
      %v292 = vadd.s32 %v264, 224
      %v293 = vadd.s32 %v264, 232
      %v294 = vadd.s32 %v264, 240
      %v295 = vadd.s32 %v264, 248
      %v296 = vadd.s32 %v264, 256
      %v297 = vadd.s32 %v264, 264
      %v298 = vadd.s32 %v264, 272
      %v299 = vadd.s32 %v264, 280
      %v300 = vadd.s32 %v264, 288
      %v301 = vadd.s32 %v264, 296
      %v302 = vadd.s32 %v264, 304
      %v303 = vadd.s32 %v264, 312
      %v304 = vadd.s32 %v264, 320
      %v305 = vadd.s32 %v264, 328
      %v306 = vadd.s32 %v264, 336
      %v307 = vadd.s32 %v264, 344
      %v308 = vadd.s32 %v264, 352
      %v309 = vadd.s32 %v264, 360
      %v310 = vadd.s32 %v264, 368
      %v311 = vadd.s32 %v264, 376
      %v312 = vadd.s32 %v264, 384
      %v313 = vadd.s32 %v264, 392
      %v314 = vadd.s32 %v264, 400
      %v315 = vadd.s32 %v264, 408
      %v316 = vadd.s32 %v264, 416
      %v317 = vadd.s32 %v264, 424
      %v318 = vadd.s32 %v264, 432
      %v319 = vadd.s32 %v264, 440
      %v320 = vadd.s32 %v264, 448
      %v321 = vadd.s32 %v264, 456
      %v322 = vadd.s32 %v264, 464
      %v323 = vadd.s32 %v264, 472
      %v324 = vadd.s32 %v264, 480
      %v325 = vadd.s32 %v264, 488
      %v326 = vadd.s32 %v264, 496
      %v327 = vadd.s32 %v264, 504
      %s328 = smul.u32 %s14, 512
      %s329 = ssub.s32 1024, %s328
      %v330 = vstv %s329
      %vm331 = vcmp.lt.s32.totalorder %v264, %v330
      %vm332 = vcmp.lt.s32.totalorder %v265, %v330
      %vm333 = vcmp.lt.s32.totalorder %v266, %v330
      %vm334 = vcmp.lt.s32.totalorder %v267, %v330
      %vm335 = vcmp.lt.s32.totalorder %v268, %v330
      %vm336 = vcmp.lt.s32.totalorder %v269, %v330
      %vm337 = vcmp.lt.s32.totalorder %v270, %v330
      %vm338 = vcmp.lt.s32.totalorder %v271, %v330
      %vm339 = vcmp.lt.s32.totalorder %v272, %v330
      %vm340 = vcmp.lt.s32.totalorder %v273, %v330
      %vm341 = vcmp.lt.s32.totalorder %v274, %v330
      %vm342 = vcmp.lt.s32.totalorder %v275, %v330
      %vm343 = vcmp.lt.s32.totalorder %v276, %v330
      %vm344 = vcmp.lt.s32.totalorder %v277, %v330
      %vm345 = vcmp.lt.s32.totalorder %v278, %v330
      %vm346 = vcmp.lt.s32.totalorder %v279, %v330
      %vm347 = vcmp.lt.s32.totalorder %v280, %v330
      %vm348 = vcmp.lt.s32.totalorder %v281, %v330
      %vm349 = vcmp.lt.s32.totalorder %v282, %v330
      %vm350 = vcmp.lt.s32.totalorder %v283, %v330
      %vm351 = vcmp.lt.s32.totalorder %v284, %v330
      %vm352 = vcmp.lt.s32.totalorder %v285, %v330
      %vm353 = vcmp.lt.s32.totalorder %v286, %v330
      %vm354 = vcmp.lt.s32.totalorder %v287, %v330
      %vm355 = vcmp.lt.s32.totalorder %v288, %v330
      %vm356 = vcmp.lt.s32.totalorder %v289, %v330
      %vm357 = vcmp.lt.s32.totalorder %v290, %v330
      %vm358 = vcmp.lt.s32.totalorder %v291, %v330
      %vm359 = vcmp.lt.s32.totalorder %v292, %v330
      %vm360 = vcmp.lt.s32.totalorder %v293, %v330
      %vm361 = vcmp.lt.s32.totalorder %v294, %v330
      %vm362 = vcmp.lt.s32.totalorder %v295, %v330
      %vm363 = vcmp.lt.s32.totalorder %v296, %v330
      %vm364 = vcmp.lt.s32.totalorder %v297, %v330
      %vm365 = vcmp.lt.s32.totalorder %v298, %v330
      %vm366 = vcmp.lt.s32.totalorder %v299, %v330
      %vm367 = vcmp.lt.s32.totalorder %v300, %v330
      %vm368 = vcmp.lt.s32.totalorder %v301, %v330
      %vm369 = vcmp.lt.s32.totalorder %v302, %v330
      %vm370 = vcmp.lt.s32.totalorder %v303, %v330
      %vm371 = vcmp.lt.s32.totalorder %v304, %v330
      %vm372 = vcmp.lt.s32.totalorder %v305, %v330
      %vm373 = vcmp.lt.s32.totalorder %v306, %v330
      %vm374 = vcmp.lt.s32.totalorder %v307, %v330
      %vm375 = vcmp.lt.s32.totalorder %v308, %v330
      %vm376 = vcmp.lt.s32.totalorder %v309, %v330
      %vm377 = vcmp.lt.s32.totalorder %v310, %v330
      %vm378 = vcmp.lt.s32.totalorder %v311, %v330
      %vm379 = vcmp.lt.s32.totalorder %v312, %v330
      %vm380 = vcmp.lt.s32.totalorder %v313, %v330
      %vm381 = vcmp.lt.s32.totalorder %v314, %v330
      %vm382 = vcmp.lt.s32.totalorder %v315, %v330
      %vm383 = vcmp.lt.s32.totalorder %v316, %v330
      %vm384 = vcmp.lt.s32.totalorder %v317, %v330
      %vm385 = vcmp.lt.s32.totalorder %v318, %v330
      %vm386 = vcmp.lt.s32.totalorder %v319, %v330
      %vm387 = vcmp.lt.s32.totalorder %v320, %v330
      %vm388 = vcmp.lt.s32.totalorder %v321, %v330
      %vm389 = vcmp.lt.s32.totalorder %v322, %v330
      %vm390 = vcmp.lt.s32.totalorder %v323, %v330
      %vm391 = vcmp.lt.s32.totalorder %v324, %v330
      %vm392 = vcmp.lt.s32.totalorder %v325, %v330
      %vm393 = vcmp.lt.s32.totalorder %v326, %v330
      %vm394 = vcmp.lt.s32.totalorder %v327, %v330
      %v395 = vsel %vm331, %v199, 0.0
      %v396 = vsel %vm332, %v200, 0.0
      %v397 = vsel %vm333, %v201, 0.0
      %v398 = vsel %vm334, %v202, 0.0
      %v399 = vsel %vm335, %v203, 0.0
      %v400 = vsel %vm336, %v204, 0.0
      %v401 = vsel %vm337, %v205, 0.0
      %v402 = vsel %vm338, %v206, 0.0
      %v403 = vsel %vm339, %v207, 0.0
      %v404 = vsel %vm340, %v208, 0.0
      %v405 = vsel %vm341, %v209, 0.0
      %v406 = vsel %vm342, %v210, 0.0
      %v407 = vsel %vm343, %v211, 0.0
      %v408 = vsel %vm344, %v212, 0.0
      %v409 = vsel %vm345, %v213, 0.0
      %v410 = vsel %vm346, %v214, 0.0
      %v411 = vsel %vm347, %v215, 0.0
      %v412 = vsel %vm348, %v216, 0.0
      %v413 = vsel %vm349, %v217, 0.0
      %v414 = vsel %vm350, %v218, 0.0
      %v415 = vsel %vm351, %v219, 0.0
      %v416 = vsel %vm352, %v220, 0.0
      %v417 = vsel %vm353, %v221, 0.0
      %v418 = vsel %vm354, %v222, 0.0
      %v419 = vsel %vm355, %v223, 0.0
      %v420 = vsel %vm356, %v224, 0.0
      %v421 = vsel %vm357, %v225, 0.0
      %v422 = vsel %vm358, %v226, 0.0
      %v423 = vsel %vm359, %v227, 0.0
      %v424 = vsel %vm360, %v228, 0.0
      %v425 = vsel %vm361, %v229, 0.0
      %v426 = vsel %vm362, %v230, 0.0
      %v427 = vsel %vm363, %v231, 0.0
      %v428 = vsel %vm364, %v232, 0.0
      %v429 = vsel %vm365, %v233, 0.0
      %v430 = vsel %vm366, %v234, 0.0
      %v431 = vsel %vm367, %v235, 0.0
      %v432 = vsel %vm368, %v236, 0.0
      %v433 = vsel %vm369, %v237, 0.0
      %v434 = vsel %vm370, %v238, 0.0
      %v435 = vsel %vm371, %v239, 0.0
      %v436 = vsel %vm372, %v240, 0.0
      %v437 = vsel %vm373, %v241, 0.0
      %v438 = vsel %vm374, %v242, 0.0
      %v439 = vsel %vm375, %v243, 0.0
      %v440 = vsel %vm376, %v244, 0.0
      %v441 = vsel %vm377, %v245, 0.0
      %v442 = vsel %vm378, %v246, 0.0
      %v443 = vsel %vm379, %v247, 0.0
      %v444 = vsel %vm380, %v248, 0.0
      %v445 = vsel %vm381, %v249, 0.0
      %v446 = vsel %vm382, %v250, 0.0
      %v447 = vsel %vm383, %v251, 0.0
      %v448 = vsel %vm384, %v252, 0.0
      %v449 = vsel %vm385, %v253, 0.0
      %v450 = vsel %vm386, %v254, 0.0
      %v451 = vsel %vm387, %v255, 0.0
      %v452 = vsel %vm388, %v256, 0.0
      %v453 = vsel %vm389, %v257, 0.0
      %v454 = vsel %vm390, %v258, 0.0
      %v455 = vsel %vm391, %v259, 0.0
      %v456 = vsel %vm392, %v260, 0.0
      %v457 = vsel %vm393, %v261, 0.0
      %v458 = vsel %vm394, %v262, 0.0
      %v459 = vld [vmem:[%s1] sm:$0x1]
      %v460 = vadd.f32 %v395, %v396
      %v461 = vadd.f32 %v460, %v397
      %v462 = vadd.f32 %v461, %v398
      %v463 = vadd.f32 %v462, %v399
      %v464 = vadd.f32 %v463, %v400
      %v465 = vadd.f32 %v464, %v401
      %v466 = vadd.f32 %v465, %v402
      %v467 = vadd.f32 %v466, %v403
      %v468 = vadd.f32 %v467, %v404
      %v469 = vadd.f32 %v468, %v405
      %v470 = vadd.f32 %v469, %v406
      %v471 = vadd.f32 %v470, %v407
      %v472 = vadd.f32 %v471, %v408
      %v473 = vadd.f32 %v472, %v409
      %v474 = vadd.f32 %v473, %v410
      %v475 = vadd.f32 %v474, %v411
      %v476 = vadd.f32 %v475, %v412
      %v477 = vadd.f32 %v476, %v413
      %v478 = vadd.f32 %v477, %v414
      %v479 = vadd.f32 %v478, %v415
      %v480 = vadd.f32 %v479, %v416
      %v481 = vadd.f32 %v480, %v417
      %v482 = vadd.f32 %v481, %v418
      %v483 = vadd.f32 %v482, %v419
      %v484 = vadd.f32 %v483, %v420
      %v485 = vadd.f32 %v484, %v421
      %v486 = vadd.f32 %v485, %v422
      %v487 = vadd.f32 %v486, %v423
      %v488 = vadd.f32 %v487, %v424
      %v489 = vadd.f32 %v488, %v425
      %v490 = vadd.f32 %v489, %v426
      %v491 = vadd.f32 %v490, %v427
      %v492 = vadd.f32 %v491, %v428
      %v493 = vadd.f32 %v492, %v429
      %v494 = vadd.f32 %v493, %v430
      %v495 = vadd.f32 %v494, %v431
      %v496 = vadd.f32 %v495, %v432
      %v497 = vadd.f32 %v496, %v433
      %v498 = vadd.f32 %v497, %v434
      %v499 = vadd.f32 %v498, %v435
      %v500 = vadd.f32 %v499, %v436
      %v501 = vadd.f32 %v500, %v437
      %v502 = vadd.f32 %v501, %v438
      %v503 = vadd.f32 %v502, %v439
      %v504 = vadd.f32 %v503, %v440
      %v505 = vadd.f32 %v504, %v441
      %v506 = vadd.f32 %v505, %v442
      %v507 = vadd.f32 %v506, %v443
      %v508 = vadd.f32 %v507, %v444
      %v509 = vadd.f32 %v508, %v445
      %v510 = vadd.f32 %v509, %v446
      %v511 = vadd.f32 %v510, %v447
      %v512 = vadd.f32 %v511, %v448
      %v513 = vadd.f32 %v512, %v449
      %v514 = vadd.f32 %v513, %v450
      %v515 = vadd.f32 %v514, %v451
      %v516 = vadd.f32 %v515, %v452
      %v517 = vadd.f32 %v516, %v453
      %v518 = vadd.f32 %v517, %v454
      %v519 = vadd.f32 %v518, %v455
      %v520 = vadd.f32 %v519, %v456
      %v521 = vadd.f32 %v520, %v457
      %v522 = vadd.f32 %v521, %v458
      %v523 = vrot.slane %v522, 4
      %v524 = vadd.f32 %v522, %v523
      %v525 = vrot.slane %v524, 2
      %v526 = vadd.f32 %v524, %v525
      %v527 = vrot.slane %v526, 1
      %v528 = vadd.f32 %v526, %v527
      %v529 = vadd.f32 %v459, %v528
      %530 = vst [vmem:[%s1] sm:$0x1] %v529
      %v531 = vld [vmem:[%s2] sm:$0x1]
      %v532 = vmul.f32 %v395, %v395
      %v533 = vmul.f32 %v396, %v396
      %v534 = vmul.f32 %v397, %v397
      %v535 = vmul.f32 %v398, %v398
      %v536 = vmul.f32 %v399, %v399
      %v537 = vmul.f32 %v400, %v400
      %v538 = vmul.f32 %v401, %v401
      %v539 = vmul.f32 %v402, %v402
      %v540 = vmul.f32 %v403, %v403
      %v541 = vmul.f32 %v404, %v404
      %v542 = vmul.f32 %v405, %v405
      %v543 = vmul.f32 %v406, %v406
      %v544 = vmul.f32 %v407, %v407
      %v545 = vmul.f32 %v408, %v408
      %v546 = vmul.f32 %v409, %v409
      %v547 = vmul.f32 %v410, %v410
      %v548 = vmul.f32 %v411, %v411
      %v549 = vmul.f32 %v412, %v412
      %v550 = vmul.f32 %v413, %v413
      %v551 = vmul.f32 %v414, %v414
      %v552 = vmul.f32 %v415, %v415
      %v553 = vmul.f32 %v416, %v416
      %v554 = vmul.f32 %v417, %v417
      %v555 = vmul.f32 %v418, %v418
      %v556 = vmul.f32 %v419, %v419
      %v557 = vmul.f32 %v420, %v420
      %v558 = vmul.f32 %v421, %v421
      %v559 = vmul.f32 %v422, %v422
      %v560 = vmul.f32 %v423, %v423
      %v561 = vmul.f32 %v424, %v424
      %v562 = vmul.f32 %v425, %v425
      %v563 = vmul.f32 %v426, %v426
      %v564 = vmul.f32 %v427, %v427
      %v565 = vmul.f32 %v428, %v428
      %v566 = vmul.f32 %v429, %v429
      %v567 = vmul.f32 %v430, %v430
      %v568 = vmul.f32 %v431, %v431
      %v569 = vmul.f32 %v432, %v432
      %v570 = vmul.f32 %v433, %v433
      %v571 = vmul.f32 %v434, %v434
      %v572 = vmul.f32 %v435, %v435
      %v573 = vmul.f32 %v436, %v436
      %v574 = vmul.f32 %v437, %v437
      %v575 = vmul.f32 %v438, %v438
      %v576 = vmul.f32 %v439, %v439
      %v577 = vmul.f32 %v440, %v440
      %v578 = vmul.f32 %v441, %v441
      %v579 = vmul.f32 %v442, %v442
      %v580 = vmul.f32 %v443, %v443
      %v581 = vmul.f32 %v444, %v444
      %v582 = vmul.f32 %v445, %v445
      %v583 = vmul.f32 %v446, %v446
      %v584 = vmul.f32 %v447, %v447
      %v585 = vmul.f32 %v448, %v448
      %v586 = vmul.f32 %v449, %v449
      %v587 = vmul.f32 %v450, %v450
      %v588 = vmul.f32 %v451, %v451
      %v589 = vmul.f32 %v452, %v452
      %v590 = vmul.f32 %v453, %v453
      %v591 = vmul.f32 %v454, %v454
      %v592 = vmul.f32 %v455, %v455
      %v593 = vmul.f32 %v456, %v456
      %v594 = vmul.f32 %v457, %v457
      %v595 = vmul.f32 %v458, %v458
      %v596 = vadd.f32 %v532, %v533
      %v597 = vadd.f32 %v596, %v534
      %v598 = vadd.f32 %v597, %v535
      %v599 = vadd.f32 %v598, %v536
      %v600 = vadd.f32 %v599, %v537
      %v601 = vadd.f32 %v600, %v538
      %v602 = vadd.f32 %v601, %v539
      %v603 = vadd.f32 %v602, %v540
      %v604 = vadd.f32 %v603, %v541
      %v605 = vadd.f32 %v604, %v542
      %v606 = vadd.f32 %v605, %v543
      %v607 = vadd.f32 %v606, %v544
      %v608 = vadd.f32 %v607, %v545
      %v609 = vadd.f32 %v608, %v546
      %v610 = vadd.f32 %v609, %v547
      %v611 = vadd.f32 %v610, %v548
      %v612 = vadd.f32 %v611, %v549
      %v613 = vadd.f32 %v612, %v550
      %v614 = vadd.f32 %v613, %v551
      %v615 = vadd.f32 %v614, %v552
      %v616 = vadd.f32 %v615, %v553
      %v617 = vadd.f32 %v616, %v554
      %v618 = vadd.f32 %v617, %v555
      %v619 = vadd.f32 %v618, %v556
      %v620 = vadd.f32 %v619, %v557
      %v621 = vadd.f32 %v620, %v558
      %v622 = vadd.f32 %v621, %v559
      %v623 = vadd.f32 %v622, %v560
      %v624 = vadd.f32 %v623, %v561
      %v625 = vadd.f32 %v624, %v562
      %v626 = vadd.f32 %v625, %v563
      %v627 = vadd.f32 %v626, %v564
      %v628 = vadd.f32 %v627, %v565
      %v629 = vadd.f32 %v628, %v566
      %v630 = vadd.f32 %v629, %v567
      %v631 = vadd.f32 %v630, %v568
      %v632 = vadd.f32 %v631, %v569
      %v633 = vadd.f32 %v632, %v570
      %v634 = vadd.f32 %v633, %v571
      %v635 = vadd.f32 %v634, %v572
      %v636 = vadd.f32 %v635, %v573
      %v637 = vadd.f32 %v636, %v574
      %v638 = vadd.f32 %v637, %v575
      %v639 = vadd.f32 %v638, %v576
      %v640 = vadd.f32 %v639, %v577
      %v641 = vadd.f32 %v640, %v578
      %v642 = vadd.f32 %v641, %v579
      %v643 = vadd.f32 %v642, %v580
      %v644 = vadd.f32 %v643, %v581
      %v645 = vadd.f32 %v644, %v582
      %v646 = vadd.f32 %v645, %v583
      %v647 = vadd.f32 %v646, %v584
      %v648 = vadd.f32 %v647, %v585
      %v649 = vadd.f32 %v648, %v586
      %v650 = vadd.f32 %v649, %v587
      %v651 = vadd.f32 %v650, %v588
      %v652 = vadd.f32 %v651, %v589
      %v653 = vadd.f32 %v652, %v590
      %v654 = vadd.f32 %v653, %v591
      %v655 = vadd.f32 %v654, %v592
      %v656 = vadd.f32 %v655, %v593
      %v657 = vadd.f32 %v656, %v594
      %v658 = vadd.f32 %v657, %v595
      %v659 = vrot.slane %v658, 4
      %v660 = vadd.f32 %v658, %v659
      %v661 = vrot.slane %v660, 2
      %v662 = vadd.f32 %v660, %v661
      %v663 = vrot.slane %v662, 1
      %v664 = vadd.f32 %v662, %v663
      %v665 = vadd.f32 %v531, %v664
      %666 = vst [vmem:[%s2] sm:$0x1] %v665
      // Predicated region
      $region29: #{forward_pallas.13} parent=23 // pred_check
        %p667 = pneg %p53
      $region30: #{forward_pallas.13} parent=23 // pred_check_branch
        %669 = sbr.rel (%p667) target = $region32
      $region31: #{forward_pallas.13} parent=23 // pred_region
        _
      $region32: #{forward_pallas.13} parent=23 // pred_fallthru
        _
      // Predicated region
      $region33: #{forward_pallas.13} parent=23 // pred_check
        %p670 = pneg %p74
      $region34: #{forward_pallas.13} parent=23 // pred_check_branch
        %672 = sbr.rel (%p670) target = $region36
      $region35: #{forward_pallas.13} parent=23 // pred_region
        _
      $region36: #{forward_pallas.13} parent=23 // pred_fallthru
        _
      // Predicated region
      $region37: #{forward_pallas.13} parent=23 // pred_check
        %p673 = pneg %p53
      $region38: #{forward_pallas.13} parent=23 // pred_check_branch
        %675 = sbr.rel (%p673) target = $region40
      $region39: #{forward_pallas.13} parent=23 // pred_region
        _
      $region40: #{forward_pallas.13} parent=23 // pred_fallthru
        _
      // Predicated region
      $region41: #{forward_pallas.13} parent=23 // pred_check
        %p676 = pneg %p74
      $region42: #{forward_pallas.13} parent=23 // pred_check_branch
        %678 = sbr.rel (%p676) target = $region44
      $region43: #{forward_pallas.13} parent=23 // pred_region
        _
      $region44: #{forward_pallas.13} parent=23 // pred_fallthru
        _
    $region24: #{forward_pallas.13} parent=5 // pred_fallthru
      _
    %p679 = scmp.le.s32.totalorder 2, %s9
    // Predicated region
    $region45: #{forward_pallas.13} parent=5 // pred_check
      %p680 = pneg %p679
    $region46: #{forward_pallas.13} parent=5 // pred_check_branch
      %682 = sbr.rel (%p680) target = $region48
    $region47: #{forward_pallas.13} parent=5 // pred_region
      %s683 = ssub.s32 %s9, 2
    $region48: #{forward_pallas.13} parent=5 // pred_fallthru
      _
  $region6: #{forward_pallas.13} parent=0 // loop_footer
    %s13 = sadd.s32 1, %s9
  $region7: #{forward_pallas.13} parent=0 // loop_footer_branch
    %8 = sbr.rel target = $region3
  $region8: #{forward_pallas.13} parent=0 // loop_exit
    _

// kernel: forward_pallas.14
$region0: #{forward_pallas.14}
  #allocation0 [shape = 'u32[]', space=smem, size = 0x4, offset = 0x4, fixed_abs, tag = 'smem constant byte address 0x4 - core index']
  #allocation1 [shape = 'u32[144,128]{1,0:T(1,128)}', space=vmem, size = 0x12000, scoped, tag = 'internal scratch']
  %s0 = inlined_call_operand.vmem [shape: bf16[1024,128], index: 0, kind: input, shape index: {}]
  %s1 = inlined_call_operand.vmem [shape: f32[1,128], index: 1, kind: input, shape index: {}]
  %s2 = inlined_call_operand.vmem [shape: f32[1,128], index: 2, kind: input, shape index: {}]
  %s3 = inlined_call_operand.vmem [shape: bf16[1024,128], index: 3, kind: output, shape index: {}]
  %s4 = sld [smem:[#allocation0]]
  $region45: #{forward_pallas.14} parent=0
    _
  %s6 = ssub.s32 1, %s4
  %s7 = scalar_select 0, %s6, %s4
  loop: start=0, step=1, limit=4
  $region2: #{forward_pallas.14} parent=0 // loop_pre_header
    _
  $region3: #{forward_pallas.14} parent=0 // loop_header
    %s9 = sphi 0, %s13
    %p10 = scmp.ge.s32.totalorder %s9, 4
    %s19 = sphi 0, %s21
    %s22 = sphi 0, %s19
    %s23 = sphi 0, %s22
    %s39 = sphi 0, %s23
    %s43 = sphi 0, %s43
    %s45 = sphi 0, %s43
    %s46 = sphi 0, %s45
    %s60 = sphi 0, %s46
    %s64 = sphi 0, %s64
    %s66 = sphi 0, %s64
    %s67 = sphi 0, %s66
    %s81 = sphi 0, %s67
    %s87 = sphi 0, %s89
    %s90 = sphi 0, %s87
    %s91 = sphi 0, %s90
    %s107 = sphi 0, %s91
  $region4: #{forward_pallas.14} parent=0 // loop_header_branch
    %12 = sbr.rel (%p10) target = $region8
  $region5: #{forward_pallas.14} parent=0 // loop_body
    %s14 = ssub.s32 %s9, 1
    %s15 = ssub.s32 %s9, 2
    %s16 = sadd.s32 %s9, 1
    %s17 = ssub.s32 %s9, %s16
    %p18 = scmp.eq.s32.totalorder %s17, 0
    %s20 = sadd.s32 %s19, 1
    %s21 = scalar_select %p18, %s19, %s20
    %p24 = pneg %p18
    %p25 = scmp.eq.s32.totalorder %s9, 1
    %p26 = por %p24, %p25
    %p27 = scmp.ne.s32.totalorder %s19, %s22
    %p28 = scmp.eq.s32.totalorder %s9, 0
    %p29 = por %p27, %p28
    %p30 = scmp.ne.s32.totalorder %s19, %s22
    %p31 = scmp.eq.s32.totalorder %s14, 1
    %p32 = por %p30, %p31
    %p33 = scmp.ne.s32.totalorder %s22, %s23
    %p34 = scmp.eq.s32.totalorder %s14, 0
    %p35 = por %p33, %p34
    %p36 = scmp.ne.s32.totalorder %s22, %s23
    %p37 = scmp.eq.s32.totalorder %s15, 1
    %p38 = por %p36, %p37
    %p40 = scmp.ne.s32.totalorder %s23, %s39
    %p41 = scmp.eq.s32.totalorder %s15, 0
    %p42 = por %p40, %p41
    %s44 = sadd.s32 %s43, 1
    %p47 = scmp.eq.s32.totalorder %s9, 1
    %p48 = scmp.ne.s32.totalorder %s43, %s45
    %p49 = scmp.eq.s32.totalorder %s9, 0
    %p50 = por %p48, %p49
    %p51 = scmp.ne.s32.totalorder %s43, %s45
    %p52 = scmp.eq.s32.totalorder %s14, 1
    %p53 = por %p51, %p52
    %p54 = scmp.ne.s32.totalorder %s45, %s46
    %p55 = scmp.eq.s32.totalorder %s14, 0
    %p56 = por %p54, %p55
    %p57 = scmp.ne.s32.totalorder %s45, %s46
    %p58 = scmp.eq.s32.totalorder %s15, 1
    %p59 = por %p57, %p58
    %p61 = scmp.ne.s32.totalorder %s46, %s60
    %p62 = scmp.eq.s32.totalorder %s15, 0
    %p63 = por %p61, %p62
    %s65 = sadd.s32 %s64, 1
    %p68 = scmp.eq.s32.totalorder %s9, 1
    %p69 = scmp.ne.s32.totalorder %s64, %s66
    %p70 = scmp.eq.s32.totalorder %s9, 0
    %p71 = por %p69, %p70
    %p72 = scmp.ne.s32.totalorder %s64, %s66
    %p73 = scmp.eq.s32.totalorder %s14, 1
    %p74 = por %p72, %p73
    %p75 = scmp.ne.s32.totalorder %s66, %s67
    %p76 = scmp.eq.s32.totalorder %s14, 0
    %p77 = por %p75, %p76
    %p78 = scmp.ne.s32.totalorder %s66, %s67
    %p79 = scmp.eq.s32.totalorder %s15, 1
    %p80 = por %p78, %p79
    %p82 = scmp.ne.s32.totalorder %s67, %s81
    %p83 = scmp.eq.s32.totalorder %s15, 0
    %p84 = por %p82, %p83
    %s85 = ssub.s32 %s9, %s16
    %p86 = scmp.eq.s32.totalorder %s85, 0
    %s88 = sadd.s32 %s87, 1
    %s89 = scalar_select %p86, %s87, %s88
    %p92 = pneg %p86
    %p93 = scmp.eq.s32.totalorder %s9, 1
    %p94 = por %p92, %p93
    %p95 = scmp.ne.s32.totalorder %s87, %s90
    %p96 = scmp.eq.s32.totalorder %s9, 0
    %p97 = por %p95, %p96
    %p98 = scmp.ne.s32.totalorder %s87, %s90
    %p99 = scmp.eq.s32.totalorder %s14, 1
    %p100 = por %p98, %p99
    %p101 = scmp.ne.s32.totalorder %s90, %s91
    %p102 = scmp.eq.s32.totalorder %s14, 0
    %p103 = por %p101, %p102
    %p104 = scmp.ne.s32.totalorder %s90, %s91
    %p105 = scmp.eq.s32.totalorder %s15, 1
    %p106 = por %p104, %p105
    %p108 = scmp.ne.s32.totalorder %s91, %s107
    %p109 = scmp.eq.s32.totalorder %s15, 0
    %p110 = por %p108, %p109
    %p111 = scmp.le.s32.totalorder 1, %s9
    %p112 = scmp.lt.s32.totalorder %s9, 3
    %p113 = pnand %p111, %p112
    %p114 = pneg %p113
    // Predicated region
    $region9: #{forward_pallas.14} parent=5 // pred_check
      _
    $region10: #{forward_pallas.14} parent=5 // pred_check_branch
      %116 = sbr.rel (%p113) target = $region12
    $region11: #{forward_pallas.14} parent=5 // pred_region
      %s117 = ssub.s32 %s9, 1
      // Predicated region
      $region13: #{forward_pallas.14} parent=11 // pred_check
        %p118 = pneg %p56
      $region14: #{forward_pallas.14} parent=11 // pred_check_branch
        %120 = sbr.rel (%p118) target = $region16
      $region15: #{forward_pallas.14} parent=11 // pred_region
        _
      $region16: #{forward_pallas.14} parent=11 // pred_fallthru
        _
      // Predicated region
      $region17: #{forward_pallas.14} parent=11 // pred_check
        %p121 = pneg %p77
      $region18: #{forward_pallas.14} parent=11 // pred_check_branch
        %123 = sbr.rel (%p121) target = $region20
      $region19: #{forward_pallas.14} parent=11 // pred_region
        _
      $region20: #{forward_pallas.14} parent=11 // pred_fallthru
        _
    $region12: #{forward_pallas.14} parent=5 // pred_fallthru
      _
    %p124 = scmp.lt.s32.totalorder %s9, 2
    // Predicated region
    $region21: #{forward_pallas.14} parent=5 // pred_check
      %p125 = pneg %p124
    $region22: #{forward_pallas.14} parent=5 // pred_check_branch
      %127 = sbr.rel (%p125) target = $region24
    $region23: #{forward_pallas.14} parent=5 // pred_region
      // Predicated region
      $region25: #{forward_pallas.14} parent=23 // pred_check
        %p128 = pneg %p29
      $region26: #{forward_pallas.14} parent=23 // pred_check_branch
        %130 = sbr.rel (%p128) target = $region28
      $region27: #{forward_pallas.14} parent=23 // pred_region
        %s131 = smul.u32 64, %s9
        %p132 = scmp.lt.s32.totalorder %s131, 127
        %s133 = scalar_select %p132, %s131, 127
        %s134 = smul.addr %s133, 4
        %s135 = scalar_lea.vmem %s0, %s134
        %s136 = smul.u32 64, %s9
      $region28: #{forward_pallas.14} parent=23 // pred_fallthru
        _
    $region24: #{forward_pallas.14} parent=5 // pred_fallthru
      _
    %p137 = scmp.le.s32.totalorder 1, %s9
    %p138 = scmp.lt.s32.totalorder %s9, 3
    %p139 = pnand %p137, %p138
    %p140 = pneg %p139
    // Predicated region
    $region29: #{forward_pallas.14} parent=5 // pred_check
      _
    $region30: #{forward_pallas.14} parent=5 // pred_check_branch
      %142 = sbr.rel (%p139) target = $region32
    $region31: #{forward_pallas.14} parent=5 // pred_region
      %s143 = ssub.s32 %s9, 1
      %s144 = smul.u32 64, %s14
      %p145 = scmp.lt.s32.totalorder %s144, 127
      %s146 = scalar_select %p145, %s144, 127
      %s147 = smul.addr %s146, 4
      %s148 = scalar_lea.vmem %s0, %s147
      %p149 = pneg %p35
      %p150 = pneg %p32
      %p151 = pneg %p56
      %p152 = pneg %p53
      %p153 = pneg %p77
      %p154 = pneg %p74
      %p155 = pneg %p103
      %p156 = pneg %p100
      %s157 = smul.u32 64, %s14
      %p158 = scmp.lt.s32.totalorder %s157, 127
      %s159 = scalar_select %p158, %s157, 127
      %s160 = smul.addr %s159, 4
      %s161 = scalar_lea.vmem %s3, %s160
      %s162 = smul.u32 64, %s14
      %p163 = scmp.lt.s32.totalorder %s162, 127
      %s164 = scalar_select %p163, %s162, 127
      %s165 = smul.addr %s164, 4
      %s166 = scalar_lea.vmem %s0, %s165
      %s167 = smul.u32 64, %s14
      %s168 = smul.u32 64, %s14
      %p169 = scmp.lt.s32.totalorder %s168, 127
      %s170 = scalar_select %p169, %s168, 127
      %s171 = smul.addr %s170, 4
      %s172 = scalar_lea.vmem %s3, %s171
      %s173 = smul.u32 64, %s14
      %v174 = vld [vmem:[%s166] sm:$0xf]
      %v175 = vld [vmem:[%s166 + $0x4] sm:$0xf]
      %v176 = vld [vmem:[%s166 + $0x8] sm:$0xf]
      %v177 = vld [vmem:[%s166 + $0xc] sm:$0xf]
      %v178 = vld [vmem:[%s166 + $0x10] sm:$0xf]
      %v179 = vld [vmem:[%s166 + $0x14] sm:$0xf]
      %v180 = vld [vmem:[%s166 + $0x18] sm:$0xf]
      %v181 = vld [vmem:[%s166 + $0x1c] sm:$0xf]
      %v182 = vld [vmem:[%s166 + $0x20] sm:$0xf]
      %v183 = vld [vmem:[%s166 + $0x24] sm:$0xf]
      %v184 = vld [vmem:[%s166 + $0x28] sm:$0xf]
      %v185 = vld [vmem:[%s166 + $0x2c] sm:$0xf]
      %v186 = vld [vmem:[%s166 + $0x30] sm:$0xf]
      %v187 = vld [vmem:[%s166 + $0x34] sm:$0xf]
      %v188 = vld [vmem:[%s166 + $0x38] sm:$0xf]
      %v189 = vld [vmem:[%s166 + $0x3c] sm:$0xf]
      %v190 = vld [vmem:[%s166 + $0x40] sm:$0xf]
      %v191 = vld [vmem:[%s166 + $0x44] sm:$0xf]
      %v192 = vld [vmem:[%s166 + $0x48] sm:$0xf]
      %v193 = vld [vmem:[%s166 + $0x4c] sm:$0xf]
      %v194 = vld [vmem:[%s166 + $0x50] sm:$0xf]
      %v195 = vld [vmem:[%s166 + $0x54] sm:$0xf]
      %v196 = vld [vmem:[%s166 + $0x58] sm:$0xf]
      %v197 = vld [vmem:[%s166 + $0x5c] sm:$0xf]
      %v198 = vld [vmem:[%s166 + $0x60] sm:$0xf]
      %v199 = vld [vmem:[%s166 + $0x64] sm:$0xf]
      %v200 = vld [vmem:[%s166 + $0x68] sm:$0xf]
      %v201 = vld [vmem:[%s166 + $0x6c] sm:$0xf]
      %v202 = vld [vmem:[%s166 + $0x70] sm:$0xf]
      %v203 = vld [vmem:[%s166 + $0x74] sm:$0xf]
      %v204 = vld [vmem:[%s166 + $0x78] sm:$0xf]
      %v205 = vld [vmem:[%s166 + $0x7c] sm:$0xf]
      %v206 = vld [vmem:[%s166 + $0x80] sm:$0xf]
      %v207 = vld [vmem:[%s166 + $0x84] sm:$0xf]
      %v208 = vld [vmem:[%s166 + $0x88] sm:$0xf]
      %v209 = vld [vmem:[%s166 + $0x8c] sm:$0xf]
      %v210 = vld [vmem:[%s166 + $0x90] sm:$0xf]
      %v211 = vld [vmem:[%s166 + $0x94] sm:$0xf]
      %v212 = vld [vmem:[%s166 + $0x98] sm:$0xf]
      %v213 = vld [vmem:[%s166 + $0x9c] sm:$0xf]
      %v214 = vld [vmem:[%s166 + $0xa0] sm:$0xf]
      %v215 = vld [vmem:[%s166 + $0xa4] sm:$0xf]
      %v216 = vld [vmem:[%s166 + $0xa8] sm:$0xf]
      %v217 = vld [vmem:[%s166 + $0xac] sm:$0xf]
      %v218 = vld [vmem:[%s166 + $0xb0] sm:$0xf]
      %v219 = vld [vmem:[%s166 + $0xb4] sm:$0xf]
      %v220 = vld [vmem:[%s166 + $0xb8] sm:$0xf]
      %v221 = vld [vmem:[%s166 + $0xbc] sm:$0xf]
      %v222 = vld [vmem:[%s166 + $0xc0] sm:$0xf]
      %v223 = vld [vmem:[%s166 + $0xc4] sm:$0xf]
      %v224 = vld [vmem:[%s166 + $0xc8] sm:$0xf]
      %v225 = vld [vmem:[%s166 + $0xcc] sm:$0xf]
      %v226 = vld [vmem:[%s166 + $0xd0] sm:$0xf]
      %v227 = vld [vmem:[%s166 + $0xd4] sm:$0xf]
      %v228 = vld [vmem:[%s166 + $0xd8] sm:$0xf]
      %v229 = vld [vmem:[%s166 + $0xdc] sm:$0xf]
      %v230 = vld [vmem:[%s166 + $0xe0] sm:$0xf]
      %v231 = vld [vmem:[%s166 + $0xe4] sm:$0xf]
      %v232 = vld [vmem:[%s166 + $0xe8] sm:$0xf]
      %v233 = vld [vmem:[%s166 + $0xec] sm:$0xf]
      %v234 = vld [vmem:[%s166 + $0xf0] sm:$0xf]
      %v235 = vld [vmem:[%s166 + $0xf4] sm:$0xf]
      %v236 = vld [vmem:[%s166 + $0xf8] sm:$0xf]
      %v237 = vld [vmem:[%s166 + $0xfc] sm:$0xf]
      %v238 = vunpack.c.l.bf16 %v174
      %v239 = vunpack.c.l.bf16 %v175
      %v240 = vunpack.c.l.bf16 %v176
      %v241 = vunpack.c.l.bf16 %v177
      %v242 = vunpack.c.l.bf16 %v178
      %v243 = vunpack.c.l.bf16 %v179
      %v244 = vunpack.c.l.bf16 %v180
      %v245 = vunpack.c.l.bf16 %v181
      %v246 = vunpack.c.l.bf16 %v182
      %v247 = vunpack.c.l.bf16 %v183
      %v248 = vunpack.c.l.bf16 %v184
      %v249 = vunpack.c.l.bf16 %v185
      %v250 = vunpack.c.l.bf16 %v186
      %v251 = vunpack.c.l.bf16 %v187
      %v252 = vunpack.c.l.bf16 %v188
      %v253 = vunpack.c.l.bf16 %v189
      %v254 = vunpack.c.l.bf16 %v190
      %v255 = vunpack.c.l.bf16 %v191
      %v256 = vunpack.c.l.bf16 %v192
      %v257 = vunpack.c.l.bf16 %v193
      %v258 = vunpack.c.l.bf16 %v194
      %v259 = vunpack.c.l.bf16 %v195
      %v260 = vunpack.c.l.bf16 %v196
      %v261 = vunpack.c.l.bf16 %v197
      %v262 = vunpack.c.l.bf16 %v198
      %v263 = vunpack.c.l.bf16 %v199
      %v264 = vunpack.c.l.bf16 %v200
      %v265 = vunpack.c.l.bf16 %v201
      %v266 = vunpack.c.l.bf16 %v202
      %v267 = vunpack.c.l.bf16 %v203
      %v268 = vunpack.c.l.bf16 %v204
      %v269 = vunpack.c.l.bf16 %v205
      %v270 = vunpack.c.l.bf16 %v206
      %v271 = vunpack.c.l.bf16 %v207
      %v272 = vunpack.c.l.bf16 %v208
      %v273 = vunpack.c.l.bf16 %v209
      %v274 = vunpack.c.l.bf16 %v210
      %v275 = vunpack.c.l.bf16 %v211
      %v276 = vunpack.c.l.bf16 %v212
      %v277 = vunpack.c.l.bf16 %v213
      %v278 = vunpack.c.l.bf16 %v214
      %v279 = vunpack.c.l.bf16 %v215
      %v280 = vunpack.c.l.bf16 %v216
      %v281 = vunpack.c.l.bf16 %v217
      %v282 = vunpack.c.l.bf16 %v218
      %v283 = vunpack.c.l.bf16 %v219
      %v284 = vunpack.c.l.bf16 %v220
      %v285 = vunpack.c.l.bf16 %v221
      %v286 = vunpack.c.l.bf16 %v222
      %v287 = vunpack.c.l.bf16 %v223
      %v288 = vunpack.c.l.bf16 %v224
      %v289 = vunpack.c.l.bf16 %v225
      %v290 = vunpack.c.l.bf16 %v226
      %v291 = vunpack.c.l.bf16 %v227
      %v292 = vunpack.c.l.bf16 %v228
      %v293 = vunpack.c.l.bf16 %v229
      %v294 = vunpack.c.l.bf16 %v230
      %v295 = vunpack.c.l.bf16 %v231
      %v296 = vunpack.c.l.bf16 %v232
      %v297 = vunpack.c.l.bf16 %v233
      %v298 = vunpack.c.l.bf16 %v234
      %v299 = vunpack.c.l.bf16 %v235
      %v300 = vunpack.c.l.bf16 %v236
      %v301 = vunpack.c.l.bf16 %v237
      %v302 = vld [vmem:[%s1] sm:$0x1]
      %v304 = vlaneseq
      %v305 = vshrl.u32 %v304, 7
      %v306 = vsub.s32 0, %v305
      %v307 = vrot.slane %v302, %v306
      %v309 = vmul.f32 %v238, %v307
      %v310 = vmul.f32 %v239, %v307
      %v311 = vmul.f32 %v240, %v307
      %v312 = vmul.f32 %v241, %v307
      %v313 = vmul.f32 %v242, %v307
      %v314 = vmul.f32 %v243, %v307
      %v315 = vmul.f32 %v244, %v307
      %v316 = vmul.f32 %v245, %v307
      %v317 = vmul.f32 %v246, %v307
      %v318 = vmul.f32 %v247, %v307
      %v319 = vmul.f32 %v248, %v307
      %v320 = vmul.f32 %v249, %v307
      %v321 = vmul.f32 %v250, %v307
      %v322 = vmul.f32 %v251, %v307
      %v323 = vmul.f32 %v252, %v307
      %v324 = vmul.f32 %v253, %v307
      %v325 = vmul.f32 %v254, %v307
      %v326 = vmul.f32 %v255, %v307
      %v327 = vmul.f32 %v256, %v307
      %v328 = vmul.f32 %v257, %v307
      %v329 = vmul.f32 %v258, %v307
      %v330 = vmul.f32 %v259, %v307
      %v331 = vmul.f32 %v260, %v307
      %v332 = vmul.f32 %v261, %v307
      %v333 = vmul.f32 %v262, %v307
      %v334 = vmul.f32 %v263, %v307
      %v335 = vmul.f32 %v264, %v307
      %v336 = vmul.f32 %v265, %v307
      %v337 = vmul.f32 %v266, %v307
      %v338 = vmul.f32 %v267, %v307
      %v339 = vmul.f32 %v268, %v307
      %v340 = vmul.f32 %v269, %v307
      %v341 = vmul.f32 %v270, %v307
      %v342 = vmul.f32 %v271, %v307
      %v343 = vmul.f32 %v272, %v307
      %v344 = vmul.f32 %v273, %v307
      %v345 = vmul.f32 %v274, %v307
      %v346 = vmul.f32 %v275, %v307
      %v347 = vmul.f32 %v276, %v307
      %v348 = vmul.f32 %v277, %v307
      %v349 = vmul.f32 %v278, %v307
      %v350 = vmul.f32 %v279, %v307
      %v351 = vmul.f32 %v280, %v307
      %v352 = vmul.f32 %v281, %v307
      %v353 = vmul.f32 %v282, %v307
      %v354 = vmul.f32 %v283, %v307
      %v355 = vmul.f32 %v284, %v307
      %v356 = vmul.f32 %v285, %v307
      %v357 = vmul.f32 %v286, %v307
      %v358 = vmul.f32 %v287, %v307
      %v359 = vmul.f32 %v288, %v307
      %v360 = vmul.f32 %v289, %v307
      %v361 = vmul.f32 %v290, %v307
      %v362 = vmul.f32 %v291, %v307
      %v363 = vmul.f32 %v292, %v307
      %v364 = vmul.f32 %v293, %v307
      %v365 = vmul.f32 %v294, %v307
      %v366 = vmul.f32 %v295, %v307
      %v367 = vmul.f32 %v296, %v307
      %v368 = vmul.f32 %v297, %v307
      %v369 = vmul.f32 %v298, %v307
      %v370 = vmul.f32 %v299, %v307
      %v371 = vmul.f32 %v300, %v307
      %v372 = vmul.f32 %v301, %v307
      %v373 = vld [vmem:[%s2] sm:$0x1]
      %v375 = vlaneseq
      %v376 = vshrl.u32 %v375, 7
      %v377 = vsub.s32 0, %v376
      %v378 = vrot.slane %v373, %v377
      %v380 = vadd.f32 %v309, %v378
      %v381 = vadd.f32 %v310, %v378
      %v382 = vadd.f32 %v311, %v378
      %v383 = vadd.f32 %v312, %v378
      %v384 = vadd.f32 %v313, %v378
      %v385 = vadd.f32 %v314, %v378
      %v386 = vadd.f32 %v315, %v378
      %v387 = vadd.f32 %v316, %v378
      %v388 = vadd.f32 %v317, %v378
      %v389 = vadd.f32 %v318, %v378
      %v390 = vadd.f32 %v319, %v378
      %v391 = vadd.f32 %v320, %v378
      %v392 = vadd.f32 %v321, %v378
      %v393 = vadd.f32 %v322, %v378
      %v394 = vadd.f32 %v323, %v378
      %v395 = vadd.f32 %v324, %v378
      %v396 = vadd.f32 %v325, %v378
      %v397 = vadd.f32 %v326, %v378
      %v398 = vadd.f32 %v327, %v378
      %v399 = vadd.f32 %v328, %v378
      %v400 = vadd.f32 %v329, %v378
      %v401 = vadd.f32 %v330, %v378
      %v402 = vadd.f32 %v331, %v378
      %v403 = vadd.f32 %v332, %v378
      %v404 = vadd.f32 %v333, %v378
      %v405 = vadd.f32 %v334, %v378
      %v406 = vadd.f32 %v335, %v378
      %v407 = vadd.f32 %v336, %v378
      %v408 = vadd.f32 %v337, %v378
      %v409 = vadd.f32 %v338, %v378
      %v410 = vadd.f32 %v339, %v378
      %v411 = vadd.f32 %v340, %v378
      %v412 = vadd.f32 %v341, %v378
      %v413 = vadd.f32 %v342, %v378
      %v414 = vadd.f32 %v343, %v378
      %v415 = vadd.f32 %v344, %v378
      %v416 = vadd.f32 %v345, %v378
      %v417 = vadd.f32 %v346, %v378
      %v418 = vadd.f32 %v347, %v378
      %v419 = vadd.f32 %v348, %v378
      %v420 = vadd.f32 %v349, %v378
      %v421 = vadd.f32 %v350, %v378
      %v422 = vadd.f32 %v351, %v378
      %v423 = vadd.f32 %v352, %v378
      %v424 = vadd.f32 %v353, %v378
      %v425 = vadd.f32 %v354, %v378
      %v426 = vadd.f32 %v355, %v378
      %v427 = vadd.f32 %v356, %v378
      %v428 = vadd.f32 %v357, %v378
      %v429 = vadd.f32 %v358, %v378
      %v430 = vadd.f32 %v359, %v378
      %v431 = vadd.f32 %v360, %v378
      %v432 = vadd.f32 %v361, %v378
      %v433 = vadd.f32 %v362, %v378
      %v434 = vadd.f32 %v363, %v378
      %v435 = vadd.f32 %v364, %v378
      %v436 = vadd.f32 %v365, %v378
      %v437 = vadd.f32 %v366, %v378
      %v438 = vadd.f32 %v367, %v378
      %v439 = vadd.f32 %v368, %v378
      %v440 = vadd.f32 %v369, %v378
      %v441 = vadd.f32 %v370, %v378
      %v442 = vadd.f32 %v371, %v378
      %v443 = vadd.f32 %v372, %v378
      %vm444 = vcmp.ge.f32.partialorder %v380, 0.0
      %vm445 = vcmp.ge.f32.partialorder %v381, 0.0
      %vm446 = vcmp.ge.f32.partialorder %v382, 0.0
      %vm447 = vcmp.ge.f32.partialorder %v383, 0.0
      %vm448 = vcmp.ge.f32.partialorder %v384, 0.0
      %vm449 = vcmp.ge.f32.partialorder %v385, 0.0
      %vm450 = vcmp.ge.f32.partialorder %v386, 0.0
      %vm451 = vcmp.ge.f32.partialorder %v387, 0.0
      %vm452 = vcmp.ge.f32.partialorder %v388, 0.0
      %vm453 = vcmp.ge.f32.partialorder %v389, 0.0
      %vm454 = vcmp.ge.f32.partialorder %v390, 0.0
      %vm455 = vcmp.ge.f32.partialorder %v391, 0.0
      %vm456 = vcmp.ge.f32.partialorder %v392, 0.0
      %vm457 = vcmp.ge.f32.partialorder %v393, 0.0
      %vm458 = vcmp.ge.f32.partialorder %v394, 0.0
      %vm459 = vcmp.ge.f32.partialorder %v395, 0.0
      %vm460 = vcmp.ge.f32.partialorder %v396, 0.0
      %vm461 = vcmp.ge.f32.partialorder %v397, 0.0
      %vm462 = vcmp.ge.f32.partialorder %v398, 0.0
      %vm463 = vcmp.ge.f32.partialorder %v399, 0.0
      %vm464 = vcmp.ge.f32.partialorder %v400, 0.0
      %vm465 = vcmp.ge.f32.partialorder %v401, 0.0
      %vm466 = vcmp.ge.f32.partialorder %v402, 0.0
      %vm467 = vcmp.ge.f32.partialorder %v403, 0.0
      %vm468 = vcmp.ge.f32.partialorder %v404, 0.0
      %vm469 = vcmp.ge.f32.partialorder %v405, 0.0
      %vm470 = vcmp.ge.f32.partialorder %v406, 0.0
      %vm471 = vcmp.ge.f32.partialorder %v407, 0.0
      %vm472 = vcmp.ge.f32.partialorder %v408, 0.0
      %vm473 = vcmp.ge.f32.partialorder %v409, 0.0
      %vm474 = vcmp.ge.f32.partialorder %v410, 0.0
      %vm475 = vcmp.ge.f32.partialorder %v411, 0.0
      %vm476 = vcmp.ge.f32.partialorder %v412, 0.0
      %vm477 = vcmp.ge.f32.partialorder %v413, 0.0
      %vm478 = vcmp.ge.f32.partialorder %v414, 0.0
      %vm479 = vcmp.ge.f32.partialorder %v415, 0.0
      %vm480 = vcmp.ge.f32.partialorder %v416, 0.0
      %vm481 = vcmp.ge.f32.partialorder %v417, 0.0
      %vm482 = vcmp.ge.f32.partialorder %v418, 0.0
      %vm483 = vcmp.ge.f32.partialorder %v419, 0.0
      %vm484 = vcmp.ge.f32.partialorder %v420, 0.0
      %vm485 = vcmp.ge.f32.partialorder %v421, 0.0
      %vm486 = vcmp.ge.f32.partialorder %v422, 0.0
      %vm487 = vcmp.ge.f32.partialorder %v423, 0.0
      %vm488 = vcmp.ge.f32.partialorder %v424, 0.0
      %vm489 = vcmp.ge.f32.partialorder %v425, 0.0
      %vm490 = vcmp.ge.f32.partialorder %v426, 0.0
      %vm491 = vcmp.ge.f32.partialorder %v427, 0.0
      %vm492 = vcmp.ge.f32.partialorder %v428, 0.0
      %vm493 = vcmp.ge.f32.partialorder %v429, 0.0
      %vm494 = vcmp.ge.f32.partialorder %v430, 0.0
      %vm495 = vcmp.ge.f32.partialorder %v431, 0.0
      %vm496 = vcmp.ge.f32.partialorder %v432, 0.0
      %vm497 = vcmp.ge.f32.partialorder %v433, 0.0
      %vm498 = vcmp.ge.f32.partialorder %v434, 0.0
      %vm499 = vcmp.ge.f32.partialorder %v435, 0.0
      %vm500 = vcmp.ge.f32.partialorder %v436, 0.0
      %vm501 = vcmp.ge.f32.partialorder %v437, 0.0
      %vm502 = vcmp.ge.f32.partialorder %v438, 0.0
      %vm503 = vcmp.ge.f32.partialorder %v439, 0.0
      %vm504 = vcmp.ge.f32.partialorder %v440, 0.0
      %vm505 = vcmp.ge.f32.partialorder %v441, 0.0
      %vm506 = vcmp.ge.f32.partialorder %v442, 0.0
      %vm507 = vcmp.ge.f32.partialorder %v443, 0.0
      %v508 = vmul.f32 %v380, 0.2
      %v509 = vmul.f32 %v381, 0.2
      %v510 = vmul.f32 %v382, 0.2
      %v511 = vmul.f32 %v383, 0.2
      %v512 = vmul.f32 %v384, 0.2
      %v513 = vmul.f32 %v385, 0.2
      %v514 = vmul.f32 %v386, 0.2
      %v515 = vmul.f32 %v387, 0.2
      %v516 = vmul.f32 %v388, 0.2
      %v517 = vmul.f32 %v389, 0.2
      %v518 = vmul.f32 %v390, 0.2
      %v519 = vmul.f32 %v391, 0.2
      %v520 = vmul.f32 %v392, 0.2
      %v521 = vmul.f32 %v393, 0.2
      %v522 = vmul.f32 %v394, 0.2
      %v523 = vmul.f32 %v395, 0.2
      %v524 = vmul.f32 %v396, 0.2
      %v525 = vmul.f32 %v397, 0.2
      %v526 = vmul.f32 %v398, 0.2
      %v527 = vmul.f32 %v399, 0.2
      %v528 = vmul.f32 %v400, 0.2
      %v529 = vmul.f32 %v401, 0.2
      %v530 = vmul.f32 %v402, 0.2
      %v531 = vmul.f32 %v403, 0.2
      %v532 = vmul.f32 %v404, 0.2
      %v533 = vmul.f32 %v405, 0.2
      %v534 = vmul.f32 %v406, 0.2
      %v535 = vmul.f32 %v407, 0.2
      %v536 = vmul.f32 %v408, 0.2
      %v537 = vmul.f32 %v409, 0.2
      %v538 = vmul.f32 %v410, 0.2
      %v539 = vmul.f32 %v411, 0.2
      %v540 = vmul.f32 %v412, 0.2
      %v541 = vmul.f32 %v413, 0.2
      %v542 = vmul.f32 %v414, 0.2
      %v543 = vmul.f32 %v415, 0.2
      %v544 = vmul.f32 %v416, 0.2
      %v545 = vmul.f32 %v417, 0.2
      %v546 = vmul.f32 %v418, 0.2
      %v547 = vmul.f32 %v419, 0.2
      %v548 = vmul.f32 %v420, 0.2
      %v549 = vmul.f32 %v421, 0.2
      %v550 = vmul.f32 %v422, 0.2
      %v551 = vmul.f32 %v423, 0.2
      %v552 = vmul.f32 %v424, 0.2
      %v553 = vmul.f32 %v425, 0.2
      %v554 = vmul.f32 %v426, 0.2
      %v555 = vmul.f32 %v427, 0.2
      %v556 = vmul.f32 %v428, 0.2
      %v557 = vmul.f32 %v429, 0.2
      %v558 = vmul.f32 %v430, 0.2
      %v559 = vmul.f32 %v431, 0.2
      %v560 = vmul.f32 %v432, 0.2
      %v561 = vmul.f32 %v433, 0.2
      %v562 = vmul.f32 %v434, 0.2
      %v563 = vmul.f32 %v435, 0.2
      %v564 = vmul.f32 %v436, 0.2
      %v565 = vmul.f32 %v437, 0.2
      %v566 = vmul.f32 %v438, 0.2
      %v567 = vmul.f32 %v439, 0.2
      %v568 = vmul.f32 %v440, 0.2
      %v569 = vmul.f32 %v441, 0.2
      %v570 = vmul.f32 %v442, 0.2
      %v571 = vmul.f32 %v443, 0.2
      %v572 = vsel %vm444, %v380, %v508
      %v573 = vsel %vm445, %v381, %v509
      %v574 = vsel %vm446, %v382, %v510
      %v575 = vsel %vm447, %v383, %v511
      %v576 = vsel %vm448, %v384, %v512
      %v577 = vsel %vm449, %v385, %v513
      %v578 = vsel %vm450, %v386, %v514
      %v579 = vsel %vm451, %v387, %v515
      %v580 = vsel %vm452, %v388, %v516
      %v581 = vsel %vm453, %v389, %v517
      %v582 = vsel %vm454, %v390, %v518
      %v583 = vsel %vm455, %v391, %v519
      %v584 = vsel %vm456, %v392, %v520
      %v585 = vsel %vm457, %v393, %v521
      %v586 = vsel %vm458, %v394, %v522
      %v587 = vsel %vm459, %v395, %v523
      %v588 = vsel %vm460, %v396, %v524
      %v589 = vsel %vm461, %v397, %v525
      %v590 = vsel %vm462, %v398, %v526
      %v591 = vsel %vm463, %v399, %v527
      %v592 = vsel %vm464, %v400, %v528
      %v593 = vsel %vm465, %v401, %v529
      %v594 = vsel %vm466, %v402, %v530
      %v595 = vsel %vm467, %v403, %v531
      %v596 = vsel %vm468, %v404, %v532
      %v597 = vsel %vm469, %v405, %v533
      %v598 = vsel %vm470, %v406, %v534
      %v599 = vsel %vm471, %v407, %v535
      %v600 = vsel %vm472, %v408, %v536
      %v601 = vsel %vm473, %v409, %v537
      %v602 = vsel %vm474, %v410, %v538
      %v603 = vsel %vm475, %v411, %v539
      %v604 = vsel %vm476, %v412, %v540
      %v605 = vsel %vm477, %v413, %v541
      %v606 = vsel %vm478, %v414, %v542
      %v607 = vsel %vm479, %v415, %v543
      %v608 = vsel %vm480, %v416, %v544
      %v609 = vsel %vm481, %v417, %v545
      %v610 = vsel %vm482, %v418, %v546
      %v611 = vsel %vm483, %v419, %v547
      %v612 = vsel %vm484, %v420, %v548
      %v613 = vsel %vm485, %v421, %v549
      %v614 = vsel %vm486, %v422, %v550
      %v615 = vsel %vm487, %v423, %v551
      %v616 = vsel %vm488, %v424, %v552
      %v617 = vsel %vm489, %v425, %v553
      %v618 = vsel %vm490, %v426, %v554
      %v619 = vsel %vm491, %v427, %v555
      %v620 = vsel %vm492, %v428, %v556
      %v621 = vsel %vm493, %v429, %v557
      %v622 = vsel %vm494, %v430, %v558
      %v623 = vsel %vm495, %v431, %v559
      %v624 = vsel %vm496, %v432, %v560
      %v625 = vsel %vm497, %v433, %v561
      %v626 = vsel %vm498, %v434, %v562
      %v627 = vsel %vm499, %v435, %v563
      %v628 = vsel %vm500, %v436, %v564
      %v629 = vsel %vm501, %v437, %v565
      %v630 = vsel %vm502, %v438, %v566
      %v631 = vsel %vm503, %v439, %v567
      %v632 = vsel %vm504, %v440, %v568
      %v633 = vsel %vm505, %v441, %v569
      %v634 = vsel %vm506, %v442, %v570
      %v635 = vsel %vm507, %v443, %v571
      %v636 = vpack.c.bf16 %v573, %v572
      %v637 = vpack.c.bf16 %v575, %v574
      %v638 = vpack.c.bf16 %v577, %v576
      %v639 = vpack.c.bf16 %v579, %v578
      %v640 = vpack.c.bf16 %v581, %v580
      %v641 = vpack.c.bf16 %v583, %v582
      %v642 = vpack.c.bf16 %v585, %v584
      %v643 = vpack.c.bf16 %v587, %v586
      %v644 = vpack.c.bf16 %v589, %v588
      %v645 = vpack.c.bf16 %v591, %v590
      %v646 = vpack.c.bf16 %v593, %v592
      %v647 = vpack.c.bf16 %v595, %v594
      %v648 = vpack.c.bf16 %v597, %v596
      %v649 = vpack.c.bf16 %v599, %v598
      %v650 = vpack.c.bf16 %v601, %v600
      %v651 = vpack.c.bf16 %v603, %v602
      %v652 = vpack.c.bf16 %v605, %v604
      %v653 = vpack.c.bf16 %v607, %v606
      %v654 = vpack.c.bf16 %v609, %v608
      %v655 = vpack.c.bf16 %v611, %v610
      %v656 = vpack.c.bf16 %v613, %v612
      %v657 = vpack.c.bf16 %v615, %v614
      %v658 = vpack.c.bf16 %v617, %v616
      %v659 = vpack.c.bf16 %v619, %v618
      %v660 = vpack.c.bf16 %v621, %v620
      %v661 = vpack.c.bf16 %v623, %v622
      %v662 = vpack.c.bf16 %v625, %v624
      %v663 = vpack.c.bf16 %v627, %v626
      %v664 = vpack.c.bf16 %v629, %v628
      %v665 = vpack.c.bf16 %v631, %v630
      %v666 = vpack.c.bf16 %v633, %v632
      %v667 = vpack.c.bf16 %v635, %v634
      %v700 = vunpack.c.l.b16 %v636
      %v701 = vunpack.c.h.b16 %v636
      %v702 = vunpack.c.l.b16 %v637
      %v703 = vunpack.c.h.b16 %v637
      %v704 = vunpack.c.l.b16 %v638
      %v705 = vunpack.c.h.b16 %v638
      %v706 = vunpack.c.l.b16 %v639
      %v707 = vunpack.c.h.b16 %v639
      %v708 = vunpack.c.l.b16 %v640
      %v709 = vunpack.c.h.b16 %v640
      %v710 = vunpack.c.l.b16 %v641
      %v711 = vunpack.c.h.b16 %v641
      %v712 = vunpack.c.l.b16 %v642
      %v713 = vunpack.c.h.b16 %v642
      %v714 = vunpack.c.l.b16 %v643
      %v715 = vunpack.c.h.b16 %v643
      %v716 = vunpack.c.l.b16 %v644
      %v717 = vunpack.c.h.b16 %v644
      %v718 = vunpack.c.l.b16 %v645
      %v719 = vunpack.c.h.b16 %v645
      %v720 = vunpack.c.l.b16 %v646
      %v721 = vunpack.c.h.b16 %v646
      %v722 = vunpack.c.l.b16 %v647
      %v723 = vunpack.c.h.b16 %v647
      %v724 = vunpack.c.l.b16 %v648
      %v725 = vunpack.c.h.b16 %v648
      %v726 = vunpack.c.l.b16 %v649
      %v727 = vunpack.c.h.b16 %v649
      %v728 = vunpack.c.l.b16 %v650
      %v729 = vunpack.c.h.b16 %v650
      %v730 = vunpack.c.l.b16 %v651
      %v731 = vunpack.c.h.b16 %v651
      %v732 = vunpack.c.l.b16 %v652
      %v733 = vunpack.c.h.b16 %v652
      %v734 = vunpack.c.l.b16 %v653
      %v735 = vunpack.c.h.b16 %v653
      %v736 = vunpack.c.l.b16 %v654
      %v737 = vunpack.c.h.b16 %v654
      %v738 = vunpack.c.l.b16 %v655
      %v739 = vunpack.c.h.b16 %v655
      %v740 = vunpack.c.l.b16 %v656
      %v741 = vunpack.c.h.b16 %v656
      %v742 = vunpack.c.l.b16 %v657
      %v743 = vunpack.c.h.b16 %v657
      %v744 = vunpack.c.l.b16 %v658
      %v745 = vunpack.c.h.b16 %v658
      %v746 = vunpack.c.l.b16 %v659
      %v747 = vunpack.c.h.b16 %v659
      %v748 = vunpack.c.l.b16 %v660
      %v749 = vunpack.c.h.b16 %v660
      %v750 = vunpack.c.l.b16 %v661
      %v751 = vunpack.c.h.b16 %v661
      %v752 = vunpack.c.l.b16 %v662
      %v753 = vunpack.c.h.b16 %v662
      %v754 = vunpack.c.l.b16 %v663
      %v755 = vunpack.c.h.b16 %v663
      %v756 = vunpack.c.l.b16 %v664
      %v757 = vunpack.c.h.b16 %v664
      %v758 = vunpack.c.l.b16 %v665
      %v759 = vunpack.c.h.b16 %v665
      %v760 = vunpack.c.l.b16 %v666
      %v761 = vunpack.c.h.b16 %v666
      %v762 = vunpack.c.l.b16 %v667
      %v763 = vunpack.c.h.b16 %v667
      %v764 = vpack.c.b16 %v700, %v700
      %v765 = vpack.c.b16 %v701, %v701
      %v766 = vpack.c.b16 %v702, %v702
      %v767 = vpack.c.b16 %v703, %v703
      %v768 = vpack.c.b16 %v704, %v704
      %v769 = vpack.c.b16 %v705, %v705
      %v770 = vpack.c.b16 %v706, %v706
      %v771 = vpack.c.b16 %v707, %v707
      %v772 = vpack.c.b16 %v708, %v708
      %v773 = vpack.c.b16 %v709, %v709
      %v774 = vpack.c.b16 %v710, %v710
      %v775 = vpack.c.b16 %v711, %v711
      %v776 = vpack.c.b16 %v712, %v712
      %v777 = vpack.c.b16 %v713, %v713
      %v778 = vpack.c.b16 %v714, %v714
      %v779 = vpack.c.b16 %v715, %v715
      %v780 = vpack.c.b16 %v716, %v716
      %v781 = vpack.c.b16 %v717, %v717
      %v782 = vpack.c.b16 %v718, %v718
      %v783 = vpack.c.b16 %v719, %v719
      %v784 = vpack.c.b16 %v720, %v720
      %v785 = vpack.c.b16 %v721, %v721
      %v786 = vpack.c.b16 %v722, %v722
      %v787 = vpack.c.b16 %v723, %v723
      %v788 = vpack.c.b16 %v724, %v724
      %v789 = vpack.c.b16 %v725, %v725
      %v790 = vpack.c.b16 %v726, %v726
      %v791 = vpack.c.b16 %v727, %v727
      %v792 = vpack.c.b16 %v728, %v728
      %v793 = vpack.c.b16 %v729, %v729
      %v794 = vpack.c.b16 %v730, %v730
      %v795 = vpack.c.b16 %v731, %v731
      %v796 = vpack.c.b16 %v732, %v732
      %v797 = vpack.c.b16 %v733, %v733
      %v798 = vpack.c.b16 %v734, %v734
      %v799 = vpack.c.b16 %v735, %v735
      %v800 = vpack.c.b16 %v736, %v736
      %v801 = vpack.c.b16 %v737, %v737
      %v802 = vpack.c.b16 %v738, %v738
      %v803 = vpack.c.b16 %v739, %v739
      %v804 = vpack.c.b16 %v740, %v740
      %v805 = vpack.c.b16 %v741, %v741
      %v806 = vpack.c.b16 %v742, %v742
      %v807 = vpack.c.b16 %v743, %v743
      %v808 = vpack.c.b16 %v744, %v744
      %v809 = vpack.c.b16 %v745, %v745
      %v810 = vpack.c.b16 %v746, %v746
      %v811 = vpack.c.b16 %v747, %v747
      %v812 = vpack.c.b16 %v748, %v748
      %v813 = vpack.c.b16 %v749, %v749
      %v814 = vpack.c.b16 %v750, %v750
      %v815 = vpack.c.b16 %v751, %v751
      %v816 = vpack.c.b16 %v752, %v752
      %v817 = vpack.c.b16 %v753, %v753
      %v818 = vpack.c.b16 %v754, %v754
      %v819 = vpack.c.b16 %v755, %v755
      %v820 = vpack.c.b16 %v756, %v756
      %v821 = vpack.c.b16 %v757, %v757
      %v822 = vpack.c.b16 %v758, %v758
      %v823 = vpack.c.b16 %v759, %v759
      %v824 = vpack.c.b16 %v760, %v760
      %v825 = vpack.c.b16 %v761, %v761
      %v826 = vpack.c.b16 %v762, %v762
      %v827 = vpack.c.b16 %v763, %v763
      %892 = vst [vmem:[%s172] sm:$0xf] %v764
      %893 = vst [vmem:[%s172 + $0x4] sm:$0xf] %v765
      %894 = vst [vmem:[%s172 + $0x8] sm:$0xf] %v766
      %895 = vst [vmem:[%s172 + $0xc] sm:$0xf] %v767
      %896 = vst [vmem:[%s172 + $0x10] sm:$0xf] %v768
      %897 = vst [vmem:[%s172 + $0x14] sm:$0xf] %v769
      %898 = vst [vmem:[%s172 + $0x18] sm:$0xf] %v770
      %899 = vst [vmem:[%s172 + $0x1c] sm:$0xf] %v771
      %900 = vst [vmem:[%s172 + $0x20] sm:$0xf] %v772
      %901 = vst [vmem:[%s172 + $0x24] sm:$0xf] %v773
      %902 = vst [vmem:[%s172 + $0x28] sm:$0xf] %v774
      %903 = vst [vmem:[%s172 + $0x2c] sm:$0xf] %v775
      %904 = vst [vmem:[%s172 + $0x30] sm:$0xf] %v776
      %905 = vst [vmem:[%s172 + $0x34] sm:$0xf] %v777
      %906 = vst [vmem:[%s172 + $0x38] sm:$0xf] %v778
      %907 = vst [vmem:[%s172 + $0x3c] sm:$0xf] %v779
      %908 = vst [vmem:[%s172 + $0x40] sm:$0xf] %v780
      %909 = vst [vmem:[%s172 + $0x44] sm:$0xf] %v781
      %910 = vst [vmem:[%s172 + $0x48] sm:$0xf] %v782
      %911 = vst [vmem:[%s172 + $0x4c] sm:$0xf] %v783
      %912 = vst [vmem:[%s172 + $0x50] sm:$0xf] %v784
      %913 = vst [vmem:[%s172 + $0x54] sm:$0xf] %v785
      %914 = vst [vmem:[%s172 + $0x58] sm:$0xf] %v786
      %915 = vst [vmem:[%s172 + $0x5c] sm:$0xf] %v787
      %916 = vst [vmem:[%s172 + $0x60] sm:$0xf] %v788
      %917 = vst [vmem:[%s172 + $0x64] sm:$0xf] %v789
      %918 = vst [vmem:[%s172 + $0x68] sm:$0xf] %v790
      %919 = vst [vmem:[%s172 + $0x6c] sm:$0xf] %v791
      %920 = vst [vmem:[%s172 + $0x70] sm:$0xf] %v792
      %921 = vst [vmem:[%s172 + $0x74] sm:$0xf] %v793
      %922 = vst [vmem:[%s172 + $0x78] sm:$0xf] %v794
      %923 = vst [vmem:[%s172 + $0x7c] sm:$0xf] %v795
      %924 = vst [vmem:[%s172 + $0x80] sm:$0xf] %v796
      %925 = vst [vmem:[%s172 + $0x84] sm:$0xf] %v797
      %926 = vst [vmem:[%s172 + $0x88] sm:$0xf] %v798
      %927 = vst [vmem:[%s172 + $0x8c] sm:$0xf] %v799
      %928 = vst [vmem:[%s172 + $0x90] sm:$0xf] %v800
      %929 = vst [vmem:[%s172 + $0x94] sm:$0xf] %v801
      %930 = vst [vmem:[%s172 + $0x98] sm:$0xf] %v802
      %931 = vst [vmem:[%s172 + $0x9c] sm:$0xf] %v803
      %932 = vst [vmem:[%s172 + $0xa0] sm:$0xf] %v804
      %933 = vst [vmem:[%s172 + $0xa4] sm:$0xf] %v805
      %934 = vst [vmem:[%s172 + $0xa8] sm:$0xf] %v806
      %935 = vst [vmem:[%s172 + $0xac] sm:$0xf] %v807
      %936 = vst [vmem:[%s172 + $0xb0] sm:$0xf] %v808
      %937 = vst [vmem:[%s172 + $0xb4] sm:$0xf] %v809
      %938 = vst [vmem:[%s172 + $0xb8] sm:$0xf] %v810
      %939 = vst [vmem:[%s172 + $0xbc] sm:$0xf] %v811
      %940 = vst [vmem:[%s172 + $0xc0] sm:$0xf] %v812
      %941 = vst [vmem:[%s172 + $0xc4] sm:$0xf] %v813
      %942 = vst [vmem:[%s172 + $0xc8] sm:$0xf] %v814
      %943 = vst [vmem:[%s172 + $0xcc] sm:$0xf] %v815
      %944 = vst [vmem:[%s172 + $0xd0] sm:$0xf] %v816
      %945 = vst [vmem:[%s172 + $0xd4] sm:$0xf] %v817
      %946 = vst [vmem:[%s172 + $0xd8] sm:$0xf] %v818
      %947 = vst [vmem:[%s172 + $0xdc] sm:$0xf] %v819
      %948 = vst [vmem:[%s172 + $0xe0] sm:$0xf] %v820
      %949 = vst [vmem:[%s172 + $0xe4] sm:$0xf] %v821
      %950 = vst [vmem:[%s172 + $0xe8] sm:$0xf] %v822
      %951 = vst [vmem:[%s172 + $0xec] sm:$0xf] %v823
      %952 = vst [vmem:[%s172 + $0xf0] sm:$0xf] %v824
      %953 = vst [vmem:[%s172 + $0xf4] sm:$0xf] %v825
      %954 = vst [vmem:[%s172 + $0xf8] sm:$0xf] %v826
      %955 = vst [vmem:[%s172 + $0xfc] sm:$0xf] %v827
      %s956 = smul.u32 64, %s14
      %p957 = scmp.lt.s32.totalorder %s956, 127
      %s958 = scalar_select %p957, %s956, 127
      %s959 = smul.addr %s958, 4
      %s960 = scalar_lea.vmem %s3, %s959
      // Predicated region
      $region33: #{forward_pallas.14} parent=31 // pred_check
        %p961 = pneg %p100
      $region34: #{forward_pallas.14} parent=31 // pred_check_branch
        %963 = sbr.rel (%p961) target = $region36
      $region35: #{forward_pallas.14} parent=31 // pred_region
        %s964 = smul.u32 64, %s14
      $region36: #{forward_pallas.14} parent=31 // pred_fallthru
        _
    $region32: #{forward_pallas.14} parent=5 // pred_fallthru
      _
    %p965 = scmp.le.s32.totalorder 2, %s9
    // Predicated region
    $region37: #{forward_pallas.14} parent=5 // pred_check
      %p966 = pneg %p965
    $region38: #{forward_pallas.14} parent=5 // pred_check_branch
      %968 = sbr.rel (%p966) target = $region40
    $region39: #{forward_pallas.14} parent=5 // pred_region
      %s969 = ssub.s32 %s9, 2
      // Predicated region
      $region41: #{forward_pallas.14} parent=39 // pred_check
        %p970 = pneg %p106
      $region42: #{forward_pallas.14} parent=39 // pred_check_branch
        %972 = sbr.rel (%p970) target = $region44
      $region43: #{forward_pallas.14} parent=39 // pred_region
        %s973 = smul.u32 64, %s15
        %p974 = scmp.lt.s32.totalorder %s973, 127
        %s975 = scalar_select %p974, %s973, 127
        %s976 = smul.addr %s975, 4
        %s977 = scalar_lea.vmem %s3, %s976
      $region44: #{forward_pallas.14} parent=39 // pred_fallthru
        _
    $region40: #{forward_pallas.14} parent=5 // pred_fallthru
      _
  $region6: #{forward_pallas.14} parent=0 // loop_footer
    %s13 = sadd.s32 1, %s9
  $region7: #{forward_pallas.14} parent=0 // loop_footer_branch
    %8 = sbr.rel target = $region3
  $region8: #{forward_pallas.14} parent=0 // loop_exit
    _

// kernel: forward_pallas.15
$region0: #{forward_pallas.15}
  #allocation0 [shape = 'u32[]', space=smem, size = 0x4, offset = 0x4, fixed_abs, tag = 'smem constant byte address 0x4 - core index']
  #allocation1 [shape = 'u32[144,128]{1,0:T(1,128)}', space=vmem, size = 0x12000, scoped, tag = 'internal scratch']
  #allocation2 [shape = 'f32[128,128]{1,0:T(8,128)}', space=vmem, size = 0x10000, scoped, tag = 'scratch operand']
  %s0 = inlined_call_operand.vmem [shape: bf16[128,1024], index: 0, kind: input, shape index: {}]
  %s1 = inlined_call_operand.vmem [shape: bf16[1024,128], index: 1, kind: input, shape index: {}]
  %s2 = inlined_call_operand.vmem [shape: f32[1,128], index: 2, kind: input, shape index: {}]
  %s3 = inlined_call_operand.vmem [shape: bf16[128,128], index: 3, kind: output, shape index: {}]
  %s4 = sld [smem:[#allocation0]]
  $region30: #{forward_pallas.15} parent=0
    _
  %s6 = ssub.s32 1, %s4
  %s7 = scalar_select 0, %s6, %s4
  // Predicated region
  $region2: #{forward_pallas.15} parent=0 // pred_check
    _
  $region3: #{forward_pallas.15} parent=0 // pred_check_branch
    %9 = sbr.rel (0) target = $region5
  $region4: #{forward_pallas.15} parent=0 // pred_region
    _
  $region5: #{forward_pallas.15} parent=0 // pred_fallthru
    _
  // Predicated region
  $region6: #{forward_pallas.15} parent=0 // pred_check
    _
  $region7: #{forward_pallas.15} parent=0 // pred_check_branch
    %11 = sbr.rel (0) target = $region9
  $region8: #{forward_pallas.15} parent=0 // pred_region
    _
  $region9: #{forward_pallas.15} parent=0 // pred_fallthru
    _
  // Predicated region
  $region10: #{forward_pallas.15} parent=0 // pred_check
    _
  $region11: #{forward_pallas.15} parent=0 // pred_check_branch
    %13 = sbr.rel (0) target = $region13
  $region12: #{forward_pallas.15} parent=0 // pred_region
    _
  $region13: #{forward_pallas.15} parent=0 // pred_fallthru
    _
  %p15 = scmp.eq.s32.totalorder 0, 0
  // Predicated region
  $region14: #{forward_pallas.15} parent=0 // pred_check
    %p16 = pneg %p15
  $region15: #{forward_pallas.15} parent=0 // pred_check_branch
    %18 = sbr.rel (%p16) target = $region17
  $region16: #{forward_pallas.15} parent=0 // pred_region
    %19 = vst [vmem:[#allocation2] sm:$0xff] 0.0
    %20 = vst [vmem:[#allocation2 + $0x8] sm:$0xff] 0.0
    %21 = vst [vmem:[#allocation2 + $0x10] sm:$0xff] 0.0
    %22 = vst [vmem:[#allocation2 + $0x18] sm:$0xff] 0.0
    %23 = vst [vmem:[#allocation2 + $0x20] sm:$0xff] 0.0
    %24 = vst [vmem:[#allocation2 + $0x28] sm:$0xff] 0.0
    %25 = vst [vmem:[#allocation2 + $0x30] sm:$0xff] 0.0
    %26 = vst [vmem:[#allocation2 + $0x38] sm:$0xff] 0.0
    %27 = vst [vmem:[#allocation2 + $0x40] sm:$0xff] 0.0
    %28 = vst [vmem:[#allocation2 + $0x48] sm:$0xff] 0.0
    %29 = vst [vmem:[#allocation2 + $0x50] sm:$0xff] 0.0
    %30 = vst [vmem:[#allocation2 + $0x58] sm:$0xff] 0.0
    %31 = vst [vmem:[#allocation2 + $0x60] sm:$0xff] 0.0
    %32 = vst [vmem:[#allocation2 + $0x68] sm:$0xff] 0.0
    %33 = vst [vmem:[#allocation2 + $0x70] sm:$0xff] 0.0
    %34 = vst [vmem:[#allocation2 + $0x78] sm:$0xff] 0.0
  $region17: #{forward_pallas.15} parent=0 // pred_fallthru
    _
  %v35 = vld [vmem:[#allocation2] sm:$0xff]
  %v36 = vld [vmem:[#allocation2 + $0x8] sm:$0xff]
  %v37 = vld [vmem:[#allocation2 + $0x10] sm:$0xff]
  %v38 = vld [vmem:[#allocation2 + $0x18] sm:$0xff]
  %v39 = vld [vmem:[#allocation2 + $0x20] sm:$0xff]
  %v40 = vld [vmem:[#allocation2 + $0x28] sm:$0xff]
  %v41 = vld [vmem:[#allocation2 + $0x30] sm:$0xff]
  %v42 = vld [vmem:[#allocation2 + $0x38] sm:$0xff]
  %v43 = vld [vmem:[#allocation2 + $0x40] sm:$0xff]
  %v44 = vld [vmem:[#allocation2 + $0x48] sm:$0xff]
  %v45 = vld [vmem:[#allocation2 + $0x50] sm:$0xff]
  %v46 = vld [vmem:[#allocation2 + $0x58] sm:$0xff]
  %v47 = vld [vmem:[#allocation2 + $0x60] sm:$0xff]
  %v48 = vld [vmem:[#allocation2 + $0x68] sm:$0xff]
  %v49 = vld [vmem:[#allocation2 + $0x70] sm:$0xff]
  %v50 = vld [vmem:[#allocation2 + $0x78] sm:$0xff]
  %v51 = vld [vmem:[%s0] sm:$0xff]
  %v52 = vld [vmem:[%s0 + $0x8] sm:$0xff]
  %v53 = vld [vmem:[%s0 + $0x10] sm:$0xff]
  %v54 = vld [vmem:[%s0 + $0x18] sm:$0xff]
  %v55 = vld [vmem:[%s0 + $0x20] sm:$0xff]
  %v56 = vld [vmem:[%s0 + $0x28] sm:$0xff]
  %v57 = vld [vmem:[%s0 + $0x30] sm:$0xff]
  %v58 = vld [vmem:[%s0 + $0x38] sm:$0xff]
  %v59 = vld [vmem:[%s0 + $0x40] sm:$0xff]
  %v60 = vld [vmem:[%s0 + $0x48] sm:$0xff]
  %v61 = vld [vmem:[%s0 + $0x50] sm:$0xff]
  %v62 = vld [vmem:[%s0 + $0x58] sm:$0xff]
  %v63 = vld [vmem:[%s0 + $0x60] sm:$0xff]
  %v64 = vld [vmem:[%s0 + $0x68] sm:$0xff]
  %v65 = vld [vmem:[%s0 + $0x70] sm:$0xff]
  %v66 = vld [vmem:[%s0 + $0x78] sm:$0xff]
  %v67 = vld [vmem:[%s0 + $0x80] sm:$0xff]
  %v68 = vld [vmem:[%s0 + $0x88] sm:$0xff]
  %v69 = vld [vmem:[%s0 + $0x90] sm:$0xff]
  %v70 = vld [vmem:[%s0 + $0x98] sm:$0xff]
  %v71 = vld [vmem:[%s0 + $0xa0] sm:$0xff]
  %v72 = vld [vmem:[%s0 + $0xa8] sm:$0xff]
  %v73 = vld [vmem:[%s0 + $0xb0] sm:$0xff]
  %v74 = vld [vmem:[%s0 + $0xb8] sm:$0xff]
  %v75 = vld [vmem:[%s0 + $0xc0] sm:$0xff]
  %v76 = vld [vmem:[%s0 + $0xc8] sm:$0xff]
  %v77 = vld [vmem:[%s0 + $0xd0] sm:$0xff]
  %v78 = vld [vmem:[%s0 + $0xd8] sm:$0xff]
  %v79 = vld [vmem:[%s0 + $0xe0] sm:$0xff]
  %v80 = vld [vmem:[%s0 + $0xe8] sm:$0xff]
  %v81 = vld [vmem:[%s0 + $0xf0] sm:$0xff]
  %v82 = vld [vmem:[%s0 + $0xf8] sm:$0xff]
  %v83 = vld [vmem:[%s0 + $0x100] sm:$0xff]
  %v84 = vld [vmem:[%s0 + $0x108] sm:$0xff]
  %v85 = vld [vmem:[%s0 + $0x110] sm:$0xff]
  %v86 = vld [vmem:[%s0 + $0x118] sm:$0xff]
  %v87 = vld [vmem:[%s0 + $0x120] sm:$0xff]
  %v88 = vld [vmem:[%s0 + $0x128] sm:$0xff]
  %v89 = vld [vmem:[%s0 + $0x130] sm:$0xff]
  %v90 = vld [vmem:[%s0 + $0x138] sm:$0xff]
  %v91 = vld [vmem:[%s0 + $0x140] sm:$0xff]
  %v92 = vld [vmem:[%s0 + $0x148] sm:$0xff]
  %v93 = vld [vmem:[%s0 + $0x150] sm:$0xff]
  %v94 = vld [vmem:[%s0 + $0x158] sm:$0xff]
  %v95 = vld [vmem:[%s0 + $0x160] sm:$0xff]
  %v96 = vld [vmem:[%s0 + $0x168] sm:$0xff]
  %v97 = vld [vmem:[%s0 + $0x170] sm:$0xff]
  %v98 = vld [vmem:[%s0 + $0x178] sm:$0xff]
  %v99 = vld [vmem:[%s0 + $0x180] sm:$0xff]
  %v100 = vld [vmem:[%s0 + $0x188] sm:$0xff]
  %v101 = vld [vmem:[%s0 + $0x190] sm:$0xff]
  %v102 = vld [vmem:[%s0 + $0x198] sm:$0xff]
  %v103 = vld [vmem:[%s0 + $0x1a0] sm:$0xff]
  %v104 = vld [vmem:[%s0 + $0x1a8] sm:$0xff]
  %v105 = vld [vmem:[%s0 + $0x1b0] sm:$0xff]
  %v106 = vld [vmem:[%s0 + $0x1b8] sm:$0xff]
  %v107 = vld [vmem:[%s0 + $0x1c0] sm:$0xff]
  %v108 = vld [vmem:[%s0 + $0x1c8] sm:$0xff]
  %v109 = vld [vmem:[%s0 + $0x1d0] sm:$0xff]
  %v110 = vld [vmem:[%s0 + $0x1d8] sm:$0xff]
  %v111 = vld [vmem:[%s0 + $0x1e0] sm:$0xff]
  %v112 = vld [vmem:[%s0 + $0x1e8] sm:$0xff]
  %v113 = vld [vmem:[%s0 + $0x1f0] sm:$0xff]
  %v114 = vld [vmem:[%s0 + $0x1f8] sm:$0xff]
  %v115 = vld [vmem:[%s1] sm:$0xf]
  %v116 = vld [vmem:[%s1 + $0x4] sm:$0xf]
  %v117 = vld [vmem:[%s1 + $0x8] sm:$0xf]
  %v118 = vld [vmem:[%s1 + $0xc] sm:$0xf]
  %v119 = vld [vmem:[%s1 + $0x10] sm:$0xf]
  %v120 = vld [vmem:[%s1 + $0x14] sm:$0xf]
  %v121 = vld [vmem:[%s1 + $0x18] sm:$0xf]
  %v122 = vld [vmem:[%s1 + $0x1c] sm:$0xf]
  %v123 = vld [vmem:[%s1 + $0x20] sm:$0xf]
  %v124 = vld [vmem:[%s1 + $0x24] sm:$0xf]
  %v125 = vld [vmem:[%s1 + $0x28] sm:$0xf]
  %v126 = vld [vmem:[%s1 + $0x2c] sm:$0xf]
  %v127 = vld [vmem:[%s1 + $0x30] sm:$0xf]
  %v128 = vld [vmem:[%s1 + $0x34] sm:$0xf]
  %v129 = vld [vmem:[%s1 + $0x38] sm:$0xf]
  %v130 = vld [vmem:[%s1 + $0x3c] sm:$0xf]
  %v131 = vld [vmem:[%s1 + $0x40] sm:$0xf]
  %v132 = vld [vmem:[%s1 + $0x44] sm:$0xf]
  %v133 = vld [vmem:[%s1 + $0x48] sm:$0xf]
  %v134 = vld [vmem:[%s1 + $0x4c] sm:$0xf]
  %v135 = vld [vmem:[%s1 + $0x50] sm:$0xf]
  %v136 = vld [vmem:[%s1 + $0x54] sm:$0xf]
  %v137 = vld [vmem:[%s1 + $0x58] sm:$0xf]
  %v138 = vld [vmem:[%s1 + $0x5c] sm:$0xf]
  %v139 = vld [vmem:[%s1 + $0x60] sm:$0xf]
  %v140 = vld [vmem:[%s1 + $0x64] sm:$0xf]
  %v141 = vld [vmem:[%s1 + $0x68] sm:$0xf]
  %v142 = vld [vmem:[%s1 + $0x6c] sm:$0xf]
  %v143 = vld [vmem:[%s1 + $0x70] sm:$0xf]
  %v144 = vld [vmem:[%s1 + $0x74] sm:$0xf]
  %v145 = vld [vmem:[%s1 + $0x78] sm:$0xf]
  %v146 = vld [vmem:[%s1 + $0x7c] sm:$0xf]
  %v147 = vld [vmem:[%s1 + $0x80] sm:$0xf]
  %v148 = vld [vmem:[%s1 + $0x84] sm:$0xf]
  %v149 = vld [vmem:[%s1 + $0x88] sm:$0xf]
  %v150 = vld [vmem:[%s1 + $0x8c] sm:$0xf]
  %v151 = vld [vmem:[%s1 + $0x90] sm:$0xf]
  %v152 = vld [vmem:[%s1 + $0x94] sm:$0xf]
  %v153 = vld [vmem:[%s1 + $0x98] sm:$0xf]
  %v154 = vld [vmem:[%s1 + $0x9c] sm:$0xf]
  %v155 = vld [vmem:[%s1 + $0xa0] sm:$0xf]
  %v156 = vld [vmem:[%s1 + $0xa4] sm:$0xf]
  %v157 = vld [vmem:[%s1 + $0xa8] sm:$0xf]
  %v158 = vld [vmem:[%s1 + $0xac] sm:$0xf]
  %v159 = vld [vmem:[%s1 + $0xb0] sm:$0xf]
  %v160 = vld [vmem:[%s1 + $0xb4] sm:$0xf]
  %v161 = vld [vmem:[%s1 + $0xb8] sm:$0xf]
  %v162 = vld [vmem:[%s1 + $0xbc] sm:$0xf]
  %v163 = vld [vmem:[%s1 + $0xc0] sm:$0xf]
  %v164 = vld [vmem:[%s1 + $0xc4] sm:$0xf]
  %v165 = vld [vmem:[%s1 + $0xc8] sm:$0xf]
  %v166 = vld [vmem:[%s1 + $0xcc] sm:$0xf]
  %v167 = vld [vmem:[%s1 + $0xd0] sm:$0xf]
  %v168 = vld [vmem:[%s1 + $0xd4] sm:$0xf]
  %v169 = vld [vmem:[%s1 + $0xd8] sm:$0xf]
  %v170 = vld [vmem:[%s1 + $0xdc] sm:$0xf]
  %v171 = vld [vmem:[%s1 + $0xe0] sm:$0xf]
  %v172 = vld [vmem:[%s1 + $0xe4] sm:$0xf]
  %v173 = vld [vmem:[%s1 + $0xe8] sm:$0xf]
  %v174 = vld [vmem:[%s1 + $0xec] sm:$0xf]
  %v175 = vld [vmem:[%s1 + $0xf0] sm:$0xf]
  %v176 = vld [vmem:[%s1 + $0xf4] sm:$0xf]
  %v177 = vld [vmem:[%s1 + $0xf8] sm:$0xf]
  %v178 = vld [vmem:[%s1 + $0xfc] sm:$0xf]
  %v179 = vld [vmem:[%s1 + $0x100] sm:$0xf]
  %v180 = vld [vmem:[%s1 + $0x104] sm:$0xf]
  %v181 = vld [vmem:[%s1 + $0x108] sm:$0xf]
  %v182 = vld [vmem:[%s1 + $0x10c] sm:$0xf]
  %v183 = vld [vmem:[%s1 + $0x110] sm:$0xf]
  %v184 = vld [vmem:[%s1 + $0x114] sm:$0xf]
  %v185 = vld [vmem:[%s1 + $0x118] sm:$0xf]
  %v186 = vld [vmem:[%s1 + $0x11c] sm:$0xf]
  %v187 = vld [vmem:[%s1 + $0x120] sm:$0xf]
  %v188 = vld [vmem:[%s1 + $0x124] sm:$0xf]
  %v189 = vld [vmem:[%s1 + $0x128] sm:$0xf]
  %v190 = vld [vmem:[%s1 + $0x12c] sm:$0xf]
  %v191 = vld [vmem:[%s1 + $0x130] sm:$0xf]
  %v192 = vld [vmem:[%s1 + $0x134] sm:$0xf]
  %v193 = vld [vmem:[%s1 + $0x138] sm:$0xf]
  %v194 = vld [vmem:[%s1 + $0x13c] sm:$0xf]
  %v195 = vld [vmem:[%s1 + $0x140] sm:$0xf]
  %v196 = vld [vmem:[%s1 + $0x144] sm:$0xf]
  %v197 = vld [vmem:[%s1 + $0x148] sm:$0xf]
  %v198 = vld [vmem:[%s1 + $0x14c] sm:$0xf]
  %v199 = vld [vmem:[%s1 + $0x150] sm:$0xf]
  %v200 = vld [vmem:[%s1 + $0x154] sm:$0xf]
  %v201 = vld [vmem:[%s1 + $0x158] sm:$0xf]
  %v202 = vld [vmem:[%s1 + $0x15c] sm:$0xf]
  %v203 = vld [vmem:[%s1 + $0x160] sm:$0xf]
  %v204 = vld [vmem:[%s1 + $0x164] sm:$0xf]
  %v205 = vld [vmem:[%s1 + $0x168] sm:$0xf]
  %v206 = vld [vmem:[%s1 + $0x16c] sm:$0xf]
  %v207 = vld [vmem:[%s1 + $0x170] sm:$0xf]
  %v208 = vld [vmem:[%s1 + $0x174] sm:$0xf]
  %v209 = vld [vmem:[%s1 + $0x178] sm:$0xf]
  %v210 = vld [vmem:[%s1 + $0x17c] sm:$0xf]
  %v211 = vld [vmem:[%s1 + $0x180] sm:$0xf]
  %v212 = vld [vmem:[%s1 + $0x184] sm:$0xf]
  %v213 = vld [vmem:[%s1 + $0x188] sm:$0xf]
  %v214 = vld [vmem:[%s1 + $0x18c] sm:$0xf]
  %v215 = vld [vmem:[%s1 + $0x190] sm:$0xf]
  %v216 = vld [vmem:[%s1 + $0x194] sm:$0xf]
  %v217 = vld [vmem:[%s1 + $0x198] sm:$0xf]
  %v218 = vld [vmem:[%s1 + $0x19c] sm:$0xf]
  %v219 = vld [vmem:[%s1 + $0x1a0] sm:$0xf]
  %v220 = vld [vmem:[%s1 + $0x1a4] sm:$0xf]
  %v221 = vld [vmem:[%s1 + $0x1a8] sm:$0xf]
  %v222 = vld [vmem:[%s1 + $0x1ac] sm:$0xf]
  %v223 = vld [vmem:[%s1 + $0x1b0] sm:$0xf]
  %v224 = vld [vmem:[%s1 + $0x1b4] sm:$0xf]
  %v225 = vld [vmem:[%s1 + $0x1b8] sm:$0xf]
  %v226 = vld [vmem:[%s1 + $0x1bc] sm:$0xf]
  %v227 = vld [vmem:[%s1 + $0x1c0] sm:$0xf]
  %v228 = vld [vmem:[%s1 + $0x1c4] sm:$0xf]
  %v229 = vld [vmem:[%s1 + $0x1c8] sm:$0xf]
  %v230 = vld [vmem:[%s1 + $0x1cc] sm:$0xf]
  %v231 = vld [vmem:[%s1 + $0x1d0] sm:$0xf]
  %v232 = vld [vmem:[%s1 + $0x1d4] sm:$0xf]
  %v233 = vld [vmem:[%s1 + $0x1d8] sm:$0xf]
  %v234 = vld [vmem:[%s1 + $0x1dc] sm:$0xf]
  %v235 = vld [vmem:[%s1 + $0x1e0] sm:$0xf]
  %v236 = vld [vmem:[%s1 + $0x1e4] sm:$0xf]
  %v237 = vld [vmem:[%s1 + $0x1e8] sm:$0xf]
  %v238 = vld [vmem:[%s1 + $0x1ec] sm:$0xf]
  %v239 = vld [vmem:[%s1 + $0x1f0] sm:$0xf]
  %v240 = vld [vmem:[%s1 + $0x1f4] sm:$0xf]
  %v241 = vld [vmem:[%s1 + $0x1f8] sm:$0xf]
  %v242 = vld [vmem:[%s1 + $0x1fc] sm:$0xf]
  %v307 = vunpack.c.l.b16 %v51
  %v308 = vunpack.c.h.b16 %v51
  %v309 = vunpack.c.l.b16 %v52
  %v310 = vunpack.c.h.b16 %v52
  %v311 = vunpack.c.l.b16 %v53
  %v312 = vunpack.c.h.b16 %v53
  %v313 = vunpack.c.l.b16 %v54
  %v314 = vunpack.c.h.b16 %v54
  %v315 = vunpack.c.l.b16 %v55
  %v316 = vunpack.c.h.b16 %v55
  %v317 = vunpack.c.l.b16 %v56
  %v318 = vunpack.c.h.b16 %v56
  %v319 = vunpack.c.l.b16 %v57
  %v320 = vunpack.c.h.b16 %v57
  %v321 = vunpack.c.l.b16 %v58
  %v322 = vunpack.c.h.b16 %v58
  %v323 = vunpack.c.l.b16 %v59
  %v324 = vunpack.c.h.b16 %v59
  %v325 = vunpack.c.l.b16 %v60
  %v326 = vunpack.c.h.b16 %v60
  %v327 = vunpack.c.l.b16 %v61
  %v328 = vunpack.c.h.b16 %v61
  %v329 = vunpack.c.l.b16 %v62
  %v330 = vunpack.c.h.b16 %v62
  %v331 = vunpack.c.l.b16 %v63
  %v332 = vunpack.c.h.b16 %v63
  %v333 = vunpack.c.l.b16 %v64
  %v334 = vunpack.c.h.b16 %v64
  %v335 = vunpack.c.l.b16 %v65
  %v336 = vunpack.c.h.b16 %v65
  %v337 = vunpack.c.l.b16 %v66
  %v338 = vunpack.c.h.b16 %v66
  %v339 = vunpack.c.l.b16 %v67
  %v340 = vunpack.c.h.b16 %v67
  %v341 = vunpack.c.l.b16 %v68
  %v342 = vunpack.c.h.b16 %v68
  %v343 = vunpack.c.l.b16 %v69
  %v344 = vunpack.c.h.b16 %v69
  %v345 = vunpack.c.l.b16 %v70
  %v346 = vunpack.c.h.b16 %v70
  %v347 = vunpack.c.l.b16 %v71
  %v348 = vunpack.c.h.b16 %v71
  %v349 = vunpack.c.l.b16 %v72
  %v350 = vunpack.c.h.b16 %v72
  %v351 = vunpack.c.l.b16 %v73
  %v352 = vunpack.c.h.b16 %v73
  %v353 = vunpack.c.l.b16 %v74
  %v354 = vunpack.c.h.b16 %v74
  %v355 = vunpack.c.l.b16 %v75
  %v356 = vunpack.c.h.b16 %v75
  %v357 = vunpack.c.l.b16 %v76
  %v358 = vunpack.c.h.b16 %v76
  %v359 = vunpack.c.l.b16 %v77
  %v360 = vunpack.c.h.b16 %v77
  %v361 = vunpack.c.l.b16 %v78
  %v362 = vunpack.c.h.b16 %v78
  %v363 = vunpack.c.l.b16 %v79
  %v364 = vunpack.c.h.b16 %v79
  %v365 = vunpack.c.l.b16 %v80
  %v366 = vunpack.c.h.b16 %v80
  %v367 = vunpack.c.l.b16 %v81
  %v368 = vunpack.c.h.b16 %v81
  %v369 = vunpack.c.l.b16 %v82
  %v370 = vunpack.c.h.b16 %v82
  %v371 = vunpack.c.l.b16 %v83
  %v372 = vunpack.c.h.b16 %v83
  %v373 = vunpack.c.l.b16 %v84
  %v374 = vunpack.c.h.b16 %v84
  %v375 = vunpack.c.l.b16 %v85
  %v376 = vunpack.c.h.b16 %v85
  %v377 = vunpack.c.l.b16 %v86
  %v378 = vunpack.c.h.b16 %v86
  %v379 = vunpack.c.l.b16 %v87
  %v380 = vunpack.c.h.b16 %v87
  %v381 = vunpack.c.l.b16 %v88
  %v382 = vunpack.c.h.b16 %v88
  %v383 = vunpack.c.l.b16 %v89
  %v384 = vunpack.c.h.b16 %v89
  %v385 = vunpack.c.l.b16 %v90
  %v386 = vunpack.c.h.b16 %v90
  %v387 = vunpack.c.l.b16 %v91
  %v388 = vunpack.c.h.b16 %v91
  %v389 = vunpack.c.l.b16 %v92
  %v390 = vunpack.c.h.b16 %v92
  %v391 = vunpack.c.l.b16 %v93
  %v392 = vunpack.c.h.b16 %v93
  %v393 = vunpack.c.l.b16 %v94
  %v394 = vunpack.c.h.b16 %v94
  %v395 = vunpack.c.l.b16 %v95
  %v396 = vunpack.c.h.b16 %v95
  %v397 = vunpack.c.l.b16 %v96
  %v398 = vunpack.c.h.b16 %v96
  %v399 = vunpack.c.l.b16 %v97
  %v400 = vunpack.c.h.b16 %v97
  %v401 = vunpack.c.l.b16 %v98
  %v402 = vunpack.c.h.b16 %v98
  %v403 = vunpack.c.l.b16 %v99
  %v404 = vunpack.c.h.b16 %v99
  %v405 = vunpack.c.l.b16 %v100
  %v406 = vunpack.c.h.b16 %v100
  %v407 = vunpack.c.l.b16 %v101
  %v408 = vunpack.c.h.b16 %v101
  %v409 = vunpack.c.l.b16 %v102
  %v410 = vunpack.c.h.b16 %v102
  %v411 = vunpack.c.l.b16 %v103
  %v412 = vunpack.c.h.b16 %v103
  %v413 = vunpack.c.l.b16 %v104
  %v414 = vunpack.c.h.b16 %v104
  %v415 = vunpack.c.l.b16 %v105
  %v416 = vunpack.c.h.b16 %v105
  %v417 = vunpack.c.l.b16 %v106
  %v418 = vunpack.c.h.b16 %v106
  %v419 = vunpack.c.l.b16 %v107
  %v420 = vunpack.c.h.b16 %v107
  %v421 = vunpack.c.l.b16 %v108
  %v422 = vunpack.c.h.b16 %v108
  %v423 = vunpack.c.l.b16 %v109
  %v424 = vunpack.c.h.b16 %v109
  %v425 = vunpack.c.l.b16 %v110
  %v426 = vunpack.c.h.b16 %v110
  %v427 = vunpack.c.l.b16 %v111
  %v428 = vunpack.c.h.b16 %v111
  %v429 = vunpack.c.l.b16 %v112
  %v430 = vunpack.c.h.b16 %v112
  %v431 = vunpack.c.l.b16 %v113
  %v432 = vunpack.c.h.b16 %v113
  %v433 = vunpack.c.l.b16 %v114
  %v434 = vunpack.c.h.b16 %v114
  %v435 = vpack.c.b16 %v315, %v307
  %v436 = vpack.c.b16 %v316, %v308
  %v437 = vpack.c.b16 %v317, %v309
  %v438 = vpack.c.b16 %v318, %v310
  %v439 = vpack.c.b16 %v319, %v311
  %v440 = vpack.c.b16 %v320, %v312
  %v441 = vpack.c.b16 %v321, %v313
  %v442 = vpack.c.b16 %v322, %v314
  %v443 = vpack.c.b16 %v331, %v323
  %v444 = vpack.c.b16 %v332, %v324
  %v445 = vpack.c.b16 %v333, %v325
  %v446 = vpack.c.b16 %v334, %v326
  %v447 = vpack.c.b16 %v335, %v327
  %v448 = vpack.c.b16 %v336, %v328
  %v449 = vpack.c.b16 %v337, %v329
  %v450 = vpack.c.b16 %v338, %v330
  %v451 = vpack.c.b16 %v347, %v339
  %v452 = vpack.c.b16 %v348, %v340
  %v453 = vpack.c.b16 %v349, %v341
  %v454 = vpack.c.b16 %v350, %v342
  %v455 = vpack.c.b16 %v351, %v343
  %v456 = vpack.c.b16 %v352, %v344
  %v457 = vpack.c.b16 %v353, %v345
  %v458 = vpack.c.b16 %v354, %v346
  %v459 = vpack.c.b16 %v363, %v355
  %v460 = vpack.c.b16 %v364, %v356
  %v461 = vpack.c.b16 %v365, %v357
  %v462 = vpack.c.b16 %v366, %v358
  %v463 = vpack.c.b16 %v367, %v359
  %v464 = vpack.c.b16 %v368, %v360
  %v465 = vpack.c.b16 %v369, %v361
  %v466 = vpack.c.b16 %v370, %v362
  %v467 = vpack.c.b16 %v379, %v371
  %v468 = vpack.c.b16 %v380, %v372
  %v469 = vpack.c.b16 %v381, %v373
  %v470 = vpack.c.b16 %v382, %v374
  %v471 = vpack.c.b16 %v383, %v375
  %v472 = vpack.c.b16 %v384, %v376
  %v473 = vpack.c.b16 %v385, %v377
  %v474 = vpack.c.b16 %v386, %v378
  %v475 = vpack.c.b16 %v395, %v387
  %v476 = vpack.c.b16 %v396, %v388
  %v477 = vpack.c.b16 %v397, %v389
  %v478 = vpack.c.b16 %v398, %v390
  %v479 = vpack.c.b16 %v399, %v391
  %v480 = vpack.c.b16 %v400, %v392
  %v481 = vpack.c.b16 %v401, %v393
  %v482 = vpack.c.b16 %v402, %v394
  %v483 = vpack.c.b16 %v411, %v403
  %v484 = vpack.c.b16 %v412, %v404
  %v485 = vpack.c.b16 %v413, %v405
  %v486 = vpack.c.b16 %v414, %v406
  %v487 = vpack.c.b16 %v415, %v407
  %v488 = vpack.c.b16 %v416, %v408
  %v489 = vpack.c.b16 %v417, %v409
  %v490 = vpack.c.b16 %v418, %v410
  %v491 = vpack.c.b16 %v427, %v419
  %v492 = vpack.c.b16 %v428, %v420
  %v493 = vpack.c.b16 %v429, %v421
  %v494 = vpack.c.b16 %v430, %v422
  %v495 = vpack.c.b16 %v431, %v423
  %v496 = vpack.c.b16 %v432, %v424
  %v497 = vpack.c.b16 %v433, %v425
  %v498 = vpack.c.b16 %v434, %v426
  %v691 = vunpack.c.l.b16 %v115
  %v692 = vunpack.c.l.b16 %v116
  %v693 = vunpack.c.l.b16 %v117
  %v694 = vunpack.c.l.b16 %v118
  %v695 = vunpack.c.l.b16 %v119
  %v696 = vunpack.c.l.b16 %v120
  %v697 = vunpack.c.l.b16 %v121
  %v698 = vunpack.c.l.b16 %v122
  %v699 = vunpack.c.l.b16 %v123
  %v700 = vunpack.c.l.b16 %v124
  %v701 = vunpack.c.l.b16 %v125
  %v702 = vunpack.c.l.b16 %v126
  %v703 = vunpack.c.l.b16 %v127
  %v704 = vunpack.c.l.b16 %v128
  %v705 = vunpack.c.l.b16 %v129
  %v706 = vunpack.c.l.b16 %v130
  %v707 = vunpack.c.l.b16 %v131
  %v708 = vunpack.c.l.b16 %v132
  %v709 = vunpack.c.l.b16 %v133
  %v710 = vunpack.c.l.b16 %v134
  %v711 = vunpack.c.l.b16 %v135
  %v712 = vunpack.c.l.b16 %v136
  %v713 = vunpack.c.l.b16 %v137
  %v714 = vunpack.c.l.b16 %v138
  %v715 = vunpack.c.l.b16 %v139
  %v716 = vunpack.c.l.b16 %v140
  %v717 = vunpack.c.l.b16 %v141
  %v718 = vunpack.c.l.b16 %v142
  %v719 = vunpack.c.l.b16 %v143
  %v720 = vunpack.c.l.b16 %v144
  %v721 = vunpack.c.l.b16 %v145
  %v722 = vunpack.c.l.b16 %v146
  %v723 = vunpack.c.l.b16 %v147
  %v724 = vunpack.c.l.b16 %v148
  %v725 = vunpack.c.l.b16 %v149
  %v726 = vunpack.c.l.b16 %v150
  %v727 = vunpack.c.l.b16 %v151
  %v728 = vunpack.c.l.b16 %v152
  %v729 = vunpack.c.l.b16 %v153
  %v730 = vunpack.c.l.b16 %v154
  %v731 = vunpack.c.l.b16 %v155
  %v732 = vunpack.c.l.b16 %v156
  %v733 = vunpack.c.l.b16 %v157
  %v734 = vunpack.c.l.b16 %v158
  %v735 = vunpack.c.l.b16 %v159
  %v736 = vunpack.c.l.b16 %v160
  %v737 = vunpack.c.l.b16 %v161
  %v738 = vunpack.c.l.b16 %v162
  %v739 = vunpack.c.l.b16 %v163
  %v740 = vunpack.c.l.b16 %v164
  %v741 = vunpack.c.l.b16 %v165
  %v742 = vunpack.c.l.b16 %v166
  %v743 = vunpack.c.l.b16 %v167
  %v744 = vunpack.c.l.b16 %v168
  %v745 = vunpack.c.l.b16 %v169
  %v746 = vunpack.c.l.b16 %v170
  %v747 = vunpack.c.l.b16 %v171
  %v748 = vunpack.c.l.b16 %v172
  %v749 = vunpack.c.l.b16 %v173
  %v750 = vunpack.c.l.b16 %v174
  %v751 = vunpack.c.l.b16 %v175
  %v752 = vunpack.c.l.b16 %v176
  %v753 = vunpack.c.l.b16 %v177
  %v754 = vunpack.c.l.b16 %v178
  %v755 = vunpack.c.l.b16 %v179
  %v756 = vunpack.c.l.b16 %v180
  %v757 = vunpack.c.l.b16 %v181
  %v758 = vunpack.c.l.b16 %v182
  %v759 = vunpack.c.l.b16 %v183
  %v760 = vunpack.c.l.b16 %v184
  %v761 = vunpack.c.l.b16 %v185
  %v762 = vunpack.c.l.b16 %v186
  %v763 = vunpack.c.l.b16 %v187
  %v764 = vunpack.c.l.b16 %v188
  %v765 = vunpack.c.l.b16 %v189
  %v766 = vunpack.c.l.b16 %v190
  %v767 = vunpack.c.l.b16 %v191
  %v768 = vunpack.c.l.b16 %v192
  %v769 = vunpack.c.l.b16 %v193
  %v770 = vunpack.c.l.b16 %v194
  %v771 = vunpack.c.l.b16 %v195
  %v772 = vunpack.c.l.b16 %v196
  %v773 = vunpack.c.l.b16 %v197
  %v774 = vunpack.c.l.b16 %v198
  %v775 = vunpack.c.l.b16 %v199
  %v776 = vunpack.c.l.b16 %v200
  %v777 = vunpack.c.l.b16 %v201
  %v778 = vunpack.c.l.b16 %v202
  %v779 = vunpack.c.l.b16 %v203
  %v780 = vunpack.c.l.b16 %v204
  %v781 = vunpack.c.l.b16 %v205
  %v782 = vunpack.c.l.b16 %v206
  %v783 = vunpack.c.l.b16 %v207
  %v784 = vunpack.c.l.b16 %v208
  %v785 = vunpack.c.l.b16 %v209
  %v786 = vunpack.c.l.b16 %v210
  %v787 = vunpack.c.l.b16 %v211
  %v788 = vunpack.c.l.b16 %v212
  %v789 = vunpack.c.l.b16 %v213
  %v790 = vunpack.c.l.b16 %v214
  %v791 = vunpack.c.l.b16 %v215
  %v792 = vunpack.c.l.b16 %v216
  %v793 = vunpack.c.l.b16 %v217
  %v794 = vunpack.c.l.b16 %v218
  %v795 = vunpack.c.l.b16 %v219
  %v796 = vunpack.c.l.b16 %v220
  %v797 = vunpack.c.l.b16 %v221
  %v798 = vunpack.c.l.b16 %v222
  %v799 = vunpack.c.l.b16 %v223
  %v800 = vunpack.c.l.b16 %v224
  %v801 = vunpack.c.l.b16 %v225
  %v802 = vunpack.c.l.b16 %v226
  %v803 = vunpack.c.l.b16 %v227
  %v804 = vunpack.c.l.b16 %v228
  %v805 = vunpack.c.l.b16 %v229
  %v806 = vunpack.c.l.b16 %v230
  %v807 = vunpack.c.l.b16 %v231
  %v808 = vunpack.c.l.b16 %v232
  %v809 = vunpack.c.l.b16 %v233
  %v810 = vunpack.c.l.b16 %v234
  %v811 = vunpack.c.l.b16 %v235
  %v812 = vunpack.c.l.b16 %v236
  %v813 = vunpack.c.l.b16 %v237
  %v814 = vunpack.c.l.b16 %v238
  %v815 = vunpack.c.l.b16 %v239
  %v816 = vunpack.c.l.b16 %v240
  %v817 = vunpack.c.l.b16 %v241
  %v818 = vunpack.c.l.b16 %v242
  %v819 = vpack.c.b16 %v692, %v691
  %v820 = vpack.c.b16 %v694, %v693
  %v821 = vpack.c.b16 %v696, %v695
  %v822 = vpack.c.b16 %v698, %v697
  %v823 = vpack.c.b16 %v700, %v699
  %v824 = vpack.c.b16 %v702, %v701
  %v825 = vpack.c.b16 %v704, %v703
  %v826 = vpack.c.b16 %v706, %v705
  %v827 = vpack.c.b16 %v708, %v707
  %v828 = vpack.c.b16 %v710, %v709
  %v829 = vpack.c.b16 %v712, %v711
  %v830 = vpack.c.b16 %v714, %v713
  %v831 = vpack.c.b16 %v716, %v715
  %v832 = vpack.c.b16 %v718, %v717
  %v833 = vpack.c.b16 %v720, %v719
  %v834 = vpack.c.b16 %v722, %v721
  %v835 = vpack.c.b16 %v724, %v723
  %v836 = vpack.c.b16 %v726, %v725
  %v837 = vpack.c.b16 %v728, %v727
  %v838 = vpack.c.b16 %v730, %v729
  %v839 = vpack.c.b16 %v732, %v731
  %v840 = vpack.c.b16 %v734, %v733
  %v841 = vpack.c.b16 %v736, %v735
  %v842 = vpack.c.b16 %v738, %v737
  %v843 = vpack.c.b16 %v740, %v739
  %v844 = vpack.c.b16 %v742, %v741
  %v845 = vpack.c.b16 %v744, %v743
  %v846 = vpack.c.b16 %v746, %v745
  %v847 = vpack.c.b16 %v748, %v747
  %v848 = vpack.c.b16 %v750, %v749
  %v849 = vpack.c.b16 %v752, %v751
  %v850 = vpack.c.b16 %v754, %v753
  %v851 = vpack.c.b16 %v756, %v755
  %v852 = vpack.c.b16 %v758, %v757
  %v853 = vpack.c.b16 %v760, %v759
  %v854 = vpack.c.b16 %v762, %v761
  %v855 = vpack.c.b16 %v764, %v763
  %v856 = vpack.c.b16 %v766, %v765
  %v857 = vpack.c.b16 %v768, %v767
  %v858 = vpack.c.b16 %v770, %v769
  %v859 = vpack.c.b16 %v772, %v771
  %v860 = vpack.c.b16 %v774, %v773
  %v861 = vpack.c.b16 %v776, %v775
  %v862 = vpack.c.b16 %v778, %v777
  %v863 = vpack.c.b16 %v780, %v779
  %v864 = vpack.c.b16 %v782, %v781
  %v865 = vpack.c.b16 %v784, %v783
  %v866 = vpack.c.b16 %v786, %v785
  %v867 = vpack.c.b16 %v788, %v787
  %v868 = vpack.c.b16 %v790, %v789
  %v869 = vpack.c.b16 %v792, %v791
  %v870 = vpack.c.b16 %v794, %v793
  %v871 = vpack.c.b16 %v796, %v795
  %v872 = vpack.c.b16 %v798, %v797
  %v873 = vpack.c.b16 %v800, %v799
  %v874 = vpack.c.b16 %v802, %v801
  %v875 = vpack.c.b16 %v804, %v803
  %v876 = vpack.c.b16 %v806, %v805
  %v877 = vpack.c.b16 %v808, %v807
  %v878 = vpack.c.b16 %v810, %v809
  %v879 = vpack.c.b16 %v812, %v811
  %v880 = vpack.c.b16 %v814, %v813
  %v881 = vpack.c.b16 %v816, %v815
  %v882 = vpack.c.b16 %v818, %v817
  %947 = vmatprep.subr.bf16.mxu0 0
  %948 = vmatpush1.bf16.msra.mxu0 %v819
  %949 = vmatprep.subr.bf16.mxu0 0
  %950 = vmatpush1.bf16.msra.mxu0 %v820
  %951 = vmatprep.subr.bf16.mxu0 0
  %952 = vmatpush1.bf16.msra.mxu0 %v821
  %953 = vmatprep.subr.bf16.mxu0 0
  %954 = vmatpush1.bf16.msra.mxu0 %v822
  %955 = vmatprep.subr.bf16.mxu0 0
  %956 = vmatpush1.bf16.msra.mxu0 %v823
  %957 = vmatprep.subr.bf16.mxu0 0
  %958 = vmatpush1.bf16.msra.mxu0 %v824
  %959 = vmatprep.subr.bf16.mxu0 0
  %960 = vmatpush1.bf16.msra.mxu0 %v825
  %961 = vmatprep.subr.bf16.mxu0 0
  %962 = vmatpush1.bf16.msra.mxu0 %v826
  %963 = vmatprep.subr.bf16.mxu0 0
  %964 = vmatpush1.bf16.msra.mxu0 %v827
  %965 = vmatprep.subr.bf16.mxu0 0
  %966 = vmatpush1.bf16.msra.mxu0 %v828
  %967 = vmatprep.subr.bf16.mxu0 0
  %968 = vmatpush1.bf16.msra.mxu0 %v829
  %969 = vmatprep.subr.bf16.mxu0 0
  %970 = vmatpush1.bf16.msra.mxu0 %v830
  %971 = vmatprep.subr.bf16.mxu0 0
  %972 = vmatpush1.bf16.msra.mxu0 %v831
  %973 = vmatprep.subr.bf16.mxu0 0
  %974 = vmatpush1.bf16.msra.mxu0 %v832
  %975 = vmatprep.subr.bf16.mxu0 0
  %976 = vmatpush1.bf16.msra.mxu0 %v833
  %977 = vmatprep.subr.bf16.mxu0 0
  %978 = vmatpush1.bf16.msra.mxu0 %v834
  %979 = vmatprep.mubr.bf16.mxu0 %v436
  %980 = vmatmul.mubr.bf16.gmra.mrb[0].mxu0 %v435
  %v981 = vpop.f32.mrb[0].mxu0
  %v982 = vadd.f32 0.0, %v981
  %v983 = vpop.f32.mrb[0].mxu0
  %v984 = vpop.f32.mrb[0].mxu0
  %v985 = vadd.f32 0.0, %v984
  %v986 = vpop.f32.mrb[0].mxu0
  %987 = vmatprep.mubr.bf16.mxu0 %v444
  %988 = vmatmul.mubr.bf16.gmra.mrb[0].mxu0 %v443
  %v989 = vpop.f32.mrb[0].mxu0
  %v990 = vadd.f32 0.0, %v989
  %v991 = vpop.f32.mrb[0].mxu0
  %v992 = vpop.f32.mrb[0].mxu0
  %v993 = vadd.f32 0.0, %v992
  %v994 = vpop.f32.mrb[0].mxu0
  %995 = vmatprep.mubr.bf16.mxu0 %v452
  %996 = vmatmul.mubr.bf16.gmra.mrb[0].mxu0 %v451
  %v997 = vpop.f32.mrb[0].mxu0
  %v998 = vadd.f32 0.0, %v997
  %v999 = vpop.f32.mrb[0].mxu0
  %v1000 = vpop.f32.mrb[0].mxu0
  %v1001 = vadd.f32 0.0, %v1000
  %v1002 = vpop.f32.mrb[0].mxu0
  %1003 = vmatprep.mubr.bf16.mxu0 %v460
  %1004 = vmatmul.mubr.bf16.gmra.mrb[0].mxu0 %v459
  %v1005 = vpop.f32.mrb[0].mxu0
  %v1006 = vadd.f32 0.0, %v1005
  %v1007 = vpop.f32.mrb[0].mxu0
  %v1008 = vpop.f32.mrb[0].mxu0
  %v1009 = vadd.f32 0.0, %v1008
  %v1010 = vpop.f32.mrb[0].mxu0
  %1011 = vmatprep.mubr.bf16.mxu0 %v468
  %1012 = vmatmul.mubr.bf16.gmra.mrb[0].mxu0 %v467
  %v1013 = vpop.f32.mrb[0].mxu0
  %v1014 = vadd.f32 0.0, %v1013
  %v1015 = vpop.f32.mrb[0].mxu0
  %v1016 = vpop.f32.mrb[0].mxu0
  %v1017 = vadd.f32 0.0, %v1016
  %v1018 = vpop.f32.mrb[0].mxu0
  %1019 = vmatprep.mubr.bf16.mxu0 %v476
  %1020 = vmatmul.mubr.bf16.gmra.mrb[0].mxu0 %v475
  %v1021 = vpop.f32.mrb[0].mxu0
  %v1022 = vadd.f32 0.0, %v1021
  %v1023 = vpop.f32.mrb[0].mxu0
  %v1024 = vpop.f32.mrb[0].mxu0
  %v1025 = vadd.f32 0.0, %v1024
  %v1026 = vpop.f32.mrb[0].mxu0
  %1027 = vmatprep.mubr.bf16.mxu0 %v484
  %1028 = vmatmul.mubr.bf16.gmra.mrb[0].mxu0 %v483
  %v1029 = vpop.f32.mrb[0].mxu0
  %v1030 = vadd.f32 0.0, %v1029
  %v1031 = vpop.f32.mrb[0].mxu0
  %v1032 = vpop.f32.mrb[0].mxu0
  %v1033 = vadd.f32 0.0, %v1032
  %v1034 = vpop.f32.mrb[0].mxu0
  %1035 = vmatprep.mubr.bf16.mxu0 %v492
  %1036 = vmatmul.mubr.bf16.gmra.mrb[0].mxu0 %v491
  %v1037 = vpop.f32.mrb[0].mxu0
  %v1038 = vadd.f32 0.0, %v1037
  %v1039 = vpop.f32.mrb[0].mxu0
  %v1040 = vpop.f32.mrb[0].mxu0
  %v1041 = vadd.f32 0.0, %v1040
  %v1042 = vpop.f32.mrb[0].mxu0
  %1043 = vdwg.mxu0
  %1044 = vmatprep.subr.bf16.mxu0 0
  %1045 = vmatpush1.bf16.msra.mxu0 %v835
  %1046 = vmatprep.subr.bf16.mxu0 0
  %1047 = vmatpush1.bf16.msra.mxu0 %v836
  %1048 = vmatprep.subr.bf16.mxu0 0
  %1049 = vmatpush1.bf16.msra.mxu0 %v837
  %1050 = vmatprep.subr.bf16.mxu0 0
  %1051 = vmatpush1.bf16.msra.mxu0 %v838
  %1052 = vmatprep.subr.bf16.mxu0 0
  %1053 = vmatpush1.bf16.msra.mxu0 %v839
  %1054 = vmatprep.subr.bf16.mxu0 0
  %1055 = vmatpush1.bf16.msra.mxu0 %v840
  %1056 = vmatprep.subr.bf16.mxu0 0
  %1057 = vmatpush1.bf16.msra.mxu0 %v841
  %1058 = vmatprep.subr.bf16.mxu0 0
  %1059 = vmatpush1.bf16.msra.mxu0 %v842
  %1060 = vmatprep.subr.bf16.mxu0 0
  %1061 = vmatpush1.bf16.msra.mxu0 %v843
  %1062 = vmatprep.subr.bf16.mxu0 0
  %1063 = vmatpush1.bf16.msra.mxu0 %v844
  %1064 = vmatprep.subr.bf16.mxu0 0
  %1065 = vmatpush1.bf16.msra.mxu0 %v845
  %1066 = vmatprep.subr.bf16.mxu0 0
  %1067 = vmatpush1.bf16.msra.mxu0 %v846
  %1068 = vmatprep.subr.bf16.mxu0 0
  %1069 = vmatpush1.bf16.msra.mxu0 %v847
  %1070 = vmatprep.subr.bf16.mxu0 0
  %1071 = vmatpush1.bf16.msra.mxu0 %v848
  %1072 = vmatprep.subr.bf16.mxu0 0
  %1073 = vmatpush1.bf16.msra.mxu0 %v849
  %1074 = vmatprep.subr.bf16.mxu0 0
  %1075 = vmatpush1.bf16.msra.mxu0 %v850
  %1076 = vmatprep.mubr.bf16.mxu0 %v438
  %1077 = vmatmul.mubr.bf16.gmra.mrb[0].mxu0 %v437
  %v1078 = vpop.f32.mrb[0].mxu0
  %v1079 = vadd.f32 %v982, %v1078
  %v1080 = vpop.f32.mrb[0].mxu0
  %v1081 = vpop.f32.mrb[0].mxu0
  %v1082 = vadd.f32 %v985, %v1081
  %v1083 = vpop.f32.mrb[0].mxu0
  %1084 = vmatprep.mubr.bf16.mxu0 %v446
  %1085 = vmatmul.mubr.bf16.gmra.mrb[0].mxu0 %v445
  %v1086 = vpop.f32.mrb[0].mxu0
  %v1087 = vadd.f32 %v990, %v1086
  %v1088 = vpop.f32.mrb[0].mxu0
  %v1089 = vpop.f32.mrb[0].mxu0
  %v1090 = vadd.f32 %v993, %v1089
  %v1091 = vpop.f32.mrb[0].mxu0
  %1092 = vmatprep.mubr.bf16.mxu0 %v454
  %1093 = vmatmul.mubr.bf16.gmra.mrb[0].mxu0 %v453
  %v1094 = vpop.f32.mrb[0].mxu0
  %v1095 = vadd.f32 %v998, %v1094
  %v1096 = vpop.f32.mrb[0].mxu0
  %v1097 = vpop.f32.mrb[0].mxu0
  %v1098 = vadd.f32 %v1001, %v1097
  %v1099 = vpop.f32.mrb[0].mxu0
  %1100 = vmatprep.mubr.bf16.mxu0 %v462
  %1101 = vmatmul.mubr.bf16.gmra.mrb[0].mxu0 %v461
  %v1102 = vpop.f32.mrb[0].mxu0
  %v1103 = vadd.f32 %v1006, %v1102
  %v1104 = vpop.f32.mrb[0].mxu0
  %v1105 = vpop.f32.mrb[0].mxu0
  %v1106 = vadd.f32 %v1009, %v1105
  %v1107 = vpop.f32.mrb[0].mxu0
  %1108 = vmatprep.mubr.bf16.mxu0 %v470
  %1109 = vmatmul.mubr.bf16.gmra.mrb[0].mxu0 %v469
  %v1110 = vpop.f32.mrb[0].mxu0
  %v1111 = vadd.f32 %v1014, %v1110
  %v1112 = vpop.f32.mrb[0].mxu0
  %v1113 = vpop.f32.mrb[0].mxu0
  %v1114 = vadd.f32 %v1017, %v1113
  %v1115 = vpop.f32.mrb[0].mxu0
  %1116 = vmatprep.mubr.bf16.mxu0 %v478
  %1117 = vmatmul.mubr.bf16.gmra.mrb[0].mxu0 %v477
  %v1118 = vpop.f32.mrb[0].mxu0
  %v1119 = vadd.f32 %v1022, %v1118
  %v1120 = vpop.f32.mrb[0].mxu0
  %v1121 = vpop.f32.mrb[0].mxu0
  %v1122 = vadd.f32 %v1025, %v1121
  %v1123 = vpop.f32.mrb[0].mxu0
  %1124 = vmatprep.mubr.bf16.mxu0 %v486
  %1125 = vmatmul.mubr.bf16.gmra.mrb[0].mxu0 %v485
  %v1126 = vpop.f32.mrb[0].mxu0
  %v1127 = vadd.f32 %v1030, %v1126
  %v1128 = vpop.f32.mrb[0].mxu0
  %v1129 = vpop.f32.mrb[0].mxu0
  %v1130 = vadd.f32 %v1033, %v1129
  %v1131 = vpop.f32.mrb[0].mxu0
  %1132 = vmatprep.mubr.bf16.mxu0 %v494
  %1133 = vmatmul.mubr.bf16.gmra.mrb[0].mxu0 %v493
  %v1134 = vpop.f32.mrb[0].mxu0
  %v1135 = vadd.f32 %v1038, %v1134
  %v1136 = vpop.f32.mrb[0].mxu0
  %v1137 = vpop.f32.mrb[0].mxu0
  %v1138 = vadd.f32 %v1041, %v1137
  %v1139 = vpop.f32.mrb[0].mxu0
  %1140 = vdwg.mxu0
  %1141 = vmatprep.subr.bf16.mxu0 0
  %1142 = vmatpush1.bf16.msra.mxu0 %v851
  %1143 = vmatprep.subr.bf16.mxu0 0
  %1144 = vmatpush1.bf16.msra.mxu0 %v852
  %1145 = vmatprep.subr.bf16.mxu0 0
  %1146 = vmatpush1.bf16.msra.mxu0 %v853
  %1147 = vmatprep.subr.bf16.mxu0 0
  %1148 = vmatpush1.bf16.msra.mxu0 %v854
  %1149 = vmatprep.subr.bf16.mxu0 0
  %1150 = vmatpush1.bf16.msra.mxu0 %v855
  %1151 = vmatprep.subr.bf16.mxu0 0
  %1152 = vmatpush1.bf16.msra.mxu0 %v856
  %1153 = vmatprep.subr.bf16.mxu0 0
  %1154 = vmatpush1.bf16.msra.mxu0 %v857
  %1155 = vmatprep.subr.bf16.mxu0 0
  %1156 = vmatpush1.bf16.msra.mxu0 %v858
  %1157 = vmatprep.subr.bf16.mxu0 0
  %1158 = vmatpush1.bf16.msra.mxu0 %v859
  %1159 = vmatprep.subr.bf16.mxu0 0
  %1160 = vmatpush1.bf16.msra.mxu0 %v860
  %1161 = vmatprep.subr.bf16.mxu0 0
  %1162 = vmatpush1.bf16.msra.mxu0 %v861
  %1163 = vmatprep.subr.bf16.mxu0 0
  %1164 = vmatpush1.bf16.msra.mxu0 %v862
  %1165 = vmatprep.subr.bf16.mxu0 0
  %1166 = vmatpush1.bf16.msra.mxu0 %v863
  %1167 = vmatprep.subr.bf16.mxu0 0
  %1168 = vmatpush1.bf16.msra.mxu0 %v864
  %1169 = vmatprep.subr.bf16.mxu0 0
  %1170 = vmatpush1.bf16.msra.mxu0 %v865
  %1171 = vmatprep.subr.bf16.mxu0 0
  %1172 = vmatpush1.bf16.msra.mxu0 %v866
  %1173 = vmatprep.mubr.bf16.mxu0 %v440
  %1174 = vmatmul.mubr.bf16.gmra.mrb[0].mxu0 %v439
  %v1175 = vpop.f32.mrb[0].mxu0
  %v1176 = vadd.f32 %v1079, %v1175
  %v1177 = vpop.f32.mrb[0].mxu0
  %v1178 = vpop.f32.mrb[0].mxu0
  %v1179 = vadd.f32 %v1082, %v1178
  %v1180 = vpop.f32.mrb[0].mxu0
  %1181 = vmatprep.mubr.bf16.mxu0 %v448
  %1182 = vmatmul.mubr.bf16.gmra.mrb[0].mxu0 %v447
  %v1183 = vpop.f32.mrb[0].mxu0
  %v1184 = vadd.f32 %v1087, %v1183
  %v1185 = vpop.f32.mrb[0].mxu0
  %v1186 = vpop.f32.mrb[0].mxu0
  %v1187 = vadd.f32 %v1090, %v1186
  %v1188 = vpop.f32.mrb[0].mxu0
  %1189 = vmatprep.mubr.bf16.mxu0 %v456
  %1190 = vmatmul.mubr.bf16.gmra.mrb[0].mxu0 %v455
  %v1191 = vpop.f32.mrb[0].mxu0
  %v1192 = vadd.f32 %v1095, %v1191
  %v1193 = vpop.f32.mrb[0].mxu0
  %v1194 = vpop.f32.mrb[0].mxu0
  %v1195 = vadd.f32 %v1098, %v1194
  %v1196 = vpop.f32.mrb[0].mxu0
  %1197 = vmatprep.mubr.bf16.mxu0 %v464
  %1198 = vmatmul.mubr.bf16.gmra.mrb[0].mxu0 %v463
  %v1199 = vpop.f32.mrb[0].mxu0
  %v1200 = vadd.f32 %v1103, %v1199
  %v1201 = vpop.f32.mrb[0].mxu0
  %v1202 = vpop.f32.mrb[0].mxu0
  %v1203 = vadd.f32 %v1106, %v1202
  %v1204 = vpop.f32.mrb[0].mxu0
  %1205 = vmatprep.mubr.bf16.mxu0 %v472
  %1206 = vmatmul.mubr.bf16.gmra.mrb[0].mxu0 %v471
  %v1207 = vpop.f32.mrb[0].mxu0
  %v1208 = vadd.f32 %v1111, %v1207
  %v1209 = vpop.f32.mrb[0].mxu0
  %v1210 = vpop.f32.mrb[0].mxu0
  %v1211 = vadd.f32 %v1114, %v1210
  %v1212 = vpop.f32.mrb[0].mxu0
  %1213 = vmatprep.mubr.bf16.mxu0 %v480
  %1214 = vmatmul.mubr.bf16.gmra.mrb[0].mxu0 %v479
  %v1215 = vpop.f32.mrb[0].mxu0
  %v1216 = vadd.f32 %v1119, %v1215
  %v1217 = vpop.f32.mrb[0].mxu0
  %v1218 = vpop.f32.mrb[0].mxu0
  %v1219 = vadd.f32 %v1122, %v1218
  %v1220 = vpop.f32.mrb[0].mxu0
  %1221 = vmatprep.mubr.bf16.mxu0 %v488
  %1222 = vmatmul.mubr.bf16.gmra.mrb[0].mxu0 %v487
  %v1223 = vpop.f32.mrb[0].mxu0
  %v1224 = vadd.f32 %v1127, %v1223
  %v1225 = vpop.f32.mrb[0].mxu0
  %v1226 = vpop.f32.mrb[0].mxu0
  %v1227 = vadd.f32 %v1130, %v1226
  %v1228 = vpop.f32.mrb[0].mxu0
  %1229 = vmatprep.mubr.bf16.mxu0 %v496
  %1230 = vmatmul.mubr.bf16.gmra.mrb[0].mxu0 %v495
  %v1231 = vpop.f32.mrb[0].mxu0
  %v1232 = vadd.f32 %v1135, %v1231
  %v1233 = vpop.f32.mrb[0].mxu0
  %v1234 = vpop.f32.mrb[0].mxu0
  %v1235 = vadd.f32 %v1138, %v1234
  %v1236 = vpop.f32.mrb[0].mxu0
  %1237 = vdwg.mxu0
  %1238 = vmatprep.subr.bf16.mxu0 0
  %1239 = vmatpush1.bf16.msra.mxu0 %v867
  %1240 = vmatprep.subr.bf16.mxu0 0
  %1241 = vmatpush1.bf16.msra.mxu0 %v868
  %1242 = vmatprep.subr.bf16.mxu0 0
  %1243 = vmatpush1.bf16.msra.mxu0 %v869
  %1244 = vmatprep.subr.bf16.mxu0 0
  %1245 = vmatpush1.bf16.msra.mxu0 %v870
  %1246 = vmatprep.subr.bf16.mxu0 0
  %1247 = vmatpush1.bf16.msra.mxu0 %v871
  %1248 = vmatprep.subr.bf16.mxu0 0
  %1249 = vmatpush1.bf16.msra.mxu0 %v872
  %1250 = vmatprep.subr.bf16.mxu0 0
  %1251 = vmatpush1.bf16.msra.mxu0 %v873
  %1252 = vmatprep.subr.bf16.mxu0 0
  %1253 = vmatpush1.bf16.msra.mxu0 %v874
  %1254 = vmatprep.subr.bf16.mxu0 0
  %1255 = vmatpush1.bf16.msra.mxu0 %v875
  %1256 = vmatprep.subr.bf16.mxu0 0
  %1257 = vmatpush1.bf16.msra.mxu0 %v876
  %1258 = vmatprep.subr.bf16.mxu0 0
  %1259 = vmatpush1.bf16.msra.mxu0 %v877
  %1260 = vmatprep.subr.bf16.mxu0 0
  %1261 = vmatpush1.bf16.msra.mxu0 %v878
  %1262 = vmatprep.subr.bf16.mxu0 0
  %1263 = vmatpush1.bf16.msra.mxu0 %v879
  %1264 = vmatprep.subr.bf16.mxu0 0
  %1265 = vmatpush1.bf16.msra.mxu0 %v880
  %1266 = vmatprep.subr.bf16.mxu0 0
  %1267 = vmatpush1.bf16.msra.mxu0 %v881
  %1268 = vmatprep.subr.bf16.mxu0 0
  %1269 = vmatpush1.bf16.msra.mxu0 %v882
  %1270 = vmatprep.mubr.bf16.mxu0 %v442
  %1271 = vmatmul.mubr.bf16.gmra.mrb[0].mxu0 %v441
  %v1272 = vpop.f32.mrb[0].mxu0
  %v1273 = vadd.f32 %v1176, %v1272
  %v1274 = vpop.f32.mrb[0].mxu0
  %v1275 = vpop.f32.mrb[0].mxu0
  %v1276 = vadd.f32 %v1179, %v1275
  %v1277 = vpop.f32.mrb[0].mxu0
  %1278 = vmatprep.mubr.bf16.mxu0 %v450
  %1279 = vmatmul.mubr.bf16.gmra.mrb[0].mxu0 %v449
  %v1280 = vpop.f32.mrb[0].mxu0
  %v1281 = vadd.f32 %v1184, %v1280
  %v1282 = vpop.f32.mrb[0].mxu0
  %v1283 = vpop.f32.mrb[0].mxu0
  %v1284 = vadd.f32 %v1187, %v1283
  %v1285 = vpop.f32.mrb[0].mxu0
  %1286 = vmatprep.mubr.bf16.mxu0 %v458
  %1287 = vmatmul.mubr.bf16.gmra.mrb[0].mxu0 %v457
  %v1288 = vpop.f32.mrb[0].mxu0
  %v1289 = vadd.f32 %v1192, %v1288
  %v1290 = vpop.f32.mrb[0].mxu0
  %v1291 = vpop.f32.mrb[0].mxu0
  %v1292 = vadd.f32 %v1195, %v1291
  %v1293 = vpop.f32.mrb[0].mxu0
  %1294 = vmatprep.mubr.bf16.mxu0 %v466
  %1295 = vmatmul.mubr.bf16.gmra.mrb[0].mxu0 %v465
  %v1296 = vpop.f32.mrb[0].mxu0
  %v1297 = vadd.f32 %v1200, %v1296
  %v1298 = vpop.f32.mrb[0].mxu0
  %v1299 = vpop.f32.mrb[0].mxu0
  %v1300 = vadd.f32 %v1203, %v1299
  %v1301 = vpop.f32.mrb[0].mxu0
  %1302 = vmatprep.mubr.bf16.mxu0 %v474
  %1303 = vmatmul.mubr.bf16.gmra.mrb[0].mxu0 %v473
  %v1304 = vpop.f32.mrb[0].mxu0
  %v1305 = vadd.f32 %v1208, %v1304
  %v1306 = vpop.f32.mrb[0].mxu0
  %v1307 = vpop.f32.mrb[0].mxu0
  %v1308 = vadd.f32 %v1211, %v1307
  %v1309 = vpop.f32.mrb[0].mxu0
  %1310 = vmatprep.mubr.bf16.mxu0 %v482
  %1311 = vmatmul.mubr.bf16.gmra.mrb[0].mxu0 %v481
  %v1312 = vpop.f32.mrb[0].mxu0
  %v1313 = vadd.f32 %v1216, %v1312
  %v1314 = vpop.f32.mrb[0].mxu0
  %v1315 = vpop.f32.mrb[0].mxu0
  %v1316 = vadd.f32 %v1219, %v1315
  %v1317 = vpop.f32.mrb[0].mxu0
  %1318 = vmatprep.mubr.bf16.mxu0 %v490
  %1319 = vmatmul.mubr.bf16.gmra.mrb[0].mxu0 %v489
  %v1320 = vpop.f32.mrb[0].mxu0
  %v1321 = vadd.f32 %v1224, %v1320
  %v1322 = vpop.f32.mrb[0].mxu0
  %v1323 = vpop.f32.mrb[0].mxu0
  %v1324 = vadd.f32 %v1227, %v1323
  %v1325 = vpop.f32.mrb[0].mxu0
  %1326 = vmatprep.mubr.bf16.mxu0 %v498
  %1327 = vmatmul.mubr.bf16.gmra.mrb[0].mxu0 %v497
  %v1328 = vpop.f32.mrb[0].mxu0
  %v1329 = vadd.f32 %v1232, %v1328
  %v1330 = vpop.f32.mrb[0].mxu0
  %v1331 = vpop.f32.mrb[0].mxu0
  %v1332 = vadd.f32 %v1235, %v1331
  %v1333 = vpop.f32.mrb[0].mxu0
  %1334 = vdwg.mxu0
  %v1335 = vadd.f32 %v35, %v1273
  %v1336 = vadd.f32 %v36, %v1276
  %v1337 = vadd.f32 %v37, %v1281
  %v1338 = vadd.f32 %v38, %v1284
  %v1339 = vadd.f32 %v39, %v1289
  %v1340 = vadd.f32 %v40, %v1292
  %v1341 = vadd.f32 %v41, %v1297
  %v1342 = vadd.f32 %v42, %v1300
  %v1343 = vadd.f32 %v43, %v1305
  %v1344 = vadd.f32 %v44, %v1308
  %v1345 = vadd.f32 %v45, %v1313
  %v1346 = vadd.f32 %v46, %v1316
  %v1347 = vadd.f32 %v47, %v1321
  %v1348 = vadd.f32 %v48, %v1324
  %v1349 = vadd.f32 %v49, %v1329
  %v1350 = vadd.f32 %v50, %v1332
  %1351 = vst [vmem:[#allocation2] sm:$0xff] %v1335
  %1352 = vst [vmem:[#allocation2 + $0x8] sm:$0xff] %v1336
  %1353 = vst [vmem:[#allocation2 + $0x10] sm:$0xff] %v1337
  %1354 = vst [vmem:[#allocation2 + $0x18] sm:$0xff] %v1338
  %1355 = vst [vmem:[#allocation2 + $0x20] sm:$0xff] %v1339
  %1356 = vst [vmem:[#allocation2 + $0x28] sm:$0xff] %v1340
  %1357 = vst [vmem:[#allocation2 + $0x30] sm:$0xff] %v1341
  %1358 = vst [vmem:[#allocation2 + $0x38] sm:$0xff] %v1342
  %1359 = vst [vmem:[#allocation2 + $0x40] sm:$0xff] %v1343
  %1360 = vst [vmem:[#allocation2 + $0x48] sm:$0xff] %v1344
  %1361 = vst [vmem:[#allocation2 + $0x50] sm:$0xff] %v1345
  %1362 = vst [vmem:[#allocation2 + $0x58] sm:$0xff] %v1346
  %1363 = vst [vmem:[#allocation2 + $0x60] sm:$0xff] %v1347
  %1364 = vst [vmem:[#allocation2 + $0x68] sm:$0xff] %v1348
  %1365 = vst [vmem:[#allocation2 + $0x70] sm:$0xff] %v1349
  %1366 = vst [vmem:[#allocation2 + $0x78] sm:$0xff] %v1350
  // Predicated region
  $region18: #{forward_pallas.15} parent=0 // pred_check
    %p1367 = pneg %p15
  $region19: #{forward_pallas.15} parent=0 // pred_check_branch
    %1369 = sbr.rel (%p1367) target = $region21
  $region20: #{forward_pallas.15} parent=0 // pred_region
    %v1370 = vld [vmem:[#allocation2] sm:$0xff]
    %v1371 = vld [vmem:[#allocation2 + $0x8] sm:$0xff]
    %v1372 = vld [vmem:[#allocation2 + $0x10] sm:$0xff]
    %v1373 = vld [vmem:[#allocation2 + $0x18] sm:$0xff]
    %v1374 = vld [vmem:[#allocation2 + $0x20] sm:$0xff]
    %v1375 = vld [vmem:[#allocation2 + $0x28] sm:$0xff]
    %v1376 = vld [vmem:[#allocation2 + $0x30] sm:$0xff]
    %v1377 = vld [vmem:[#allocation2 + $0x38] sm:$0xff]
    %v1378 = vld [vmem:[#allocation2 + $0x40] sm:$0xff]
    %v1379 = vld [vmem:[#allocation2 + $0x48] sm:$0xff]
    %v1380 = vld [vmem:[#allocation2 + $0x50] sm:$0xff]
    %v1381 = vld [vmem:[#allocation2 + $0x58] sm:$0xff]
    %v1382 = vld [vmem:[#allocation2 + $0x60] sm:$0xff]
    %v1383 = vld [vmem:[#allocation2 + $0x68] sm:$0xff]
    %v1384 = vld [vmem:[#allocation2 + $0x70] sm:$0xff]
    %v1385 = vld [vmem:[#allocation2 + $0x78] sm:$0xff]
    %v1386 = vld [vmem:[%s2] sm:$0x1]
    %v1388 = vlaneseq
    %v1389 = vshrl.u32 %v1388, 7
    %v1390 = vsub.s32 0, %v1389
    %v1391 = vrot.slane %v1386, %v1390
    %v1393 = vadd.f32 %v1370, %v1391
    %v1394 = vadd.f32 %v1371, %v1391
    %v1395 = vadd.f32 %v1372, %v1391
    %v1396 = vadd.f32 %v1373, %v1391
    %v1397 = vadd.f32 %v1374, %v1391
    %v1398 = vadd.f32 %v1375, %v1391
    %v1399 = vadd.f32 %v1376, %v1391
    %v1400 = vadd.f32 %v1377, %v1391
    %v1401 = vadd.f32 %v1378, %v1391
    %v1402 = vadd.f32 %v1379, %v1391
    %v1403 = vadd.f32 %v1380, %v1391
    %v1404 = vadd.f32 %v1381, %v1391
    %v1405 = vadd.f32 %v1382, %v1391
    %v1406 = vadd.f32 %v1383, %v1391
    %v1407 = vadd.f32 %v1384, %v1391
    %v1408 = vadd.f32 %v1385, %v1391
    %v1409 = vpack.c.bf16 %v1394, %v1393
    %v1410 = vpack.c.bf16 %v1396, %v1395
    %v1411 = vpack.c.bf16 %v1398, %v1397
    %v1412 = vpack.c.bf16 %v1400, %v1399
    %v1413 = vpack.c.bf16 %v1402, %v1401
    %v1414 = vpack.c.bf16 %v1404, %v1403
    %v1415 = vpack.c.bf16 %v1406, %v1405
    %v1416 = vpack.c.bf16 %v1408, %v1407
    %v1425 = vunpack.c.l.b16 %v1409
    %v1426 = vunpack.c.h.b16 %v1409
    %v1427 = vunpack.c.l.b16 %v1410
    %v1428 = vunpack.c.h.b16 %v1410
    %v1429 = vunpack.c.l.b16 %v1411
    %v1430 = vunpack.c.h.b16 %v1411
    %v1431 = vunpack.c.l.b16 %v1412
    %v1432 = vunpack.c.h.b16 %v1412
    %v1433 = vunpack.c.l.b16 %v1413
    %v1434 = vunpack.c.h.b16 %v1413
    %v1435 = vunpack.c.l.b16 %v1414
    %v1436 = vunpack.c.h.b16 %v1414
    %v1437 = vunpack.c.l.b16 %v1415
    %v1438 = vunpack.c.h.b16 %v1415
    %v1439 = vunpack.c.l.b16 %v1416
    %v1440 = vunpack.c.h.b16 %v1416
    %v1441 = vpack.c.b16 %v1425, %v1425
    %v1442 = vpack.c.b16 %v1426, %v1426
    %v1443 = vpack.c.b16 %v1427, %v1427
    %v1444 = vpack.c.b16 %v1428, %v1428
    %v1445 = vpack.c.b16 %v1429, %v1429
    %v1446 = vpack.c.b16 %v1430, %v1430
    %v1447 = vpack.c.b16 %v1431, %v1431
    %v1448 = vpack.c.b16 %v1432, %v1432
    %v1449 = vpack.c.b16 %v1433, %v1433
    %v1450 = vpack.c.b16 %v1434, %v1434
    %v1451 = vpack.c.b16 %v1435, %v1435
    %v1452 = vpack.c.b16 %v1436, %v1436
    %v1453 = vpack.c.b16 %v1437, %v1437
    %v1454 = vpack.c.b16 %v1438, %v1438
    %v1455 = vpack.c.b16 %v1439, %v1439
    %v1456 = vpack.c.b16 %v1440, %v1440
    %1473 = vst [vmem:[%s3] sm:$0xf] %v1441
    %1474 = vst [vmem:[%s3 + $0x4] sm:$0xf] %v1442
    %1475 = vst [vmem:[%s3 + $0x8] sm:$0xf] %v1443
    %1476 = vst [vmem:[%s3 + $0xc] sm:$0xf] %v1444
    %1477 = vst [vmem:[%s3 + $0x10] sm:$0xf] %v1445
    %1478 = vst [vmem:[%s3 + $0x14] sm:$0xf] %v1446
    %1479 = vst [vmem:[%s3 + $0x18] sm:$0xf] %v1447
    %1480 = vst [vmem:[%s3 + $0x1c] sm:$0xf] %v1448
    %1481 = vst [vmem:[%s3 + $0x20] sm:$0xf] %v1449
    %1482 = vst [vmem:[%s3 + $0x24] sm:$0xf] %v1450
    %1483 = vst [vmem:[%s3 + $0x28] sm:$0xf] %v1451
    %1484 = vst [vmem:[%s3 + $0x2c] sm:$0xf] %v1452
    %1485 = vst [vmem:[%s3 + $0x30] sm:$0xf] %v1453
    %1486 = vst [vmem:[%s3 + $0x34] sm:$0xf] %v1454
    %1487 = vst [vmem:[%s3 + $0x38] sm:$0xf] %v1455
    %1488 = vst [vmem:[%s3 + $0x3c] sm:$0xf] %v1456
  $region21: #{forward_pallas.15} parent=0 // pred_fallthru
    _
  // Predicated region
  $region22: #{forward_pallas.15} parent=0 // pred_check
    _
  $region23: #{forward_pallas.15} parent=0 // pred_check_branch
    %1490 = sbr.rel (0) target = $region25
  $region24: #{forward_pallas.15} parent=0 // pred_region
    _
  $region25: #{forward_pallas.15} parent=0 // pred_fallthru
    _
  // Predicated region
  $region26: #{forward_pallas.15} parent=0 // pred_check
    _
  $region27: #{forward_pallas.15} parent=0 // pred_check_branch
    %1492 = sbr.rel (0) target = $region29
  $region28: #{forward_pallas.15} parent=0 // pred_region
    _
  $region29: #{forward_pallas.15} parent=0 // pred_fallthru
    _

// kernel: forward_pallas.16
$region0: #{forward_pallas.16}
  #allocation0 [shape = 'u32[]', space=smem, size = 0x4, offset = 0x4, fixed_abs, tag = 'smem constant byte address 0x4 - core index']
  #allocation1 [shape = 'u32[144,128]{1,0:T(1,128)}', space=vmem, size = 0x12000, scoped, tag = 'internal scratch']
  %s0 = inlined_call_operand.vmem [shape: bf16[128,128], index: 0, kind: input, shape index: {}]
  %s1 = inlined_call_operand.vmem [shape: f32[1,128], index: 1, kind: output, shape index: {0}]
  %s2 = inlined_call_operand.vmem [shape: f32[1,128], index: 2, kind: output, shape index: {1}]
  %3 = xla_tuple %s1, %s2
  %s4 = sld [smem:[#allocation0]]
  $region26: #{forward_pallas.16} parent=0
    _
  %s6 = ssub.s32 1, %s4
  %s7 = scalar_select 0, %s6, %s4
  // Predicated region
  $region2: #{forward_pallas.16} parent=0 // pred_check
    _
  $region3: #{forward_pallas.16} parent=0 // pred_check_branch
    %9 = sbr.rel (0) target = $region5
  $region4: #{forward_pallas.16} parent=0 // pred_region
    _
  $region5: #{forward_pallas.16} parent=0 // pred_fallthru
    _
  %p10 = scmp.eq.s32.totalorder 0, 0
  // Predicated region
  $region6: #{forward_pallas.16} parent=0 // pred_check
    %p11 = pneg %p10
  $region7: #{forward_pallas.16} parent=0 // pred_check_branch
    %13 = sbr.rel (%p11) target = $region9
  $region8: #{forward_pallas.16} parent=0 // pred_region
    %14 = vst [vmem:[%s1] sm:$0x1] 0.0
    %15 = vst [vmem:[%s2] sm:$0x1] 0.0
  $region9: #{forward_pallas.16} parent=0 // pred_fallthru
    _
  %v16 = vld [vmem:[%s0] sm:$0xf]
  %v17 = vld [vmem:[%s0 + $0x4] sm:$0xf]
  %v18 = vld [vmem:[%s0 + $0x8] sm:$0xf]
  %v19 = vld [vmem:[%s0 + $0xc] sm:$0xf]
  %v20 = vld [vmem:[%s0 + $0x10] sm:$0xf]
  %v21 = vld [vmem:[%s0 + $0x14] sm:$0xf]
  %v22 = vld [vmem:[%s0 + $0x18] sm:$0xf]
  %v23 = vld [vmem:[%s0 + $0x1c] sm:$0xf]
  %v24 = vld [vmem:[%s0 + $0x20] sm:$0xf]
  %v25 = vld [vmem:[%s0 + $0x24] sm:$0xf]
  %v26 = vld [vmem:[%s0 + $0x28] sm:$0xf]
  %v27 = vld [vmem:[%s0 + $0x2c] sm:$0xf]
  %v28 = vld [vmem:[%s0 + $0x30] sm:$0xf]
  %v29 = vld [vmem:[%s0 + $0x34] sm:$0xf]
  %v30 = vld [vmem:[%s0 + $0x38] sm:$0xf]
  %v31 = vld [vmem:[%s0 + $0x3c] sm:$0xf]
  %v32 = vunpack.c.l.bf16 %v16
  %v33 = vunpack.c.l.bf16 %v17
  %v34 = vunpack.c.l.bf16 %v18
  %v35 = vunpack.c.l.bf16 %v19
  %v36 = vunpack.c.l.bf16 %v20
  %v37 = vunpack.c.l.bf16 %v21
  %v38 = vunpack.c.l.bf16 %v22
  %v39 = vunpack.c.l.bf16 %v23
  %v40 = vunpack.c.l.bf16 %v24
  %v41 = vunpack.c.l.bf16 %v25
  %v42 = vunpack.c.l.bf16 %v26
  %v43 = vunpack.c.l.bf16 %v27
  %v44 = vunpack.c.l.bf16 %v28
  %v45 = vunpack.c.l.bf16 %v29
  %v46 = vunpack.c.l.bf16 %v30
  %v47 = vunpack.c.l.bf16 %v31
  %v48 = vlaneseq
  %v49 = vshrl.u32 %v48, 7
  %v50 = vadd.s32 %v49, 8
  %v51 = vadd.s32 %v49, 16
  %v52 = vadd.s32 %v49, 24
  %v53 = vadd.s32 %v49, 32
  %v54 = vadd.s32 %v49, 40
  %v55 = vadd.s32 %v49, 48
  %v56 = vadd.s32 %v49, 56
  %v57 = vadd.s32 %v49, 64
  %v58 = vadd.s32 %v49, 72
  %v59 = vadd.s32 %v49, 80
  %v60 = vadd.s32 %v49, 88
  %v61 = vadd.s32 %v49, 96
  %v62 = vadd.s32 %v49, 104
  %v63 = vadd.s32 %v49, 112
  %v64 = vadd.s32 %v49, 120
  %s65 = smul.u32 0, 128
  %s66 = ssub.s32 128, %s65
  %v67 = vstv %s66
  %vm68 = vcmp.lt.s32.totalorder %v49, %v67
  %vm69 = vcmp.lt.s32.totalorder %v50, %v67
  %vm70 = vcmp.lt.s32.totalorder %v51, %v67
  %vm71 = vcmp.lt.s32.totalorder %v52, %v67
  %vm72 = vcmp.lt.s32.totalorder %v53, %v67
  %vm73 = vcmp.lt.s32.totalorder %v54, %v67
  %vm74 = vcmp.lt.s32.totalorder %v55, %v67
  %vm75 = vcmp.lt.s32.totalorder %v56, %v67
  %vm76 = vcmp.lt.s32.totalorder %v57, %v67
  %vm77 = vcmp.lt.s32.totalorder %v58, %v67
  %vm78 = vcmp.lt.s32.totalorder %v59, %v67
  %vm79 = vcmp.lt.s32.totalorder %v60, %v67
  %vm80 = vcmp.lt.s32.totalorder %v61, %v67
  %vm81 = vcmp.lt.s32.totalorder %v62, %v67
  %vm82 = vcmp.lt.s32.totalorder %v63, %v67
  %vm83 = vcmp.lt.s32.totalorder %v64, %v67
  %v84 = vsel %vm68, %v32, 0.0
  %v85 = vsel %vm69, %v33, 0.0
  %v86 = vsel %vm70, %v34, 0.0
  %v87 = vsel %vm71, %v35, 0.0
  %v88 = vsel %vm72, %v36, 0.0
  %v89 = vsel %vm73, %v37, 0.0
  %v90 = vsel %vm74, %v38, 0.0
  %v91 = vsel %vm75, %v39, 0.0
  %v92 = vsel %vm76, %v40, 0.0
  %v93 = vsel %vm77, %v41, 0.0
  %v94 = vsel %vm78, %v42, 0.0
  %v95 = vsel %vm79, %v43, 0.0
  %v96 = vsel %vm80, %v44, 0.0
  %v97 = vsel %vm81, %v45, 0.0
  %v98 = vsel %vm82, %v46, 0.0
  %v99 = vsel %vm83, %v47, 0.0
  %v100 = vld [vmem:[%s1] sm:$0x1]
  %v101 = vadd.f32 %v84, %v85
  %v102 = vadd.f32 %v101, %v86
  %v103 = vadd.f32 %v102, %v87
  %v104 = vadd.f32 %v103, %v88
  %v105 = vadd.f32 %v104, %v89
  %v106 = vadd.f32 %v105, %v90
  %v107 = vadd.f32 %v106, %v91
  %v108 = vadd.f32 %v107, %v92
  %v109 = vadd.f32 %v108, %v93
  %v110 = vadd.f32 %v109, %v94
  %v111 = vadd.f32 %v110, %v95
  %v112 = vadd.f32 %v111, %v96
  %v113 = vadd.f32 %v112, %v97
  %v114 = vadd.f32 %v113, %v98
  %v115 = vadd.f32 %v114, %v99
  %v116 = vrot.slane %v115, 4
  %v117 = vadd.f32 %v115, %v116
  %v118 = vrot.slane %v117, 2
  %v119 = vadd.f32 %v117, %v118
  %v120 = vrot.slane %v119, 1
  %v121 = vadd.f32 %v119, %v120
  %v122 = vadd.f32 %v100, %v121
  %123 = vst [vmem:[%s1] sm:$0x1] %v122
  %v124 = vld [vmem:[%s2] sm:$0x1]
  %v125 = vmul.f32 %v84, %v84
  %v126 = vmul.f32 %v85, %v85
  %v127 = vmul.f32 %v86, %v86
  %v128 = vmul.f32 %v87, %v87
  %v129 = vmul.f32 %v88, %v88
  %v130 = vmul.f32 %v89, %v89
  %v131 = vmul.f32 %v90, %v90
  %v132 = vmul.f32 %v91, %v91
  %v133 = vmul.f32 %v92, %v92
  %v134 = vmul.f32 %v93, %v93
  %v135 = vmul.f32 %v94, %v94
  %v136 = vmul.f32 %v95, %v95
  %v137 = vmul.f32 %v96, %v96
  %v138 = vmul.f32 %v97, %v97
  %v139 = vmul.f32 %v98, %v98
  %v140 = vmul.f32 %v99, %v99
  %v141 = vadd.f32 %v125, %v126
  %v142 = vadd.f32 %v141, %v127
  %v143 = vadd.f32 %v142, %v128
  %v144 = vadd.f32 %v143, %v129
  %v145 = vadd.f32 %v144, %v130
  %v146 = vadd.f32 %v145, %v131
  %v147 = vadd.f32 %v146, %v132
  %v148 = vadd.f32 %v147, %v133
  %v149 = vadd.f32 %v148, %v134
  %v150 = vadd.f32 %v149, %v135
  %v151 = vadd.f32 %v150, %v136
  %v152 = vadd.f32 %v151, %v137
  %v153 = vadd.f32 %v152, %v138
  %v154 = vadd.f32 %v153, %v139
  %v155 = vadd.f32 %v154, %v140
  %v156 = vrot.slane %v155, 4
  %v157 = vadd.f32 %v155, %v156
  %v158 = vrot.slane %v157, 2
  %v159 = vadd.f32 %v157, %v158
  %v160 = vrot.slane %v159, 1
  %v161 = vadd.f32 %v159, %v160
  %v162 = vadd.f32 %v124, %v161
  %163 = vst [vmem:[%s2] sm:$0x1] %v162
  // Predicated region
  $region10: #{forward_pallas.16} parent=0 // pred_check
    _
  $region11: #{forward_pallas.16} parent=0 // pred_check_branch
    %165 = sbr.rel (0) target = $region13
  $region12: #{forward_pallas.16} parent=0 // pred_region
    _
  $region13: #{forward_pallas.16} parent=0 // pred_fallthru
    _
  // Predicated region
  $region14: #{forward_pallas.16} parent=0 // pred_check
    _
  $region15: #{forward_pallas.16} parent=0 // pred_check_branch
    %167 = sbr.rel (0) target = $region17
  $region16: #{forward_pallas.16} parent=0 // pred_region
    _
  $region17: #{forward_pallas.16} parent=0 // pred_fallthru
    _
  // Predicated region
  $region18: #{forward_pallas.16} parent=0 // pred_check
    _
  $region19: #{forward_pallas.16} parent=0 // pred_check_branch
    %169 = sbr.rel (0) target = $region21
  $region20: #{forward_pallas.16} parent=0 // pred_region
    _
  $region21: #{forward_pallas.16} parent=0 // pred_fallthru
    _
  // Predicated region
  $region22: #{forward_pallas.16} parent=0 // pred_check
    _
  $region23: #{forward_pallas.16} parent=0 // pred_check_branch
    %171 = sbr.rel (0) target = $region25
  $region24: #{forward_pallas.16} parent=0 // pred_region
    _
  $region25: #{forward_pallas.16} parent=0 // pred_fallthru
    _

// kernel: forward_pallas.17
$region0: #{forward_pallas.17}
  #allocation0 [shape = 'u32[]', space=smem, size = 0x4, offset = 0x4, fixed_abs, tag = 'smem constant byte address 0x4 - core index']
  #allocation1 [shape = 'u32[144,128]{1,0:T(1,128)}', space=vmem, size = 0x12000, scoped, tag = 'internal scratch']
  %s0 = inlined_call_operand.vmem [shape: bf16[128,128], index: 0, kind: input, shape index: {}]
  %s1 = inlined_call_operand.vmem [shape: f32[1,128], index: 1, kind: input, shape index: {}]
  %s2 = inlined_call_operand.vmem [shape: f32[1,128], index: 2, kind: input, shape index: {}]
  %s3 = inlined_call_operand.vmem [shape: bf16[128,128], index: 3, kind: output, shape index: {}]
  %s4 = sld [smem:[#allocation0]]
  $region22: #{forward_pallas.17} parent=0
    _
  %s6 = ssub.s32 1, %s4
  %s7 = scalar_select 0, %s6, %s4
  // Predicated region
  $region2: #{forward_pallas.17} parent=0 // pred_check
    _
  $region3: #{forward_pallas.17} parent=0 // pred_check_branch
    %9 = sbr.rel (0) target = $region5
  $region4: #{forward_pallas.17} parent=0 // pred_region
    _
  $region5: #{forward_pallas.17} parent=0 // pred_fallthru
    _
  // Predicated region
  $region6: #{forward_pallas.17} parent=0 // pred_check
    _
  $region7: #{forward_pallas.17} parent=0 // pred_check_branch
    %11 = sbr.rel (0) target = $region9
  $region8: #{forward_pallas.17} parent=0 // pred_region
    _
  $region9: #{forward_pallas.17} parent=0 // pred_fallthru
    _
  // Predicated region
  $region10: #{forward_pallas.17} parent=0 // pred_check
    _
  $region11: #{forward_pallas.17} parent=0 // pred_check_branch
    %13 = sbr.rel (0) target = $region13
  $region12: #{forward_pallas.17} parent=0 // pred_region
    _
  $region13: #{forward_pallas.17} parent=0 // pred_fallthru
    _
  %v14 = vld [vmem:[%s0] sm:$0xf]
  %v15 = vld [vmem:[%s0 + $0x4] sm:$0xf]
  %v16 = vld [vmem:[%s0 + $0x8] sm:$0xf]
  %v17 = vld [vmem:[%s0 + $0xc] sm:$0xf]
  %v18 = vld [vmem:[%s0 + $0x10] sm:$0xf]
  %v19 = vld [vmem:[%s0 + $0x14] sm:$0xf]
  %v20 = vld [vmem:[%s0 + $0x18] sm:$0xf]
  %v21 = vld [vmem:[%s0 + $0x1c] sm:$0xf]
  %v22 = vld [vmem:[%s0 + $0x20] sm:$0xf]
  %v23 = vld [vmem:[%s0 + $0x24] sm:$0xf]
  %v24 = vld [vmem:[%s0 + $0x28] sm:$0xf]
  %v25 = vld [vmem:[%s0 + $0x2c] sm:$0xf]
  %v26 = vld [vmem:[%s0 + $0x30] sm:$0xf]
  %v27 = vld [vmem:[%s0 + $0x34] sm:$0xf]
  %v28 = vld [vmem:[%s0 + $0x38] sm:$0xf]
  %v29 = vld [vmem:[%s0 + $0x3c] sm:$0xf]
  %v30 = vunpack.c.l.bf16 %v14
  %v31 = vunpack.c.l.bf16 %v15
  %v32 = vunpack.c.l.bf16 %v16
  %v33 = vunpack.c.l.bf16 %v17
  %v34 = vunpack.c.l.bf16 %v18
  %v35 = vunpack.c.l.bf16 %v19
  %v36 = vunpack.c.l.bf16 %v20
  %v37 = vunpack.c.l.bf16 %v21
  %v38 = vunpack.c.l.bf16 %v22
  %v39 = vunpack.c.l.bf16 %v23
  %v40 = vunpack.c.l.bf16 %v24
  %v41 = vunpack.c.l.bf16 %v25
  %v42 = vunpack.c.l.bf16 %v26
  %v43 = vunpack.c.l.bf16 %v27
  %v44 = vunpack.c.l.bf16 %v28
  %v45 = vunpack.c.l.bf16 %v29
  %v46 = vld [vmem:[%s1] sm:$0x1]
  %v48 = vlaneseq
  %v49 = vshrl.u32 %v48, 7
  %v50 = vsub.s32 0, %v49
  %v51 = vrot.slane %v46, %v50
  %v53 = vmul.f32 %v30, %v51
  %v54 = vmul.f32 %v31, %v51
  %v55 = vmul.f32 %v32, %v51
  %v56 = vmul.f32 %v33, %v51
  %v57 = vmul.f32 %v34, %v51
  %v58 = vmul.f32 %v35, %v51
  %v59 = vmul.f32 %v36, %v51
  %v60 = vmul.f32 %v37, %v51
  %v61 = vmul.f32 %v38, %v51
  %v62 = vmul.f32 %v39, %v51
  %v63 = vmul.f32 %v40, %v51
  %v64 = vmul.f32 %v41, %v51
  %v65 = vmul.f32 %v42, %v51
  %v66 = vmul.f32 %v43, %v51
  %v67 = vmul.f32 %v44, %v51
  %v68 = vmul.f32 %v45, %v51
  %v69 = vld [vmem:[%s2] sm:$0x1]
  %v71 = vlaneseq
  %v72 = vshrl.u32 %v71, 7
  %v73 = vsub.s32 0, %v72
  %v74 = vrot.slane %v69, %v73
  %v76 = vadd.f32 %v53, %v74
  %v77 = vadd.f32 %v54, %v74
  %v78 = vadd.f32 %v55, %v74
  %v79 = vadd.f32 %v56, %v74
  %v80 = vadd.f32 %v57, %v74
  %v81 = vadd.f32 %v58, %v74
  %v82 = vadd.f32 %v59, %v74
  %v83 = vadd.f32 %v60, %v74
  %v84 = vadd.f32 %v61, %v74
  %v85 = vadd.f32 %v62, %v74
  %v86 = vadd.f32 %v63, %v74
  %v87 = vadd.f32 %v64, %v74
  %v88 = vadd.f32 %v65, %v74
  %v89 = vadd.f32 %v66, %v74
  %v90 = vadd.f32 %v67, %v74
  %v91 = vadd.f32 %v68, %v74
  %vm92 = vcmp.ge.f32.partialorder %v76, 0.0
  %vm93 = vcmp.ge.f32.partialorder %v77, 0.0
  %vm94 = vcmp.ge.f32.partialorder %v78, 0.0
  %vm95 = vcmp.ge.f32.partialorder %v79, 0.0
  %vm96 = vcmp.ge.f32.partialorder %v80, 0.0
  %vm97 = vcmp.ge.f32.partialorder %v81, 0.0
  %vm98 = vcmp.ge.f32.partialorder %v82, 0.0
  %vm99 = vcmp.ge.f32.partialorder %v83, 0.0
  %vm100 = vcmp.ge.f32.partialorder %v84, 0.0
  %vm101 = vcmp.ge.f32.partialorder %v85, 0.0
  %vm102 = vcmp.ge.f32.partialorder %v86, 0.0
  %vm103 = vcmp.ge.f32.partialorder %v87, 0.0
  %vm104 = vcmp.ge.f32.partialorder %v88, 0.0
  %vm105 = vcmp.ge.f32.partialorder %v89, 0.0
  %vm106 = vcmp.ge.f32.partialorder %v90, 0.0
  %vm107 = vcmp.ge.f32.partialorder %v91, 0.0
  %v108 = vmul.f32 %v76, 0.2
  %v109 = vmul.f32 %v77, 0.2
  %v110 = vmul.f32 %v78, 0.2
  %v111 = vmul.f32 %v79, 0.2
  %v112 = vmul.f32 %v80, 0.2
  %v113 = vmul.f32 %v81, 0.2
  %v114 = vmul.f32 %v82, 0.2
  %v115 = vmul.f32 %v83, 0.2
  %v116 = vmul.f32 %v84, 0.2
  %v117 = vmul.f32 %v85, 0.2
  %v118 = vmul.f32 %v86, 0.2
  %v119 = vmul.f32 %v87, 0.2
  %v120 = vmul.f32 %v88, 0.2
  %v121 = vmul.f32 %v89, 0.2
  %v122 = vmul.f32 %v90, 0.2
  %v123 = vmul.f32 %v91, 0.2
  %v124 = vsel %vm92, %v76, %v108
  %v125 = vsel %vm93, %v77, %v109
  %v126 = vsel %vm94, %v78, %v110
  %v127 = vsel %vm95, %v79, %v111
  %v128 = vsel %vm96, %v80, %v112
  %v129 = vsel %vm97, %v81, %v113
  %v130 = vsel %vm98, %v82, %v114
  %v131 = vsel %vm99, %v83, %v115
  %v132 = vsel %vm100, %v84, %v116
  %v133 = vsel %vm101, %v85, %v117
  %v134 = vsel %vm102, %v86, %v118
  %v135 = vsel %vm103, %v87, %v119
  %v136 = vsel %vm104, %v88, %v120
  %v137 = vsel %vm105, %v89, %v121
  %v138 = vsel %vm106, %v90, %v122
  %v139 = vsel %vm107, %v91, %v123
  %v140 = vpack.c.bf16 %v125, %v124
  %v141 = vpack.c.bf16 %v127, %v126
  %v142 = vpack.c.bf16 %v129, %v128
  %v143 = vpack.c.bf16 %v131, %v130
  %v144 = vpack.c.bf16 %v133, %v132
  %v145 = vpack.c.bf16 %v135, %v134
  %v146 = vpack.c.bf16 %v137, %v136
  %v147 = vpack.c.bf16 %v139, %v138
  %v156 = vunpack.c.l.b16 %v140
  %v157 = vunpack.c.h.b16 %v140
  %v158 = vunpack.c.l.b16 %v141
  %v159 = vunpack.c.h.b16 %v141
  %v160 = vunpack.c.l.b16 %v142
  %v161 = vunpack.c.h.b16 %v142
  %v162 = vunpack.c.l.b16 %v143
  %v163 = vunpack.c.h.b16 %v143
  %v164 = vunpack.c.l.b16 %v144
  %v165 = vunpack.c.h.b16 %v144
  %v166 = vunpack.c.l.b16 %v145
  %v167 = vunpack.c.h.b16 %v145
  %v168 = vunpack.c.l.b16 %v146
  %v169 = vunpack.c.h.b16 %v146
  %v170 = vunpack.c.l.b16 %v147
  %v171 = vunpack.c.h.b16 %v147
  %v172 = vpack.c.b16 %v156, %v156
  %v173 = vpack.c.b16 %v157, %v157
  %v174 = vpack.c.b16 %v158, %v158
  %v175 = vpack.c.b16 %v159, %v159
  %v176 = vpack.c.b16 %v160, %v160
  %v177 = vpack.c.b16 %v161, %v161
  %v178 = vpack.c.b16 %v162, %v162
  %v179 = vpack.c.b16 %v163, %v163
  %v180 = vpack.c.b16 %v164, %v164
  %v181 = vpack.c.b16 %v165, %v165
  %v182 = vpack.c.b16 %v166, %v166
  %v183 = vpack.c.b16 %v167, %v167
  %v184 = vpack.c.b16 %v168, %v168
  %v185 = vpack.c.b16 %v169, %v169
  %v186 = vpack.c.b16 %v170, %v170
  %v187 = vpack.c.b16 %v171, %v171
  %204 = vst [vmem:[%s3] sm:$0xf] %v172
  %205 = vst [vmem:[%s3 + $0x4] sm:$0xf] %v173
  %206 = vst [vmem:[%s3 + $0x8] sm:$0xf] %v174
  %207 = vst [vmem:[%s3 + $0xc] sm:$0xf] %v175
  %208 = vst [vmem:[%s3 + $0x10] sm:$0xf] %v176
  %209 = vst [vmem:[%s3 + $0x14] sm:$0xf] %v177
  %210 = vst [vmem:[%s3 + $0x18] sm:$0xf] %v178
  %211 = vst [vmem:[%s3 + $0x1c] sm:$0xf] %v179
  %212 = vst [vmem:[%s3 + $0x20] sm:$0xf] %v180
  %213 = vst [vmem:[%s3 + $0x24] sm:$0xf] %v181
  %214 = vst [vmem:[%s3 + $0x28] sm:$0xf] %v182
  %215 = vst [vmem:[%s3 + $0x2c] sm:$0xf] %v183
  %216 = vst [vmem:[%s3 + $0x30] sm:$0xf] %v184
  %217 = vst [vmem:[%s3 + $0x34] sm:$0xf] %v185
  %218 = vst [vmem:[%s3 + $0x38] sm:$0xf] %v186
  %219 = vst [vmem:[%s3 + $0x3c] sm:$0xf] %v187
  // Predicated region
  $region14: #{forward_pallas.17} parent=0 // pred_check
    _
  $region15: #{forward_pallas.17} parent=0 // pred_check_branch
    %221 = sbr.rel (0) target = $region17
  $region16: #{forward_pallas.17} parent=0 // pred_region
    _
  $region17: #{forward_pallas.17} parent=0 // pred_fallthru
    _
  // Predicated region
  $region18: #{forward_pallas.17} parent=0 // pred_check
    _
  $region19: #{forward_pallas.17} parent=0 // pred_check_branch
    %223 = sbr.rel (0) target = $region21
  $region20: #{forward_pallas.17} parent=0 // pred_region
    _
  $region21: #{forward_pallas.17} parent=0 // pred_fallthru
    _

// kernel: forward_pallas.18
$region0: #{forward_pallas.18}
  #allocation0 [shape = 'u32[]', space=smem, size = 0x4, offset = 0x4, fixed_abs, tag = 'smem constant byte address 0x4 - core index']
  #allocation1 [shape = 'u32[144,128]{1,0:T(1,128)}', space=vmem, size = 0x12000, scoped, tag = 'internal scratch']
  #allocation2 [shape = 'f32[54,128]{1,0:T(8,128)}', space=vmem, size = 0x7000, scoped, tag = 'scratch operand']
  %s0 = inlined_call_operand.vmem [shape: bf16[54,2048], index: 0, kind: input, shape index: {}]
  %s1 = inlined_call_operand.vmem [shape: bf16[2048,128], index: 1, kind: input, shape index: {}]
  %s2 = inlined_call_operand.vmem [shape: f32[1,128], index: 2, kind: input, shape index: {}]
  %s3 = inlined_call_operand.vmem [shape: bf16[54,128], index: 3, kind: output, shape index: {}]
  %s4 = sld [smem:[#allocation0]]
  $region76: #{forward_pallas.18} parent=0
    _
  %s6 = ssub.s32 1, %s4
  %s7 = scalar_select 0, %s6, %s4
  $region1: #{forward_pallas.18} parent=0
    #allocation3 [shape = 'u8[229376]{0}', space=vmem, size = 0x38000, scoped, tag = 'input window, operand 0']
    loop: start=0, step=1, limit=4
    $region2: #{forward_pallas.18} parent=1 // loop_pre_header
      _
    $region3: #{forward_pallas.18} parent=1 // loop_header
      %s9 = sphi 0, %s13
      %p10 = scmp.ge.s32.totalorder %s9, 4
      %s16 = sphi 0, %s35
      %s17 = sphi 0, %s31
      %s18 = sphi 0, %s27
      %s19 = sphi 0, %s16
      %s20 = sphi 0, %s17
      %s21 = sphi 0, %s18
      %s22 = sphi 0, %s19
      %s23 = sphi 0, %s20
      %s24 = sphi 0, %s21
      %s40 = sphi 0, %s42
      %s43 = sphi 0, %s40
      %s44 = sphi 0, %s43
      %s60 = sphi 0, %s44
      %s68 = sphi 0, %s70
      %s71 = sphi 0, %s68
      %s72 = sphi 0, %s71
      %s88 = sphi 0, %s72
      %s94 = sphi 0, %s96
      %s97 = sphi 0, %s94
      %s98 = sphi 0, %s97
      %s114 = sphi 0, %s98
      %s122 = sphi 0, %s124
      %s125 = sphi 0, %s122
      %s126 = sphi 0, %s125
      %s142 = sphi 0, %s126
    $region4: #{forward_pallas.18} parent=1 // loop_header_branch
      %12 = sbr.rel (%p10) target = $region8
    $region5: #{forward_pallas.18} parent=1 // loop_body
      %s14 = ssub.s32 %s9, 1
      %s15 = ssub.s32 %s9, 2
      %s25 = sadd.s32 1, %s18
      %p26 = scmp.ge.s32.totalorder %s25, 2
      %s27 = scalar_select %p26, 0, %s25
      %s28 = sadd.s32 1, %s17
      %s29 = scalar_select %p26, %s28, %s17
      %p30 = scmp.ge.s32.totalorder %s29, 1
      %s31 = scalar_select %p30, 0, %s29
      %s32 = sadd.s32 1, %s16
      %s33 = scalar_select %p30, %s32, %s16
      %p34 = scmp.ge.s32.totalorder %s33, 1
      %s35 = scalar_select %p34, 0, %s33
      %s36 = ssub.s32 %s16, %s35
      %s37 = ssub.s32 %s18, %s27
      %s38 = sor.u32 %s36, %s37
      %p39 = scmp.eq.s32.totalorder %s38, 0
      %s41 = sadd.s32 %s40, 1
      %s42 = scalar_select %p39, %s40, %s41
      %p45 = pneg %p39
      %p46 = scmp.eq.s32.totalorder %s9, 1
      %p47 = por %p45, %p46
      %p48 = scmp.ne.s32.totalorder %s40, %s43
      %p49 = scmp.eq.s32.totalorder %s9, 0
      %p50 = por %p48, %p49
      %p51 = scmp.ne.s32.totalorder %s40, %s43
      %p52 = scmp.eq.s32.totalorder %s14, 1
      %p53 = por %p51, %p52
      %p54 = scmp.ne.s32.totalorder %s43, %s44
      %p55 = scmp.eq.s32.totalorder %s14, 0
      %p56 = por %p54, %p55
      %p57 = scmp.ne.s32.totalorder %s43, %s44
      %p58 = scmp.eq.s32.totalorder %s15, 1
      %p59 = por %p57, %p58
      %p61 = scmp.ne.s32.totalorder %s44, %s60
      %p62 = scmp.eq.s32.totalorder %s15, 0
      %p63 = por %p61, %p62
      %s64 = ssub.s32 %s18, %s27
      %s65 = ssub.s32 %s17, %s31
      %s66 = sor.u32 %s64, %s65
      %p67 = scmp.eq.s32.totalorder %s66, 0
      %s69 = sadd.s32 %s68, 1
      %s70 = scalar_select %p67, %s68, %s69
      %p73 = pneg %p67
      %p74 = scmp.eq.s32.totalorder %s9, 1
      %p75 = por %p73, %p74
      %p76 = scmp.ne.s32.totalorder %s68, %s71
      %p77 = scmp.eq.s32.totalorder %s9, 0
      %p78 = por %p76, %p77
      %p79 = scmp.ne.s32.totalorder %s68, %s71
      %p80 = scmp.eq.s32.totalorder %s14, 1
      %p81 = por %p79, %p80
      %p82 = scmp.ne.s32.totalorder %s71, %s72
      %p83 = scmp.eq.s32.totalorder %s14, 0
      %p84 = por %p82, %p83
      %p85 = scmp.ne.s32.totalorder %s71, %s72
      %p86 = scmp.eq.s32.totalorder %s15, 1
      %p87 = por %p85, %p86
      %p89 = scmp.ne.s32.totalorder %s72, %s88
      %p90 = scmp.eq.s32.totalorder %s15, 0
      %p91 = por %p89, %p90
      %s92 = ssub.s32 %s17, %s31
      %p93 = scmp.eq.s32.totalorder %s92, 0
      %s95 = sadd.s32 %s94, 1
      %s96 = scalar_select %p93, %s94, %s95
      %p99 = pneg %p93
      %p100 = scmp.eq.s32.totalorder %s9, 1
      %p101 = por %p99, %p100
      %p102 = scmp.ne.s32.totalorder %s94, %s97
      %p103 = scmp.eq.s32.totalorder %s9, 0
      %p104 = por %p102, %p103
      %p105 = scmp.ne.s32.totalorder %s94, %s97
      %p106 = scmp.eq.s32.totalorder %s14, 1
      %p107 = por %p105, %p106
      %p108 = scmp.ne.s32.totalorder %s97, %s98
      %p109 = scmp.eq.s32.totalorder %s14, 0
      %p110 = por %p108, %p109
      %p111 = scmp.ne.s32.totalorder %s97, %s98
      %p112 = scmp.eq.s32.totalorder %s15, 1
      %p113 = por %p111, %p112
      %p115 = scmp.ne.s32.totalorder %s98, %s114
      %p116 = scmp.eq.s32.totalorder %s15, 0
      %p117 = por %p115, %p116
      %s118 = ssub.s32 %s16, %s35
      %s119 = ssub.s32 %s17, %s31
      %s120 = sor.u32 %s118, %s119
      %p121 = scmp.eq.s32.totalorder %s120, 0
      %s123 = sadd.s32 %s122, 1
      %s124 = scalar_select %p121, %s122, %s123
      %p127 = pneg %p121
      %p128 = scmp.eq.s32.totalorder %s9, 1
      %p129 = por %p127, %p128
      %p130 = scmp.ne.s32.totalorder %s122, %s125
      %p131 = scmp.eq.s32.totalorder %s9, 0
      %p132 = por %p130, %p131
      %p133 = scmp.ne.s32.totalorder %s122, %s125
      %p134 = scmp.eq.s32.totalorder %s14, 1
      %p135 = por %p133, %p134
      %p136 = scmp.ne.s32.totalorder %s125, %s126
      %p137 = scmp.eq.s32.totalorder %s14, 0
      %p138 = por %p136, %p137
      %p139 = scmp.ne.s32.totalorder %s125, %s126
      %p140 = scmp.eq.s32.totalorder %s15, 1
      %p141 = por %p139, %p140
      %p143 = scmp.ne.s32.totalorder %s126, %s142
      %p144 = scmp.eq.s32.totalorder %s15, 0
      %p145 = por %p143, %p144
      %p146 = scmp.le.s32.totalorder 1, %s9
      %p147 = scmp.lt.s32.totalorder %s9, 3
      %p148 = pnand %p146, %p147
      %p149 = pneg %p148
      // Predicated region
      $region9: #{forward_pallas.18} parent=5 // pred_check
        _
      $region10: #{forward_pallas.18} parent=5 // pred_check_branch
        %151 = sbr.rel (%p148) target = $region12
      $region11: #{forward_pallas.18} parent=5 // pred_region
        %s152 = ssub.s32 %s9, 1
        // Predicated region
        $region13: #{forward_pallas.18} parent=11 // pred_check
          %p153 = pneg %p110
        $region14: #{forward_pallas.18} parent=11 // pred_check_branch
          %155 = sbr.rel (%p153) target = $region16
        $region15: #{forward_pallas.18} parent=11 // pred_region
          %p156 = scmp.lt.s32.totalorder %s20, 0
          %s157 = scalar_select %p156, %s20, 0
          %s158 = scalar_lea.vmem %s2, %s157
        $region16: #{forward_pallas.18} parent=11 // pred_fallthru
          _
      $region12: #{forward_pallas.18} parent=5 // pred_fallthru
        _
      %p159 = scmp.lt.s32.totalorder %s9, 2
      // Predicated region
      $region17: #{forward_pallas.18} parent=5 // pred_check
        %p160 = pneg %p159
      $region18: #{forward_pallas.18} parent=5 // pred_check_branch
        %162 = sbr.rel (%p160) target = $region20
      $region19: #{forward_pallas.18} parent=5 // pred_region
        // Predicated region
        $region21: #{forward_pallas.18} parent=19 // pred_check
          %p163 = pneg %p50
        $region22: #{forward_pallas.18} parent=19 // pred_check_branch
          %165 = sbr.rel (%p163) target = $region24
        $region23: #{forward_pallas.18} parent=19 // pred_region
          %s166 = sand.u32 %s40, 1
          %s167 = sand.u32 %s40, 1
          %s168 = smul.addr %s167, 224
          %s169 = scalar_lea.vmem [#allocation3], %s168
          %s170 = smul.u32 7, %s16
          %s171 = smul.u32 8, %s18
          %s172 = smul.addr %s170, 16
          %s173 = sadd.s32 %s171, %s172
          %s174 = smul.addr %s173, 4
          %s175 = scalar_lea.vmem %s0, %s174
          // Predicated region
          $region25: #{forward_pallas.18} parent=23 // pred_check
            _
          $region26: #{forward_pallas.18} parent=23 // pred_check_branch
            %177 = sbr.rel (0) target = $region28
          $region27: #{forward_pallas.18} parent=23 // pred_region
            // Predicated region
            $region29: #{forward_pallas.18} parent=27 // pred_check
              _
            $region30: #{forward_pallas.18} parent=27 // pred_check_branch
              %179 = sbr.rel (0) target = $region32
            $region31: #{forward_pallas.18} parent=27 // pred_region
              loop: start=0, step=1, limit=1
              $region33: #{forward_pallas.18} parent=31 // loop_pre_header
                _
              $region34: #{forward_pallas.18} parent=31 // loop_header
                %s181 = sphi 0, %s185
                %p182 = scmp.ge.s32.totalorder %s181, 1
                %s186 = sphi %s175, %s175
                %s187 = sphi %s169, %s169
              $region35: #{forward_pallas.18} parent=31 // loop_header_branch
                %184 = sbr.rel (%p182) target = $region39
              $region36: #{forward_pallas.18} parent=31 // loop_body
                %v188 = vld [vmem:[%s186] sm:$0xff]
                %189 = vst [vmem:[%s187] sm:$0xff] %v188
                %v190 = vld [vmem:[%s186 + $0x8] sm:$0xff]
                %191 = vst [vmem:[%s187 + $0x8] sm:$0xff] %v190
                %v192 = vld [vmem:[%s186 + $0x10] sm:$0xff]
                %193 = vst [vmem:[%s187 + $0x10] sm:$0xff] %v192
                %v194 = vld [vmem:[%s186 + $0x18] sm:$0xff]
                %195 = vst [vmem:[%s187 + $0x18] sm:$0xff] %v194
                %v196 = vld [vmem:[%s186 + $0x40] sm:$0xff]
                %197 = vst [vmem:[%s187 + $0x20] sm:$0xff] %v196
                %v198 = vld [vmem:[%s186 + $0x48] sm:$0xff]
                %199 = vst [vmem:[%s187 + $0x28] sm:$0xff] %v198
                %v200 = vld [vmem:[%s186 + $0x50] sm:$0xff]
                %201 = vst [vmem:[%s187 + $0x30] sm:$0xff] %v200
                %v202 = vld [vmem:[%s186 + $0x58] sm:$0xff]
                %203 = vst [vmem:[%s187 + $0x38] sm:$0xff] %v202
                %v204 = vld [vmem:[%s186 + $0x80] sm:$0xff]
                %205 = vst [vmem:[%s187 + $0x40] sm:$0xff] %v204
                %v206 = vld [vmem:[%s186 + $0x88] sm:$0xff]
                %207 = vst [vmem:[%s187 + $0x48] sm:$0xff] %v206
                %v208 = vld [vmem:[%s186 + $0x90] sm:$0xff]
                %209 = vst [vmem:[%s187 + $0x50] sm:$0xff] %v208
                %v210 = vld [vmem:[%s186 + $0x98] sm:$0xff]
                %211 = vst [vmem:[%s187 + $0x58] sm:$0xff] %v210
                %v212 = vld [vmem:[%s186 + $0xc0] sm:$0xff]
                %213 = vst [vmem:[%s187 + $0x60] sm:$0xff] %v212
                %v214 = vld [vmem:[%s186 + $0xc8] sm:$0xff]
                %215 = vst [vmem:[%s187 + $0x68] sm:$0xff] %v214
                %v216 = vld [vmem:[%s186 + $0xd0] sm:$0xff]
                %217 = vst [vmem:[%s187 + $0x70] sm:$0xff] %v216
                %v218 = vld [vmem:[%s186 + $0xd8] sm:$0xff]
                %219 = vst [vmem:[%s187 + $0x78] sm:$0xff] %v218
                %v220 = vld [vmem:[%s186 + $0x100] sm:$0xff]
                %221 = vst [vmem:[%s187 + $0x80] sm:$0xff] %v220
                %v222 = vld [vmem:[%s186 + $0x108] sm:$0xff]
                %223 = vst [vmem:[%s187 + $0x88] sm:$0xff] %v222
                %v224 = vld [vmem:[%s186 + $0x110] sm:$0xff]
                %225 = vst [vmem:[%s187 + $0x90] sm:$0xff] %v224
                %v226 = vld [vmem:[%s186 + $0x118] sm:$0xff]
                %227 = vst [vmem:[%s187 + $0x98] sm:$0xff] %v226
                %v228 = vld [vmem:[%s186 + $0x140] sm:$0xff]
                %229 = vst [vmem:[%s187 + $0xa0] sm:$0xff] %v228
                %v230 = vld [vmem:[%s186 + $0x148] sm:$0xff]
                %231 = vst [vmem:[%s187 + $0xa8] sm:$0xff] %v230
                %v232 = vld [vmem:[%s186 + $0x150] sm:$0xff]
                %233 = vst [vmem:[%s187 + $0xb0] sm:$0xff] %v232
                %v234 = vld [vmem:[%s186 + $0x158] sm:$0xff]
                %235 = vst [vmem:[%s187 + $0xb8] sm:$0xff] %v234
                %v236 = vld [vmem:[%s186 + $0x180] sm:$0xff]
                %237 = vst [vmem:[%s187 + $0xc0] sm:$0xff] %v236
                %v238 = vld [vmem:[%s186 + $0x188] sm:$0xff]
                %239 = vst [vmem:[%s187 + $0xc8] sm:$0xff] %v238
                %v240 = vld [vmem:[%s186 + $0x190] sm:$0xff]
                %241 = vst [vmem:[%s187 + $0xd0] sm:$0xff] %v240
                %v242 = vld [vmem:[%s186 + $0x198] sm:$0xff]
                %243 = vst [vmem:[%s187 + $0xd8] sm:$0xff] %v242
              $region37: #{forward_pallas.18} parent=31 // loop_footer
                %s185 = sadd.s32 1, %s181
              $region38: #{forward_pallas.18} parent=31 // loop_footer_branch
                %180 = sbr.rel target = $region34
              $region39: #{forward_pallas.18} parent=31 // loop_exit
                _
            $region32: #{forward_pallas.18} parent=27 // pred_fallthru
              _
            // Predicated region
            $region40: #{forward_pallas.18} parent=27 // pred_check
              _
            $region41: #{forward_pallas.18} parent=27 // pred_check_branch
              %245 = sbr.rel target = $region43
            $region42: #{forward_pallas.18} parent=27 // pred_region
              _
            $region43: #{forward_pallas.18} parent=27 // pred_fallthru
              _
          $region28: #{forward_pallas.18} parent=23 // pred_fallthru
            _
          %246 = vnop
        $region24: #{forward_pallas.18} parent=19 // pred_fallthru
          _
        // Predicated region
        $region44: #{forward_pallas.18} parent=19 // pred_check
          %p247 = pneg %p78
        $region45: #{forward_pallas.18} parent=19 // pred_check_branch
          %249 = sbr.rel (%p247) target = $region47
        $region46: #{forward_pallas.18} parent=19 // pred_region
          %s250 = smul.u32 128, %s18
          %p251 = scmp.lt.s32.totalorder %s250, 255
          %s252 = scalar_select %p251, %s250, 255
          %p253 = scmp.lt.s32.totalorder %s17, 0
          %s254 = scalar_select %p253, %s17, 0
          %s255 = sadd.s32 %s254, %s252
          %s256 = smul.addr %s255, 4
          %s257 = scalar_lea.vmem %s1, %s256
          %s258 = smul.u32 128, %s18
        $region47: #{forward_pallas.18} parent=19 // pred_fallthru
          _
      $region20: #{forward_pallas.18} parent=5 // pred_fallthru
        _
      %p259 = scmp.le.s32.totalorder 1, %s9
      %p260 = scmp.lt.s32.totalorder %s9, 3
      %p261 = pnand %p259, %p260
      %p262 = pneg %p261
      // Predicated region
      $region48: #{forward_pallas.18} parent=5 // pred_check
        _
      $region49: #{forward_pallas.18} parent=5 // pred_check_branch
        %264 = sbr.rel (%p261) target = $region51
      $region50: #{forward_pallas.18} parent=5 // pred_region
        %s265 = ssub.s32 %s9, 1
        %s266 = sand.u32 %s43, 1
        %s267 = sand.u32 %s43, 1
        %s268 = smul.addr %s267, 224
        %s269 = scalar_lea.vmem [#allocation3], %s268
        // Predicated region
        $region52: #{forward_pallas.18} parent=50 // pred_check
          %p270 = pneg %p56
        $region53: #{forward_pallas.18} parent=50 // pred_check_branch
          %272 = sbr.rel (%p270) target = $region55
        $region54: #{forward_pallas.18} parent=50 // pred_region
          _
        $region55: #{forward_pallas.18} parent=50 // pred_fallthru
          _
        %s273 = sand.u32 %s43, 1
        %s274 = sand.u32 %s43, 1
        %s275 = smul.addr %s274, 224
        %s276 = scalar_lea.vmem [#allocation3], %s275
        %p277 = pneg %p56
        %p278 = pneg %p53
        %s279 = smul.u32 128, %s21
        %p280 = scmp.lt.s32.totalorder %s279, 255
        %s281 = scalar_select %p280, %s279, 255
        %p282 = scmp.lt.s32.totalorder %s20, 0
        %s283 = scalar_select %p282, %s20, 0
        %s284 = sadd.s32 %s283, %s281
        %s285 = smul.addr %s284, 4
        %s286 = scalar_lea.vmem %s1, %s285
        %p287 = pneg %p84
        %p288 = pneg %p81
        %p289 = scmp.lt.s32.totalorder %s20, 0
        %s290 = scalar_select %p289, %s20, 0
        %s291 = scalar_lea.vmem %s2, %s290
        %p292 = pneg %p110
        %p293 = pneg %p107
        %p294 = pneg %p138
        %p295 = pneg %p135
        %s296 = smul.u32 7, %s19
        %p297 = scmp.lt.s32.totalorder %s296, 6
        %s298 = scalar_select %p297, %s296, 6
        %p299 = scmp.lt.s32.totalorder %s20, 0
        %s300 = scalar_select %p299, %s20, 0
        %s301 = sadd.s32 %s300, %s298
        %s302 = smul.addr %s301, 4
        %s303 = scalar_lea.vmem %s3, %s302
        %s304 = smul.u32 7, %s19
        %s305 = smul.u32 8, %s21
        %s306 = smul.u32 128, %s21
        %p307 = scmp.lt.s32.totalorder %s306, 255
        %s308 = scalar_select %p307, %s306, 255
        %p309 = scmp.lt.s32.totalorder %s20, 0
        %s310 = scalar_select %p309, %s20, 0
        %s311 = sadd.s32 %s310, %s308
        %s312 = smul.addr %s311, 4
        %s313 = scalar_lea.vmem %s1, %s312
        %s314 = smul.u32 128, %s21
        %p315 = scmp.lt.s32.totalorder %s20, 0
        %s316 = scalar_select %p315, %s20, 0
        %s317 = scalar_lea.vmem %s2, %s316
        %s318 = smul.u32 7, %s19
        %p319 = scmp.lt.s32.totalorder %s318, 6
        %s320 = scalar_select %p319, %s318, 6
        %p321 = scmp.lt.s32.totalorder %s20, 0
        %s322 = scalar_select %p321, %s20, 0
        %s323 = sadd.s32 %s322, %s320
        %s324 = smul.addr %s323, 4
        %s325 = scalar_lea.vmem %s3, %s324
        %s326 = smul.u32 7, %s19
        %p328 = scmp.eq.s32.totalorder %s21, 0
        // Predicated region
        $region56: #{forward_pallas.18} parent=50 // pred_check
          %p329 = pneg %p328
        $region57: #{forward_pallas.18} parent=50 // pred_check_branch
          %331 = sbr.rel (%p329) target = $region59
        $region58: #{forward_pallas.18} parent=50 // pred_region
          %332 = vst [vmem:[#allocation2] sm:$0xff] 0.0
          %333 = vst [vmem:[#allocation2 + $0x8] sm:$0xff] 0.0
          %334 = vst [vmem:[#allocation2 + $0x10] sm:$0xff] 0.0
          %335 = vst [vmem:[#allocation2 + $0x18] sm:$0xff] 0.0
          %336 = vst [vmem:[#allocation2 + $0x20] sm:$0xff] 0.0
          %337 = vst [vmem:[#allocation2 + $0x28] sm:$0xff] 0.0
          %338 = vst [vmem:[#allocation2 + $0x30] sm:$0x3f] 0.0
        $region59: #{forward_pallas.18} parent=50 // pred_fallthru
          _
        %v339 = vld [vmem:[#allocation2] sm:$0xff]
        %v340 = vld [vmem:[#allocation2 + $0x8] sm:$0xff]
        %v341 = vld [vmem:[#allocation2 + $0x10] sm:$0xff]
        %v342 = vld [vmem:[#allocation2 + $0x18] sm:$0xff]
        %v343 = vld [vmem:[#allocation2 + $0x20] sm:$0xff]
        %v344 = vld [vmem:[#allocation2 + $0x28] sm:$0xff]
        %v345 = vld [vmem:[#allocation2 + $0x30] sm:$0x3f]
        %v346 = vld [vmem:[%s269] sm:$0xff]
        %v347 = vld [vmem:[%s269 + $0x8] sm:$0xff]
        %v348 = vld [vmem:[%s269 + $0x10] sm:$0xff]
        %v349 = vld [vmem:[%s269 + $0x18] sm:$0xff]
        %v350 = vld [vmem:[%s269 + $0x20] sm:$0xff]
        %v351 = vld [vmem:[%s269 + $0x28] sm:$0xff]
        %v352 = vld [vmem:[%s269 + $0x30] sm:$0xff]
        %v353 = vld [vmem:[%s269 + $0x38] sm:$0xff]
        %v354 = vld [vmem:[%s269 + $0x40] sm:$0xff]
        %v355 = vld [vmem:[%s269 + $0x48] sm:$0xff]
        %v356 = vld [vmem:[%s269 + $0x50] sm:$0xff]
        %v357 = vld [vmem:[%s269 + $0x58] sm:$0xff]
        %v358 = vld [vmem:[%s269 + $0x60] sm:$0xff]
        %v359 = vld [vmem:[%s269 + $0x68] sm:$0xff]
        %v360 = vld [vmem:[%s269 + $0x70] sm:$0xff]
        %v361 = vld [vmem:[%s269 + $0x78] sm:$0xff]
        %v362 = vld [vmem:[%s269 + $0x80] sm:$0xff]
        %v363 = vld [vmem:[%s269 + $0x88] sm:$0xff]
        %v364 = vld [vmem:[%s269 + $0x90] sm:$0xff]
        %v365 = vld [vmem:[%s269 + $0x98] sm:$0xff]
        %v366 = vld [vmem:[%s269 + $0xa0] sm:$0xff]
        %v367 = vld [vmem:[%s269 + $0xa8] sm:$0xff]
        %v368 = vld [vmem:[%s269 + $0xb0] sm:$0xff]
        %v369 = vld [vmem:[%s269 + $0xb8] sm:$0xff]
        %v370 = vld [vmem:[%s269 + $0xc0] sm:$0x77]
        %v371 = vld [vmem:[%s269 + $0xc8] sm:$0x77]
        %v372 = vld [vmem:[%s269 + $0xd0] sm:$0x77]
        %v373 = vld [vmem:[%s269 + $0xd8] sm:$0x77]
        %v374 = vld [vmem:[%s313] sm:$0xf]
        %v375 = vld [vmem:[%s313 + $0x4] sm:$0xf]
        %v376 = vld [vmem:[%s313 + $0x8] sm:$0xf]
        %v377 = vld [vmem:[%s313 + $0xc] sm:$0xf]
        %v378 = vld [vmem:[%s313 + $0x10] sm:$0xf]
        %v379 = vld [vmem:[%s313 + $0x14] sm:$0xf]
        %v380 = vld [vmem:[%s313 + $0x18] sm:$0xf]
        %v381 = vld [vmem:[%s313 + $0x1c] sm:$0xf]
        %v382 = vld [vmem:[%s313 + $0x20] sm:$0xf]
        %v383 = vld [vmem:[%s313 + $0x24] sm:$0xf]
        %v384 = vld [vmem:[%s313 + $0x28] sm:$0xf]
        %v385 = vld [vmem:[%s313 + $0x2c] sm:$0xf]
        %v386 = vld [vmem:[%s313 + $0x30] sm:$0xf]
        %v387 = vld [vmem:[%s313 + $0x34] sm:$0xf]
        %v388 = vld [vmem:[%s313 + $0x38] sm:$0xf]
        %v389 = vld [vmem:[%s313 + $0x3c] sm:$0xf]
        %v390 = vld [vmem:[%s313 + $0x40] sm:$0xf]
        %v391 = vld [vmem:[%s313 + $0x44] sm:$0xf]
        %v392 = vld [vmem:[%s313 + $0x48] sm:$0xf]
        %v393 = vld [vmem:[%s313 + $0x4c] sm:$0xf]
        %v394 = vld [vmem:[%s313 + $0x50] sm:$0xf]
        %v395 = vld [vmem:[%s313 + $0x54] sm:$0xf]
        %v396 = vld [vmem:[%s313 + $0x58] sm:$0xf]
        %v397 = vld [vmem:[%s313 + $0x5c] sm:$0xf]
        %v398 = vld [vmem:[%s313 + $0x60] sm:$0xf]
        %v399 = vld [vmem:[%s313 + $0x64] sm:$0xf]
        %v400 = vld [vmem:[%s313 + $0x68] sm:$0xf]
        %v401 = vld [vmem:[%s313 + $0x6c] sm:$0xf]
        %v402 = vld [vmem:[%s313 + $0x70] sm:$0xf]
        %v403 = vld [vmem:[%s313 + $0x74] sm:$0xf]
        %v404 = vld [vmem:[%s313 + $0x78] sm:$0xf]
        %v405 = vld [vmem:[%s313 + $0x7c] sm:$0xf]
        %v406 = vld [vmem:[%s313 + $0x80] sm:$0xf]
        %v407 = vld [vmem:[%s313 + $0x84] sm:$0xf]
        %v408 = vld [vmem:[%s313 + $0x88] sm:$0xf]
        %v409 = vld [vmem:[%s313 + $0x8c] sm:$0xf]
        %v410 = vld [vmem:[%s313 + $0x90] sm:$0xf]
        %v411 = vld [vmem:[%s313 + $0x94] sm:$0xf]
        %v412 = vld [vmem:[%s313 + $0x98] sm:$0xf]
        %v413 = vld [vmem:[%s313 + $0x9c] sm:$0xf]
        %v414 = vld [vmem:[%s313 + $0xa0] sm:$0xf]
        %v415 = vld [vmem:[%s313 + $0xa4] sm:$0xf]
        %v416 = vld [vmem:[%s313 + $0xa8] sm:$0xf]
        %v417 = vld [vmem:[%s313 + $0xac] sm:$0xf]
        %v418 = vld [vmem:[%s313 + $0xb0] sm:$0xf]
        %v419 = vld [vmem:[%s313 + $0xb4] sm:$0xf]
        %v420 = vld [vmem:[%s313 + $0xb8] sm:$0xf]
        %v421 = vld [vmem:[%s313 + $0xbc] sm:$0xf]
        %v422 = vld [vmem:[%s313 + $0xc0] sm:$0xf]
        %v423 = vld [vmem:[%s313 + $0xc4] sm:$0xf]
        %v424 = vld [vmem:[%s313 + $0xc8] sm:$0xf]
        %v425 = vld [vmem:[%s313 + $0xcc] sm:$0xf]
        %v426 = vld [vmem:[%s313 + $0xd0] sm:$0xf]
        %v427 = vld [vmem:[%s313 + $0xd4] sm:$0xf]
        %v428 = vld [vmem:[%s313 + $0xd8] sm:$0xf]
        %v429 = vld [vmem:[%s313 + $0xdc] sm:$0xf]
        %v430 = vld [vmem:[%s313 + $0xe0] sm:$0xf]
        %v431 = vld [vmem:[%s313 + $0xe4] sm:$0xf]
        %v432 = vld [vmem:[%s313 + $0xe8] sm:$0xf]
        %v433 = vld [vmem:[%s313 + $0xec] sm:$0xf]
        %v434 = vld [vmem:[%s313 + $0xf0] sm:$0xf]
        %v435 = vld [vmem:[%s313 + $0xf4] sm:$0xf]
        %v436 = vld [vmem:[%s313 + $0xf8] sm:$0xf]
        %v437 = vld [vmem:[%s313 + $0xfc] sm:$0xf]
        %v438 = vld [vmem:[%s313 + $0x100] sm:$0xf]
        %v439 = vld [vmem:[%s313 + $0x104] sm:$0xf]
        %v440 = vld [vmem:[%s313 + $0x108] sm:$0xf]
        %v441 = vld [vmem:[%s313 + $0x10c] sm:$0xf]
        %v442 = vld [vmem:[%s313 + $0x110] sm:$0xf]
        %v443 = vld [vmem:[%s313 + $0x114] sm:$0xf]
        %v444 = vld [vmem:[%s313 + $0x118] sm:$0xf]
        %v445 = vld [vmem:[%s313 + $0x11c] sm:$0xf]
        %v446 = vld [vmem:[%s313 + $0x120] sm:$0xf]
        %v447 = vld [vmem:[%s313 + $0x124] sm:$0xf]
        %v448 = vld [vmem:[%s313 + $0x128] sm:$0xf]
        %v449 = vld [vmem:[%s313 + $0x12c] sm:$0xf]
        %v450 = vld [vmem:[%s313 + $0x130] sm:$0xf]
        %v451 = vld [vmem:[%s313 + $0x134] sm:$0xf]
        %v452 = vld [vmem:[%s313 + $0x138] sm:$0xf]
        %v453 = vld [vmem:[%s313 + $0x13c] sm:$0xf]
        %v454 = vld [vmem:[%s313 + $0x140] sm:$0xf]
        %v455 = vld [vmem:[%s313 + $0x144] sm:$0xf]
        %v456 = vld [vmem:[%s313 + $0x148] sm:$0xf]
        %v457 = vld [vmem:[%s313 + $0x14c] sm:$0xf]
        %v458 = vld [vmem:[%s313 + $0x150] sm:$0xf]
        %v459 = vld [vmem:[%s313 + $0x154] sm:$0xf]
        %v460 = vld [vmem:[%s313 + $0x158] sm:$0xf]
        %v461 = vld [vmem:[%s313 + $0x15c] sm:$0xf]
        %v462 = vld [vmem:[%s313 + $0x160] sm:$0xf]
        %v463 = vld [vmem:[%s313 + $0x164] sm:$0xf]
        %v464 = vld [vmem:[%s313 + $0x168] sm:$0xf]
        %v465 = vld [vmem:[%s313 + $0x16c] sm:$0xf]
        %v466 = vld [vmem:[%s313 + $0x170] sm:$0xf]
        %v467 = vld [vmem:[%s313 + $0x174] sm:$0xf]
        %v468 = vld [vmem:[%s313 + $0x178] sm:$0xf]
        %v469 = vld [vmem:[%s313 + $0x17c] sm:$0xf]
        %v470 = vld [vmem:[%s313 + $0x180] sm:$0xf]
        %v471 = vld [vmem:[%s313 + $0x184] sm:$0xf]
        %v472 = vld [vmem:[%s313 + $0x188] sm:$0xf]
        %v473 = vld [vmem:[%s313 + $0x18c] sm:$0xf]
        %v474 = vld [vmem:[%s313 + $0x190] sm:$0xf]
        %v475 = vld [vmem:[%s313 + $0x194] sm:$0xf]
        %v476 = vld [vmem:[%s313 + $0x198] sm:$0xf]
        %v477 = vld [vmem:[%s313 + $0x19c] sm:$0xf]
        %v478 = vld [vmem:[%s313 + $0x1a0] sm:$0xf]
        %v479 = vld [vmem:[%s313 + $0x1a4] sm:$0xf]
        %v480 = vld [vmem:[%s313 + $0x1a8] sm:$0xf]
        %v481 = vld [vmem:[%s313 + $0x1ac] sm:$0xf]
        %v482 = vld [vmem:[%s313 + $0x1b0] sm:$0xf]
        %v483 = vld [vmem:[%s313 + $0x1b4] sm:$0xf]
        %v484 = vld [vmem:[%s313 + $0x1b8] sm:$0xf]
        %v485 = vld [vmem:[%s313 + $0x1bc] sm:$0xf]
        %v486 = vld [vmem:[%s313 + $0x1c0] sm:$0xf]
        %v487 = vld [vmem:[%s313 + $0x1c4] sm:$0xf]
        %v488 = vld [vmem:[%s313 + $0x1c8] sm:$0xf]
        %v489 = vld [vmem:[%s313 + $0x1cc] sm:$0xf]
        %v490 = vld [vmem:[%s313 + $0x1d0] sm:$0xf]
        %v491 = vld [vmem:[%s313 + $0x1d4] sm:$0xf]
        %v492 = vld [vmem:[%s313 + $0x1d8] sm:$0xf]
        %v493 = vld [vmem:[%s313 + $0x1dc] sm:$0xf]
        %v494 = vld [vmem:[%s313 + $0x1e0] sm:$0xf]
        %v495 = vld [vmem:[%s313 + $0x1e4] sm:$0xf]
        %v496 = vld [vmem:[%s313 + $0x1e8] sm:$0xf]
        %v497 = vld [vmem:[%s313 + $0x1ec] sm:$0xf]
        %v498 = vld [vmem:[%s313 + $0x1f0] sm:$0xf]
        %v499 = vld [vmem:[%s313 + $0x1f4] sm:$0xf]
        %v500 = vld [vmem:[%s313 + $0x1f8] sm:$0xf]
        %v501 = vld [vmem:[%s313 + $0x1fc] sm:$0xf]
        %v530 = vunpack.c.l.b16 %v346
        %v531 = vunpack.c.h.b16 %v346
        %v532 = vunpack.c.l.b16 %v347
        %v533 = vunpack.c.h.b16 %v347
        %v534 = vunpack.c.l.b16 %v348
        %v535 = vunpack.c.h.b16 %v348
        %v536 = vunpack.c.l.b16 %v349
        %v537 = vunpack.c.h.b16 %v349
        %v538 = vunpack.c.l.b16 %v350
        %v539 = vunpack.c.h.b16 %v350
        %v540 = vunpack.c.l.b16 %v351
        %v541 = vunpack.c.h.b16 %v351
        %v542 = vunpack.c.l.b16 %v352
        %v543 = vunpack.c.h.b16 %v352
        %v544 = vunpack.c.l.b16 %v353
        %v545 = vunpack.c.h.b16 %v353
        %v546 = vunpack.c.l.b16 %v354
        %v547 = vunpack.c.h.b16 %v354
        %v548 = vunpack.c.l.b16 %v355
        %v549 = vunpack.c.h.b16 %v355
        %v550 = vunpack.c.l.b16 %v356
        %v551 = vunpack.c.h.b16 %v356
        %v552 = vunpack.c.l.b16 %v357
        %v553 = vunpack.c.h.b16 %v357
        %v554 = vunpack.c.l.b16 %v358
        %v555 = vunpack.c.h.b16 %v358
        %v556 = vunpack.c.l.b16 %v359
        %v557 = vunpack.c.h.b16 %v359
        %v558 = vunpack.c.l.b16 %v360
        %v559 = vunpack.c.h.b16 %v360
        %v560 = vunpack.c.l.b16 %v361
        %v561 = vunpack.c.h.b16 %v361
        %v562 = vunpack.c.l.b16 %v362
        %v563 = vunpack.c.h.b16 %v362
        %v564 = vunpack.c.l.b16 %v363
        %v565 = vunpack.c.h.b16 %v363
        %v566 = vunpack.c.l.b16 %v364
        %v567 = vunpack.c.h.b16 %v364
        %v568 = vunpack.c.l.b16 %v365
        %v569 = vunpack.c.h.b16 %v365
        %v570 = vunpack.c.l.b16 %v366
        %v571 = vunpack.c.h.b16 %v366
        %v572 = vunpack.c.l.b16 %v367
        %v573 = vunpack.c.h.b16 %v367
        %v574 = vunpack.c.l.b16 %v368
        %v575 = vunpack.c.h.b16 %v368
        %v576 = vunpack.c.l.b16 %v369
        %v577 = vunpack.c.h.b16 %v369
        %v578 = vunpack.c.l.b16 %v370
        %v579 = vunpack.c.h.b16 %v370
        %v580 = vunpack.c.l.b16 %v371
        %v581 = vunpack.c.h.b16 %v371
        %v582 = vunpack.c.l.b16 %v372
        %v583 = vunpack.c.h.b16 %v372
        %v584 = vunpack.c.l.b16 %v373
        %v585 = vunpack.c.h.b16 %v373
        %v586 = vpack.c.b16 %v538, %v530
        %v587 = vpack.c.b16 %v539, %v531
        %v588 = vpack.c.b16 %v540, %v532
        %v589 = vpack.c.b16 %v541, %v533
        %v590 = vpack.c.b16 %v542, %v534
        %v591 = vpack.c.b16 %v543, %v535
        %v592 = vpack.c.b16 %v544, %v536
        %v593 = vpack.c.b16 %v545, %v537
        %v594 = vpack.c.b16 %v554, %v546
        %v595 = vpack.c.b16 %v555, %v547
        %v596 = vpack.c.b16 %v556, %v548
        %v597 = vpack.c.b16 %v557, %v549
        %v598 = vpack.c.b16 %v558, %v550
        %v599 = vpack.c.b16 %v559, %v551
        %v600 = vpack.c.b16 %v560, %v552
        %v601 = vpack.c.b16 %v561, %v553
        %v602 = vpack.c.b16 %v570, %v562
        %v603 = vpack.c.b16 %v571, %v563
        %v604 = vpack.c.b16 %v572, %v564
        %v605 = vpack.c.b16 %v573, %v565
        %v606 = vpack.c.b16 %v574, %v566
        %v607 = vpack.c.b16 %v575, %v567
        %v608 = vpack.c.b16 %v576, %v568
        %v609 = vpack.c.b16 %v577, %v569
        %v610 = vpack.c.b16 %v578, %v578
        %v611 = vpack.c.b16 %v579, %v579
        %v612 = vpack.c.b16 %v580, %v580
        %v613 = vpack.c.b16 %v581, %v581
        %v614 = vpack.c.b16 %v582, %v582
        %v615 = vpack.c.b16 %v583, %v583
        %v616 = vpack.c.b16 %v584, %v584
        %v617 = vpack.c.b16 %v585, %v585
        %v778 = vunpack.c.l.b16 %v374
        %v779 = vunpack.c.l.b16 %v375
        %v780 = vunpack.c.l.b16 %v376
        %v781 = vunpack.c.l.b16 %v377
        %v782 = vunpack.c.l.b16 %v378
        %v783 = vunpack.c.l.b16 %v379
        %v784 = vunpack.c.l.b16 %v380
        %v785 = vunpack.c.l.b16 %v381
        %v786 = vunpack.c.l.b16 %v382
        %v787 = vunpack.c.l.b16 %v383
        %v788 = vunpack.c.l.b16 %v384
        %v789 = vunpack.c.l.b16 %v385
        %v790 = vunpack.c.l.b16 %v386
        %v791 = vunpack.c.l.b16 %v387
        %v792 = vunpack.c.l.b16 %v388
        %v793 = vunpack.c.l.b16 %v389
        %v794 = vunpack.c.l.b16 %v390
        %v795 = vunpack.c.l.b16 %v391
        %v796 = vunpack.c.l.b16 %v392
        %v797 = vunpack.c.l.b16 %v393
        %v798 = vunpack.c.l.b16 %v394
        %v799 = vunpack.c.l.b16 %v395
        %v800 = vunpack.c.l.b16 %v396
        %v801 = vunpack.c.l.b16 %v397
        %v802 = vunpack.c.l.b16 %v398
        %v803 = vunpack.c.l.b16 %v399
        %v804 = vunpack.c.l.b16 %v400
        %v805 = vunpack.c.l.b16 %v401
        %v806 = vunpack.c.l.b16 %v402
        %v807 = vunpack.c.l.b16 %v403
        %v808 = vunpack.c.l.b16 %v404
        %v809 = vunpack.c.l.b16 %v405
        %v810 = vunpack.c.l.b16 %v406
        %v811 = vunpack.c.l.b16 %v407
        %v812 = vunpack.c.l.b16 %v408
        %v813 = vunpack.c.l.b16 %v409
        %v814 = vunpack.c.l.b16 %v410
        %v815 = vunpack.c.l.b16 %v411
        %v816 = vunpack.c.l.b16 %v412
        %v817 = vunpack.c.l.b16 %v413
        %v818 = vunpack.c.l.b16 %v414
        %v819 = vunpack.c.l.b16 %v415
        %v820 = vunpack.c.l.b16 %v416
        %v821 = vunpack.c.l.b16 %v417
        %v822 = vunpack.c.l.b16 %v418
        %v823 = vunpack.c.l.b16 %v419
        %v824 = vunpack.c.l.b16 %v420
        %v825 = vunpack.c.l.b16 %v421
        %v826 = vunpack.c.l.b16 %v422
        %v827 = vunpack.c.l.b16 %v423
        %v828 = vunpack.c.l.b16 %v424
        %v829 = vunpack.c.l.b16 %v425
        %v830 = vunpack.c.l.b16 %v426
        %v831 = vunpack.c.l.b16 %v427
        %v832 = vunpack.c.l.b16 %v428
        %v833 = vunpack.c.l.b16 %v429
        %v834 = vunpack.c.l.b16 %v430
        %v835 = vunpack.c.l.b16 %v431
        %v836 = vunpack.c.l.b16 %v432
        %v837 = vunpack.c.l.b16 %v433
        %v838 = vunpack.c.l.b16 %v434
        %v839 = vunpack.c.l.b16 %v435
        %v840 = vunpack.c.l.b16 %v436
        %v841 = vunpack.c.l.b16 %v437
        %v842 = vunpack.c.l.b16 %v438
        %v843 = vunpack.c.l.b16 %v439
        %v844 = vunpack.c.l.b16 %v440
        %v845 = vunpack.c.l.b16 %v441
        %v846 = vunpack.c.l.b16 %v442
        %v847 = vunpack.c.l.b16 %v443
        %v848 = vunpack.c.l.b16 %v444
        %v849 = vunpack.c.l.b16 %v445
        %v850 = vunpack.c.l.b16 %v446
        %v851 = vunpack.c.l.b16 %v447
        %v852 = vunpack.c.l.b16 %v448
        %v853 = vunpack.c.l.b16 %v449
        %v854 = vunpack.c.l.b16 %v450
        %v855 = vunpack.c.l.b16 %v451
        %v856 = vunpack.c.l.b16 %v452
        %v857 = vunpack.c.l.b16 %v453
        %v858 = vunpack.c.l.b16 %v454
        %v859 = vunpack.c.l.b16 %v455
        %v860 = vunpack.c.l.b16 %v456
        %v861 = vunpack.c.l.b16 %v457
        %v862 = vunpack.c.l.b16 %v458
        %v863 = vunpack.c.l.b16 %v459
        %v864 = vunpack.c.l.b16 %v460
        %v865 = vunpack.c.l.b16 %v461
        %v866 = vunpack.c.l.b16 %v462
        %v867 = vunpack.c.l.b16 %v463
        %v868 = vunpack.c.l.b16 %v464
        %v869 = vunpack.c.l.b16 %v465
        %v870 = vunpack.c.l.b16 %v466
        %v871 = vunpack.c.l.b16 %v467
        %v872 = vunpack.c.l.b16 %v468
        %v873 = vunpack.c.l.b16 %v469
        %v874 = vunpack.c.l.b16 %v470
        %v875 = vunpack.c.l.b16 %v471
        %v876 = vunpack.c.l.b16 %v472
        %v877 = vunpack.c.l.b16 %v473
        %v878 = vunpack.c.l.b16 %v474
        %v879 = vunpack.c.l.b16 %v475
        %v880 = vunpack.c.l.b16 %v476
        %v881 = vunpack.c.l.b16 %v477
        %v882 = vunpack.c.l.b16 %v478
        %v883 = vunpack.c.l.b16 %v479
        %v884 = vunpack.c.l.b16 %v480
        %v885 = vunpack.c.l.b16 %v481
        %v886 = vunpack.c.l.b16 %v482
        %v887 = vunpack.c.l.b16 %v483
        %v888 = vunpack.c.l.b16 %v484
        %v889 = vunpack.c.l.b16 %v485
        %v890 = vunpack.c.l.b16 %v486
        %v891 = vunpack.c.l.b16 %v487
        %v892 = vunpack.c.l.b16 %v488
        %v893 = vunpack.c.l.b16 %v489
        %v894 = vunpack.c.l.b16 %v490
        %v895 = vunpack.c.l.b16 %v491
        %v896 = vunpack.c.l.b16 %v492
        %v897 = vunpack.c.l.b16 %v493
        %v898 = vunpack.c.l.b16 %v494
        %v899 = vunpack.c.l.b16 %v495
        %v900 = vunpack.c.l.b16 %v496
        %v901 = vunpack.c.l.b16 %v497
        %v902 = vunpack.c.l.b16 %v498
        %v903 = vunpack.c.l.b16 %v499
        %v904 = vunpack.c.l.b16 %v500
        %v905 = vunpack.c.l.b16 %v501
        %v906 = vpack.c.b16 %v779, %v778
        %v907 = vpack.c.b16 %v781, %v780
        %v908 = vpack.c.b16 %v783, %v782
        %v909 = vpack.c.b16 %v785, %v784
        %v910 = vpack.c.b16 %v787, %v786
        %v911 = vpack.c.b16 %v789, %v788
        %v912 = vpack.c.b16 %v791, %v790
        %v913 = vpack.c.b16 %v793, %v792
        %v914 = vpack.c.b16 %v795, %v794
        %v915 = vpack.c.b16 %v797, %v796
        %v916 = vpack.c.b16 %v799, %v798
        %v917 = vpack.c.b16 %v801, %v800
        %v918 = vpack.c.b16 %v803, %v802
        %v919 = vpack.c.b16 %v805, %v804
        %v920 = vpack.c.b16 %v807, %v806
        %v921 = vpack.c.b16 %v809, %v808
        %v922 = vpack.c.b16 %v811, %v810
        %v923 = vpack.c.b16 %v813, %v812
        %v924 = vpack.c.b16 %v815, %v814
        %v925 = vpack.c.b16 %v817, %v816
        %v926 = vpack.c.b16 %v819, %v818
        %v927 = vpack.c.b16 %v821, %v820
        %v928 = vpack.c.b16 %v823, %v822
        %v929 = vpack.c.b16 %v825, %v824
        %v930 = vpack.c.b16 %v827, %v826
        %v931 = vpack.c.b16 %v829, %v828
        %v932 = vpack.c.b16 %v831, %v830
        %v933 = vpack.c.b16 %v833, %v832
        %v934 = vpack.c.b16 %v835, %v834
        %v935 = vpack.c.b16 %v837, %v836
        %v936 = vpack.c.b16 %v839, %v838
        %v937 = vpack.c.b16 %v841, %v840
        %v938 = vpack.c.b16 %v843, %v842
        %v939 = vpack.c.b16 %v845, %v844
        %v940 = vpack.c.b16 %v847, %v846
        %v941 = vpack.c.b16 %v849, %v848
        %v942 = vpack.c.b16 %v851, %v850
        %v943 = vpack.c.b16 %v853, %v852
        %v944 = vpack.c.b16 %v855, %v854
        %v945 = vpack.c.b16 %v857, %v856
        %v946 = vpack.c.b16 %v859, %v858
        %v947 = vpack.c.b16 %v861, %v860
        %v948 = vpack.c.b16 %v863, %v862
        %v949 = vpack.c.b16 %v865, %v864
        %v950 = vpack.c.b16 %v867, %v866
        %v951 = vpack.c.b16 %v869, %v868
        %v952 = vpack.c.b16 %v871, %v870
        %v953 = vpack.c.b16 %v873, %v872
        %v954 = vpack.c.b16 %v875, %v874
        %v955 = vpack.c.b16 %v877, %v876
        %v956 = vpack.c.b16 %v879, %v878
        %v957 = vpack.c.b16 %v881, %v880
        %v958 = vpack.c.b16 %v883, %v882
        %v959 = vpack.c.b16 %v885, %v884
        %v960 = vpack.c.b16 %v887, %v886
        %v961 = vpack.c.b16 %v889, %v888
        %v962 = vpack.c.b16 %v891, %v890
        %v963 = vpack.c.b16 %v893, %v892
        %v964 = vpack.c.b16 %v895, %v894
        %v965 = vpack.c.b16 %v897, %v896
        %v966 = vpack.c.b16 %v899, %v898
        %v967 = vpack.c.b16 %v901, %v900
        %v968 = vpack.c.b16 %v903, %v902
        %v969 = vpack.c.b16 %v905, %v904
        %1034 = vmatprep.subr.bf16.mxu0 0
        %1035 = vmatpush1.bf16.msra.mxu0 %v906
        %1036 = vmatprep.subr.bf16.mxu0 0
        %1037 = vmatpush1.bf16.msra.mxu0 %v907
        %1038 = vmatprep.subr.bf16.mxu0 0
        %1039 = vmatpush1.bf16.msra.mxu0 %v908
        %1040 = vmatprep.subr.bf16.mxu0 0
        %1041 = vmatpush1.bf16.msra.mxu0 %v909
        %1042 = vmatprep.subr.bf16.mxu0 0
        %1043 = vmatpush1.bf16.msra.mxu0 %v910
        %1044 = vmatprep.subr.bf16.mxu0 0
        %1045 = vmatpush1.bf16.msra.mxu0 %v911
        %1046 = vmatprep.subr.bf16.mxu0 0
        %1047 = vmatpush1.bf16.msra.mxu0 %v912
        %1048 = vmatprep.subr.bf16.mxu0 0
        %1049 = vmatpush1.bf16.msra.mxu0 %v913
        %1050 = vmatprep.subr.bf16.mxu0 0
        %1051 = vmatpush1.bf16.msra.mxu0 %v914
        %1052 = vmatprep.subr.bf16.mxu0 0
        %1053 = vmatpush1.bf16.msra.mxu0 %v915
        %1054 = vmatprep.subr.bf16.mxu0 0
        %1055 = vmatpush1.bf16.msra.mxu0 %v916
        %1056 = vmatprep.subr.bf16.mxu0 0
        %1057 = vmatpush1.bf16.msra.mxu0 %v917
        %1058 = vmatprep.subr.bf16.mxu0 0
        %1059 = vmatpush1.bf16.msra.mxu0 %v918
        %1060 = vmatprep.subr.bf16.mxu0 0
        %1061 = vmatpush1.bf16.msra.mxu0 %v919
        %1062 = vmatprep.subr.bf16.mxu0 0
        %1063 = vmatpush1.bf16.msra.mxu0 %v920
        %1064 = vmatprep.subr.bf16.mxu0 0
        %1065 = vmatpush1.bf16.msra.mxu0 %v921
        %1066 = vmatprep.mubr.bf16.mxu0 %v587
        %1067 = vmatmul.mubr.bf16.gmra.mrb[0].mxu0 %v586
        %v1068 = vpop.f32.mrb[0].mxu0
        %v1069 = vadd.f32 0.0, %v1068
        %v1070 = vpop.f32.mrb[0].mxu0
        %v1071 = vpop.f32.mrb[0].mxu0
        %v1072 = vadd.f32 0.0, %v1071
        %v1073 = vpop.f32.mrb[0].mxu0
        %1074 = vmatprep.mubr.bf16.mxu0 %v595
        %1075 = vmatmul.mubr.bf16.gmra.mrb[0].mxu0 %v594
        %v1076 = vpop.f32.mrb[0].mxu0
        %v1077 = vadd.f32 0.0, %v1076
        %v1078 = vpop.f32.mrb[0].mxu0
        %v1079 = vpop.f32.mrb[0].mxu0
        %v1080 = vadd.f32 0.0, %v1079
        %v1081 = vpop.f32.mrb[0].mxu0
        %1082 = vmatprep.mubr.bf16.mxu0 %v603
        %1083 = vmatmul.mubr.bf16.gmra.mrb[0].mxu0 %v602
        %v1084 = vpop.f32.mrb[0].mxu0
        %v1085 = vadd.f32 0.0, %v1084
        %v1086 = vpop.f32.mrb[0].mxu0
        %v1087 = vpop.f32.mrb[0].mxu0
        %v1088 = vadd.f32 0.0, %v1087
        %v1089 = vpop.f32.mrb[0].mxu0
        %1090 = vmatprep.mubr.bf16.mxu0 %v611
        %1091 = vmatmul.mubr.bf16.gmra.mrb[0].mxu0 %v610
        %v1092 = vpop.f32.mrb[0].mxu0
        %v1093 = vadd.f32 0.0, %v1092
        %v1094 = vpop.f32.mrb[0].mxu0
        %v1095 = vpop.f32.mrb[0].mxu0
        %v1096 = vpop.f32.mrb[0].mxu0
        %1097 = vdwg.mxu0
        %1098 = vmatprep.subr.bf16.mxu0 0
        %1099 = vmatpush1.bf16.msra.mxu0 %v922
        %1100 = vmatprep.subr.bf16.mxu0 0
        %1101 = vmatpush1.bf16.msra.mxu0 %v923
        %1102 = vmatprep.subr.bf16.mxu0 0
        %1103 = vmatpush1.bf16.msra.mxu0 %v924
        %1104 = vmatprep.subr.bf16.mxu0 0
        %1105 = vmatpush1.bf16.msra.mxu0 %v925
        %1106 = vmatprep.subr.bf16.mxu0 0
        %1107 = vmatpush1.bf16.msra.mxu0 %v926
        %1108 = vmatprep.subr.bf16.mxu0 0
        %1109 = vmatpush1.bf16.msra.mxu0 %v927
        %1110 = vmatprep.subr.bf16.mxu0 0
        %1111 = vmatpush1.bf16.msra.mxu0 %v928
        %1112 = vmatprep.subr.bf16.mxu0 0
        %1113 = vmatpush1.bf16.msra.mxu0 %v929
        %1114 = vmatprep.subr.bf16.mxu0 0
        %1115 = vmatpush1.bf16.msra.mxu0 %v930
        %1116 = vmatprep.subr.bf16.mxu0 0
        %1117 = vmatpush1.bf16.msra.mxu0 %v931
        %1118 = vmatprep.subr.bf16.mxu0 0
        %1119 = vmatpush1.bf16.msra.mxu0 %v932
        %1120 = vmatprep.subr.bf16.mxu0 0
        %1121 = vmatpush1.bf16.msra.mxu0 %v933
        %1122 = vmatprep.subr.bf16.mxu0 0
        %1123 = vmatpush1.bf16.msra.mxu0 %v934
        %1124 = vmatprep.subr.bf16.mxu0 0
        %1125 = vmatpush1.bf16.msra.mxu0 %v935
        %1126 = vmatprep.subr.bf16.mxu0 0
        %1127 = vmatpush1.bf16.msra.mxu0 %v936
        %1128 = vmatprep.subr.bf16.mxu0 0
        %1129 = vmatpush1.bf16.msra.mxu0 %v937
        %1130 = vmatprep.mubr.bf16.mxu0 %v589
        %1131 = vmatmul.mubr.bf16.gmra.mrb[0].mxu0 %v588
        %v1132 = vpop.f32.mrb[0].mxu0
        %v1133 = vadd.f32 %v1069, %v1132
        %v1134 = vpop.f32.mrb[0].mxu0
        %v1135 = vpop.f32.mrb[0].mxu0
        %v1136 = vadd.f32 %v1072, %v1135
        %v1137 = vpop.f32.mrb[0].mxu0
        %1138 = vmatprep.mubr.bf16.mxu0 %v597
        %1139 = vmatmul.mubr.bf16.gmra.mrb[0].mxu0 %v596
        %v1140 = vpop.f32.mrb[0].mxu0
        %v1141 = vadd.f32 %v1077, %v1140
        %v1142 = vpop.f32.mrb[0].mxu0
        %v1143 = vpop.f32.mrb[0].mxu0
        %v1144 = vadd.f32 %v1080, %v1143
        %v1145 = vpop.f32.mrb[0].mxu0
        %1146 = vmatprep.mubr.bf16.mxu0 %v605
        %1147 = vmatmul.mubr.bf16.gmra.mrb[0].mxu0 %v604
        %v1148 = vpop.f32.mrb[0].mxu0
        %v1149 = vadd.f32 %v1085, %v1148
        %v1150 = vpop.f32.mrb[0].mxu0
        %v1151 = vpop.f32.mrb[0].mxu0
        %v1152 = vadd.f32 %v1088, %v1151
        %v1153 = vpop.f32.mrb[0].mxu0
        %1154 = vmatprep.mubr.bf16.mxu0 %v613
        %1155 = vmatmul.mubr.bf16.gmra.mrb[0].mxu0 %v612
        %v1156 = vpop.f32.mrb[0].mxu0
        %v1157 = vadd.f32 %v1093, %v1156
        %v1158 = vpop.f32.mrb[0].mxu0
        %v1159 = vpop.f32.mrb[0].mxu0
        %v1160 = vpop.f32.mrb[0].mxu0
        %1161 = vdwg.mxu0
        %1162 = vmatprep.subr.bf16.mxu0 0
        %1163 = vmatpush1.bf16.msra.mxu0 %v938
        %1164 = vmatprep.subr.bf16.mxu0 0
        %1165 = vmatpush1.bf16.msra.mxu0 %v939
        %1166 = vmatprep.subr.bf16.mxu0 0
        %1167 = vmatpush1.bf16.msra.mxu0 %v940
        %1168 = vmatprep.subr.bf16.mxu0 0
        %1169 = vmatpush1.bf16.msra.mxu0 %v941
        %1170 = vmatprep.subr.bf16.mxu0 0
        %1171 = vmatpush1.bf16.msra.mxu0 %v942
        %1172 = vmatprep.subr.bf16.mxu0 0
        %1173 = vmatpush1.bf16.msra.mxu0 %v943
        %1174 = vmatprep.subr.bf16.mxu0 0
        %1175 = vmatpush1.bf16.msra.mxu0 %v944
        %1176 = vmatprep.subr.bf16.mxu0 0
        %1177 = vmatpush1.bf16.msra.mxu0 %v945
        %1178 = vmatprep.subr.bf16.mxu0 0
        %1179 = vmatpush1.bf16.msra.mxu0 %v946
        %1180 = vmatprep.subr.bf16.mxu0 0
        %1181 = vmatpush1.bf16.msra.mxu0 %v947
        %1182 = vmatprep.subr.bf16.mxu0 0
        %1183 = vmatpush1.bf16.msra.mxu0 %v948
        %1184 = vmatprep.subr.bf16.mxu0 0
        %1185 = vmatpush1.bf16.msra.mxu0 %v949
        %1186 = vmatprep.subr.bf16.mxu0 0
        %1187 = vmatpush1.bf16.msra.mxu0 %v950
        %1188 = vmatprep.subr.bf16.mxu0 0
        %1189 = vmatpush1.bf16.msra.mxu0 %v951
        %1190 = vmatprep.subr.bf16.mxu0 0
        %1191 = vmatpush1.bf16.msra.mxu0 %v952
        %1192 = vmatprep.subr.bf16.mxu0 0
        %1193 = vmatpush1.bf16.msra.mxu0 %v953
        %1194 = vmatprep.mubr.bf16.mxu0 %v591
        %1195 = vmatmul.mubr.bf16.gmra.mrb[0].mxu0 %v590
        %v1196 = vpop.f32.mrb[0].mxu0
        %v1197 = vadd.f32 %v1133, %v1196
        %v1198 = vpop.f32.mrb[0].mxu0
        %v1199 = vpop.f32.mrb[0].mxu0
        %v1200 = vadd.f32 %v1136, %v1199
        %v1201 = vpop.f32.mrb[0].mxu0
        %1202 = vmatprep.mubr.bf16.mxu0 %v599
        %1203 = vmatmul.mubr.bf16.gmra.mrb[0].mxu0 %v598
        %v1204 = vpop.f32.mrb[0].mxu0
        %v1205 = vadd.f32 %v1141, %v1204
        %v1206 = vpop.f32.mrb[0].mxu0
        %v1207 = vpop.f32.mrb[0].mxu0
        %v1208 = vadd.f32 %v1144, %v1207
        %v1209 = vpop.f32.mrb[0].mxu0
        %1210 = vmatprep.mubr.bf16.mxu0 %v607
        %1211 = vmatmul.mubr.bf16.gmra.mrb[0].mxu0 %v606
        %v1212 = vpop.f32.mrb[0].mxu0
        %v1213 = vadd.f32 %v1149, %v1212
        %v1214 = vpop.f32.mrb[0].mxu0
        %v1215 = vpop.f32.mrb[0].mxu0
        %v1216 = vadd.f32 %v1152, %v1215
        %v1217 = vpop.f32.mrb[0].mxu0
        %1218 = vmatprep.mubr.bf16.mxu0 %v615
        %1219 = vmatmul.mubr.bf16.gmra.mrb[0].mxu0 %v614
        %v1220 = vpop.f32.mrb[0].mxu0
        %v1221 = vadd.f32 %v1157, %v1220
        %v1222 = vpop.f32.mrb[0].mxu0
        %v1223 = vpop.f32.mrb[0].mxu0
        %v1224 = vpop.f32.mrb[0].mxu0
        %1225 = vdwg.mxu0
        %1226 = vmatprep.subr.bf16.mxu0 0
        %1227 = vmatpush1.bf16.msra.mxu0 %v954
        %1228 = vmatprep.subr.bf16.mxu0 0
        %1229 = vmatpush1.bf16.msra.mxu0 %v955
        %1230 = vmatprep.subr.bf16.mxu0 0
        %1231 = vmatpush1.bf16.msra.mxu0 %v956
        %1232 = vmatprep.subr.bf16.mxu0 0
        %1233 = vmatpush1.bf16.msra.mxu0 %v957
        %1234 = vmatprep.subr.bf16.mxu0 0
        %1235 = vmatpush1.bf16.msra.mxu0 %v958
        %1236 = vmatprep.subr.bf16.mxu0 0
        %1237 = vmatpush1.bf16.msra.mxu0 %v959
        %1238 = vmatprep.subr.bf16.mxu0 0
        %1239 = vmatpush1.bf16.msra.mxu0 %v960
        %1240 = vmatprep.subr.bf16.mxu0 0
        %1241 = vmatpush1.bf16.msra.mxu0 %v961
        %1242 = vmatprep.subr.bf16.mxu0 0
        %1243 = vmatpush1.bf16.msra.mxu0 %v962
        %1244 = vmatprep.subr.bf16.mxu0 0
        %1245 = vmatpush1.bf16.msra.mxu0 %v963
        %1246 = vmatprep.subr.bf16.mxu0 0
        %1247 = vmatpush1.bf16.msra.mxu0 %v964
        %1248 = vmatprep.subr.bf16.mxu0 0
        %1249 = vmatpush1.bf16.msra.mxu0 %v965
        %1250 = vmatprep.subr.bf16.mxu0 0
        %1251 = vmatpush1.bf16.msra.mxu0 %v966
        %1252 = vmatprep.subr.bf16.mxu0 0
        %1253 = vmatpush1.bf16.msra.mxu0 %v967
        %1254 = vmatprep.subr.bf16.mxu0 0
        %1255 = vmatpush1.bf16.msra.mxu0 %v968
        %1256 = vmatprep.subr.bf16.mxu0 0
        %1257 = vmatpush1.bf16.msra.mxu0 %v969
        %1258 = vmatprep.mubr.bf16.mxu0 %v593
        %1259 = vmatmul.mubr.bf16.gmra.mrb[0].mxu0 %v592
        %v1260 = vpop.f32.mrb[0].mxu0
        %v1261 = vadd.f32 %v1197, %v1260
        %v1262 = vpop.f32.mrb[0].mxu0
        %v1263 = vpop.f32.mrb[0].mxu0
        %v1264 = vadd.f32 %v1200, %v1263
        %v1265 = vpop.f32.mrb[0].mxu0
        %1266 = vmatprep.mubr.bf16.mxu0 %v601
        %1267 = vmatmul.mubr.bf16.gmra.mrb[0].mxu0 %v600
        %v1268 = vpop.f32.mrb[0].mxu0
        %v1269 = vadd.f32 %v1205, %v1268
        %v1270 = vpop.f32.mrb[0].mxu0
        %v1271 = vpop.f32.mrb[0].mxu0
        %v1272 = vadd.f32 %v1208, %v1271
        %v1273 = vpop.f32.mrb[0].mxu0
        %1274 = vmatprep.mubr.bf16.mxu0 %v609
        %1275 = vmatmul.mubr.bf16.gmra.mrb[0].mxu0 %v608
        %v1276 = vpop.f32.mrb[0].mxu0
        %v1277 = vadd.f32 %v1213, %v1276
        %v1278 = vpop.f32.mrb[0].mxu0
        %v1279 = vpop.f32.mrb[0].mxu0
        %v1280 = vadd.f32 %v1216, %v1279
        %v1281 = vpop.f32.mrb[0].mxu0
        %1282 = vmatprep.mubr.bf16.mxu0 %v617
        %1283 = vmatmul.mubr.bf16.gmra.mrb[0].mxu0 %v616
        %v1284 = vpop.f32.mrb[0].mxu0
        %v1285 = vadd.f32 %v1221, %v1284
        %v1286 = vpop.f32.mrb[0].mxu0
        %v1287 = vpop.f32.mrb[0].mxu0
        %v1288 = vpop.f32.mrb[0].mxu0
        %1289 = vdwg.mxu0
        %v1290 = vadd.f32 %v339, %v1261
        %v1291 = vadd.f32 %v340, %v1264
        %v1292 = vadd.f32 %v341, %v1269
        %v1293 = vadd.f32 %v342, %v1272
        %v1294 = vadd.f32 %v343, %v1277
        %v1295 = vadd.f32 %v344, %v1280
        %v1296 = vadd.f32 %v345, %v1285
        %1297 = vst [vmem:[#allocation2] sm:$0xff] %v1290
        %1298 = vst [vmem:[#allocation2 + $0x8] sm:$0xff] %v1291
        %1299 = vst [vmem:[#allocation2 + $0x10] sm:$0xff] %v1292
        %1300 = vst [vmem:[#allocation2 + $0x18] sm:$0xff] %v1293
        %1301 = vst [vmem:[#allocation2 + $0x20] sm:$0xff] %v1294
        %1302 = vst [vmem:[#allocation2 + $0x28] sm:$0xff] %v1295
        %1303 = vst [vmem:[#allocation2 + $0x30] sm:$0x3f] %v1296
        %p1304 = scmp.eq.s32.totalorder %s21, 1
        // Predicated region
        $region60: #{forward_pallas.18} parent=50 // pred_check
          %p1305 = pneg %p1304
        $region61: #{forward_pallas.18} parent=50 // pred_check_branch
          %1307 = sbr.rel (%p1305) target = $region63
        $region62: #{forward_pallas.18} parent=50 // pred_region
          %v1308 = vld [vmem:[#allocation2] sm:$0xff]
          %v1309 = vld [vmem:[#allocation2 + $0x8] sm:$0xff]
          %v1310 = vld [vmem:[#allocation2 + $0x10] sm:$0xff]
          %v1311 = vld [vmem:[#allocation2 + $0x18] sm:$0xff]
          %v1312 = vld [vmem:[#allocation2 + $0x20] sm:$0xff]
          %v1313 = vld [vmem:[#allocation2 + $0x28] sm:$0xff]
          %v1314 = vld [vmem:[#allocation2 + $0x30] sm:$0x3f]
          %v1315 = vld [vmem:[%s317] sm:$0x1]
          %v1317 = vlaneseq
          %v1318 = vshrl.u32 %v1317, 7
          %v1319 = vsub.s32 0, %v1318
          %v1320 = vrot.slane %v1315, %v1319
          %v1322 = vadd.f32 %v1308, %v1320
          %v1323 = vadd.f32 %v1309, %v1320
          %v1324 = vadd.f32 %v1310, %v1320
          %v1325 = vadd.f32 %v1311, %v1320
          %v1326 = vadd.f32 %v1312, %v1320
          %v1327 = vadd.f32 %v1313, %v1320
          %v1328 = vadd.f32 %v1314, %v1320
          %v1329 = vpack.c.bf16 %v1323, %v1322
          %v1330 = vpack.c.bf16 %v1325, %v1324
          %v1331 = vpack.c.bf16 %v1327, %v1326
          %v1332 = vpack.c.bf16 %v1328, %v1328
          %v1337 = vunpack.c.l.b16 %v1329
          %v1338 = vunpack.c.h.b16 %v1329
          %v1339 = vunpack.c.l.b16 %v1330
          %v1340 = vunpack.c.h.b16 %v1330
          %v1341 = vunpack.c.l.b16 %v1331
          %v1342 = vunpack.c.h.b16 %v1331
          %v1343 = vunpack.c.l.b16 %v1332
          %v1344 = vpack.c.b16 %v1337, %v1337
          %v1345 = vpack.c.b16 %v1338, %v1338
          %v1346 = vpack.c.b16 %v1339, %v1339
          %v1347 = vpack.c.b16 %v1340, %v1340
          %v1348 = vpack.c.b16 %v1341, %v1341
          %v1349 = vpack.c.b16 %v1342, %v1342
          %v1350 = vpack.c.b16 %v1343, %v1343
          %1358 = vst [vmem:[%s325] sm:$0xf] %v1344
          %1359 = vst [vmem:[%s325 + $0x4] sm:$0xf] %v1345
          %1360 = vst [vmem:[%s325 + $0x8] sm:$0xf] %v1346
          %1361 = vst [vmem:[%s325 + $0xc] sm:$0xf] %v1347
          %1362 = vst [vmem:[%s325 + $0x10] sm:$0xf] %v1348
          %1363 = vst [vmem:[%s325 + $0x14] sm:$0xf] %v1349
          %1364 = vst [vmem:[%s325 + $0x18] sm:$0x7] %v1350
        $region63: #{forward_pallas.18} parent=50 // pred_fallthru
          _
        %s1365 = smul.u32 7, %s19
        %p1366 = scmp.lt.s32.totalorder %s1365, 6
        %s1367 = scalar_select %p1366, %s1365, 6
        %p1368 = scmp.lt.s32.totalorder %s20, 0
        %s1369 = scalar_select %p1368, %s20, 0
        %s1370 = sadd.s32 %s1369, %s1367
        %s1371 = smul.addr %s1370, 4
        %s1372 = scalar_lea.vmem %s3, %s1371
        // Predicated region
        $region64: #{forward_pallas.18} parent=50 // pred_check
          %p1373 = pneg %p135
        $region65: #{forward_pallas.18} parent=50 // pred_check_branch
          %1375 = sbr.rel (%p1373) target = $region67
        $region66: #{forward_pallas.18} parent=50 // pred_region
          %s1376 = smul.u32 7, %s19
        $region67: #{forward_pallas.18} parent=50 // pred_fallthru
          _
        // Predicated region
        $region68: #{forward_pallas.18} parent=50 // pred_check
          %p1377 = pneg %p135
        $region69: #{forward_pallas.18} parent=50 // pred_check_branch
          %1379 = sbr.rel (%p1377) target = $region71
        $region70: #{forward_pallas.18} parent=50 // pred_region
          %s1380 = smul.u32 7, %s19
          %p1381 = scmp.lt.s32.totalorder %s1380, 6
          %s1382 = scalar_select %p1381, %s1380, 6
          %p1383 = scmp.lt.s32.totalorder %s20, 0
          %s1384 = scalar_select %p1383, %s20, 0
          %s1385 = sadd.s32 %s1384, %s1382
          %s1386 = smul.addr %s1385, 4
          %s1387 = scalar_lea.vmem %s3, %s1386
        $region71: #{forward_pallas.18} parent=50 // pred_fallthru
          _
      $region51: #{forward_pallas.18} parent=5 // pred_fallthru
        _
      %p1388 = scmp.le.s32.totalorder 2, %s9
      // Predicated region
      $region72: #{forward_pallas.18} parent=5 // pred_check
        %p1389 = pneg %p1388
      $region73: #{forward_pallas.18} parent=5 // pred_check_branch
        %1391 = sbr.rel (%p1389) target = $region75
      $region74: #{forward_pallas.18} parent=5 // pred_region
        %s1392 = ssub.s32 %s9, 2
      $region75: #{forward_pallas.18} parent=5 // pred_fallthru
        _
    $region6: #{forward_pallas.18} parent=1 // loop_footer
      %s13 = sadd.s32 1, %s9
    $region7: #{forward_pallas.18} parent=1 // loop_footer_branch
      %8 = sbr.rel target = $region3
    $region8: #{forward_pallas.18} parent=1 // loop_exit
      _

// kernel: forward_pallas.19
$region0: #{forward_pallas.19}
  #allocation0 [shape = 'u32[]', space=smem, size = 0x4, offset = 0x4, fixed_abs, tag = 'smem constant byte address 0x4 - core index']
  #allocation1 [shape = 'u32[144,128]{1,0:T(1,128)}', space=vmem, size = 0x12000, scoped, tag = 'internal scratch']
  %s0 = inlined_call_operand.vmem [shape: bf16[54,128], index: 0, kind: input, shape index: {}]
  %s1 = inlined_call_operand.vmem [shape: f32[1,128], index: 1, kind: output, shape index: {0}]
  %s2 = inlined_call_operand.vmem [shape: f32[1,128], index: 2, kind: output, shape index: {1}]
  %3 = xla_tuple %s1, %s2
  %s4 = sld [smem:[#allocation0]]
  $region26: #{forward_pallas.19} parent=0
    _
  %s6 = ssub.s32 1, %s4
  %s7 = scalar_select 0, %s6, %s4
  // Predicated region
  $region2: #{forward_pallas.19} parent=0 // pred_check
    _
  $region3: #{forward_pallas.19} parent=0 // pred_check_branch
    %9 = sbr.rel (0) target = $region5
  $region4: #{forward_pallas.19} parent=0 // pred_region
    _
  $region5: #{forward_pallas.19} parent=0 // pred_fallthru
    _
  %p10 = scmp.eq.s32.totalorder 0, 0
  // Predicated region
  $region6: #{forward_pallas.19} parent=0 // pred_check
    %p11 = pneg %p10
  $region7: #{forward_pallas.19} parent=0 // pred_check_branch
    %13 = sbr.rel (%p11) target = $region9
  $region8: #{forward_pallas.19} parent=0 // pred_region
    %14 = vst [vmem:[%s1] sm:$0x1] 0.0
    %15 = vst [vmem:[%s2] sm:$0x1] 0.0
  $region9: #{forward_pallas.19} parent=0 // pred_fallthru
    _
  %v16 = vld [vmem:[%s0] sm:$0xf]
  %v17 = vld [vmem:[%s0 + $0x4] sm:$0xf]
  %v18 = vld [vmem:[%s0 + $0x8] sm:$0xf]
  %v19 = vld [vmem:[%s0 + $0xc] sm:$0xf]
  %v20 = vld [vmem:[%s0 + $0x10] sm:$0xf]
  %v21 = vld [vmem:[%s0 + $0x14] sm:$0xf]
  %v22 = vld [vmem:[%s0 + $0x18] sm:$0x7]
  %v23 = vunpack.c.l.bf16 %v16
  %v24 = vunpack.c.l.bf16 %v17
  %v25 = vunpack.c.l.bf16 %v18
  %v26 = vunpack.c.l.bf16 %v19
  %v27 = vunpack.c.l.bf16 %v20
  %v28 = vunpack.c.l.bf16 %v21
  %v29 = vunpack.c.l.bf16 %v22
  %v30 = vlaneseq
  %v31 = vshrl.u32 %v30, 7
  %v32 = vadd.s32 %v31, 8
  %v33 = vadd.s32 %v31, 16
  %v34 = vadd.s32 %v31, 24
  %v35 = vadd.s32 %v31, 32
  %v36 = vadd.s32 %v31, 40
  %v37 = vadd.s32 %v31, 48
  %s38 = smul.u32 0, 54
  %s39 = ssub.s32 54, %s38
  %v40 = vstv %s39
  %vm41 = vcmp.lt.s32.totalorder %v31, %v40
  %vm42 = vcmp.lt.s32.totalorder %v32, %v40
  %vm43 = vcmp.lt.s32.totalorder %v33, %v40
  %vm44 = vcmp.lt.s32.totalorder %v34, %v40
  %vm45 = vcmp.lt.s32.totalorder %v35, %v40
  %vm46 = vcmp.lt.s32.totalorder %v36, %v40
  %vm47 = vcmp.lt.s32.totalorder %v37, %v40
  %v48 = vsel %vm41, %v23, 0.0
  %v49 = vsel %vm42, %v24, 0.0
  %v50 = vsel %vm43, %v25, 0.0
  %v51 = vsel %vm44, %v26, 0.0
  %v52 = vsel %vm45, %v27, 0.0
  %v53 = vsel %vm46, %v28, 0.0
  %v54 = vsel %vm47, %v29, 0.0
  %v55 = vld [vmem:[%s1] sm:$0x1]
  %v56 = vadd.f32 %v48, %v49
  %v57 = vadd.f32 %v56, %v50
  %v58 = vadd.f32 %v57, %v51
  %v59 = vadd.f32 %v58, %v52
  %v60 = vadd.f32 %v59, %v53
  %vm61 = vcmask 1045504
  %v62 = vsel %vm61, %v54, 0.0
  %v63 = vadd.f32 %v60, %v62
  %v64 = vrot.slane %v63, 4
  %v65 = vadd.f32 %v63, %v64
  %v66 = vrot.slane %v65, 2
  %v67 = vadd.f32 %v65, %v66
  %v68 = vrot.slane %v67, 1
  %v69 = vadd.f32 %v67, %v68
  %v70 = vadd.f32 %v55, %v69
  %71 = vst [vmem:[%s1] sm:$0x1] %v70
  %v72 = vld [vmem:[%s2] sm:$0x1]
  %v73 = vmul.f32 %v48, %v48
  %v74 = vmul.f32 %v49, %v49
  %v75 = vmul.f32 %v50, %v50
  %v76 = vmul.f32 %v51, %v51
  %v77 = vmul.f32 %v52, %v52
  %v78 = vmul.f32 %v53, %v53
  %v79 = vmul.f32 %v54, %v54
  %v80 = vadd.f32 %v73, %v74
  %v81 = vadd.f32 %v80, %v75
  %v82 = vadd.f32 %v81, %v76
  %v83 = vadd.f32 %v82, %v77
  %v84 = vadd.f32 %v83, %v78
  %v85 = vsel %vm61, %v79, 0.0
  %v86 = vadd.f32 %v84, %v85
  %v87 = vrot.slane %v86, 4
  %v88 = vadd.f32 %v86, %v87
  %v89 = vrot.slane %v88, 2
  %v90 = vadd.f32 %v88, %v89
  %v91 = vrot.slane %v90, 1
  %v92 = vadd.f32 %v90, %v91
  %v93 = vadd.f32 %v72, %v92
  %94 = vst [vmem:[%s2] sm:$0x1] %v93
  // Predicated region
  $region10: #{forward_pallas.19} parent=0 // pred_check
    _
  $region11: #{forward_pallas.19} parent=0 // pred_check_branch
    %96 = sbr.rel (0) target = $region13
  $region12: #{forward_pallas.19} parent=0 // pred_region
    _
  $region13: #{forward_pallas.19} parent=0 // pred_fallthru
    _
  // Predicated region
  $region14: #{forward_pallas.19} parent=0 // pred_check
    _
  $region15: #{forward_pallas.19} parent=0 // pred_check_branch
    %98 = sbr.rel (0) target = $region17
  $region16: #{forward_pallas.19} parent=0 // pred_region
    _
  $region17: #{forward_pallas.19} parent=0 // pred_fallthru
    _
  // Predicated region
  $region18: #{forward_pallas.19} parent=0 // pred_check
    _
  $region19: #{forward_pallas.19} parent=0 // pred_check_branch
    %100 = sbr.rel (0) target = $region21
  $region20: #{forward_pallas.19} parent=0 // pred_region
    _
  $region21: #{forward_pallas.19} parent=0 // pred_fallthru
    _
  // Predicated region
  $region22: #{forward_pallas.19} parent=0 // pred_check
    _
  $region23: #{forward_pallas.19} parent=0 // pred_check_branch
    %102 = sbr.rel (0) target = $region25
  $region24: #{forward_pallas.19} parent=0 // pred_region
    _
  $region25: #{forward_pallas.19} parent=0 // pred_fallthru
    _

// kernel: forward_pallas.20
$region0: #{forward_pallas.20}
  #allocation0 [shape = 'u32[]', space=smem, size = 0x4, offset = 0x4, fixed_abs, tag = 'smem constant byte address 0x4 - core index']
  #allocation1 [shape = 'u32[144,128]{1,0:T(1,128)}', space=vmem, size = 0x12000, scoped, tag = 'internal scratch']
  %s0 = inlined_call_operand.vmem [shape: bf16[54,128], index: 0, kind: input, shape index: {}]
  %s1 = inlined_call_operand.vmem [shape: f32[1,128], index: 1, kind: input, shape index: {}]
  %s2 = inlined_call_operand.vmem [shape: f32[1,128], index: 2, kind: input, shape index: {}]
  %s3 = inlined_call_operand.vmem [shape: bf16[54,128], index: 3, kind: output, shape index: {}]
  %s4 = sld [smem:[#allocation0]]
  $region22: #{forward_pallas.20} parent=0
    _
  %s6 = ssub.s32 1, %s4
  %s7 = scalar_select 0, %s6, %s4
  // Predicated region
  $region2: #{forward_pallas.20} parent=0 // pred_check
    _
  $region3: #{forward_pallas.20} parent=0 // pred_check_branch
    %9 = sbr.rel (0) target = $region5
  $region4: #{forward_pallas.20} parent=0 // pred_region
    _
  $region5: #{forward_pallas.20} parent=0 // pred_fallthru
    _
  // Predicated region
  $region6: #{forward_pallas.20} parent=0 // pred_check
    _
  $region7: #{forward_pallas.20} parent=0 // pred_check_branch
    %11 = sbr.rel (0) target = $region9
  $region8: #{forward_pallas.20} parent=0 // pred_region
    _
  $region9: #{forward_pallas.20} parent=0 // pred_fallthru
    _
  // Predicated region
  $region10: #{forward_pallas.20} parent=0 // pred_check
    _
  $region11: #{forward_pallas.20} parent=0 // pred_check_branch
    %13 = sbr.rel (0) target = $region13
  $region12: #{forward_pallas.20} parent=0 // pred_region
    _
  $region13: #{forward_pallas.20} parent=0 // pred_fallthru
    _
  %v14 = vld [vmem:[%s0] sm:$0xf]
  %v15 = vld [vmem:[%s0 + $0x4] sm:$0xf]
  %v16 = vld [vmem:[%s0 + $0x8] sm:$0xf]
  %v17 = vld [vmem:[%s0 + $0xc] sm:$0xf]
  %v18 = vld [vmem:[%s0 + $0x10] sm:$0xf]
  %v19 = vld [vmem:[%s0 + $0x14] sm:$0xf]
  %v20 = vld [vmem:[%s0 + $0x18] sm:$0x7]
  %v21 = vunpack.c.l.bf16 %v14
  %v22 = vunpack.c.l.bf16 %v15
  %v23 = vunpack.c.l.bf16 %v16
  %v24 = vunpack.c.l.bf16 %v17
  %v25 = vunpack.c.l.bf16 %v18
  %v26 = vunpack.c.l.bf16 %v19
  %v27 = vunpack.c.l.bf16 %v20
  %v28 = vld [vmem:[%s1] sm:$0x1]
  %v30 = vlaneseq
  %v31 = vshrl.u32 %v30, 7
  %v32 = vsub.s32 0, %v31
  %v33 = vrot.slane %v28, %v32
  %v35 = vmul.f32 %v21, %v33
  %v36 = vmul.f32 %v22, %v33
  %v37 = vmul.f32 %v23, %v33
  %v38 = vmul.f32 %v24, %v33
  %v39 = vmul.f32 %v25, %v33
  %v40 = vmul.f32 %v26, %v33
  %v41 = vmul.f32 %v27, %v33
  %v42 = vld [vmem:[%s2] sm:$0x1]
  %v44 = vlaneseq
  %v45 = vshrl.u32 %v44, 7
  %v46 = vsub.s32 0, %v45
  %v47 = vrot.slane %v42, %v46
  %v49 = vadd.f32 %v35, %v47
  %v50 = vadd.f32 %v36, %v47
  %v51 = vadd.f32 %v37, %v47
  %v52 = vadd.f32 %v38, %v47
  %v53 = vadd.f32 %v39, %v47
  %v54 = vadd.f32 %v40, %v47
  %v55 = vadd.f32 %v41, %v47
  %vm56 = vcmp.ge.f32.partialorder %v49, 0.0
  %vm57 = vcmp.ge.f32.partialorder %v50, 0.0
  %vm58 = vcmp.ge.f32.partialorder %v51, 0.0
  %vm59 = vcmp.ge.f32.partialorder %v52, 0.0
  %vm60 = vcmp.ge.f32.partialorder %v53, 0.0
  %vm61 = vcmp.ge.f32.partialorder %v54, 0.0
  %vm62 = vcmp.ge.f32.partialorder %v55, 0.0
  %v63 = vmul.f32 %v49, 0.2
  %v64 = vmul.f32 %v50, 0.2
  %v65 = vmul.f32 %v51, 0.2
  %v66 = vmul.f32 %v52, 0.2
  %v67 = vmul.f32 %v53, 0.2
  %v68 = vmul.f32 %v54, 0.2
  %v69 = vmul.f32 %v55, 0.2
  %v70 = vsel %vm56, %v49, %v63
  %v71 = vsel %vm57, %v50, %v64
  %v72 = vsel %vm58, %v51, %v65
  %v73 = vsel %vm59, %v52, %v66
  %v74 = vsel %vm60, %v53, %v67
  %v75 = vsel %vm61, %v54, %v68
  %v76 = vsel %vm62, %v55, %v69
  %v77 = vpack.c.bf16 %v71, %v70
  %v78 = vpack.c.bf16 %v73, %v72
  %v79 = vpack.c.bf16 %v75, %v74
  %v80 = vpack.c.bf16 %v76, %v76
  %v85 = vunpack.c.l.b16 %v77
  %v86 = vunpack.c.h.b16 %v77
  %v87 = vunpack.c.l.b16 %v78
  %v88 = vunpack.c.h.b16 %v78
  %v89 = vunpack.c.l.b16 %v79
  %v90 = vunpack.c.h.b16 %v79
  %v91 = vunpack.c.l.b16 %v80
  %v92 = vpack.c.b16 %v85, %v85
  %v93 = vpack.c.b16 %v86, %v86
  %v94 = vpack.c.b16 %v87, %v87
  %v95 = vpack.c.b16 %v88, %v88
  %v96 = vpack.c.b16 %v89, %v89
  %v97 = vpack.c.b16 %v90, %v90
  %v98 = vpack.c.b16 %v91, %v91
  %106 = vst [vmem:[%s3] sm:$0xf] %v92
  %107 = vst [vmem:[%s3 + $0x4] sm:$0xf] %v93
  %108 = vst [vmem:[%s3 + $0x8] sm:$0xf] %v94
  %109 = vst [vmem:[%s3 + $0xc] sm:$0xf] %v95
  %110 = vst [vmem:[%s3 + $0x10] sm:$0xf] %v96
  %111 = vst [vmem:[%s3 + $0x14] sm:$0xf] %v97
  %112 = vst [vmem:[%s3 + $0x18] sm:$0x7] %v98
  // Predicated region
  $region14: #{forward_pallas.20} parent=0 // pred_check
    _
  $region15: #{forward_pallas.20} parent=0 // pred_check_branch
    %114 = sbr.rel (0) target = $region17
  $region16: #{forward_pallas.20} parent=0 // pred_region
    _
  $region17: #{forward_pallas.20} parent=0 // pred_fallthru
    _
  // Predicated region
  $region18: #{forward_pallas.20} parent=0 // pred_check
    _
  $region19: #{forward_pallas.20} parent=0 // pred_check_branch
    %116 = sbr.rel (0) target = $region21
  $region20: #{forward_pallas.20} parent=0 // pred_region
    _
  $region21: #{forward_pallas.20} parent=0 // pred_fallthru
    _

// kernel: forward_pallas.21
$region0: #{forward_pallas.21}
  #allocation0 [shape = 'u32[]', space=smem, size = 0x4, offset = 0x4, fixed_abs, tag = 'smem constant byte address 0x4 - core index']
  #allocation1 [shape = 'u32[144,128]{1,0:T(1,128)}', space=vmem, size = 0x12000, scoped, tag = 'internal scratch']
  #allocation2 [shape = 'f32[16,128]{1,0:T(8,128)}', space=vmem, size = 0x2000, scoped, tag = 'scratch operand']
  %s0 = inlined_call_operand.vmem [shape: bf16[16,4096], index: 0, kind: input, shape index: {}]
  %s1 = inlined_call_operand.vmem [shape: bf16[4096,128], index: 1, kind: input, shape index: {}]
  %s2 = inlined_call_operand.vmem [shape: f32[1,128], index: 2, kind: input, shape index: {}]
  %s3 = inlined_call_operand.vmem [shape: f32[16,128], index: 3, kind: output, shape index: {}]
  %s4 = sld [smem:[#allocation0]]
  $region76: #{forward_pallas.21} parent=0
    _
  %s6 = ssub.s32 1, %s4
  %s7 = scalar_select 0, %s6, %s4
  $region1: #{forward_pallas.21} parent=0
    #allocation3 [shape = 'u8[65536]{0}', space=vmem, size = 0x10000, scoped, tag = 'input window, operand 0']
    loop: start=0, step=1, limit=6
    $region2: #{forward_pallas.21} parent=1 // loop_pre_header
      _
    $region3: #{forward_pallas.21} parent=1 // loop_header
      %s9 = sphi 0, %s13
      %p10 = scmp.ge.s32.totalorder %s9, 6
      %s16 = sphi 0, %s35
      %s17 = sphi 0, %s31
      %s18 = sphi 0, %s27
      %s19 = sphi 0, %s16
      %s20 = sphi 0, %s17
      %s21 = sphi 0, %s18
      %s22 = sphi 0, %s19
      %s23 = sphi 0, %s20
      %s24 = sphi 0, %s21
      %s40 = sphi 0, %s42
      %s43 = sphi 0, %s40
      %s44 = sphi 0, %s43
      %s60 = sphi 0, %s44
      %s68 = sphi 0, %s70
      %s71 = sphi 0, %s68
      %s72 = sphi 0, %s71
      %s88 = sphi 0, %s72
      %s94 = sphi 0, %s96
      %s97 = sphi 0, %s94
      %s98 = sphi 0, %s97
      %s114 = sphi 0, %s98
      %s122 = sphi 0, %s124
      %s125 = sphi 0, %s122
      %s126 = sphi 0, %s125
      %s142 = sphi 0, %s126
    $region4: #{forward_pallas.21} parent=1 // loop_header_branch
      %12 = sbr.rel (%p10) target = $region8
    $region5: #{forward_pallas.21} parent=1 // loop_body
      %s14 = ssub.s32 %s9, 1
      %s15 = ssub.s32 %s9, 2
      %s25 = sadd.s32 1, %s18
      %p26 = scmp.ge.s32.totalorder %s25, 4
      %s27 = scalar_select %p26, 0, %s25
      %s28 = sadd.s32 1, %s17
      %s29 = scalar_select %p26, %s28, %s17
      %p30 = scmp.ge.s32.totalorder %s29, 1
      %s31 = scalar_select %p30, 0, %s29
      %s32 = sadd.s32 1, %s16
      %s33 = scalar_select %p30, %s32, %s16
      %p34 = scmp.ge.s32.totalorder %s33, 1
      %s35 = scalar_select %p34, 0, %s33
      %s36 = ssub.s32 %s16, %s35
      %s37 = ssub.s32 %s18, %s27
      %s38 = sor.u32 %s36, %s37
      %p39 = scmp.eq.s32.totalorder %s38, 0
      %s41 = sadd.s32 %s40, 1
      %s42 = scalar_select %p39, %s40, %s41
      %p45 = pneg %p39
      %p46 = scmp.eq.s32.totalorder %s9, 3
      %p47 = por %p45, %p46
      %p48 = scmp.ne.s32.totalorder %s40, %s43
      %p49 = scmp.eq.s32.totalorder %s9, 0
      %p50 = por %p48, %p49
      %p51 = scmp.ne.s32.totalorder %s40, %s43
      %p52 = scmp.eq.s32.totalorder %s14, 3
      %p53 = por %p51, %p52
      %p54 = scmp.ne.s32.totalorder %s43, %s44
      %p55 = scmp.eq.s32.totalorder %s14, 0
      %p56 = por %p54, %p55
      %p57 = scmp.ne.s32.totalorder %s43, %s44
      %p58 = scmp.eq.s32.totalorder %s15, 3
      %p59 = por %p57, %p58
      %p61 = scmp.ne.s32.totalorder %s44, %s60
      %p62 = scmp.eq.s32.totalorder %s15, 0
      %p63 = por %p61, %p62
      %s64 = ssub.s32 %s18, %s27
      %s65 = ssub.s32 %s17, %s31
      %s66 = sor.u32 %s64, %s65
      %p67 = scmp.eq.s32.totalorder %s66, 0
      %s69 = sadd.s32 %s68, 1
      %s70 = scalar_select %p67, %s68, %s69
      %p73 = pneg %p67
      %p74 = scmp.eq.s32.totalorder %s9, 3
      %p75 = por %p73, %p74
      %p76 = scmp.ne.s32.totalorder %s68, %s71
      %p77 = scmp.eq.s32.totalorder %s9, 0
      %p78 = por %p76, %p77
      %p79 = scmp.ne.s32.totalorder %s68, %s71
      %p80 = scmp.eq.s32.totalorder %s14, 3
      %p81 = por %p79, %p80
      %p82 = scmp.ne.s32.totalorder %s71, %s72
      %p83 = scmp.eq.s32.totalorder %s14, 0
      %p84 = por %p82, %p83
      %p85 = scmp.ne.s32.totalorder %s71, %s72
      %p86 = scmp.eq.s32.totalorder %s15, 3
      %p87 = por %p85, %p86
      %p89 = scmp.ne.s32.totalorder %s72, %s88
      %p90 = scmp.eq.s32.totalorder %s15, 0
      %p91 = por %p89, %p90
      %s92 = ssub.s32 %s17, %s31
      %p93 = scmp.eq.s32.totalorder %s92, 0
      %s95 = sadd.s32 %s94, 1
      %s96 = scalar_select %p93, %s94, %s95
      %p99 = pneg %p93
      %p100 = scmp.eq.s32.totalorder %s9, 3
      %p101 = por %p99, %p100
      %p102 = scmp.ne.s32.totalorder %s94, %s97
      %p103 = scmp.eq.s32.totalorder %s9, 0
      %p104 = por %p102, %p103
      %p105 = scmp.ne.s32.totalorder %s94, %s97
      %p106 = scmp.eq.s32.totalorder %s14, 3
      %p107 = por %p105, %p106
      %p108 = scmp.ne.s32.totalorder %s97, %s98
      %p109 = scmp.eq.s32.totalorder %s14, 0
      %p110 = por %p108, %p109
      %p111 = scmp.ne.s32.totalorder %s97, %s98
      %p112 = scmp.eq.s32.totalorder %s15, 3
      %p113 = por %p111, %p112
      %p115 = scmp.ne.s32.totalorder %s98, %s114
      %p116 = scmp.eq.s32.totalorder %s15, 0
      %p117 = por %p115, %p116
      %s118 = ssub.s32 %s16, %s35
      %s119 = ssub.s32 %s17, %s31
      %s120 = sor.u32 %s118, %s119
      %p121 = scmp.eq.s32.totalorder %s120, 0
      %s123 = sadd.s32 %s122, 1
      %s124 = scalar_select %p121, %s122, %s123
      %p127 = pneg %p121
      %p128 = scmp.eq.s32.totalorder %s9, 3
      %p129 = por %p127, %p128
      %p130 = scmp.ne.s32.totalorder %s122, %s125
      %p131 = scmp.eq.s32.totalorder %s9, 0
      %p132 = por %p130, %p131
      %p133 = scmp.ne.s32.totalorder %s122, %s125
      %p134 = scmp.eq.s32.totalorder %s14, 3
      %p135 = por %p133, %p134
      %p136 = scmp.ne.s32.totalorder %s125, %s126
      %p137 = scmp.eq.s32.totalorder %s14, 0
      %p138 = por %p136, %p137
      %p139 = scmp.ne.s32.totalorder %s125, %s126
      %p140 = scmp.eq.s32.totalorder %s15, 3
      %p141 = por %p139, %p140
      %p143 = scmp.ne.s32.totalorder %s126, %s142
      %p144 = scmp.eq.s32.totalorder %s15, 0
      %p145 = por %p143, %p144
      %p146 = scmp.le.s32.totalorder 1, %s9
      %p147 = scmp.lt.s32.totalorder %s9, 5
      %p148 = pnand %p146, %p147
      %p149 = pneg %p148
      // Predicated region
      $region9: #{forward_pallas.21} parent=5 // pred_check
        _
      $region10: #{forward_pallas.21} parent=5 // pred_check_branch
        %151 = sbr.rel (%p148) target = $region12
      $region11: #{forward_pallas.21} parent=5 // pred_region
        %s152 = ssub.s32 %s9, 1
        // Predicated region
        $region13: #{forward_pallas.21} parent=11 // pred_check
          %p153 = pneg %p110
        $region14: #{forward_pallas.21} parent=11 // pred_check_branch
          %155 = sbr.rel (%p153) target = $region16
        $region15: #{forward_pallas.21} parent=11 // pred_region
          %p156 = scmp.lt.s32.totalorder %s20, 0
          %s157 = scalar_select %p156, %s20, 0
          %s158 = scalar_lea.vmem %s2, %s157
        $region16: #{forward_pallas.21} parent=11 // pred_fallthru
          _
      $region12: #{forward_pallas.21} parent=5 // pred_fallthru
        _
      %p159 = scmp.lt.s32.totalorder %s9, 4
      // Predicated region
      $region17: #{forward_pallas.21} parent=5 // pred_check
        %p160 = pneg %p159
      $region18: #{forward_pallas.21} parent=5 // pred_check_branch
        %162 = sbr.rel (%p160) target = $region20
      $region19: #{forward_pallas.21} parent=5 // pred_region
        // Predicated region
        $region21: #{forward_pallas.21} parent=19 // pred_check
          %p163 = pneg %p50
        $region22: #{forward_pallas.21} parent=19 // pred_check_branch
          %165 = sbr.rel (%p163) target = $region24
        $region23: #{forward_pallas.21} parent=19 // pred_region
          %s166 = sand.u32 %s40, 1
          %s167 = sand.u32 %s40, 1
          %s168 = smul.addr %s167, 64
          %s169 = scalar_lea.vmem [#allocation3], %s168
          %s170 = smul.u32 2, %s16
          %s171 = smul.u32 8, %s18
          %s172 = smul.addr %s170, 32
          %s173 = sadd.s32 %s171, %s172
          %s174 = smul.addr %s173, 4
          %s175 = scalar_lea.vmem %s0, %s174
          // Predicated region
          $region25: #{forward_pallas.21} parent=23 // pred_check
            _
          $region26: #{forward_pallas.21} parent=23 // pred_check_branch
            %177 = sbr.rel (0) target = $region28
          $region27: #{forward_pallas.21} parent=23 // pred_region
            // Predicated region
            $region29: #{forward_pallas.21} parent=27 // pred_check
              _
            $region30: #{forward_pallas.21} parent=27 // pred_check_branch
              %179 = sbr.rel (0) target = $region32
            $region31: #{forward_pallas.21} parent=27 // pred_region
              loop: start=0, step=1, limit=1
              $region33: #{forward_pallas.21} parent=31 // loop_pre_header
                _
              $region34: #{forward_pallas.21} parent=31 // loop_header
                %s181 = sphi 0, %s185
                %p182 = scmp.ge.s32.totalorder %s181, 1
                %s186 = sphi %s175, %s175
                %s187 = sphi %s169, %s169
              $region35: #{forward_pallas.21} parent=31 // loop_header_branch
                %184 = sbr.rel (%p182) target = $region39
              $region36: #{forward_pallas.21} parent=31 // loop_body
                %v188 = vld [vmem:[%s186] sm:$0xff]
                %189 = vst [vmem:[%s187] sm:$0xff] %v188
                %v190 = vld [vmem:[%s186 + $0x8] sm:$0xff]
                %191 = vst [vmem:[%s187 + $0x8] sm:$0xff] %v190
                %v192 = vld [vmem:[%s186 + $0x10] sm:$0xff]
                %193 = vst [vmem:[%s187 + $0x10] sm:$0xff] %v192
                %v194 = vld [vmem:[%s186 + $0x18] sm:$0xff]
                %195 = vst [vmem:[%s187 + $0x18] sm:$0xff] %v194
                %v196 = vld [vmem:[%s186 + $0x80] sm:$0xff]
                %197 = vst [vmem:[%s187 + $0x20] sm:$0xff] %v196
                %v198 = vld [vmem:[%s186 + $0x88] sm:$0xff]
                %199 = vst [vmem:[%s187 + $0x28] sm:$0xff] %v198
                %v200 = vld [vmem:[%s186 + $0x90] sm:$0xff]
                %201 = vst [vmem:[%s187 + $0x30] sm:$0xff] %v200
                %v202 = vld [vmem:[%s186 + $0x98] sm:$0xff]
                %203 = vst [vmem:[%s187 + $0x38] sm:$0xff] %v202
              $region37: #{forward_pallas.21} parent=31 // loop_footer
                %s185 = sadd.s32 1, %s181
              $region38: #{forward_pallas.21} parent=31 // loop_footer_branch
                %180 = sbr.rel target = $region34
              $region39: #{forward_pallas.21} parent=31 // loop_exit
                _
            $region32: #{forward_pallas.21} parent=27 // pred_fallthru
              _
            // Predicated region
            $region40: #{forward_pallas.21} parent=27 // pred_check
              _
            $region41: #{forward_pallas.21} parent=27 // pred_check_branch
              %205 = sbr.rel target = $region43
            $region42: #{forward_pallas.21} parent=27 // pred_region
              _
            $region43: #{forward_pallas.21} parent=27 // pred_fallthru
              _
          $region28: #{forward_pallas.21} parent=23 // pred_fallthru
            _
          %206 = vnop
        $region24: #{forward_pallas.21} parent=19 // pred_fallthru
          _
        // Predicated region
        $region44: #{forward_pallas.21} parent=19 // pred_check
          %p207 = pneg %p78
        $region45: #{forward_pallas.21} parent=19 // pred_check_branch
          %209 = sbr.rel (%p207) target = $region47
        $region46: #{forward_pallas.21} parent=19 // pred_region
          %s210 = smul.u32 128, %s18
          %p211 = scmp.lt.s32.totalorder %s210, 511
          %s212 = scalar_select %p211, %s210, 511
          %p213 = scmp.lt.s32.totalorder %s17, 0
          %s214 = scalar_select %p213, %s17, 0
          %s215 = sadd.s32 %s214, %s212
          %s216 = smul.addr %s215, 4
          %s217 = scalar_lea.vmem %s1, %s216
          %s218 = smul.u32 128, %s18
        $region47: #{forward_pallas.21} parent=19 // pred_fallthru
          _
      $region20: #{forward_pallas.21} parent=5 // pred_fallthru
        _
      %p219 = scmp.le.s32.totalorder 1, %s9
      %p220 = scmp.lt.s32.totalorder %s9, 5
      %p221 = pnand %p219, %p220
      %p222 = pneg %p221
      // Predicated region
      $region48: #{forward_pallas.21} parent=5 // pred_check
        _
      $region49: #{forward_pallas.21} parent=5 // pred_check_branch
        %224 = sbr.rel (%p221) target = $region51
      $region50: #{forward_pallas.21} parent=5 // pred_region
        %s225 = ssub.s32 %s9, 1
        %s226 = sand.u32 %s43, 1
        %s227 = sand.u32 %s43, 1
        %s228 = smul.addr %s227, 64
        %s229 = scalar_lea.vmem [#allocation3], %s228
        // Predicated region
        $region52: #{forward_pallas.21} parent=50 // pred_check
          %p230 = pneg %p56
        $region53: #{forward_pallas.21} parent=50 // pred_check_branch
          %232 = sbr.rel (%p230) target = $region55
        $region54: #{forward_pallas.21} parent=50 // pred_region
          _
        $region55: #{forward_pallas.21} parent=50 // pred_fallthru
          _
        %s233 = sand.u32 %s43, 1
        %s234 = sand.u32 %s43, 1
        %s235 = smul.addr %s234, 64
        %s236 = scalar_lea.vmem [#allocation3], %s235
        %p237 = pneg %p56
        %p238 = pneg %p53
        %s239 = smul.u32 128, %s21
        %p240 = scmp.lt.s32.totalorder %s239, 511
        %s241 = scalar_select %p240, %s239, 511
        %p242 = scmp.lt.s32.totalorder %s20, 0
        %s243 = scalar_select %p242, %s20, 0
        %s244 = sadd.s32 %s243, %s241
        %s245 = smul.addr %s244, 4
        %s246 = scalar_lea.vmem %s1, %s245
        %p247 = pneg %p84
        %p248 = pneg %p81
        %p249 = scmp.lt.s32.totalorder %s20, 0
        %s250 = scalar_select %p249, %s20, 0
        %s251 = scalar_lea.vmem %s2, %s250
        %p252 = pneg %p110
        %p253 = pneg %p107
        %p254 = pneg %p138
        %p255 = pneg %p135
        %s256 = smul.u32 2, %s19
        %p257 = scmp.lt.s32.totalorder %s256, 1
        %s258 = scalar_select %p257, %s256, 1
        %p259 = scmp.lt.s32.totalorder %s20, 0
        %s260 = scalar_select %p259, %s20, 0
        %s261 = sadd.s32 %s260, %s258
        %s262 = smul.addr %s261, 8
        %s263 = scalar_lea.vmem %s3, %s262
        %s264 = smul.u32 2, %s19
        %s265 = smul.u32 8, %s21
        %s266 = smul.u32 128, %s21
        %p267 = scmp.lt.s32.totalorder %s266, 511
        %s268 = scalar_select %p267, %s266, 511
        %p269 = scmp.lt.s32.totalorder %s20, 0
        %s270 = scalar_select %p269, %s20, 0
        %s271 = sadd.s32 %s270, %s268
        %s272 = smul.addr %s271, 4
        %s273 = scalar_lea.vmem %s1, %s272
        %s274 = smul.u32 128, %s21
        %p275 = scmp.lt.s32.totalorder %s20, 0
        %s276 = scalar_select %p275, %s20, 0
        %s277 = scalar_lea.vmem %s2, %s276
        %s278 = smul.u32 2, %s19
        %p279 = scmp.lt.s32.totalorder %s278, 1
        %s280 = scalar_select %p279, %s278, 1
        %p281 = scmp.lt.s32.totalorder %s20, 0
        %s282 = scalar_select %p281, %s20, 0
        %s283 = sadd.s32 %s282, %s280
        %s284 = smul.addr %s283, 8
        %s285 = scalar_lea.vmem %s3, %s284
        %s286 = smul.u32 2, %s19
        %p288 = scmp.eq.s32.totalorder %s21, 0
        // Predicated region
        $region56: #{forward_pallas.21} parent=50 // pred_check
          %p289 = pneg %p288
        $region57: #{forward_pallas.21} parent=50 // pred_check_branch
          %291 = sbr.rel (%p289) target = $region59
        $region58: #{forward_pallas.21} parent=50 // pred_region
          %292 = vst [vmem:[#allocation2] sm:$0xff] 0.0
          %293 = vst [vmem:[#allocation2 + $0x8] sm:$0xff] 0.0
        $region59: #{forward_pallas.21} parent=50 // pred_fallthru
          _
        %v294 = vld [vmem:[#allocation2] sm:$0xff]
        %v295 = vld [vmem:[#allocation2 + $0x8] sm:$0xff]
        %v296 = vld [vmem:[%s229] sm:$0xff]
        %v297 = vld [vmem:[%s229 + $0x8] sm:$0xff]
        %v298 = vld [vmem:[%s229 + $0x10] sm:$0xff]
        %v299 = vld [vmem:[%s229 + $0x18] sm:$0xff]
        %v300 = vld [vmem:[%s229 + $0x20] sm:$0xff]
        %v301 = vld [vmem:[%s229 + $0x28] sm:$0xff]
        %v302 = vld [vmem:[%s229 + $0x30] sm:$0xff]
        %v303 = vld [vmem:[%s229 + $0x38] sm:$0xff]
        %v304 = vld [vmem:[%s273] sm:$0xf]
        %v305 = vld [vmem:[%s273 + $0x4] sm:$0xf]
        %v306 = vld [vmem:[%s273 + $0x8] sm:$0xf]
        %v307 = vld [vmem:[%s273 + $0xc] sm:$0xf]
        %v308 = vld [vmem:[%s273 + $0x10] sm:$0xf]
        %v309 = vld [vmem:[%s273 + $0x14] sm:$0xf]
        %v310 = vld [vmem:[%s273 + $0x18] sm:$0xf]
        %v311 = vld [vmem:[%s273 + $0x1c] sm:$0xf]
        %v312 = vld [vmem:[%s273 + $0x20] sm:$0xf]
        %v313 = vld [vmem:[%s273 + $0x24] sm:$0xf]
        %v314 = vld [vmem:[%s273 + $0x28] sm:$0xf]
        %v315 = vld [vmem:[%s273 + $0x2c] sm:$0xf]
        %v316 = vld [vmem:[%s273 + $0x30] sm:$0xf]
        %v317 = vld [vmem:[%s273 + $0x34] sm:$0xf]
        %v318 = vld [vmem:[%s273 + $0x38] sm:$0xf]
        %v319 = vld [vmem:[%s273 + $0x3c] sm:$0xf]
        %v320 = vld [vmem:[%s273 + $0x40] sm:$0xf]
        %v321 = vld [vmem:[%s273 + $0x44] sm:$0xf]
        %v322 = vld [vmem:[%s273 + $0x48] sm:$0xf]
        %v323 = vld [vmem:[%s273 + $0x4c] sm:$0xf]
        %v324 = vld [vmem:[%s273 + $0x50] sm:$0xf]
        %v325 = vld [vmem:[%s273 + $0x54] sm:$0xf]
        %v326 = vld [vmem:[%s273 + $0x58] sm:$0xf]
        %v327 = vld [vmem:[%s273 + $0x5c] sm:$0xf]
        %v328 = vld [vmem:[%s273 + $0x60] sm:$0xf]
        %v329 = vld [vmem:[%s273 + $0x64] sm:$0xf]
        %v330 = vld [vmem:[%s273 + $0x68] sm:$0xf]
        %v331 = vld [vmem:[%s273 + $0x6c] sm:$0xf]
        %v332 = vld [vmem:[%s273 + $0x70] sm:$0xf]
        %v333 = vld [vmem:[%s273 + $0x74] sm:$0xf]
        %v334 = vld [vmem:[%s273 + $0x78] sm:$0xf]
        %v335 = vld [vmem:[%s273 + $0x7c] sm:$0xf]
        %v336 = vld [vmem:[%s273 + $0x80] sm:$0xf]
        %v337 = vld [vmem:[%s273 + $0x84] sm:$0xf]
        %v338 = vld [vmem:[%s273 + $0x88] sm:$0xf]
        %v339 = vld [vmem:[%s273 + $0x8c] sm:$0xf]
        %v340 = vld [vmem:[%s273 + $0x90] sm:$0xf]
        %v341 = vld [vmem:[%s273 + $0x94] sm:$0xf]
        %v342 = vld [vmem:[%s273 + $0x98] sm:$0xf]
        %v343 = vld [vmem:[%s273 + $0x9c] sm:$0xf]
        %v344 = vld [vmem:[%s273 + $0xa0] sm:$0xf]
        %v345 = vld [vmem:[%s273 + $0xa4] sm:$0xf]
        %v346 = vld [vmem:[%s273 + $0xa8] sm:$0xf]
        %v347 = vld [vmem:[%s273 + $0xac] sm:$0xf]
        %v348 = vld [vmem:[%s273 + $0xb0] sm:$0xf]
        %v349 = vld [vmem:[%s273 + $0xb4] sm:$0xf]
        %v350 = vld [vmem:[%s273 + $0xb8] sm:$0xf]
        %v351 = vld [vmem:[%s273 + $0xbc] sm:$0xf]
        %v352 = vld [vmem:[%s273 + $0xc0] sm:$0xf]
        %v353 = vld [vmem:[%s273 + $0xc4] sm:$0xf]
        %v354 = vld [vmem:[%s273 + $0xc8] sm:$0xf]
        %v355 = vld [vmem:[%s273 + $0xcc] sm:$0xf]
        %v356 = vld [vmem:[%s273 + $0xd0] sm:$0xf]
        %v357 = vld [vmem:[%s273 + $0xd4] sm:$0xf]
        %v358 = vld [vmem:[%s273 + $0xd8] sm:$0xf]
        %v359 = vld [vmem:[%s273 + $0xdc] sm:$0xf]
        %v360 = vld [vmem:[%s273 + $0xe0] sm:$0xf]
        %v361 = vld [vmem:[%s273 + $0xe4] sm:$0xf]
        %v362 = vld [vmem:[%s273 + $0xe8] sm:$0xf]
        %v363 = vld [vmem:[%s273 + $0xec] sm:$0xf]
        %v364 = vld [vmem:[%s273 + $0xf0] sm:$0xf]
        %v365 = vld [vmem:[%s273 + $0xf4] sm:$0xf]
        %v366 = vld [vmem:[%s273 + $0xf8] sm:$0xf]
        %v367 = vld [vmem:[%s273 + $0xfc] sm:$0xf]
        %v368 = vld [vmem:[%s273 + $0x100] sm:$0xf]
        %v369 = vld [vmem:[%s273 + $0x104] sm:$0xf]
        %v370 = vld [vmem:[%s273 + $0x108] sm:$0xf]
        %v371 = vld [vmem:[%s273 + $0x10c] sm:$0xf]
        %v372 = vld [vmem:[%s273 + $0x110] sm:$0xf]
        %v373 = vld [vmem:[%s273 + $0x114] sm:$0xf]
        %v374 = vld [vmem:[%s273 + $0x118] sm:$0xf]
        %v375 = vld [vmem:[%s273 + $0x11c] sm:$0xf]
        %v376 = vld [vmem:[%s273 + $0x120] sm:$0xf]
        %v377 = vld [vmem:[%s273 + $0x124] sm:$0xf]
        %v378 = vld [vmem:[%s273 + $0x128] sm:$0xf]
        %v379 = vld [vmem:[%s273 + $0x12c] sm:$0xf]
        %v380 = vld [vmem:[%s273 + $0x130] sm:$0xf]
        %v381 = vld [vmem:[%s273 + $0x134] sm:$0xf]
        %v382 = vld [vmem:[%s273 + $0x138] sm:$0xf]
        %v383 = vld [vmem:[%s273 + $0x13c] sm:$0xf]
        %v384 = vld [vmem:[%s273 + $0x140] sm:$0xf]
        %v385 = vld [vmem:[%s273 + $0x144] sm:$0xf]
        %v386 = vld [vmem:[%s273 + $0x148] sm:$0xf]
        %v387 = vld [vmem:[%s273 + $0x14c] sm:$0xf]
        %v388 = vld [vmem:[%s273 + $0x150] sm:$0xf]
        %v389 = vld [vmem:[%s273 + $0x154] sm:$0xf]
        %v390 = vld [vmem:[%s273 + $0x158] sm:$0xf]
        %v391 = vld [vmem:[%s273 + $0x15c] sm:$0xf]
        %v392 = vld [vmem:[%s273 + $0x160] sm:$0xf]
        %v393 = vld [vmem:[%s273 + $0x164] sm:$0xf]
        %v394 = vld [vmem:[%s273 + $0x168] sm:$0xf]
        %v395 = vld [vmem:[%s273 + $0x16c] sm:$0xf]
        %v396 = vld [vmem:[%s273 + $0x170] sm:$0xf]
        %v397 = vld [vmem:[%s273 + $0x174] sm:$0xf]
        %v398 = vld [vmem:[%s273 + $0x178] sm:$0xf]
        %v399 = vld [vmem:[%s273 + $0x17c] sm:$0xf]
        %v400 = vld [vmem:[%s273 + $0x180] sm:$0xf]
        %v401 = vld [vmem:[%s273 + $0x184] sm:$0xf]
        %v402 = vld [vmem:[%s273 + $0x188] sm:$0xf]
        %v403 = vld [vmem:[%s273 + $0x18c] sm:$0xf]
        %v404 = vld [vmem:[%s273 + $0x190] sm:$0xf]
        %v405 = vld [vmem:[%s273 + $0x194] sm:$0xf]
        %v406 = vld [vmem:[%s273 + $0x198] sm:$0xf]
        %v407 = vld [vmem:[%s273 + $0x19c] sm:$0xf]
        %v408 = vld [vmem:[%s273 + $0x1a0] sm:$0xf]
        %v409 = vld [vmem:[%s273 + $0x1a4] sm:$0xf]
        %v410 = vld [vmem:[%s273 + $0x1a8] sm:$0xf]
        %v411 = vld [vmem:[%s273 + $0x1ac] sm:$0xf]
        %v412 = vld [vmem:[%s273 + $0x1b0] sm:$0xf]
        %v413 = vld [vmem:[%s273 + $0x1b4] sm:$0xf]
        %v414 = vld [vmem:[%s273 + $0x1b8] sm:$0xf]
        %v415 = vld [vmem:[%s273 + $0x1bc] sm:$0xf]
        %v416 = vld [vmem:[%s273 + $0x1c0] sm:$0xf]
        %v417 = vld [vmem:[%s273 + $0x1c4] sm:$0xf]
        %v418 = vld [vmem:[%s273 + $0x1c8] sm:$0xf]
        %v419 = vld [vmem:[%s273 + $0x1cc] sm:$0xf]
        %v420 = vld [vmem:[%s273 + $0x1d0] sm:$0xf]
        %v421 = vld [vmem:[%s273 + $0x1d4] sm:$0xf]
        %v422 = vld [vmem:[%s273 + $0x1d8] sm:$0xf]
        %v423 = vld [vmem:[%s273 + $0x1dc] sm:$0xf]
        %v424 = vld [vmem:[%s273 + $0x1e0] sm:$0xf]
        %v425 = vld [vmem:[%s273 + $0x1e4] sm:$0xf]
        %v426 = vld [vmem:[%s273 + $0x1e8] sm:$0xf]
        %v427 = vld [vmem:[%s273 + $0x1ec] sm:$0xf]
        %v428 = vld [vmem:[%s273 + $0x1f0] sm:$0xf]
        %v429 = vld [vmem:[%s273 + $0x1f4] sm:$0xf]
        %v430 = vld [vmem:[%s273 + $0x1f8] sm:$0xf]
        %v431 = vld [vmem:[%s273 + $0x1fc] sm:$0xf]
        %v440 = vunpack.c.l.b16 %v296
        %v441 = vunpack.c.h.b16 %v296
        %v442 = vunpack.c.l.b16 %v297
        %v443 = vunpack.c.h.b16 %v297
        %v444 = vunpack.c.l.b16 %v298
        %v445 = vunpack.c.h.b16 %v298
        %v446 = vunpack.c.l.b16 %v299
        %v447 = vunpack.c.h.b16 %v299
        %v448 = vunpack.c.l.b16 %v300
        %v449 = vunpack.c.h.b16 %v300
        %v450 = vunpack.c.l.b16 %v301
        %v451 = vunpack.c.h.b16 %v301
        %v452 = vunpack.c.l.b16 %v302
        %v453 = vunpack.c.h.b16 %v302
        %v454 = vunpack.c.l.b16 %v303
        %v455 = vunpack.c.h.b16 %v303
        %v456 = vpack.c.b16 %v448, %v440
        %v457 = vpack.c.b16 %v449, %v441
        %v458 = vpack.c.b16 %v450, %v442
        %v459 = vpack.c.b16 %v451, %v443
        %v460 = vpack.c.b16 %v452, %v444
        %v461 = vpack.c.b16 %v453, %v445
        %v462 = vpack.c.b16 %v454, %v446
        %v463 = vpack.c.b16 %v455, %v447
        %v600 = vunpack.c.l.b16 %v304
        %v601 = vunpack.c.l.b16 %v305
        %v602 = vunpack.c.l.b16 %v306
        %v603 = vunpack.c.l.b16 %v307
        %v604 = vunpack.c.l.b16 %v308
        %v605 = vunpack.c.l.b16 %v309
        %v606 = vunpack.c.l.b16 %v310
        %v607 = vunpack.c.l.b16 %v311
        %v608 = vunpack.c.l.b16 %v312
        %v609 = vunpack.c.l.b16 %v313
        %v610 = vunpack.c.l.b16 %v314
        %v611 = vunpack.c.l.b16 %v315
        %v612 = vunpack.c.l.b16 %v316
        %v613 = vunpack.c.l.b16 %v317
        %v614 = vunpack.c.l.b16 %v318
        %v615 = vunpack.c.l.b16 %v319
        %v616 = vunpack.c.l.b16 %v320
        %v617 = vunpack.c.l.b16 %v321
        %v618 = vunpack.c.l.b16 %v322
        %v619 = vunpack.c.l.b16 %v323
        %v620 = vunpack.c.l.b16 %v324
        %v621 = vunpack.c.l.b16 %v325
        %v622 = vunpack.c.l.b16 %v326
        %v623 = vunpack.c.l.b16 %v327
        %v624 = vunpack.c.l.b16 %v328
        %v625 = vunpack.c.l.b16 %v329
        %v626 = vunpack.c.l.b16 %v330
        %v627 = vunpack.c.l.b16 %v331
        %v628 = vunpack.c.l.b16 %v332
        %v629 = vunpack.c.l.b16 %v333
        %v630 = vunpack.c.l.b16 %v334
        %v631 = vunpack.c.l.b16 %v335
        %v632 = vunpack.c.l.b16 %v336
        %v633 = vunpack.c.l.b16 %v337
        %v634 = vunpack.c.l.b16 %v338
        %v635 = vunpack.c.l.b16 %v339
        %v636 = vunpack.c.l.b16 %v340
        %v637 = vunpack.c.l.b16 %v341
        %v638 = vunpack.c.l.b16 %v342
        %v639 = vunpack.c.l.b16 %v343
        %v640 = vunpack.c.l.b16 %v344
        %v641 = vunpack.c.l.b16 %v345
        %v642 = vunpack.c.l.b16 %v346
        %v643 = vunpack.c.l.b16 %v347
        %v644 = vunpack.c.l.b16 %v348
        %v645 = vunpack.c.l.b16 %v349
        %v646 = vunpack.c.l.b16 %v350
        %v647 = vunpack.c.l.b16 %v351
        %v648 = vunpack.c.l.b16 %v352
        %v649 = vunpack.c.l.b16 %v353
        %v650 = vunpack.c.l.b16 %v354
        %v651 = vunpack.c.l.b16 %v355
        %v652 = vunpack.c.l.b16 %v356
        %v653 = vunpack.c.l.b16 %v357
        %v654 = vunpack.c.l.b16 %v358
        %v655 = vunpack.c.l.b16 %v359
        %v656 = vunpack.c.l.b16 %v360
        %v657 = vunpack.c.l.b16 %v361
        %v658 = vunpack.c.l.b16 %v362
        %v659 = vunpack.c.l.b16 %v363
        %v660 = vunpack.c.l.b16 %v364
        %v661 = vunpack.c.l.b16 %v365
        %v662 = vunpack.c.l.b16 %v366
        %v663 = vunpack.c.l.b16 %v367
        %v664 = vunpack.c.l.b16 %v368
        %v665 = vunpack.c.l.b16 %v369
        %v666 = vunpack.c.l.b16 %v370
        %v667 = vunpack.c.l.b16 %v371
        %v668 = vunpack.c.l.b16 %v372
        %v669 = vunpack.c.l.b16 %v373
        %v670 = vunpack.c.l.b16 %v374
        %v671 = vunpack.c.l.b16 %v375
        %v672 = vunpack.c.l.b16 %v376
        %v673 = vunpack.c.l.b16 %v377
        %v674 = vunpack.c.l.b16 %v378
        %v675 = vunpack.c.l.b16 %v379
        %v676 = vunpack.c.l.b16 %v380
        %v677 = vunpack.c.l.b16 %v381
        %v678 = vunpack.c.l.b16 %v382
        %v679 = vunpack.c.l.b16 %v383
        %v680 = vunpack.c.l.b16 %v384
        %v681 = vunpack.c.l.b16 %v385
        %v682 = vunpack.c.l.b16 %v386
        %v683 = vunpack.c.l.b16 %v387
        %v684 = vunpack.c.l.b16 %v388
        %v685 = vunpack.c.l.b16 %v389
        %v686 = vunpack.c.l.b16 %v390
        %v687 = vunpack.c.l.b16 %v391
        %v688 = vunpack.c.l.b16 %v392
        %v689 = vunpack.c.l.b16 %v393
        %v690 = vunpack.c.l.b16 %v394
        %v691 = vunpack.c.l.b16 %v395
        %v692 = vunpack.c.l.b16 %v396
        %v693 = vunpack.c.l.b16 %v397
        %v694 = vunpack.c.l.b16 %v398
        %v695 = vunpack.c.l.b16 %v399
        %v696 = vunpack.c.l.b16 %v400
        %v697 = vunpack.c.l.b16 %v401
        %v698 = vunpack.c.l.b16 %v402
        %v699 = vunpack.c.l.b16 %v403
        %v700 = vunpack.c.l.b16 %v404
        %v701 = vunpack.c.l.b16 %v405
        %v702 = vunpack.c.l.b16 %v406
        %v703 = vunpack.c.l.b16 %v407
        %v704 = vunpack.c.l.b16 %v408
        %v705 = vunpack.c.l.b16 %v409
        %v706 = vunpack.c.l.b16 %v410
        %v707 = vunpack.c.l.b16 %v411
        %v708 = vunpack.c.l.b16 %v412
        %v709 = vunpack.c.l.b16 %v413
        %v710 = vunpack.c.l.b16 %v414
        %v711 = vunpack.c.l.b16 %v415
        %v712 = vunpack.c.l.b16 %v416
        %v713 = vunpack.c.l.b16 %v417
        %v714 = vunpack.c.l.b16 %v418
        %v715 = vunpack.c.l.b16 %v419
        %v716 = vunpack.c.l.b16 %v420
        %v717 = vunpack.c.l.b16 %v421
        %v718 = vunpack.c.l.b16 %v422
        %v719 = vunpack.c.l.b16 %v423
        %v720 = vunpack.c.l.b16 %v424
        %v721 = vunpack.c.l.b16 %v425
        %v722 = vunpack.c.l.b16 %v426
        %v723 = vunpack.c.l.b16 %v427
        %v724 = vunpack.c.l.b16 %v428
        %v725 = vunpack.c.l.b16 %v429
        %v726 = vunpack.c.l.b16 %v430
        %v727 = vunpack.c.l.b16 %v431
        %v728 = vpack.c.b16 %v601, %v600
        %v729 = vpack.c.b16 %v603, %v602
        %v730 = vpack.c.b16 %v605, %v604
        %v731 = vpack.c.b16 %v607, %v606
        %v732 = vpack.c.b16 %v609, %v608
        %v733 = vpack.c.b16 %v611, %v610
        %v734 = vpack.c.b16 %v613, %v612
        %v735 = vpack.c.b16 %v615, %v614
        %v736 = vpack.c.b16 %v617, %v616
        %v737 = vpack.c.b16 %v619, %v618
        %v738 = vpack.c.b16 %v621, %v620
        %v739 = vpack.c.b16 %v623, %v622
        %v740 = vpack.c.b16 %v625, %v624
        %v741 = vpack.c.b16 %v627, %v626
        %v742 = vpack.c.b16 %v629, %v628
        %v743 = vpack.c.b16 %v631, %v630
        %v744 = vpack.c.b16 %v633, %v632
        %v745 = vpack.c.b16 %v635, %v634
        %v746 = vpack.c.b16 %v637, %v636
        %v747 = vpack.c.b16 %v639, %v638
        %v748 = vpack.c.b16 %v641, %v640
        %v749 = vpack.c.b16 %v643, %v642
        %v750 = vpack.c.b16 %v645, %v644
        %v751 = vpack.c.b16 %v647, %v646
        %v752 = vpack.c.b16 %v649, %v648
        %v753 = vpack.c.b16 %v651, %v650
        %v754 = vpack.c.b16 %v653, %v652
        %v755 = vpack.c.b16 %v655, %v654
        %v756 = vpack.c.b16 %v657, %v656
        %v757 = vpack.c.b16 %v659, %v658
        %v758 = vpack.c.b16 %v661, %v660
        %v759 = vpack.c.b16 %v663, %v662
        %v760 = vpack.c.b16 %v665, %v664
        %v761 = vpack.c.b16 %v667, %v666
        %v762 = vpack.c.b16 %v669, %v668
        %v763 = vpack.c.b16 %v671, %v670
        %v764 = vpack.c.b16 %v673, %v672
        %v765 = vpack.c.b16 %v675, %v674
        %v766 = vpack.c.b16 %v677, %v676
        %v767 = vpack.c.b16 %v679, %v678
        %v768 = vpack.c.b16 %v681, %v680
        %v769 = vpack.c.b16 %v683, %v682
        %v770 = vpack.c.b16 %v685, %v684
        %v771 = vpack.c.b16 %v687, %v686
        %v772 = vpack.c.b16 %v689, %v688
        %v773 = vpack.c.b16 %v691, %v690
        %v774 = vpack.c.b16 %v693, %v692
        %v775 = vpack.c.b16 %v695, %v694
        %v776 = vpack.c.b16 %v697, %v696
        %v777 = vpack.c.b16 %v699, %v698
        %v778 = vpack.c.b16 %v701, %v700
        %v779 = vpack.c.b16 %v703, %v702
        %v780 = vpack.c.b16 %v705, %v704
        %v781 = vpack.c.b16 %v707, %v706
        %v782 = vpack.c.b16 %v709, %v708
        %v783 = vpack.c.b16 %v711, %v710
        %v784 = vpack.c.b16 %v713, %v712
        %v785 = vpack.c.b16 %v715, %v714
        %v786 = vpack.c.b16 %v717, %v716
        %v787 = vpack.c.b16 %v719, %v718
        %v788 = vpack.c.b16 %v721, %v720
        %v789 = vpack.c.b16 %v723, %v722
        %v790 = vpack.c.b16 %v725, %v724
        %v791 = vpack.c.b16 %v727, %v726
        %856 = vmatprep.subr.bf16.mxu0 0
        %857 = vmatpush1.bf16.msra.mxu0 %v728
        %858 = vmatprep.subr.bf16.mxu0 0
        %859 = vmatpush1.bf16.msra.mxu0 %v729
        %860 = vmatprep.subr.bf16.mxu0 0
        %861 = vmatpush1.bf16.msra.mxu0 %v730
        %862 = vmatprep.subr.bf16.mxu0 0
        %863 = vmatpush1.bf16.msra.mxu0 %v731
        %864 = vmatprep.subr.bf16.mxu0 0
        %865 = vmatpush1.bf16.msra.mxu0 %v732
        %866 = vmatprep.subr.bf16.mxu0 0
        %867 = vmatpush1.bf16.msra.mxu0 %v733
        %868 = vmatprep.subr.bf16.mxu0 0
        %869 = vmatpush1.bf16.msra.mxu0 %v734
        %870 = vmatprep.subr.bf16.mxu0 0
        %871 = vmatpush1.bf16.msra.mxu0 %v735
        %872 = vmatprep.subr.bf16.mxu0 0
        %873 = vmatpush1.bf16.msra.mxu0 %v736
        %874 = vmatprep.subr.bf16.mxu0 0
        %875 = vmatpush1.bf16.msra.mxu0 %v737
        %876 = vmatprep.subr.bf16.mxu0 0
        %877 = vmatpush1.bf16.msra.mxu0 %v738
        %878 = vmatprep.subr.bf16.mxu0 0
        %879 = vmatpush1.bf16.msra.mxu0 %v739
        %880 = vmatprep.subr.bf16.mxu0 0
        %881 = vmatpush1.bf16.msra.mxu0 %v740
        %882 = vmatprep.subr.bf16.mxu0 0
        %883 = vmatpush1.bf16.msra.mxu0 %v741
        %884 = vmatprep.subr.bf16.mxu0 0
        %885 = vmatpush1.bf16.msra.mxu0 %v742
        %886 = vmatprep.subr.bf16.mxu0 0
        %887 = vmatpush1.bf16.msra.mxu0 %v743
        %888 = vmatprep.mubr.bf16.mxu0 %v457
        %889 = vmatmul.mubr.bf16.gmra.mrb[0].mxu0 %v456
        %v890 = vpop.f32.mrb[0].mxu0
        %v891 = vadd.f32 0.0, %v890
        %v892 = vpop.f32.mrb[0].mxu0
        %v893 = vpop.f32.mrb[0].mxu0
        %v894 = vadd.f32 0.0, %v893
        %v895 = vpop.f32.mrb[0].mxu0
        %896 = vdwg.mxu0
        %897 = vmatprep.subr.bf16.mxu0 0
        %898 = vmatpush1.bf16.msra.mxu0 %v744
        %899 = vmatprep.subr.bf16.mxu0 0
        %900 = vmatpush1.bf16.msra.mxu0 %v745
        %901 = vmatprep.subr.bf16.mxu0 0
        %902 = vmatpush1.bf16.msra.mxu0 %v746
        %903 = vmatprep.subr.bf16.mxu0 0
        %904 = vmatpush1.bf16.msra.mxu0 %v747
        %905 = vmatprep.subr.bf16.mxu0 0
        %906 = vmatpush1.bf16.msra.mxu0 %v748
        %907 = vmatprep.subr.bf16.mxu0 0
        %908 = vmatpush1.bf16.msra.mxu0 %v749
        %909 = vmatprep.subr.bf16.mxu0 0
        %910 = vmatpush1.bf16.msra.mxu0 %v750
        %911 = vmatprep.subr.bf16.mxu0 0
        %912 = vmatpush1.bf16.msra.mxu0 %v751
        %913 = vmatprep.subr.bf16.mxu0 0
        %914 = vmatpush1.bf16.msra.mxu0 %v752
        %915 = vmatprep.subr.bf16.mxu0 0
        %916 = vmatpush1.bf16.msra.mxu0 %v753
        %917 = vmatprep.subr.bf16.mxu0 0
        %918 = vmatpush1.bf16.msra.mxu0 %v754
        %919 = vmatprep.subr.bf16.mxu0 0
        %920 = vmatpush1.bf16.msra.mxu0 %v755
        %921 = vmatprep.subr.bf16.mxu0 0
        %922 = vmatpush1.bf16.msra.mxu0 %v756
        %923 = vmatprep.subr.bf16.mxu0 0
        %924 = vmatpush1.bf16.msra.mxu0 %v757
        %925 = vmatprep.subr.bf16.mxu0 0
        %926 = vmatpush1.bf16.msra.mxu0 %v758
        %927 = vmatprep.subr.bf16.mxu0 0
        %928 = vmatpush1.bf16.msra.mxu0 %v759
        %929 = vmatprep.mubr.bf16.mxu0 %v459
        %930 = vmatmul.mubr.bf16.gmra.mrb[0].mxu0 %v458
        %v931 = vpop.f32.mrb[0].mxu0
        %v932 = vadd.f32 %v891, %v931
        %v933 = vpop.f32.mrb[0].mxu0
        %v934 = vpop.f32.mrb[0].mxu0
        %v935 = vadd.f32 %v894, %v934
        %v936 = vpop.f32.mrb[0].mxu0
        %937 = vdwg.mxu0
        %938 = vmatprep.subr.bf16.mxu0 0
        %939 = vmatpush1.bf16.msra.mxu0 %v760
        %940 = vmatprep.subr.bf16.mxu0 0
        %941 = vmatpush1.bf16.msra.mxu0 %v761
        %942 = vmatprep.subr.bf16.mxu0 0
        %943 = vmatpush1.bf16.msra.mxu0 %v762
        %944 = vmatprep.subr.bf16.mxu0 0
        %945 = vmatpush1.bf16.msra.mxu0 %v763
        %946 = vmatprep.subr.bf16.mxu0 0
        %947 = vmatpush1.bf16.msra.mxu0 %v764
        %948 = vmatprep.subr.bf16.mxu0 0
        %949 = vmatpush1.bf16.msra.mxu0 %v765
        %950 = vmatprep.subr.bf16.mxu0 0
        %951 = vmatpush1.bf16.msra.mxu0 %v766
        %952 = vmatprep.subr.bf16.mxu0 0
        %953 = vmatpush1.bf16.msra.mxu0 %v767
        %954 = vmatprep.subr.bf16.mxu0 0
        %955 = vmatpush1.bf16.msra.mxu0 %v768
        %956 = vmatprep.subr.bf16.mxu0 0
        %957 = vmatpush1.bf16.msra.mxu0 %v769
        %958 = vmatprep.subr.bf16.mxu0 0
        %959 = vmatpush1.bf16.msra.mxu0 %v770
        %960 = vmatprep.subr.bf16.mxu0 0
        %961 = vmatpush1.bf16.msra.mxu0 %v771
        %962 = vmatprep.subr.bf16.mxu0 0
        %963 = vmatpush1.bf16.msra.mxu0 %v772
        %964 = vmatprep.subr.bf16.mxu0 0
        %965 = vmatpush1.bf16.msra.mxu0 %v773
        %966 = vmatprep.subr.bf16.mxu0 0
        %967 = vmatpush1.bf16.msra.mxu0 %v774
        %968 = vmatprep.subr.bf16.mxu0 0
        %969 = vmatpush1.bf16.msra.mxu0 %v775
        %970 = vmatprep.mubr.bf16.mxu0 %v461
        %971 = vmatmul.mubr.bf16.gmra.mrb[0].mxu0 %v460
        %v972 = vpop.f32.mrb[0].mxu0
        %v973 = vadd.f32 %v932, %v972
        %v974 = vpop.f32.mrb[0].mxu0
        %v975 = vpop.f32.mrb[0].mxu0
        %v976 = vadd.f32 %v935, %v975
        %v977 = vpop.f32.mrb[0].mxu0
        %978 = vdwg.mxu0
        %979 = vmatprep.subr.bf16.mxu0 0
        %980 = vmatpush1.bf16.msra.mxu0 %v776
        %981 = vmatprep.subr.bf16.mxu0 0
        %982 = vmatpush1.bf16.msra.mxu0 %v777
        %983 = vmatprep.subr.bf16.mxu0 0
        %984 = vmatpush1.bf16.msra.mxu0 %v778
        %985 = vmatprep.subr.bf16.mxu0 0
        %986 = vmatpush1.bf16.msra.mxu0 %v779
        %987 = vmatprep.subr.bf16.mxu0 0
        %988 = vmatpush1.bf16.msra.mxu0 %v780
        %989 = vmatprep.subr.bf16.mxu0 0
        %990 = vmatpush1.bf16.msra.mxu0 %v781
        %991 = vmatprep.subr.bf16.mxu0 0
        %992 = vmatpush1.bf16.msra.mxu0 %v782
        %993 = vmatprep.subr.bf16.mxu0 0
        %994 = vmatpush1.bf16.msra.mxu0 %v783
        %995 = vmatprep.subr.bf16.mxu0 0
        %996 = vmatpush1.bf16.msra.mxu0 %v784
        %997 = vmatprep.subr.bf16.mxu0 0
        %998 = vmatpush1.bf16.msra.mxu0 %v785
        %999 = vmatprep.subr.bf16.mxu0 0
        %1000 = vmatpush1.bf16.msra.mxu0 %v786
        %1001 = vmatprep.subr.bf16.mxu0 0
        %1002 = vmatpush1.bf16.msra.mxu0 %v787
        %1003 = vmatprep.subr.bf16.mxu0 0
        %1004 = vmatpush1.bf16.msra.mxu0 %v788
        %1005 = vmatprep.subr.bf16.mxu0 0
        %1006 = vmatpush1.bf16.msra.mxu0 %v789
        %1007 = vmatprep.subr.bf16.mxu0 0
        %1008 = vmatpush1.bf16.msra.mxu0 %v790
        %1009 = vmatprep.subr.bf16.mxu0 0
        %1010 = vmatpush1.bf16.msra.mxu0 %v791
        %1011 = vmatprep.mubr.bf16.mxu0 %v463
        %1012 = vmatmul.mubr.bf16.gmra.mrb[0].mxu0 %v462
        %v1013 = vpop.f32.mrb[0].mxu0
        %v1014 = vadd.f32 %v973, %v1013
        %v1015 = vpop.f32.mrb[0].mxu0
        %v1016 = vpop.f32.mrb[0].mxu0
        %v1017 = vadd.f32 %v976, %v1016
        %v1018 = vpop.f32.mrb[0].mxu0
        %1019 = vdwg.mxu0
        %v1020 = vadd.f32 %v294, %v1014
        %v1021 = vadd.f32 %v295, %v1017
        %1022 = vst [vmem:[#allocation2] sm:$0xff] %v1020
        %1023 = vst [vmem:[#allocation2 + $0x8] sm:$0xff] %v1021
        %p1024 = scmp.eq.s32.totalorder %s21, 3
        // Predicated region
        $region60: #{forward_pallas.21} parent=50 // pred_check
          %p1025 = pneg %p1024
        $region61: #{forward_pallas.21} parent=50 // pred_check_branch
          %1027 = sbr.rel (%p1025) target = $region63
        $region62: #{forward_pallas.21} parent=50 // pred_region
          %v1028 = vld [vmem:[#allocation2] sm:$0xff]
          %v1029 = vld [vmem:[#allocation2 + $0x8] sm:$0xff]
          %v1030 = vld [vmem:[%s277] sm:$0x1]
          %v1032 = vlaneseq
          %v1033 = vshrl.u32 %v1032, 7
          %v1034 = vsub.s32 0, %v1033
          %v1035 = vrot.slane %v1030, %v1034
          %v1037 = vadd.f32 %v1028, %v1035
          %v1038 = vadd.f32 %v1029, %v1035
          %1039 = vst [vmem:[%s285] sm:$0xff] %v1037
          %1040 = vst [vmem:[%s285 + $0x8] sm:$0xff] %v1038
        $region63: #{forward_pallas.21} parent=50 // pred_fallthru
          _
        %s1041 = smul.u32 2, %s19
        %p1042 = scmp.lt.s32.totalorder %s1041, 1
        %s1043 = scalar_select %p1042, %s1041, 1
        %p1044 = scmp.lt.s32.totalorder %s20, 0
        %s1045 = scalar_select %p1044, %s20, 0
        %s1046 = sadd.s32 %s1045, %s1043
        %s1047 = smul.addr %s1046, 8
        %s1048 = scalar_lea.vmem %s3, %s1047
        // Predicated region
        $region64: #{forward_pallas.21} parent=50 // pred_check
          %p1049 = pneg %p135
        $region65: #{forward_pallas.21} parent=50 // pred_check_branch
          %1051 = sbr.rel (%p1049) target = $region67
        $region66: #{forward_pallas.21} parent=50 // pred_region
          %s1052 = smul.u32 2, %s19
        $region67: #{forward_pallas.21} parent=50 // pred_fallthru
          _
        // Predicated region
        $region68: #{forward_pallas.21} parent=50 // pred_check
          %p1053 = pneg %p135
        $region69: #{forward_pallas.21} parent=50 // pred_check_branch
          %1055 = sbr.rel (%p1053) target = $region71
        $region70: #{forward_pallas.21} parent=50 // pred_region
          %s1056 = smul.u32 2, %s19
          %p1057 = scmp.lt.s32.totalorder %s1056, 1
          %s1058 = scalar_select %p1057, %s1056, 1
          %p1059 = scmp.lt.s32.totalorder %s20, 0
          %s1060 = scalar_select %p1059, %s20, 0
          %s1061 = sadd.s32 %s1060, %s1058
          %s1062 = smul.addr %s1061, 8
          %s1063 = scalar_lea.vmem %s3, %s1062
        $region71: #{forward_pallas.21} parent=50 // pred_fallthru
          _
      $region51: #{forward_pallas.21} parent=5 // pred_fallthru
        _
      %p1064 = scmp.le.s32.totalorder 2, %s9
      // Predicated region
      $region72: #{forward_pallas.21} parent=5 // pred_check
        %p1065 = pneg %p1064
      $region73: #{forward_pallas.21} parent=5 // pred_check_branch
        %1067 = sbr.rel (%p1065) target = $region75
      $region74: #{forward_pallas.21} parent=5 // pred_region
        %s1068 = ssub.s32 %s9, 2
      $region75: #{forward_pallas.21} parent=5 // pred_fallthru
        _
    $region6: #{forward_pallas.21} parent=1 // loop_footer
      %s13 = sadd.s32 1, %s9
    $region7: #{forward_pallas.21} parent=1 // loop_footer_branch
      %8 = sbr.rel target = $region3
    $region8: #{forward_pallas.21} parent=1 // loop_exit
      _

</llo_original>
